<compile_context>
chip_gen: v6e
topology: v6e:2x2x1
jax: 0.10.0
libtpu: 0.0.40
codegen_flags: <defaults>
</compile_context>

<pallas_src>
import functools

import jax
import jax.numpy as jnp
from jax.experimental import pallas as pl
from jax.experimental.pallas import tpu as pltpu

BN_EPS = 1e-5
NEG_SLOPE = 0.2
VMEM_LIMIT_BYTES = 32 * 1024 * 1024


# --------------------------------------------------------------------------- #
# Kernels
# --------------------------------------------------------------------------- #
def _conv_image(xf_ref, w_ref, *, hw2, wp2):
    """3x3 same-padded conv of one image as 9 shifted matmuls on the flat plane.

    xf_ref: (1, Cin, Lp)   zero-padded plane flattened row-major, Lp=(H+2)*(W+2)+2
    w_ref : (9, Cout, Cin) taps, k = dy*3 + dx
    returns (Cout, hw2) float32 with hw2 = H*(W+2); the last 2 columns of every
    row are wrap-around junk, masked / sliced away by the caller.
    """
    x = xf_ref[0]                                        # (Cin, Lp)
    cout = w_ref.shape[1]
    acc = jnp.zeros((cout, hw2), jnp.float32)
    for k in range(9):                                   # unrolled, static offsets
        off = (k // 3) * wp2 + (k % 3)
        xs = x[:, off:off + hw2]                         # (Cin, hw2) lane-offset slice
        acc = acc + jnp.dot(w_ref[k], xs, preferred_element_type=jnp.float32)
    return acc


def _conv_stats_kernel(xf_ref, w_ref, mask_ref, sum_ref, sumsq_ref, *, hw2, wp2):
    """Pass 1: accumulate global per-channel sum / sumsq of the conv output."""
    @pl.when(pl.program_id(0) == 0)
    def _init():
        sum_ref[...] = jnp.zeros_like(sum_ref)
        sumsq_ref[...] = jnp.zeros_like(sumsq_ref)

    y = _conv_image(xf_ref, w_ref, hw2=hw2, wp2=wp2)     # (Cout, hw2) f32
    ym = y * mask_ref[...]                               # zero the junk columns
    sum_ref[...] += jnp.sum(ym, axis=1, keepdims=True)   # (Cout, 1)
    sumsq_ref[...] += jnp.sum(ym * y, axis=1, keepdims=True)


def _conv_norm_kernel(xf_ref, w_ref, scale_ref, shift_ref, o_ref, *, hw2, wp2):
    """Pass 2: recompute conv, apply folded BN affine + LeakyReLU, lane-dense store."""
    y = _conv_image(xf_ref, w_ref, hw2=hw2, wp2=wp2)     # (Cout, hw2) f32
    yn = y * scale_ref[...] + shift_ref[...]             # (Cout,1) broadcast over lanes
    o_ref[0] = jnp.where(yn >= 0, yn, NEG_SLOPE * yn).astype(o_ref.dtype)


# --------------------------------------------------------------------------- #
# Wrapper (layout plumbing only: pad / flatten / final junk-column slice)
# --------------------------------------------------------------------------- #
def _flat_pad_nchw(x):
    """(N, C, H, W) -> (N, C, (H+2)*(W+2)+2): spatial zero-pad by 1, flatten the
    padded plane row-major, append 2 zeros so every shifted tap slice is in bounds."""
    n, c, h, w = x.shape
    xp = jnp.pad(x, ((0, 0), (0, 0), (1, 1), (1, 1)))
    flat = xp.reshape(n, c, (h + 2) * (w + 2))
    return jnp.pad(flat, ((0, 0), (0, 0), (0, 2)))


def _conv_bn_lrelu_stage(x, weight, gamma, beta, *, compute_dtype=jnp.float32):
    """One Conv2d(3x3, pad=1, bias=False) -> BatchNorm2d(train) -> LeakyReLU(0.2)."""
    n, cin, h, w = x.shape
    cout = weight.shape[0]
    assert weight.shape == (cout, cin, 3, 3)
    wp2 = w + 2
    hw2 = h * wp2
    lp = (h + 2) * wp2 + 2

    xf = _flat_pad_nchw(x).astype(compute_dtype)                     # (N, Cin, Lp)
    wk = (jnp.transpose(weight, (2, 3, 0, 1))                        # tiny tensor
          .reshape(9, cout, cin).astype(compute_dtype))              # (9, Cout, Cin)
    col = jnp.arange(hw2, dtype=jnp.int32) % wp2
    mask = (col < w).astype(jnp.float32).reshape(1, hw2)             # valid-column mask

    stats_kernel = functools.partial(_conv_stats_kernel, hw2=hw2, wp2=wp2)
    norm_kernel = functools.partial(_conv_norm_kernel, hw2=hw2, wp2=wp2)

    # ---- pass 1: global per-channel statistics (grid over images, accumulated) ----
    sums, sumsqs = pl.pallas_call(
        stats_kernel,
        grid=(n,),
        in_specs=[
            pl.BlockSpec((1, cin, lp), lambda i: (i, 0, 0)),
            pl.BlockSpec((9, cout, cin), lambda i: (0, 0, 0)),       # resident weights
            pl.BlockSpec((1, hw2), lambda i: (0, 0)),                # resident mask
        ],
        out_specs=(
            pl.BlockSpec((cout, 1), lambda i: (0, 0)),               # resident accumulators
            pl.BlockSpec((cout, 1), lambda i: (0, 0)),
        ),
        out_shape=(
            jax.ShapeDtypeStruct((cout, 1), jnp.float32),
            jax.ShapeDtypeStruct((cout, 1), jnp.float32),
        ),
        compiler_params=pltpu.CompilerParams(
            dimension_semantics=("arbitrary",),                      # reduction over images
            vmem_limit_bytes=VMEM_LIMIT_BYTES),
    )(xf, wk, mask)

    # Fold training-mode BatchNorm into per-channel scale/shift (tiny wrapper math).
    count = float(n * h * w)
    mean = sums[:, 0] / count
    var = sumsqs[:, 0] / count - mean * mean
    var = jnp.maximum(var, 0.0)                                      # guard fp cancellation
    inv = jax.lax.rsqrt(var + BN_EPS)
    g = gamma.astype(jnp.float32)
    b = beta.astype(jnp.float32)
    scale = (g * inv).reshape(cout, 1)
    shift = (b - mean * g * inv).reshape(cout, 1)

    # ---- pass 2: recompute conv, normalize + LeakyReLU, lane-dense output ----
    y_ext = pl.pallas_call(
        norm_kernel,
        grid=(n,),
        in_specs=[
            pl.BlockSpec((1, cin, lp), lambda i: (i, 0, 0)),
            pl.BlockSpec((9, cout, cin), lambda i: (0, 0, 0)),
            pl.BlockSpec((cout, 1), lambda i: (0, 0)),
            pl.BlockSpec((cout, 1), lambda i: (0, 0)),
        ],
        out_specs=pl.BlockSpec((1, cout, hw2), lambda i: (i, 0, 0)),
        out_shape=jax.ShapeDtypeStruct((n, cout, hw2), jnp.float32),
        compiler_params=pltpu.CompilerParams(
            dimension_semantics=("parallel",),                       # images independent
            vmem_limit_bytes=VMEM_LIMIT_BYTES),
    )(xf, wk, scale, shift)

    # (N, Cout, H*(W+2)) -> (N, Cout, H, W): drop the 2 junk columns of each row.
    return y_ext.reshape(n, cout, h, wp2)[:, :, :, :w]


def _dropout2d(x, drop_prob, key):
    """Train-mode nn.Dropout2d: zero whole (sample, channel) planes w.p. drop_prob."""
    # TODO(synk): applied wrapper-side; could be fused into the normalize kernel via
    # pltpu.prng_seed / prng_random_bits if a fused train-mode dropout path is needed.
    if drop_prob <= 0.0 or key is None:
        return x
    keep = jax.random.bernoulli(key, 1.0 - drop_prob, x.shape[:2]).astype(x.dtype)
    return x * keep[:, :, None, None] / (1.0 - drop_prob)


def conv_block(x, w1, g1, b1, w2, g2, b2, *, drop_prob=0.0, rng_key=None,
               compute_dtype=jnp.float32):
    """ConvBlock forward: [Conv3x3 -> BN(train) -> LeakyReLU(0.2) -> Dropout2d] x 2.

    x: (N, Cin, H, W) NCHW; w1: (Cout, Cin, 3, 3); w2: (Cout, Cout, 3, 3);
    g*/b*: (Cout,).  Set compute_dtype=jnp.bfloat16 to feed the MXU in bf16 with
    f32 accumulation (v6e/v7x); default float32 for exact reference parity.
    """
    k1 = k2 = None
    if rng_key is not None:
        k1, k2 = jax.random.split(rng_key)
    h1 = _conv_bn_lrelu_stage(x, w1, g1, b1, compute_dtype=compute_dtype)
    h1 = _dropout2d(h1, drop_prob, k1)
    h2 = _conv_bn_lrelu_stage(h1, w2, g2, b2, compute_dtype=compute_dtype)
    h2 = _dropout2d(h2, drop_prob, k2)
    return h2


# --------------------------------------------------------------------------- #
# Pure-JAX reference (for the correctness check)
# --------------------------------------------------------------------------- #
def _reference(x, w1, g1, b1, w2, g2, b2):
    def stage(v, w, g, b):
        n, c, h, wd = v.shape
        cout = w.shape[0]
        vp = jnp.pad(v, ((0, 0), (0, 0), (1, 1), (1, 1)))
        y = jnp.zeros((n, cout, h, wd), jnp.float32)
        for dy in range(3):
            for dx in range(3):
                y = y + jnp.einsum("oc,nchw->nohw", w[:, :, dy, dx],
                                   vp[:, :, dy:dy + h, dx:dx + wd])
        mean = jnp.mean(y, axis=(0, 2, 3), keepdims=True)
        var = jnp.mean((y - mean) ** 2, axis=(0, 2, 3), keepdims=True)
        yn = (y - mean) * jax.lax.rsqrt(var + BN_EPS)
        yn = yn * g.reshape(1, -1, 1, 1) + b.reshape(1, -1, 1, 1)
        return jnp.where(yn >= 0, yn, NEG_SLOPE * yn)

    return stage(stage(x, w1, g1, b1), w2, g2, b2)


if __name__ == "__main__":
    key = jax.random.PRNGKey(0)
    ks = jax.random.split(key, 7)

    N, CIN, COUT, H, W = 2, 4, 8, 16, 16
    x = jax.random.normal(ks[0], (N, CIN, H, W), dtype=jnp.float32)
    w1 = 0.1 * jax.random.normal(ks[1], (COUT, CIN, 3, 3), dtype=jnp.float32)
    g1 = 1.0 + 0.1 * jax.random.normal(ks[2], (COUT,), dtype=jnp.float32)
    b1 = 0.1 * jax.random.normal(ks[3], (COUT,), dtype=jnp.float32)
    w2 = 0.1 * jax.random.normal(ks[4], (COUT, COUT, 3, 3), dtype=jnp.float32)
    g2 = 1.0 + 0.1 * jax.random.normal(ks[5], (COUT,), dtype=jnp.float32)
    b2 = 0.1 * jax.random.normal(ks[6], (COUT,), dtype=jnp.float32)

    fwd = jax.jit(functools.partial(conv_block, drop_prob=0.0))
    out = jax.block_until_ready(fwd(x, w1, g1, b1, w2, g2, b2))

    assert out.shape == (N, COUT, H, W)
    assert bool(jnp.all(jnp.isfinite(out)))

    ref = _reference(x, w1, g1, b1, w2, g2, b2)
    # Two conv+BN stages compound MXU rounding; tolerance sized accordingly.
    assert jnp.allclose(out, ref, atol=2e-3, rtol=2e-3), (
        "mismatch vs reference, max abs diff "
        f"{float(jnp.max(jnp.abs(out - ref))):.3e}")

    print("KERNEL_OK")
</pallas_src>

<mosaic_0001>
module attributes {stable_mosaic.version = 11 : i64} {
  func.func @_conv_stats_kernel(%arg0: i32, %arg1: memref<1x4x326xf32, #tpu.memory_space<vmem>>, %arg2: memref<9x8x4xf32, #tpu.memory_space<vmem>>, %arg3: memref<1x288xf32, #tpu.memory_space<vmem>>, %arg4: memref<8x1xf32, #tpu.memory_space<vmem>>, %arg5: memref<8x1xf32, #tpu.memory_space<vmem>>) attributes {dimension_semantics = [#tpu.dimension_semantics<arbitrary>], iteration_bounds = array<i64: 2>, scalar_prefetch = 0 : i64, scratch_operands = 0 : i64, tpu.core_type = #tpu.core_type<tc>, window_params = [{transform_indices = @transform_0, window_bounds = array<i64: 1, 4, 326>}, {pipeline_mode = #tpu.pipeline_mode<synchronous>, transform_indices = @transform_1, window_bounds = array<i64: 9, 8, 4>}, {pipeline_mode = #tpu.pipeline_mode<synchronous>, transform_indices = @transform_2, window_bounds = array<i64: 1, 288>}, {pipeline_mode = #tpu.pipeline_mode<synchronous>, transform_indices = @transform_3, window_bounds = array<i64: 8, 1>}, {pipeline_mode = #tpu.pipeline_mode<synchronous>, transform_indices = @transform_4, window_bounds = array<i64: 8, 1>}]} {
    %c0_i32 = arith.constant 0 : i32
    %0 = arith.cmpi eq, %arg0, %c0_i32 : i32
    %1 = arith.extui %0 : i1 to i32
    %c0_i32_0 = arith.constant 0 : i32
    %2 = arith.cmpi ne, %1, %c0_i32_0 : i32
    scf.if %2 {
      %cst_43 = arith.constant 0.000000e+00 : f32
      %65 = vector.broadcast %cst_43 : f32 to vector<8x1xf32>
      %c0_44 = arith.constant 0 : index
      %c0_45 = arith.constant 0 : index
      %66 = vector.load %arg4[%c0_44, %c0_45] : memref<8x1xf32, #tpu.memory_space<vmem>>, vector<8x1xf32>
      tpu.vector_store %arg4[%c0_44, %c0_45], %65 {strides = array<i32>} : memref<8x1xf32, #tpu.memory_space<vmem>>, vector<8x1xf32>,
      %cst_46 = arith.constant 0.000000e+00 : f32
      %67 = vector.broadcast %cst_46 : f32 to vector<8x1xf32>
      %c0_47 = arith.constant 0 : index
      %c0_48 = arith.constant 0 : index
      %68 = vector.load %arg5[%c0_47, %c0_48] : memref<8x1xf32, #tpu.memory_space<vmem>>, vector<8x1xf32>
      tpu.vector_store %arg5[%c0_47, %c0_48], %67 {strides = array<i32>} : memref<8x1xf32, #tpu.memory_space<vmem>>, vector<8x1xf32>,
    } else {
    }
    %c0 = arith.constant 0 : index
    %c0_1 = arith.constant 0 : index
    %c0_2 = arith.constant 0 : index
    %3 = vector.load %arg1[%c0, %c0_1, %c0_2] : memref<1x4x326xf32, #tpu.memory_space<vmem>>, vector<1x4x326xf32>
    %4 = vector.shape_cast %3 : vector<1x4x326xf32> to vector<4x326xf32>
    %cst = arith.constant 0.000000e+00 : f32
    %5 = vector.broadcast %cst : f32 to vector<8x288xf32>
    %6 = vector.extract_strided_slice %4 {offsets = [0, 0], sizes = [4, 288], strides = [1, 1]} : vector<4x326xf32> to vector<4x288xf32>
    %c0_3 = arith.constant 0 : index
    %c0_4 = arith.constant 0 : index
    %c0_5 = arith.constant 0 : index
    %7 = vector.load %arg2[%c0_3, %c0_4, %c0_5] : memref<9x8x4xf32, #tpu.memory_space<vmem>>, vector<1x8x4xf32>
    %8 = vector.shape_cast %7 : vector<1x8x4xf32> to vector<8x4xf32>
    %cst_6 = arith.constant dense<0.000000e+00> : vector<8x288xf32>
    %9 = tpu.matmul %8, %6, %cst_6 {dimension_numbers = #tpu.dot_dimension_numbers<[1], [0], [0], [1], [0, 0, 1, 1], [], []>} : vector<8x4xf32>, vector<4x288xf32>, vector<8x288xf32> -> vector<8x288xf32>
    %10 = arith.addf %5, %9 : vector<8x288xf32>
    %11 = vector.extract_strided_slice %4 {offsets = [0, 1], sizes = [4, 288], strides = [1, 1]} : vector<4x326xf32> to vector<4x288xf32>
    %c1 = arith.constant 1 : index
    %c0_7 = arith.constant 0 : index
    %c0_8 = arith.constant 0 : index
    %12 = vector.load %arg2[%c1, %c0_7, %c0_8] : memref<9x8x4xf32, #tpu.memory_space<vmem>>, vector<1x8x4xf32>
    %13 = vector.shape_cast %12 : vector<1x8x4xf32> to vector<8x4xf32>
    %cst_9 = arith.constant dense<0.000000e+00> : vector<8x288xf32>
    %14 = tpu.matmul %13, %11, %cst_9 {dimension_numbers = #tpu.dot_dimension_numbers<[1], [0], [0], [1], [0, 0, 1, 1], [], []>} : vector<8x4xf32>, vector<4x288xf32>, vector<8x288xf32> -> vector<8x288xf32>
    %15 = arith.addf %10, %14 : vector<8x288xf32>
    %16 = vector.extract_strided_slice %4 {offsets = [0, 2], sizes = [4, 288], strides = [1, 1]} : vector<4x326xf32> to vector<4x288xf32>
    %c2 = arith.constant 2 : index
    %c0_10 = arith.constant 0 : index
    %c0_11 = arith.constant 0 : index
    %17 = vector.load %arg2[%c2, %c0_10, %c0_11] : memref<9x8x4xf32, #tpu.memory_space<vmem>>, vector<1x8x4xf32>
    %18 = vector.shape_cast %17 : vector<1x8x4xf32> to vector<8x4xf32>
    %cst_12 = arith.constant dense<0.000000e+00> : vector<8x288xf32>
    %19 = tpu.matmul %18, %16, %cst_12 {dimension_numbers = #tpu.dot_dimension_numbers<[1], [0], [0], [1], [0, 0, 1, 1], [], []>} : vector<8x4xf32>, vector<4x288xf32>, vector<8x288xf32> -> vector<8x288xf32>
    %20 = arith.addf %15, %19 : vector<8x288xf32>
    %21 = vector.extract_strided_slice %4 {offsets = [0, 18], sizes = [4, 288], strides = [1, 1]} : vector<4x326xf32> to vector<4x288xf32>
    %c3 = arith.constant 3 : index
    %c0_13 = arith.constant 0 : index
    %c0_14 = arith.constant 0 : index
    %22 = vector.load %arg2[%c3, %c0_13, %c0_14] : memref<9x8x4xf32, #tpu.memory_space<vmem>>, vector<1x8x4xf32>
    %23 = vector.shape_cast %22 : vector<1x8x4xf32> to vector<8x4xf32>
    %cst_15 = arith.constant dense<0.000000e+00> : vector<8x288xf32>
    %24 = tpu.matmul %23, %21, %cst_15 {dimension_numbers = #tpu.dot_dimension_numbers<[1], [0], [0], [1], [0, 0, 1, 1], [], []>} : vector<8x4xf32>, vector<4x288xf32>, vector<8x288xf32> -> vector<8x288xf32>
    %25 = arith.addf %20, %24 : vector<8x288xf32>
    %26 = vector.extract_strided_slice %4 {offsets = [0, 19], sizes = [4, 288], strides = [1, 1]} : vector<4x326xf32> to vector<4x288xf32>
    %c4 = arith.constant 4 : index
    %c0_16 = arith.constant 0 : index
    %c0_17 = arith.constant 0 : index
    %27 = vector.load %arg2[%c4, %c0_16, %c0_17] : memref<9x8x4xf32, #tpu.memory_space<vmem>>, vector<1x8x4xf32>
    %28 = vector.shape_cast %27 : vector<1x8x4xf32> to vector<8x4xf32>
    %cst_18 = arith.constant dense<0.000000e+00> : vector<8x288xf32>
    %29 = tpu.matmul %28, %26, %cst_18 {dimension_numbers = #tpu.dot_dimension_numbers<[1], [0], [0], [1], [0, 0, 1, 1], [], []>} : vector<8x4xf32>, vector<4x288xf32>, vector<8x288xf32> -> vector<8x288xf32>
    %30 = arith.addf %25, %29 : vector<8x288xf32>
    %31 = vector.extract_strided_slice %4 {offsets = [0, 20], sizes = [4, 288], strides = [1, 1]} : vector<4x326xf32> to vector<4x288xf32>
    %c5 = arith.constant 5 : index
    %c0_19 = arith.constant 0 : index
    %c0_20 = arith.constant 0 : index
    %32 = vector.load %arg2[%c5, %c0_19, %c0_20] : memref<9x8x4xf32, #tpu.memory_space<vmem>>, vector<1x8x4xf32>
    %33 = vector.shape_cast %32 : vector<1x8x4xf32> to vector<8x4xf32>
    %cst_21 = arith.constant dense<0.000000e+00> : vector<8x288xf32>
    %34 = tpu.matmul %33, %31, %cst_21 {dimension_numbers = #tpu.dot_dimension_numbers<[1], [0], [0], [1], [0, 0, 1, 1], [], []>} : vector<8x4xf32>, vector<4x288xf32>, vector<8x288xf32> -> vector<8x288xf32>
    %35 = arith.addf %30, %34 : vector<8x288xf32>
    %36 = vector.extract_strided_slice %4 {offsets = [0, 36], sizes = [4, 288], strides = [1, 1]} : vector<4x326xf32> to vector<4x288xf32>
    %c6 = arith.constant 6 : index
    %c0_22 = arith.constant 0 : index
    %c0_23 = arith.constant 0 : index
    %37 = vector.load %arg2[%c6, %c0_22, %c0_23] : memref<9x8x4xf32, #tpu.memory_space<vmem>>, vector<1x8x4xf32>
    %38 = vector.shape_cast %37 : vector<1x8x4xf32> to vector<8x4xf32>
    %cst_24 = arith.constant dense<0.000000e+00> : vector<8x288xf32>
    %39 = tpu.matmul %38, %36, %cst_24 {dimension_numbers = #tpu.dot_dimension_numbers<[1], [0], [0], [1], [0, 0, 1, 1], [], []>} : vector<8x4xf32>, vector<4x288xf32>, vector<8x288xf32> -> vector<8x288xf32>
    %40 = arith.addf %35, %39 : vector<8x288xf32>
    %41 = vector.extract_strided_slice %4 {offsets = [0, 37], sizes = [4, 288], strides = [1, 1]} : vector<4x326xf32> to vector<4x288xf32>
    %c7 = arith.constant 7 : index
    %c0_25 = arith.constant 0 : index
    %c0_26 = arith.constant 0 : index
    %42 = vector.load %arg2[%c7, %c0_25, %c0_26] : memref<9x8x4xf32, #tpu.memory_space<vmem>>, vector<1x8x4xf32>
    %43 = vector.shape_cast %42 : vector<1x8x4xf32> to vector<8x4xf32>
    %cst_27 = arith.constant dense<0.000000e+00> : vector<8x288xf32>
    %44 = tpu.matmul %43, %41, %cst_27 {dimension_numbers = #tpu.dot_dimension_numbers<[1], [0], [0], [1], [0, 0, 1, 1], [], []>} : vector<8x4xf32>, vector<4x288xf32>, vector<8x288xf32> -> vector<8x288xf32>
    %45 = arith.addf %40, %44 : vector<8x288xf32>
    %46 = vector.extract_strided_slice %4 {offsets = [0, 38], sizes = [4, 288], strides = [1, 1]} : vector<4x326xf32> to vector<4x288xf32>
    %c8 = arith.constant 8 : index
    %c0_28 = arith.constant 0 : index
    %c0_29 = arith.constant 0 : index
    %47 = vector.load %arg2[%c8, %c0_28, %c0_29] : memref<9x8x4xf32, #tpu.memory_space<vmem>>, vector<1x8x4xf32>
    %48 = vector.shape_cast %47 : vector<1x8x4xf32> to vector<8x4xf32>
    %cst_30 = arith.constant dense<0.000000e+00> : vector<8x288xf32>
    %49 = tpu.matmul %48, %46, %cst_30 {dimension_numbers = #tpu.dot_dimension_numbers<[1], [0], [0], [1], [0, 0, 1, 1], [], []>} : vector<8x4xf32>, vector<4x288xf32>, vector<8x288xf32> -> vector<8x288xf32>
    %50 = arith.addf %45, %49 : vector<8x288xf32>
    %c0_31 = arith.constant 0 : index
    %c0_32 = arith.constant 0 : index
    %51 = vector.load %arg3[%c0_31, %c0_32] : memref<1x288xf32, #tpu.memory_space<vmem>>, vector<1x288xf32>
    %52 = vector.broadcast %51 : vector<1x288xf32> to vector<8x288xf32>
    %53 = arith.mulf %50, %52 : vector<8x288xf32>
    %c0_33 = arith.constant 0 : index
    %c0_34 = arith.constant 0 : index
    %54 = vector.load %arg4[%c0_33, %c0_34] : memref<8x1xf32, #tpu.memory_space<vmem>>, vector<8x1xf32>
    %cst_35 = arith.constant dense<0.000000e+00> : vector<8xf32>
    %55 = vector.multi_reduction <add>, %53, %cst_35 [1] : vector<8x288xf32> to vector<8xf32>
    %56 = vector.shape_cast %55 : vector<8xf32> to vector<8x1xf32>
    %57 = arith.addf %54, %56 : vector<8x1xf32>
    %c0_36 = arith.constant 0 : index
    %c0_37 = arith.constant 0 : index
    %58 = vector.load %arg4[%c0_36, %c0_37] : memref<8x1xf32, #tpu.memory_space<vmem>>, vector<8x1xf32>
    tpu.vector_store %arg4[%c0_36, %c0_37], %57 {strides = array<i32>} : memref<8x1xf32, #tpu.memory_space<vmem>>, vector<8x1xf32>,
    %c0_38 = arith.constant 0 : index
    %c0_39 = arith.constant 0 : index
    %59 = vector.load %arg5[%c0_38, %c0_39] : memref<8x1xf32, #tpu.memory_space<vmem>>, vector<8x1xf32>
    %60 = arith.mulf %53, %50 : vector<8x288xf32>
    %cst_40 = arith.constant dense<0.000000e+00> : vector<8xf32>
    %61 = vector.multi_reduction <add>, %60, %cst_40 [1] : vector<8x288xf32> to vector<8xf32>
    %62 = vector.shape_cast %61 : vector<8xf32> to vector<8x1xf32>
    %63 = arith.addf %59, %62 : vector<8x1xf32>
    %c0_41 = arith.constant 0 : index
    %c0_42 = arith.constant 0 : index
    %64 = vector.load %arg5[%c0_41, %c0_42] : memref<8x1xf32, #tpu.memory_space<vmem>>, vector<8x1xf32>
    tpu.vector_store %arg5[%c0_41, %c0_42], %63 {strides = array<i32>} : memref<8x1xf32, #tpu.memory_space<vmem>>, vector<8x1xf32>,
    return
  }
  func.func @transform_0(%arg0: i32) -> (i32, i32, i32) {
    %c0_i32 = arith.constant 0 : i32
    %c0_i32_0 = arith.constant 0 : i32
    %c0_i32_1 = arith.constant 0 : i32
    return %arg0, %c0_i32, %c0_i32_0 : i32, i32, i32
  }
  func.func @transform_1(%arg0: i32) -> (i32, i32, i32) {
    %c0_i32 = arith.constant 0 : i32
    %c0_i32_0 = arith.constant 0 : i32
    %c0_i32_1 = arith.constant 0 : i32
    %c0_i32_2 = arith.constant 0 : i32
    return %c0_i32, %c0_i32_0, %c0_i32_1 : i32, i32, i32
  }
  func.func @transform_2(%arg0: i32) -> (i32, i32) {
    %c0_i32 = arith.constant 0 : i32
    %c0_i32_0 = arith.constant 0 : i32
    %c0_i32_1 = arith.constant 0 : i32
    return %c0_i32, %c0_i32_0 : i32, i32
  }
  func.func @transform_3(%arg0: i32) -> (i32, i32) {
    %c0_i32 = arith.constant 0 : i32
    %c0_i32_0 = arith.constant 0 : i32
    %c0_i32_1 = arith.constant 0 : i32
    return %c0_i32, %c0_i32_0 : i32, i32
  }
  func.func @transform_4(%arg0: i32) -> (i32, i32) {
    %c0_i32 = arith.constant 0 : i32
    %c0_i32_0 = arith.constant 0 : i32
    %c0_i32_1 = arith.constant 0 : i32
    return %c0_i32, %c0_i32_0 : i32, i32
  }
}

module attributes {stable_mosaic.version = 11 : i64} {
  func.func @_conv_norm_kernel(%arg0: i32, %arg1: memref<1x4x326xf32, #tpu.memory_space<vmem>>, %arg2: memref<9x8x4xf32, #tpu.memory_space<vmem>>, %arg3: memref<8x1xf32, #tpu.memory_space<vmem>>, %arg4: memref<8x1xf32, #tpu.memory_space<vmem>>, %arg5: memref<1x8x288xf32, #tpu.memory_space<vmem>>) attributes {dimension_semantics = [#tpu.dimension_semantics<parallel>], iteration_bounds = array<i64: 2>, scalar_prefetch = 0 : i64, scratch_operands = 0 : i64, tpu.core_type = #tpu.core_type<tc>, window_params = [{transform_indices = @transform_0, window_bounds = array<i64: 1, 4, 326>}, {pipeline_mode = #tpu.pipeline_mode<synchronous>, transform_indices = @transform_1, window_bounds = array<i64: 9, 8, 4>}, {pipeline_mode = #tpu.pipeline_mode<synchronous>, transform_indices = @transform_2, window_bounds = array<i64: 8, 1>}, {pipeline_mode = #tpu.pipeline_mode<synchronous>, transform_indices = @transform_3, window_bounds = array<i64: 8, 1>}, {transform_indices = @transform_4, window_bounds = array<i64: 1, 8, 288>}]} {
    %c0 = arith.constant 0 : index
    %c0_0 = arith.constant 0 : index
    %c0_1 = arith.constant 0 : index
    %0 = vector.load %arg1[%c0, %c0_0, %c0_1] : memref<1x4x326xf32, #tpu.memory_space<vmem>>, vector<1x4x326xf32>
    %1 = vector.shape_cast %0 : vector<1x4x326xf32> to vector<4x326xf32>
    %cst = arith.constant 0.000000e+00 : f32
    %2 = vector.broadcast %cst : f32 to vector<8x288xf32>
    %3 = vector.extract_strided_slice %1 {offsets = [0, 0], sizes = [4, 288], strides = [1, 1]} : vector<4x326xf32> to vector<4x288xf32>
    %c0_2 = arith.constant 0 : index
    %c0_3 = arith.constant 0 : index
    %c0_4 = arith.constant 0 : index
    %4 = vector.load %arg2[%c0_2, %c0_3, %c0_4] : memref<9x8x4xf32, #tpu.memory_space<vmem>>, vector<1x8x4xf32>
    %5 = vector.shape_cast %4 : vector<1x8x4xf32> to vector<8x4xf32>
    %cst_5 = arith.constant dense<0.000000e+00> : vector<8x288xf32>
    %6 = tpu.matmul %5, %3, %cst_5 {dimension_numbers = #tpu.dot_dimension_numbers<[1], [0], [0], [1], [0, 0, 1, 1], [], []>} : vector<8x4xf32>, vector<4x288xf32>, vector<8x288xf32> -> vector<8x288xf32>
    %7 = arith.addf %2, %6 : vector<8x288xf32>
    %8 = vector.extract_strided_slice %1 {offsets = [0, 1], sizes = [4, 288], strides = [1, 1]} : vector<4x326xf32> to vector<4x288xf32>
    %c1 = arith.constant 1 : index
    %c0_6 = arith.constant 0 : index
    %c0_7 = arith.constant 0 : index
    %9 = vector.load %arg2[%c1, %c0_6, %c0_7] : memref<9x8x4xf32, #tpu.memory_space<vmem>>, vector<1x8x4xf32>
    %10 = vector.shape_cast %9 : vector<1x8x4xf32> to vector<8x4xf32>
    %cst_8 = arith.constant dense<0.000000e+00> : vector<8x288xf32>
    %11 = tpu.matmul %10, %8, %cst_8 {dimension_numbers = #tpu.dot_dimension_numbers<[1], [0], [0], [1], [0, 0, 1, 1], [], []>} : vector<8x4xf32>, vector<4x288xf32>, vector<8x288xf32> -> vector<8x288xf32>
    %12 = arith.addf %7, %11 : vector<8x288xf32>
    %13 = vector.extract_strided_slice %1 {offsets = [0, 2], sizes = [4, 288], strides = [1, 1]} : vector<4x326xf32> to vector<4x288xf32>
    %c2 = arith.constant 2 : index
    %c0_9 = arith.constant 0 : index
    %c0_10 = arith.constant 0 : index
    %14 = vector.load %arg2[%c2, %c0_9, %c0_10] : memref<9x8x4xf32, #tpu.memory_space<vmem>>, vector<1x8x4xf32>
    %15 = vector.shape_cast %14 : vector<1x8x4xf32> to vector<8x4xf32>
    %cst_11 = arith.constant dense<0.000000e+00> : vector<8x288xf32>
    %16 = tpu.matmul %15, %13, %cst_11 {dimension_numbers = #tpu.dot_dimension_numbers<[1], [0], [0], [1], [0, 0, 1, 1], [], []>} : vector<8x4xf32>, vector<4x288xf32>, vector<8x288xf32> -> vector<8x288xf32>
    %17 = arith.addf %12, %16 : vector<8x288xf32>
    %18 = vector.extract_strided_slice %1 {offsets = [0, 18], sizes = [4, 288], strides = [1, 1]} : vector<4x326xf32> to vector<4x288xf32>
    %c3 = arith.constant 3 : index
    %c0_12 = arith.constant 0 : index
    %c0_13 = arith.constant 0 : index
    %19 = vector.load %arg2[%c3, %c0_12, %c0_13] : memref<9x8x4xf32, #tpu.memory_space<vmem>>, vector<1x8x4xf32>
    %20 = vector.shape_cast %19 : vector<1x8x4xf32> to vector<8x4xf32>
    %cst_14 = arith.constant dense<0.000000e+00> : vector<8x288xf32>
    %21 = tpu.matmul %20, %18, %cst_14 {dimension_numbers = #tpu.dot_dimension_numbers<[1], [0], [0], [1], [0, 0, 1, 1], [], []>} : vector<8x4xf32>, vector<4x288xf32>, vector<8x288xf32> -> vector<8x288xf32>
    %22 = arith.addf %17, %21 : vector<8x288xf32>
    %23 = vector.extract_strided_slice %1 {offsets = [0, 19], sizes = [4, 288], strides = [1, 1]} : vector<4x326xf32> to vector<4x288xf32>
    %c4 = arith.constant 4 : index
    %c0_15 = arith.constant 0 : index
    %c0_16 = arith.constant 0 : index
    %24 = vector.load %arg2[%c4, %c0_15, %c0_16] : memref<9x8x4xf32, #tpu.memory_space<vmem>>, vector<1x8x4xf32>
    %25 = vector.shape_cast %24 : vector<1x8x4xf32> to vector<8x4xf32>
    %cst_17 = arith.constant dense<0.000000e+00> : vector<8x288xf32>
    %26 = tpu.matmul %25, %23, %cst_17 {dimension_numbers = #tpu.dot_dimension_numbers<[1], [0], [0], [1], [0, 0, 1, 1], [], []>} : vector<8x4xf32>, vector<4x288xf32>, vector<8x288xf32> -> vector<8x288xf32>
    %27 = arith.addf %22, %26 : vector<8x288xf32>
    %28 = vector.extract_strided_slice %1 {offsets = [0, 20], sizes = [4, 288], strides = [1, 1]} : vector<4x326xf32> to vector<4x288xf32>
    %c5 = arith.constant 5 : index
    %c0_18 = arith.constant 0 : index
    %c0_19 = arith.constant 0 : index
    %29 = vector.load %arg2[%c5, %c0_18, %c0_19] : memref<9x8x4xf32, #tpu.memory_space<vmem>>, vector<1x8x4xf32>
    %30 = vector.shape_cast %29 : vector<1x8x4xf32> to vector<8x4xf32>
    %cst_20 = arith.constant dense<0.000000e+00> : vector<8x288xf32>
    %31 = tpu.matmul %30, %28, %cst_20 {dimension_numbers = #tpu.dot_dimension_numbers<[1], [0], [0], [1], [0, 0, 1, 1], [], []>} : vector<8x4xf32>, vector<4x288xf32>, vector<8x288xf32> -> vector<8x288xf32>
    %32 = arith.addf %27, %31 : vector<8x288xf32>
    %33 = vector.extract_strided_slice %1 {offsets = [0, 36], sizes = [4, 288], strides = [1, 1]} : vector<4x326xf32> to vector<4x288xf32>
    %c6 = arith.constant 6 : index
    %c0_21 = arith.constant 0 : index
    %c0_22 = arith.constant 0 : index
    %34 = vector.load %arg2[%c6, %c0_21, %c0_22] : memref<9x8x4xf32, #tpu.memory_space<vmem>>, vector<1x8x4xf32>
    %35 = vector.shape_cast %34 : vector<1x8x4xf32> to vector<8x4xf32>
    %cst_23 = arith.constant dense<0.000000e+00> : vector<8x288xf32>
    %36 = tpu.matmul %35, %33, %cst_23 {dimension_numbers = #tpu.dot_dimension_numbers<[1], [0], [0], [1], [0, 0, 1, 1], [], []>} : vector<8x4xf32>, vector<4x288xf32>, vector<8x288xf32> -> vector<8x288xf32>
    %37 = arith.addf %32, %36 : vector<8x288xf32>
    %38 = vector.extract_strided_slice %1 {offsets = [0, 37], sizes = [4, 288], strides = [1, 1]} : vector<4x326xf32> to vector<4x288xf32>
    %c7 = arith.constant 7 : index
    %c0_24 = arith.constant 0 : index
    %c0_25 = arith.constant 0 : index
    %39 = vector.load %arg2[%c7, %c0_24, %c0_25] : memref<9x8x4xf32, #tpu.memory_space<vmem>>, vector<1x8x4xf32>
    %40 = vector.shape_cast %39 : vector<1x8x4xf32> to vector<8x4xf32>
    %cst_26 = arith.constant dense<0.000000e+00> : vector<8x288xf32>
    %41 = tpu.matmul %40, %38, %cst_26 {dimension_numbers = #tpu.dot_dimension_numbers<[1], [0], [0], [1], [0, 0, 1, 1], [], []>} : vector<8x4xf32>, vector<4x288xf32>, vector<8x288xf32> -> vector<8x288xf32>
    %42 = arith.addf %37, %41 : vector<8x288xf32>
    %43 = vector.extract_strided_slice %1 {offsets = [0, 38], sizes = [4, 288], strides = [1, 1]} : vector<4x326xf32> to vector<4x288xf32>
    %c8 = arith.constant 8 : index
    %c0_27 = arith.constant 0 : index
    %c0_28 = arith.constant 0 : index
    %44 = vector.load %arg2[%c8, %c0_27, %c0_28] : memref<9x8x4xf32, #tpu.memory_space<vmem>>, vector<1x8x4xf32>
    %45 = vector.shape_cast %44 : vector<1x8x4xf32> to vector<8x4xf32>
    %cst_29 = arith.constant dense<0.000000e+00> : vector<8x288xf32>
    %46 = tpu.matmul %45, %43, %cst_29 {dimension_numbers = #tpu.dot_dimension_numbers<[1], [0], [0], [1], [0, 0, 1, 1], [], []>} : vector<8x4xf32>, vector<4x288xf32>, vector<8x288xf32> -> vector<8x288xf32>
    %47 = arith.addf %42, %46 : vector<8x288xf32>
    %c0_30 = arith.constant 0 : index
    %c0_31 = arith.constant 0 : index
    %48 = vector.load %arg3[%c0_30, %c0_31] : memref<8x1xf32, #tpu.memory_space<vmem>>, vector<8x1xf32>
    %49 = vector.broadcast %48 : vector<8x1xf32> to vector<8x288xf32>
    %50 = arith.mulf %47, %49 : vector<8x288xf32>
    %c0_32 = arith.constant 0 : index
    %c0_33 = arith.constant 0 : index
    %51 = vector.load %arg4[%c0_32, %c0_33] : memref<8x1xf32, #tpu.memory_space<vmem>>, vector<8x1xf32>
    %52 = vector.broadcast %51 : vector<8x1xf32> to vector<8x288xf32>
    %53 = arith.addf %50, %52 : vector<8x288xf32>
    %cst_34 = arith.constant 0.000000e+00 : f32
    %54 = vector.broadcast %cst_34 : f32 to vector<8x288xf32>
    %55 = arith.cmpf oge, %53, %54 : vector<8x288xf32>
    %cst_35 = arith.constant 2.000000e-01 : f32
    %56 = vector.broadcast %cst_35 : f32 to vector<8x288xf32>
    %57 = arith.mulf %56, %53 : vector<8x288xf32>
    %58 = arith.select %55, %53, %57 : vector<8x288xi1>, vector<8x288xf32>
    %c0_36 = arith.constant 0 : index
    %c0_37 = arith.constant 0 : index
    %c0_38 = arith.constant 0 : index
    %59 = vector.load %arg5[%c0_36, %c0_37, %c0_38] : memref<1x8x288xf32, #tpu.memory_space<vmem>>, vector<1x8x288xf32>
    %60 = vector.shape_cast %59 : vector<1x8x288xf32> to vector<8x288xf32>
    %61 = vector.shape_cast %58 : vector<8x288xf32> to vector<1x8x288xf32>
    tpu.vector_store %arg5[%c0_36, %c0_37, %c0_38], %61 {strides = array<i32>} : memref<1x8x288xf32, #tpu.memory_space<vmem>>, vector<1x8x288xf32>,
    return
  }
  func.func @transform_0(%arg0: i32) -> (i32, i32, i32) {
    %c0_i32 = arith.constant 0 : i32
    %c0_i32_0 = arith.constant 0 : i32
    %c0_i32_1 = arith.constant 0 : i32
    return %arg0, %c0_i32, %c0_i32_0 : i32, i32, i32
  }
  func.func @transform_1(%arg0: i32) -> (i32, i32, i32) {
    %c0_i32 = arith.constant 0 : i32
    %c0_i32_0 = arith.constant 0 : i32
    %c0_i32_1 = arith.constant 0 : i32
    %c0_i32_2 = arith.constant 0 : i32
    return %c0_i32, %c0_i32_0, %c0_i32_1 : i32, i32, i32
  }
  func.func @transform_2(%arg0: i32) -> (i32, i32) {
    %c0_i32 = arith.constant 0 : i32
    %c0_i32_0 = arith.constant 0 : i32
    %c0_i32_1 = arith.constant 0 : i32
    return %c0_i32, %c0_i32_0 : i32, i32
  }
  func.func @transform_3(%arg0: i32) -> (i32, i32) {
    %c0_i32 = arith.constant 0 : i32
    %c0_i32_0 = arith.constant 0 : i32
    %c0_i32_1 = arith.constant 0 : i32
    return %c0_i32, %c0_i32_0 : i32, i32
  }
  func.func @transform_4(%arg0: i32) -> (i32, i32, i32) {
    %c0_i32 = arith.constant 0 : i32
    %c0_i32_0 = arith.constant 0 : i32
    %c0_i32_1 = arith.constant 0 : i32
    return %arg0, %c0_i32, %c0_i32_0 : i32, i32, i32
  }
}

module attributes {stable_mosaic.version = 11 : i64} {
  func.func @_conv_norm_kernel(%arg0: i32, %arg1: memref<1x8x326xf32, #tpu.memory_space<vmem>>, %arg2: memref<9x8x8xf32, #tpu.memory_space<vmem>>, %arg3: memref<8x1xf32, #tpu.memory_space<vmem>>, %arg4: memref<8x1xf32, #tpu.memory_space<vmem>>, %arg5: memref<1x8x288xf32, #tpu.memory_space<vmem>>) attributes {dimension_semantics = [#tpu.dimension_semantics<parallel>], iteration_bounds = array<i64: 2>, scalar_prefetch = 0 : i64, scratch_operands = 0 : i64, tpu.core_type = #tpu.core_type<tc>, window_params = [{transform_indices = @transform_0, window_bounds = array<i64: 1, 8, 326>}, {pipeline_mode = #tpu.pipeline_mode<synchronous>, transform_indices = @transform_1, window_bounds = array<i64: 9, 8, 8>}, {pipeline_mode = #tpu.pipeline_mode<synchronous>, transform_indices = @transform_2, window_bounds = array<i64: 8, 1>}, {pipeline_mode = #tpu.pipeline_mode<synchronous>, transform_indices = @transform_3, window_bounds = array<i64: 8, 1>}, {transform_indices = @transform_4, window_bounds = array<i64: 1, 8, 288>}]} {
    %c0 = arith.constant 0 : index
    %c0_0 = arith.constant 0 : index
    %c0_1 = arith.constant 0 : index
    %0 = vector.load %arg1[%c0, %c0_0, %c0_1] : memref<1x8x326xf32, #tpu.memory_space<vmem>>, vector<1x8x326xf32>
    %1 = vector.shape_cast %0 : vector<1x8x326xf32> to vector<8x326xf32>
    %cst = arith.constant 0.000000e+00 : f32
    %2 = vector.broadcast %cst : f32 to vector<8x288xf32>
    %3 = vector.extract_strided_slice %1 {offsets = [0, 0], sizes = [8, 288], strides = [1, 1]} : vector<8x326xf32> to vector<8x288xf32>
    %c0_2 = arith.constant 0 : index
    %c0_3 = arith.constant 0 : index
    %c0_4 = arith.constant 0 : index
    %4 = vector.load %arg2[%c0_2, %c0_3, %c0_4] : memref<9x8x8xf32, #tpu.memory_space<vmem>>, vector<1x8x8xf32>
    %5 = vector.shape_cast %4 : vector<1x8x8xf32> to vector<8x8xf32>
    %cst_5 = arith.constant dense<0.000000e+00> : vector<8x288xf32>
    %6 = tpu.matmul %5, %3, %cst_5 {dimension_numbers = #tpu.dot_dimension_numbers<[1], [0], [0], [1], [0, 0, 1, 1], [], []>} : vector<8x8xf32>, vector<8x288xf32>, vector<8x288xf32> -> vector<8x288xf32>
    %7 = arith.addf %2, %6 : vector<8x288xf32>
    %8 = vector.extract_strided_slice %1 {offsets = [0, 1], sizes = [8, 288], strides = [1, 1]} : vector<8x326xf32> to vector<8x288xf32>
    %c1 = arith.constant 1 : index
    %c0_6 = arith.constant 0 : index
    %c0_7 = arith.constant 0 : index
    %9 = vector.load %arg2[%c1, %c0_6, %c0_7] : memref<9x8x8xf32, #tpu.memory_space<vmem>>, vector<1x8x8xf32>
    %10 = vector.shape_cast %9 : vector<1x8x8xf32> to vector<8x8xf32>
    %cst_8 = arith.constant dense<0.000000e+00> : vector<8x288xf32>
    %11 = tpu.matmul %10, %8, %cst_8 {dimension_numbers = #tpu.dot_dimension_numbers<[1], [0], [0], [1], [0, 0, 1, 1], [], []>} : vector<8x8xf32>, vector<8x288xf32>, vector<8x288xf32> -> vector<8x288xf32>
    %12 = arith.addf %7, %11 : vector<8x288xf32>
    %13 = vector.extract_strided_slice %1 {offsets = [0, 2], sizes = [8, 288], strides = [1, 1]} : vector<8x326xf32> to vector<8x288xf32>
    %c2 = arith.constant 2 : index
    %c0_9 = arith.constant 0 : index
    %c0_10 = arith.constant 0 : index
    %14 = vector.load %arg2[%c2, %c0_9, %c0_10] : memref<9x8x8xf32, #tpu.memory_space<vmem>>, vector<1x8x8xf32>
    %15 = vector.shape_cast %14 : vector<1x8x8xf32> to vector<8x8xf32>
    %cst_11 = arith.constant dense<0.000000e+00> : vector<8x288xf32>
    %16 = tpu.matmul %15, %13, %cst_11 {dimension_numbers = #tpu.dot_dimension_numbers<[1], [0], [0], [1], [0, 0, 1, 1], [], []>} : vector<8x8xf32>, vector<8x288xf32>, vector<8x288xf32> -> vector<8x288xf32>
    %17 = arith.addf %12, %16 : vector<8x288xf32>
    %18 = vector.extract_strided_slice %1 {offsets = [0, 18], sizes = [8, 288], strides = [1, 1]} : vector<8x326xf32> to vector<8x288xf32>
    %c3 = arith.constant 3 : index
    %c0_12 = arith.constant 0 : index
    %c0_13 = arith.constant 0 : index
    %19 = vector.load %arg2[%c3, %c0_12, %c0_13] : memref<9x8x8xf32, #tpu.memory_space<vmem>>, vector<1x8x8xf32>
    %20 = vector.shape_cast %19 : vector<1x8x8xf32> to vector<8x8xf32>
    %cst_14 = arith.constant dense<0.000000e+00> : vector<8x288xf32>
    %21 = tpu.matmul %20, %18, %cst_14 {dimension_numbers = #tpu.dot_dimension_numbers<[1], [0], [0], [1], [0, 0, 1, 1], [], []>} : vector<8x8xf32>, vector<8x288xf32>, vector<8x288xf32> -> vector<8x288xf32>
    %22 = arith.addf %17, %21 : vector<8x288xf32>
    %23 = vector.extract_strided_slice %1 {offsets = [0, 19], sizes = [8, 288], strides = [1, 1]} : vector<8x326xf32> to vector<8x288xf32>
    %c4 = arith.constant 4 : index
    %c0_15 = arith.constant 0 : index
    %c0_16 = arith.constant 0 : index
    %24 = vector.load %arg2[%c4, %c0_15, %c0_16] : memref<9x8x8xf32, #tpu.memory_space<vmem>>, vector<1x8x8xf32>
    %25 = vector.shape_cast %24 : vector<1x8x8xf32> to vector<8x8xf32>
    %cst_17 = arith.constant dense<0.000000e+00> : vector<8x288xf32>
    %26 = tpu.matmul %25, %23, %cst_17 {dimension_numbers = #tpu.dot_dimension_numbers<[1], [0], [0], [1], [0, 0, 1, 1], [], []>} : vector<8x8xf32>, vector<8x288xf32>, vector<8x288xf32> -> vector<8x288xf32>
    %27 = arith.addf %22, %26 : vector<8x288xf32>
    %28 = vector.extract_strided_slice %1 {offsets = [0, 20], sizes = [8, 288], strides = [1, 1]} : vector<8x326xf32> to vector<8x288xf32>
    %c5 = arith.constant 5 : index
    %c0_18 = arith.constant 0 : index
    %c0_19 = arith.constant 0 : index
    %29 = vector.load %arg2[%c5, %c0_18, %c0_19] : memref<9x8x8xf32, #tpu.memory_space<vmem>>, vector<1x8x8xf32>
    %30 = vector.shape_cast %29 : vector<1x8x8xf32> to vector<8x8xf32>
    %cst_20 = arith.constant dense<0.000000e+00> : vector<8x288xf32>
    %31 = tpu.matmul %30, %28, %cst_20 {dimension_numbers = #tpu.dot_dimension_numbers<[1], [0], [0], [1], [0, 0, 1, 1], [], []>} : vector<8x8xf32>, vector<8x288xf32>, vector<8x288xf32> -> vector<8x288xf32>
    %32 = arith.addf %27, %31 : vector<8x288xf32>
    %33 = vector.extract_strided_slice %1 {offsets = [0, 36], sizes = [8, 288], strides = [1, 1]} : vector<8x326xf32> to vector<8x288xf32>
    %c6 = arith.constant 6 : index
    %c0_21 = arith.constant 0 : index
    %c0_22 = arith.constant 0 : index
    %34 = vector.load %arg2[%c6, %c0_21, %c0_22] : memref<9x8x8xf32, #tpu.memory_space<vmem>>, vector<1x8x8xf32>
    %35 = vector.shape_cast %34 : vector<1x8x8xf32> to vector<8x8xf32>
    %cst_23 = arith.constant dense<0.000000e+00> : vector<8x288xf32>
    %36 = tpu.matmul %35, %33, %cst_23 {dimension_numbers = #tpu.dot_dimension_numbers<[1], [0], [0], [1], [0, 0, 1, 1], [], []>} : vector<8x8xf32>, vector<8x288xf32>, vector<8x288xf32> -> vector<8x288xf32>
    %37 = arith.addf %32, %36 : vector<8x288xf32>
    %38 = vector.extract_strided_slice %1 {offsets = [0, 37], sizes = [8, 288], strides = [1, 1]} : vector<8x326xf32> to vector<8x288xf32>
    %c7 = arith.constant 7 : index
    %c0_24 = arith.constant 0 : index
    %c0_25 = arith.constant 0 : index
    %39 = vector.load %arg2[%c7, %c0_24, %c0_25] : memref<9x8x8xf32, #tpu.memory_space<vmem>>, vector<1x8x8xf32>
    %40 = vector.shape_cast %39 : vector<1x8x8xf32> to vector<8x8xf32>
    %cst_26 = arith.constant dense<0.000000e+00> : vector<8x288xf32>
    %41 = tpu.matmul %40, %38, %cst_26 {dimension_numbers = #tpu.dot_dimension_numbers<[1], [0], [0], [1], [0, 0, 1, 1], [], []>} : vector<8x8xf32>, vector<8x288xf32>, vector<8x288xf32> -> vector<8x288xf32>
    %42 = arith.addf %37, %41 : vector<8x288xf32>
    %43 = vector.extract_strided_slice %1 {offsets = [0, 38], sizes = [8, 288], strides = [1, 1]} : vector<8x326xf32> to vector<8x288xf32>
    %c8 = arith.constant 8 : index
    %c0_27 = arith.constant 0 : index
    %c0_28 = arith.constant 0 : index
    %44 = vector.load %arg2[%c8, %c0_27, %c0_28] : memref<9x8x8xf32, #tpu.memory_space<vmem>>, vector<1x8x8xf32>
    %45 = vector.shape_cast %44 : vector<1x8x8xf32> to vector<8x8xf32>
    %cst_29 = arith.constant dense<0.000000e+00> : vector<8x288xf32>
    %46 = tpu.matmul %45, %43, %cst_29 {dimension_numbers = #tpu.dot_dimension_numbers<[1], [0], [0], [1], [0, 0, 1, 1], [], []>} : vector<8x8xf32>, vector<8x288xf32>, vector<8x288xf32> -> vector<8x288xf32>
    %47 = arith.addf %42, %46 : vector<8x288xf32>
    %c0_30 = arith.constant 0 : index
    %c0_31 = arith.constant 0 : index
    %48 = vector.load %arg3[%c0_30, %c0_31] : memref<8x1xf32, #tpu.memory_space<vmem>>, vector<8x1xf32>
    %49 = vector.broadcast %48 : vector<8x1xf32> to vector<8x288xf32>
    %50 = arith.mulf %47, %49 : vector<8x288xf32>
    %c0_32 = arith.constant 0 : index
    %c0_33 = arith.constant 0 : index
    %51 = vector.load %arg4[%c0_32, %c0_33] : memref<8x1xf32, #tpu.memory_space<vmem>>, vector<8x1xf32>
    %52 = vector.broadcast %51 : vector<8x1xf32> to vector<8x288xf32>
    %53 = arith.addf %50, %52 : vector<8x288xf32>
    %cst_34 = arith.constant 0.000000e+00 : f32
    %54 = vector.broadcast %cst_34 : f32 to vector<8x288xf32>
    %55 = arith.cmpf oge, %53, %54 : vector<8x288xf32>
    %cst_35 = arith.constant 2.000000e-01 : f32
    %56 = vector.broadcast %cst_35 : f32 to vector<8x288xf32>
    %57 = arith.mulf %56, %53 : vector<8x288xf32>
    %58 = arith.select %55, %53, %57 : vector<8x288xi1>, vector<8x288xf32>
    %c0_36 = arith.constant 0 : index
    %c0_37 = arith.constant 0 : index
    %c0_38 = arith.constant 0 : index
    %59 = vector.load %arg5[%c0_36, %c0_37, %c0_38] : memref<1x8x288xf32, #tpu.memory_space<vmem>>, vector<1x8x288xf32>
    %60 = vector.shape_cast %59 : vector<1x8x288xf32> to vector<8x288xf32>
    %61 = vector.shape_cast %58 : vector<8x288xf32> to vector<1x8x288xf32>
    tpu.vector_store %arg5[%c0_36, %c0_37, %c0_38], %61 {strides = array<i32>} : memref<1x8x288xf32, #tpu.memory_space<vmem>>, vector<1x8x288xf32>,
    return
  }
  func.func @transform_0(%arg0: i32) -> (i32, i32, i32) {
    %c0_i32 = arith.constant 0 : i32
    %c0_i32_0 = arith.constant 0 : i32
    %c0_i32_1 = arith.constant 0 : i32
    return %arg0, %c0_i32, %c0_i32_0 : i32, i32, i32
  }
  func.func @transform_1(%arg0: i32) -> (i32, i32, i32) {
    %c0_i32 = arith.constant 0 : i32
    %c0_i32_0 = arith.constant 0 : i32
    %c0_i32_1 = arith.constant 0 : i32
    %c0_i32_2 = arith.constant 0 : i32
    return %c0_i32, %c0_i32_0, %c0_i32_1 : i32, i32, i32
  }
  func.func @transform_2(%arg0: i32) -> (i32, i32) {
    %c0_i32 = arith.constant 0 : i32
    %c0_i32_0 = arith.constant 0 : i32
    %c0_i32_1 = arith.constant 0 : i32
    return %c0_i32, %c0_i32_0 : i32, i32
  }
  func.func @transform_3(%arg0: i32) -> (i32, i32) {
    %c0_i32 = arith.constant 0 : i32
    %c0_i32_0 = arith.constant 0 : i32
    %c0_i32_1 = arith.constant 0 : i32
    return %c0_i32, %c0_i32_0 : i32, i32
  }
  func.func @transform_4(%arg0: i32) -> (i32, i32, i32) {
    %c0_i32 = arith.constant 0 : i32
    %c0_i32_0 = arith.constant 0 : i32
    %c0_i32_1 = arith.constant 0 : i32
    return %arg0, %c0_i32, %c0_i32_0 : i32, i32, i32
  }
}

module attributes {stable_mosaic.version = 11 : i64} {
  func.func @_conv_stats_kernel(%arg0: i32, %arg1: memref<1x8x326xf32, #tpu.memory_space<vmem>>, %arg2: memref<9x8x8xf32, #tpu.memory_space<vmem>>, %arg3: memref<1x288xf32, #tpu.memory_space<vmem>>, %arg4: memref<8x1xf32, #tpu.memory_space<vmem>>, %arg5: memref<8x1xf32, #tpu.memory_space<vmem>>) attributes {dimension_semantics = [#tpu.dimension_semantics<arbitrary>], iteration_bounds = array<i64: 2>, scalar_prefetch = 0 : i64, scratch_operands = 0 : i64, tpu.core_type = #tpu.core_type<tc>, window_params = [{transform_indices = @transform_0, window_bounds = array<i64: 1, 8, 326>}, {pipeline_mode = #tpu.pipeline_mode<synchronous>, transform_indices = @transform_1, window_bounds = array<i64: 9, 8, 8>}, {pipeline_mode = #tpu.pipeline_mode<synchronous>, transform_indices = @transform_2, window_bounds = array<i64: 1, 288>}, {pipeline_mode = #tpu.pipeline_mode<synchronous>, transform_indices = @transform_3, window_bounds = array<i64: 8, 1>}, {pipeline_mode = #tpu.pipeline_mode<synchronous>, transform_indices = @transform_4, window_bounds = array<i64: 8, 1>}]} {
    %c0_i32 = arith.constant 0 : i32
    %0 = arith.cmpi eq, %arg0, %c0_i32 : i32
    %1 = arith.extui %0 : i1 to i32
    %c0_i32_0 = arith.constant 0 : i32
    %2 = arith.cmpi ne, %1, %c0_i32_0 : i32
    scf.if %2 {
      %cst_43 = arith.constant 0.000000e+00 : f32
      %65 = vector.broadcast %cst_43 : f32 to vector<8x1xf32>
      %c0_44 = arith.constant 0 : index
      %c0_45 = arith.constant 0 : index
      %66 = vector.load %arg4[%c0_44, %c0_45] : memref<8x1xf32, #tpu.memory_space<vmem>>, vector<8x1xf32>
      tpu.vector_store %arg4[%c0_44, %c0_45], %65 {strides = array<i32>} : memref<8x1xf32, #tpu.memory_space<vmem>>, vector<8x1xf32>,
      %cst_46 = arith.constant 0.000000e+00 : f32
      %67 = vector.broadcast %cst_46 : f32 to vector<8x1xf32>
      %c0_47 = arith.constant 0 : index
      %c0_48 = arith.constant 0 : index
      %68 = vector.load %arg5[%c0_47, %c0_48] : memref<8x1xf32, #tpu.memory_space<vmem>>, vector<8x1xf32>
      tpu.vector_store %arg5[%c0_47, %c0_48], %67 {strides = array<i32>} : memref<8x1xf32, #tpu.memory_space<vmem>>, vector<8x1xf32>,
    } else {
    }
    %c0 = arith.constant 0 : index
    %c0_1 = arith.constant 0 : index
    %c0_2 = arith.constant 0 : index
    %3 = vector.load %arg1[%c0, %c0_1, %c0_2] : memref<1x8x326xf32, #tpu.memory_space<vmem>>, vector<1x8x326xf32>
    %4 = vector.shape_cast %3 : vector<1x8x326xf32> to vector<8x326xf32>
    %cst = arith.constant 0.000000e+00 : f32
    %5 = vector.broadcast %cst : f32 to vector<8x288xf32>
    %6 = vector.extract_strided_slice %4 {offsets = [0, 0], sizes = [8, 288], strides = [1, 1]} : vector<8x326xf32> to vector<8x288xf32>
    %c0_3 = arith.constant 0 : index
    %c0_4 = arith.constant 0 : index
    %c0_5 = arith.constant 0 : index
    %7 = vector.load %arg2[%c0_3, %c0_4, %c0_5] : memref<9x8x8xf32, #tpu.memory_space<vmem>>, vector<1x8x8xf32>
    %8 = vector.shape_cast %7 : vector<1x8x8xf32> to vector<8x8xf32>
    %cst_6 = arith.constant dense<0.000000e+00> : vector<8x288xf32>
    %9 = tpu.matmul %8, %6, %cst_6 {dimension_numbers = #tpu.dot_dimension_numbers<[1], [0], [0], [1], [0, 0, 1, 1], [], []>} : vector<8x8xf32>, vector<8x288xf32>, vector<8x288xf32> -> vector<8x288xf32>
    %10 = arith.addf %5, %9 : vector<8x288xf32>
    %11 = vector.extract_strided_slice %4 {offsets = [0, 1], sizes = [8, 288], strides = [1, 1]} : vector<8x326xf32> to vector<8x288xf32>
    %c1 = arith.constant 1 : index
    %c0_7 = arith.constant 0 : index
    %c0_8 = arith.constant 0 : index
    %12 = vector.load %arg2[%c1, %c0_7, %c0_8] : memref<9x8x8xf32, #tpu.memory_space<vmem>>, vector<1x8x8xf32>
    %13 = vector.shape_cast %12 : vector<1x8x8xf32> to vector<8x8xf32>
    %cst_9 = arith.constant dense<0.000000e+00> : vector<8x288xf32>
    %14 = tpu.matmul %13, %11, %cst_9 {dimension_numbers = #tpu.dot_dimension_numbers<[1], [0], [0], [1], [0, 0, 1, 1], [], []>} : vector<8x8xf32>, vector<8x288xf32>, vector<8x288xf32> -> vector<8x288xf32>
    %15 = arith.addf %10, %14 : vector<8x288xf32>
    %16 = vector.extract_strided_slice %4 {offsets = [0, 2], sizes = [8, 288], strides = [1, 1]} : vector<8x326xf32> to vector<8x288xf32>
    %c2 = arith.constant 2 : index
    %c0_10 = arith.constant 0 : index
    %c0_11 = arith.constant 0 : index
    %17 = vector.load %arg2[%c2, %c0_10, %c0_11] : memref<9x8x8xf32, #tpu.memory_space<vmem>>, vector<1x8x8xf32>
    %18 = vector.shape_cast %17 : vector<1x8x8xf32> to vector<8x8xf32>
    %cst_12 = arith.constant dense<0.000000e+00> : vector<8x288xf32>
    %19 = tpu.matmul %18, %16, %cst_12 {dimension_numbers = #tpu.dot_dimension_numbers<[1], [0], [0], [1], [0, 0, 1, 1], [], []>} : vector<8x8xf32>, vector<8x288xf32>, vector<8x288xf32> -> vector<8x288xf32>
    %20 = arith.addf %15, %19 : vector<8x288xf32>
    %21 = vector.extract_strided_slice %4 {offsets = [0, 18], sizes = [8, 288], strides = [1, 1]} : vector<8x326xf32> to vector<8x288xf32>
    %c3 = arith.constant 3 : index
    %c0_13 = arith.constant 0 : index
    %c0_14 = arith.constant 0 : index
    %22 = vector.load %arg2[%c3, %c0_13, %c0_14] : memref<9x8x8xf32, #tpu.memory_space<vmem>>, vector<1x8x8xf32>
    %23 = vector.shape_cast %22 : vector<1x8x8xf32> to vector<8x8xf32>
    %cst_15 = arith.constant dense<0.000000e+00> : vector<8x288xf32>
    %24 = tpu.matmul %23, %21, %cst_15 {dimension_numbers = #tpu.dot_dimension_numbers<[1], [0], [0], [1], [0, 0, 1, 1], [], []>} : vector<8x8xf32>, vector<8x288xf32>, vector<8x288xf32> -> vector<8x288xf32>
    %25 = arith.addf %20, %24 : vector<8x288xf32>
    %26 = vector.extract_strided_slice %4 {offsets = [0, 19], sizes = [8, 288], strides = [1, 1]} : vector<8x326xf32> to vector<8x288xf32>
    %c4 = arith.constant 4 : index
    %c0_16 = arith.constant 0 : index
    %c0_17 = arith.constant 0 : index
    %27 = vector.load %arg2[%c4, %c0_16, %c0_17] : memref<9x8x8xf32, #tpu.memory_space<vmem>>, vector<1x8x8xf32>
    %28 = vector.shape_cast %27 : vector<1x8x8xf32> to vector<8x8xf32>
    %cst_18 = arith.constant dense<0.000000e+00> : vector<8x288xf32>
    %29 = tpu.matmul %28, %26, %cst_18 {dimension_numbers = #tpu.dot_dimension_numbers<[1], [0], [0], [1], [0, 0, 1, 1], [], []>} : vector<8x8xf32>, vector<8x288xf32>, vector<8x288xf32> -> vector<8x288xf32>
    %30 = arith.addf %25, %29 : vector<8x288xf32>
    %31 = vector.extract_strided_slice %4 {offsets = [0, 20], sizes = [8, 288], strides = [1, 1]} : vector<8x326xf32> to vector<8x288xf32>
    %c5 = arith.constant 5 : index
    %c0_19 = arith.constant 0 : index
    %c0_20 = arith.constant 0 : index
    %32 = vector.load %arg2[%c5, %c0_19, %c0_20] : memref<9x8x8xf32, #tpu.memory_space<vmem>>, vector<1x8x8xf32>
    %33 = vector.shape_cast %32 : vector<1x8x8xf32> to vector<8x8xf32>
    %cst_21 = arith.constant dense<0.000000e+00> : vector<8x288xf32>
    %34 = tpu.matmul %33, %31, %cst_21 {dimension_numbers = #tpu.dot_dimension_numbers<[1], [0], [0], [1], [0, 0, 1, 1], [], []>} : vector<8x8xf32>, vector<8x288xf32>, vector<8x288xf32> -> vector<8x288xf32>
    %35 = arith.addf %30, %34 : vector<8x288xf32>
    %36 = vector.extract_strided_slice %4 {offsets = [0, 36], sizes = [8, 288], strides = [1, 1]} : vector<8x326xf32> to vector<8x288xf32>
    %c6 = arith.constant 6 : index
    %c0_22 = arith.constant 0 : index
    %c0_23 = arith.constant 0 : index
    %37 = vector.load %arg2[%c6, %c0_22, %c0_23] : memref<9x8x8xf32, #tpu.memory_space<vmem>>, vector<1x8x8xf32>
    %38 = vector.shape_cast %37 : vector<1x8x8xf32> to vector<8x8xf32>
    %cst_24 = arith.constant dense<0.000000e+00> : vector<8x288xf32>
    %39 = tpu.matmul %38, %36, %cst_24 {dimension_numbers = #tpu.dot_dimension_numbers<[1], [0], [0], [1], [0, 0, 1, 1], [], []>} : vector<8x8xf32>, vector<8x288xf32>, vector<8x288xf32> -> vector<8x288xf32>
    %40 = arith.addf %35, %39 : vector<8x288xf32>
    %41 = vector.extract_strided_slice %4 {offsets = [0, 37], sizes = [8, 288], strides = [1, 1]} : vector<8x326xf32> to vector<8x288xf32>
    %c7 = arith.constant 7 : index
    %c0_25 = arith.constant 0 : index
    %c0_26 = arith.constant 0 : index
    %42 = vector.load %arg2[%c7, %c0_25, %c0_26] : memref<9x8x8xf32, #tpu.memory_space<vmem>>, vector<1x8x8xf32>
    %43 = vector.shape_cast %42 : vector<1x8x8xf32> to vector<8x8xf32>
    %cst_27 = arith.constant dense<0.000000e+00> : vector<8x288xf32>
    %44 = tpu.matmul %43, %41, %cst_27 {dimension_numbers = #tpu.dot_dimension_numbers<[1], [0], [0], [1], [0, 0, 1, 1], [], []>} : vector<8x8xf32>, vector<8x288xf32>, vector<8x288xf32> -> vector<8x288xf32>
    %45 = arith.addf %40, %44 : vector<8x288xf32>
    %46 = vector.extract_strided_slice %4 {offsets = [0, 38], sizes = [8, 288], strides = [1, 1]} : vector<8x326xf32> to vector<8x288xf32>
    %c8 = arith.constant 8 : index
    %c0_28 = arith.constant 0 : index
    %c0_29 = arith.constant 0 : index
    %47 = vector.load %arg2[%c8, %c0_28, %c0_29] : memref<9x8x8xf32, #tpu.memory_space<vmem>>, vector<1x8x8xf32>
    %48 = vector.shape_cast %47 : vector<1x8x8xf32> to vector<8x8xf32>
    %cst_30 = arith.constant dense<0.000000e+00> : vector<8x288xf32>
    %49 = tpu.matmul %48, %46, %cst_30 {dimension_numbers = #tpu.dot_dimension_numbers<[1], [0], [0], [1], [0, 0, 1, 1], [], []>} : vector<8x8xf32>, vector<8x288xf32>, vector<8x288xf32> -> vector<8x288xf32>
    %50 = arith.addf %45, %49 : vector<8x288xf32>
    %c0_31 = arith.constant 0 : index
    %c0_32 = arith.constant 0 : index
    %51 = vector.load %arg3[%c0_31, %c0_32] : memref<1x288xf32, #tpu.memory_space<vmem>>, vector<1x288xf32>
    %52 = vector.broadcast %51 : vector<1x288xf32> to vector<8x288xf32>
    %53 = arith.mulf %50, %52 : vector<8x288xf32>
    %c0_33 = arith.constant 0 : index
    %c0_34 = arith.constant 0 : index
    %54 = vector.load %arg4[%c0_33, %c0_34] : memref<8x1xf32, #tpu.memory_space<vmem>>, vector<8x1xf32>
    %cst_35 = arith.constant dense<0.000000e+00> : vector<8xf32>
    %55 = vector.multi_reduction <add>, %53, %cst_35 [1] : vector<8x288xf32> to vector<8xf32>
    %56 = vector.shape_cast %55 : vector<8xf32> to vector<8x1xf32>
    %57 = arith.addf %54, %56 : vector<8x1xf32>
    %c0_36 = arith.constant 0 : index
    %c0_37 = arith.constant 0 : index
    %58 = vector.load %arg4[%c0_36, %c0_37] : memref<8x1xf32, #tpu.memory_space<vmem>>, vector<8x1xf32>
    tpu.vector_store %arg4[%c0_36, %c0_37], %57 {strides = array<i32>} : memref<8x1xf32, #tpu.memory_space<vmem>>, vector<8x1xf32>,
    %c0_38 = arith.constant 0 : index
    %c0_39 = arith.constant 0 : index
    %59 = vector.load %arg5[%c0_38, %c0_39] : memref<8x1xf32, #tpu.memory_space<vmem>>, vector<8x1xf32>
    %60 = arith.mulf %53, %50 : vector<8x288xf32>
    %cst_40 = arith.constant dense<0.000000e+00> : vector<8xf32>
    %61 = vector.multi_reduction <add>, %60, %cst_40 [1] : vector<8x288xf32> to vector<8xf32>
    %62 = vector.shape_cast %61 : vector<8xf32> to vector<8x1xf32>
    %63 = arith.addf %59, %62 : vector<8x1xf32>
    %c0_41 = arith.constant 0 : index
    %c0_42 = arith.constant 0 : index
    %64 = vector.load %arg5[%c0_41, %c0_42] : memref<8x1xf32, #tpu.memory_space<vmem>>, vector<8x1xf32>
    tpu.vector_store %arg5[%c0_41, %c0_42], %63 {strides = array<i32>} : memref<8x1xf32, #tpu.memory_space<vmem>>, vector<8x1xf32>,
    return
  }
  func.func @transform_0(%arg0: i32) -> (i32, i32, i32) {
    %c0_i32 = arith.constant 0 : i32
    %c0_i32_0 = arith.constant 0 : i32
    %c0_i32_1 = arith.constant 0 : i32
    return %arg0, %c0_i32, %c0_i32_0 : i32, i32, i32
  }
  func.func @transform_1(%arg0: i32) -> (i32, i32, i32) {
    %c0_i32 = arith.constant 0 : i32
    %c0_i32_0 = arith.constant 0 : i32
    %c0_i32_1 = arith.constant 0 : i32
    %c0_i32_2 = arith.constant 0 : i32
    return %c0_i32, %c0_i32_0, %c0_i32_1 : i32, i32, i32
  }
  func.func @transform_2(%arg0: i32) -> (i32, i32) {
    %c0_i32 = arith.constant 0 : i32
    %c0_i32_0 = arith.constant 0 : i32
    %c0_i32_1 = arith.constant 0 : i32
    return %c0_i32, %c0_i32_0 : i32, i32
  }
  func.func @transform_3(%arg0: i32) -> (i32, i32) {
    %c0_i32 = arith.constant 0 : i32
    %c0_i32_0 = arith.constant 0 : i32
    %c0_i32_1 = arith.constant 0 : i32
    return %c0_i32, %c0_i32_0 : i32, i32
  }
  func.func @transform_4(%arg0: i32) -> (i32, i32) {
    %c0_i32 = arith.constant 0 : i32
    %c0_i32_0 = arith.constant 0 : i32
    %c0_i32_1 = arith.constant 0 : i32
    return %c0_i32, %c0_i32_0 : i32, i32
  }
}

</mosaic_0001>

<llo_original>
// kernel: conv_block.4
$region0: #{conv_block.4}
  #allocation0 [shape = 'u32[]', space=smem, size = 0x4, offset = 0x4, fixed_abs, tag = 'smem constant byte address 0x4 - core index']
  #allocation1 [shape = 'u32[144,128]{1,0:T(1,128)}', space=vmem, size = 0x12000, scoped, tag = 'internal scratch']
  %s0 = inlined_call_operand.vmem [shape: f32[2,4,326], index: 0, kind: input, shape index: {}]
  %s1 = inlined_call_operand.vmem [shape: f32[9,8,4], index: 1, kind: input, shape index: {}]
  %s2 = inlined_call_operand.vmem [shape: f32[1,288], index: 2, kind: input, shape index: {}]
  %s3 = inlined_call_operand.vmem [shape: f32[8,1], index: 3, kind: output, shape index: {0}]
  %s4 = inlined_call_operand.vmem [shape: f32[8,1], index: 4, kind: output, shape index: {1}]
  %5 = xla_tuple %s3, %s4
  %s6 = sld [smem:[#allocation0]]
  $region57: #{conv_block.4} parent=0
    _
  %s8 = ssub.s32 1, %s6
  %s9 = scalar_select 0, %s8, %s6
  loop: start=0, step=1, limit=4
  $region2: #{conv_block.4} parent=0 // loop_pre_header
    _
  $region3: #{conv_block.4} parent=0 // loop_header
    %s11 = sphi 0, %s15
    %p12 = scmp.ge.s32.totalorder %s11, 4
    %s21 = sphi 0, %s23
    %s24 = sphi 0, %s21
    %s25 = sphi 0, %s24
    %s41 = sphi 0, %s25
    %s45 = sphi 0, %s45
    %s47 = sphi 0, %s45
    %s48 = sphi 0, %s47
    %s62 = sphi 0, %s48
    %s66 = sphi 0, %s66
    %s68 = sphi 0, %s66
    %s69 = sphi 0, %s68
    %s83 = sphi 0, %s69
    %s87 = sphi 0, %s87
    %s89 = sphi 0, %s87
    %s90 = sphi 0, %s89
    %s104 = sphi 0, %s90
    %s108 = sphi 0, %s108
    %s110 = sphi 0, %s108
    %s111 = sphi 0, %s110
    %s125 = sphi 0, %s111
  $region4: #{conv_block.4} parent=0 // loop_header_branch
    %14 = sbr.rel (%p12) target = $region8
  $region5: #{conv_block.4} parent=0 // loop_body
    %s16 = ssub.s32 %s11, 1
    %s17 = ssub.s32 %s11, 2
    %s18 = sadd.s32 %s11, 1
    %s19 = ssub.s32 %s11, %s18
    %p20 = scmp.eq.s32.totalorder %s19, 0
    %s22 = sadd.s32 %s21, 1
    %s23 = scalar_select %p20, %s21, %s22
    %p26 = pneg %p20
    %p27 = scmp.eq.s32.totalorder %s11, 1
    %p28 = por %p26, %p27
    %p29 = scmp.ne.s32.totalorder %s21, %s24
    %p30 = scmp.eq.s32.totalorder %s11, 0
    %p31 = por %p29, %p30
    %p32 = scmp.ne.s32.totalorder %s21, %s24
    %p33 = scmp.eq.s32.totalorder %s16, 1
    %p34 = por %p32, %p33
    %p35 = scmp.ne.s32.totalorder %s24, %s25
    %p36 = scmp.eq.s32.totalorder %s16, 0
    %p37 = por %p35, %p36
    %p38 = scmp.ne.s32.totalorder %s24, %s25
    %p39 = scmp.eq.s32.totalorder %s17, 1
    %p40 = por %p38, %p39
    %p42 = scmp.ne.s32.totalorder %s25, %s41
    %p43 = scmp.eq.s32.totalorder %s17, 0
    %p44 = por %p42, %p43
    %s46 = sadd.s32 %s45, 1
    %p49 = scmp.eq.s32.totalorder %s11, 1
    %p50 = scmp.ne.s32.totalorder %s45, %s47
    %p51 = scmp.eq.s32.totalorder %s11, 0
    %p52 = por %p50, %p51
    %p53 = scmp.ne.s32.totalorder %s45, %s47
    %p54 = scmp.eq.s32.totalorder %s16, 1
    %p55 = por %p53, %p54
    %p56 = scmp.ne.s32.totalorder %s47, %s48
    %p57 = scmp.eq.s32.totalorder %s16, 0
    %p58 = por %p56, %p57
    %p59 = scmp.ne.s32.totalorder %s47, %s48
    %p60 = scmp.eq.s32.totalorder %s17, 1
    %p61 = por %p59, %p60
    %p63 = scmp.ne.s32.totalorder %s48, %s62
    %p64 = scmp.eq.s32.totalorder %s17, 0
    %p65 = por %p63, %p64
    %s67 = sadd.s32 %s66, 1
    %p70 = scmp.eq.s32.totalorder %s11, 1
    %p71 = scmp.ne.s32.totalorder %s66, %s68
    %p72 = scmp.eq.s32.totalorder %s11, 0
    %p73 = por %p71, %p72
    %p74 = scmp.ne.s32.totalorder %s66, %s68
    %p75 = scmp.eq.s32.totalorder %s16, 1
    %p76 = por %p74, %p75
    %p77 = scmp.ne.s32.totalorder %s68, %s69
    %p78 = scmp.eq.s32.totalorder %s16, 0
    %p79 = por %p77, %p78
    %p80 = scmp.ne.s32.totalorder %s68, %s69
    %p81 = scmp.eq.s32.totalorder %s17, 1
    %p82 = por %p80, %p81
    %p84 = scmp.ne.s32.totalorder %s69, %s83
    %p85 = scmp.eq.s32.totalorder %s17, 0
    %p86 = por %p84, %p85
    %s88 = sadd.s32 %s87, 1
    %p91 = scmp.eq.s32.totalorder %s11, 1
    %p92 = scmp.ne.s32.totalorder %s87, %s89
    %p93 = scmp.eq.s32.totalorder %s11, 0
    %p94 = por %p92, %p93
    %p95 = scmp.ne.s32.totalorder %s87, %s89
    %p96 = scmp.eq.s32.totalorder %s16, 1
    %p97 = por %p95, %p96
    %p98 = scmp.ne.s32.totalorder %s89, %s90
    %p99 = scmp.eq.s32.totalorder %s16, 0
    %p100 = por %p98, %p99
    %p101 = scmp.ne.s32.totalorder %s89, %s90
    %p102 = scmp.eq.s32.totalorder %s17, 1
    %p103 = por %p101, %p102
    %p105 = scmp.ne.s32.totalorder %s90, %s104
    %p106 = scmp.eq.s32.totalorder %s17, 0
    %p107 = por %p105, %p106
    %s109 = sadd.s32 %s108, 1
    %p112 = scmp.eq.s32.totalorder %s11, 1
    %p113 = scmp.ne.s32.totalorder %s108, %s110
    %p114 = scmp.eq.s32.totalorder %s11, 0
    %p115 = por %p113, %p114
    %p116 = scmp.ne.s32.totalorder %s108, %s110
    %p117 = scmp.eq.s32.totalorder %s16, 1
    %p118 = por %p116, %p117
    %p119 = scmp.ne.s32.totalorder %s110, %s111
    %p120 = scmp.eq.s32.totalorder %s16, 0
    %p121 = por %p119, %p120
    %p122 = scmp.ne.s32.totalorder %s110, %s111
    %p123 = scmp.eq.s32.totalorder %s17, 1
    %p124 = por %p122, %p123
    %p126 = scmp.ne.s32.totalorder %s111, %s125
    %p127 = scmp.eq.s32.totalorder %s17, 0
    %p128 = por %p126, %p127
    %p129 = scmp.le.s32.totalorder 1, %s11
    %p130 = scmp.lt.s32.totalorder %s11, 3
    %p131 = pnand %p129, %p130
    %p132 = pneg %p131
    // Predicated region
    $region9: #{conv_block.4} parent=5 // pred_check
      _
    $region10: #{conv_block.4} parent=5 // pred_check_branch
      %134 = sbr.rel (%p131) target = $region12
    $region11: #{conv_block.4} parent=5 // pred_region
      %s135 = ssub.s32 %s11, 1
      // Predicated region
      $region13: #{conv_block.4} parent=11 // pred_check
        %p136 = pneg %p58
      $region14: #{conv_block.4} parent=11 // pred_check_branch
        %138 = sbr.rel (%p136) target = $region16
      $region15: #{conv_block.4} parent=11 // pred_region
        _
      $region16: #{conv_block.4} parent=11 // pred_fallthru
        _
      // Predicated region
      $region17: #{conv_block.4} parent=11 // pred_check
        %p139 = pneg %p79
      $region18: #{conv_block.4} parent=11 // pred_check_branch
        %141 = sbr.rel (%p139) target = $region20
      $region19: #{conv_block.4} parent=11 // pred_region
        _
      $region20: #{conv_block.4} parent=11 // pred_fallthru
        _
    $region12: #{conv_block.4} parent=5 // pred_fallthru
      _
    %p142 = scmp.lt.s32.totalorder %s11, 2
    // Predicated region
    $region21: #{conv_block.4} parent=5 // pred_check
      %p143 = pneg %p142
    $region22: #{conv_block.4} parent=5 // pred_check_branch
      %145 = sbr.rel (%p143) target = $region24
    $region23: #{conv_block.4} parent=5 // pred_region
      // Predicated region
      $region25: #{conv_block.4} parent=23 // pred_check
        %p146 = pneg %p31
      $region26: #{conv_block.4} parent=23 // pred_check_branch
        %148 = sbr.rel (%p146) target = $region28
      $region27: #{conv_block.4} parent=23 // pred_region
        %p149 = scmp.lt.s32.totalorder %s11, 1
        %s150 = scalar_select %p149, %s11, 1
        %s151 = smul.addr %s150, 3
        %s152 = smul.addr %s151, 4
        %s153 = scalar_lea.vmem %s0, %s152
      $region28: #{conv_block.4} parent=23 // pred_fallthru
        _
    $region24: #{conv_block.4} parent=5 // pred_fallthru
      _
    %p154 = scmp.le.s32.totalorder 1, %s11
    %p155 = scmp.lt.s32.totalorder %s11, 3
    %p156 = pnand %p154, %p155
    %p157 = pneg %p156
    // Predicated region
    $region29: #{conv_block.4} parent=5 // pred_check
      _
    $region30: #{conv_block.4} parent=5 // pred_check_branch
      %159 = sbr.rel (%p156) target = $region32
    $region31: #{conv_block.4} parent=5 // pred_region
      %s160 = ssub.s32 %s11, 1
      %p161 = scmp.lt.s32.totalorder %s16, 1
      %s162 = scalar_select %p161, %s16, 1
      %s163 = smul.addr %s162, 3
      %s164 = smul.addr %s163, 4
      %s165 = scalar_lea.vmem %s0, %s164
      %p166 = pneg %p37
      %p167 = pneg %p34
      %p168 = pneg %p58
      %p169 = pneg %p55
      %p170 = pneg %p79
      %p171 = pneg %p76
      %p172 = pneg %p100
      %p173 = pneg %p97
      %p174 = pneg %p121
      %p175 = pneg %p118
      %p176 = scmp.lt.s32.totalorder %s16, 1
      %s177 = scalar_select %p176, %s16, 1
      %s178 = smul.addr %s177, 3
      %s179 = smul.addr %s178, 4
      %s180 = scalar_lea.vmem %s0, %s179
      %p181 = scmp.eq.s32.totalorder %s16, 0
      // Predicated region
      $region33: #{conv_block.4} parent=31 // pred_check
        %p182 = pneg %p181
      $region34: #{conv_block.4} parent=31 // pred_check_branch
        %184 = sbr.rel (%p182) target = $region36
      $region35: #{conv_block.4} parent=31 // pred_region
        %vm185 = vcmask 7168
        %186 = vst.msk [vmem:[%s3] sm:$0xff] %vm185, 0.0
        %187 = vst.msk [vmem:[%s4] sm:$0xff] %vm185, 0.0
      $region36: #{conv_block.4} parent=31 // pred_fallthru
        _
      %v188 = vld [vmem:[%s180] sm:$0xff]
      %v189 = vld [vmem:[%s180 + $0x8] sm:$0xf]
      %v190 = vld [vmem:[%s1] sm:$0xff]
      %s191 = scalar_lea.vmem %s1, 8
      %v192 = vld [vmem:[%s191] sm:$0xff]
      %v195 = vcombine.high %v188, %v188
      %196 = vrot.lane.b32.xlu0 %v188, 127
      %v197 = vpop.permute.xlu0 %196
      %198 = vrot.lane.b32.xlu0 %v195, 127
      %v199 = vpop.permute.xlu0 %198
      %200 = vrot.lane.b32.xlu0 %v189, 127
      %v201 = vpop.permute.xlu0 %200
      %vm202 = vcmask 1039360
      %v203 = vsel %vm202, %v197, %v199
      %v204 = vsel %vm202, %v199, %v201
      %vm205 = vcmask 31744
      %v207 = vsel %vm205, %v192, 0
      %vm209 = vcmask 1043456
      %v210 = vsel %vm209, %v203, 0
      %v212 = vsel %vm209, %v204, 0
      %v214 = vsel %vm209, %v201, 0
      %216 = vmatprep.subr.mxu0 0.0
      %217 = vmatpush1.msra.mxu0 0.0
      %218 = vmatprep.subr.mxu0 0.0
      %219 = vmatpush1.msra.mxu0 0.0
      %220 = vmatprep.subr.mxu0 0.0
      %221 = vmatpush1.msra.mxu0 0.0
      %222 = vmatprep.subr.mxu0 0.0
      %223 = vmatpush1.msra.mxu0 0.0
      %224 = vmatprep.subr.mxu0 0.0
      %225 = vmatpush1.msra.mxu0 0.0
      %226 = vmatprep.subr.mxu0 0.0
      %227 = vmatpush1.msra.mxu0 0.0
      %228 = vmatprep.subr.mxu0 0.0
      %229 = vmatpush1.msra.mxu0 0.0
      %230 = vmatprep.subr.mxu0 0.0
      %231 = vmatpush1.msra.mxu0 0.0
      %232 = vmatprep.subr.mxu0 0.0
      %233 = vmatpush1.msra.mxu0 0.0
      %234 = vmatprep.subr.mxu0 0.0
      %235 = vmatpush1.msra.mxu0 0.0
      %236 = vmatprep.subr.mxu0 0.0
      %237 = vmatpush1.msra.mxu0 0.0
      %238 = vmatprep.subr.mxu0 0.0
      %239 = vmatpush1.msra.mxu0 0.0
      %240 = vmatprep.subr.mxu0 0.0
      %241 = vmatpush1.msra.mxu0 0.0
      %242 = vmatprep.subr.mxu0 0.0
      %243 = vmatpush1.msra.mxu0 0.0
      %244 = vmatprep.subr.mxu0 0.0
      %245 = vmatpush1.msra.mxu0 0.0
      %246 = vmatprep.subr.mxu0 %v212
      %247 = vmatpush1.msra.mxu0 %v210
      %248 = vmatprep.subr.mxu0 0.0
      %249 = vmatpush2.msra.mxu0 0.0
      %250 = vmatprep.subr.mxu0 0.0
      %251 = vmatpush2.msra.mxu0 0.0
      %252 = vmatprep.subr.mxu0 0.0
      %253 = vmatpush2.msra.mxu0 0.0
      %254 = vmatprep.subr.mxu0 0.0
      %255 = vmatpush2.msra.mxu0 0.0
      %256 = vmatprep.subr.mxu0 0.0
      %257 = vmatpush2.msra.mxu0 0.0
      %258 = vmatprep.subr.mxu0 0.0
      %259 = vmatpush2.msra.mxu0 0.0
      %260 = vmatprep.subr.mxu0 0.0
      %261 = vmatpush2.msra.mxu0 0.0
      %262 = vmatprep.subr.mxu0 0.0
      %263 = vmatpush2.msra.mxu0 0.0
      %264 = vmatprep.subr.mxu0 0.0
      %265 = vmatpush2.msra.mxu0 0.0
      %266 = vmatprep.subr.mxu0 0.0
      %267 = vmatpush2.msra.mxu0 0.0
      %268 = vmatprep.subr.mxu0 0.0
      %269 = vmatpush2.msra.mxu0 0.0
      %270 = vmatprep.subr.mxu0 0.0
      %271 = vmatpush2.msra.mxu0 0.0
      %272 = vmatprep.subr.mxu0 0.0
      %273 = vmatpush2.msra.mxu0 0.0
      %274 = vmatprep.subr.mxu0 0.0
      %275 = vmatpush2.msra.mxu0 0.0
      %276 = vmatprep.subr.mxu0 0.0
      %277 = vmatpush2.msra.mxu0 0.0
      %278 = vmatprep.subr.mxu0 0.0
      %279 = vmatpush2.msra.mxu0 0.0
      %280 = vmatprep.mubr.f32.mxu0 0.0
      %281 = vmatmul.mubr.f32.gmra.mxu0 %v207
      %v282 = vpop.f32.mrf.mxu0
      %v283 = vadd.f32 0.0, %v282
      %v284 = vpop.f32.mrf.mxu0
      %v285 = vadd.f32 0.0, %v284
      %286 = vdwg.mxu0
      %287 = vmatprep.subr.mxu0 0.0
      %288 = vmatpush1.msra.mxu0 0.0
      %289 = vmatprep.subr.mxu0 0.0
      %290 = vmatpush1.msra.mxu0 0.0
      %291 = vmatprep.subr.mxu0 0.0
      %292 = vmatpush1.msra.mxu0 0.0
      %293 = vmatprep.subr.mxu0 0.0
      %294 = vmatpush1.msra.mxu0 0.0
      %295 = vmatprep.subr.mxu0 0.0
      %296 = vmatpush1.msra.mxu0 0.0
      %297 = vmatprep.subr.mxu0 0.0
      %298 = vmatpush1.msra.mxu0 0.0
      %299 = vmatprep.subr.mxu0 0.0
      %300 = vmatpush1.msra.mxu0 0.0
      %301 = vmatprep.subr.mxu0 0.0
      %302 = vmatpush1.msra.mxu0 0.0
      %303 = vmatprep.subr.mxu0 0.0
      %304 = vmatpush1.msra.mxu0 0.0
      %305 = vmatprep.subr.mxu0 0.0
      %306 = vmatpush1.msra.mxu0 0.0
      %307 = vmatprep.subr.mxu0 0.0
      %308 = vmatpush1.msra.mxu0 0.0
      %309 = vmatprep.subr.mxu0 0.0
      %310 = vmatpush1.msra.mxu0 0.0
      %311 = vmatprep.subr.mxu0 0.0
      %312 = vmatpush1.msra.mxu0 0.0
      %313 = vmatprep.subr.mxu0 0.0
      %314 = vmatpush1.msra.mxu0 0.0
      %315 = vmatprep.subr.mxu0 0.0
      %316 = vmatpush1.msra.mxu0 0.0
      %317 = vmatprep.subr.mxu0 0.0
      %318 = vmatpush1.msra.mxu0 %v214
      %319 = vmatprep.subr.mxu0 0.0
      %320 = vmatpush2.msra.mxu0 0.0
      %321 = vmatprep.subr.mxu0 0.0
      %322 = vmatpush2.msra.mxu0 0.0
      %323 = vmatprep.subr.mxu0 0.0
      %324 = vmatpush2.msra.mxu0 0.0
      %325 = vmatprep.subr.mxu0 0.0
      %326 = vmatpush2.msra.mxu0 0.0
      %327 = vmatprep.subr.mxu0 0.0
      %328 = vmatpush2.msra.mxu0 0.0
      %329 = vmatprep.subr.mxu0 0.0
      %330 = vmatpush2.msra.mxu0 0.0
      %331 = vmatprep.subr.mxu0 0.0
      %332 = vmatpush2.msra.mxu0 0.0
      %333 = vmatprep.subr.mxu0 0.0
      %334 = vmatpush2.msra.mxu0 0.0
      %335 = vmatprep.subr.mxu0 0.0
      %336 = vmatpush2.msra.mxu0 0.0
      %337 = vmatprep.subr.mxu0 0.0
      %338 = vmatpush2.msra.mxu0 0.0
      %339 = vmatprep.subr.mxu0 0.0
      %340 = vmatpush2.msra.mxu0 0.0
      %341 = vmatprep.subr.mxu0 0.0
      %342 = vmatpush2.msra.mxu0 0.0
      %343 = vmatprep.subr.mxu0 0.0
      %344 = vmatpush2.msra.mxu0 0.0
      %345 = vmatprep.subr.mxu0 0.0
      %346 = vmatpush2.msra.mxu0 0.0
      %347 = vmatprep.subr.mxu0 0.0
      %348 = vmatpush2.msra.mxu0 0.0
      %349 = vmatprep.subr.mxu0 0.0
      %350 = vmatpush2.msra.mxu0 0.0
      %351 = vmatprep.mubr.f32.mxu0 0.0
      %352 = vmatmul.mubr.f32.gmra.mxu0 %v207
      %v353 = vpop.f32.mrf.mxu0
      %v354 = vadd.f32 0.0, %v353
      %v355 = vpop.f32.mrf.mxu0
      %356 = vdwg.mxu0
      %v358 = vsel %vm205, %v190, 0
      %v360 = vsel %vm209, %v188, 0
      %v362 = vsel %vm209, %v195, 0
      %v364 = vsel %vm209, %v189, 0
      %366 = vmatprep.subr.mxu0 0.0
      %367 = vmatpush1.msra.mxu0 0.0
      %368 = vmatprep.subr.mxu0 0.0
      %369 = vmatpush1.msra.mxu0 0.0
      %370 = vmatprep.subr.mxu0 0.0
      %371 = vmatpush1.msra.mxu0 0.0
      %372 = vmatprep.subr.mxu0 0.0
      %373 = vmatpush1.msra.mxu0 0.0
      %374 = vmatprep.subr.mxu0 0.0
      %375 = vmatpush1.msra.mxu0 0.0
      %376 = vmatprep.subr.mxu0 0.0
      %377 = vmatpush1.msra.mxu0 0.0
      %378 = vmatprep.subr.mxu0 0.0
      %379 = vmatpush1.msra.mxu0 0.0
      %380 = vmatprep.subr.mxu0 0.0
      %381 = vmatpush1.msra.mxu0 0.0
      %382 = vmatprep.subr.mxu0 0.0
      %383 = vmatpush1.msra.mxu0 0.0
      %384 = vmatprep.subr.mxu0 0.0
      %385 = vmatpush1.msra.mxu0 0.0
      %386 = vmatprep.subr.mxu0 0.0
      %387 = vmatpush1.msra.mxu0 0.0
      %388 = vmatprep.subr.mxu0 0.0
      %389 = vmatpush1.msra.mxu0 0.0
      %390 = vmatprep.subr.mxu0 0.0
      %391 = vmatpush1.msra.mxu0 0.0
      %392 = vmatprep.subr.mxu0 0.0
      %393 = vmatpush1.msra.mxu0 0.0
      %394 = vmatprep.subr.mxu0 0.0
      %395 = vmatpush1.msra.mxu0 0.0
      %396 = vmatprep.subr.mxu0 %v362
      %397 = vmatpush1.msra.mxu0 %v360
      %398 = vmatprep.subr.mxu0 0.0
      %399 = vmatpush2.msra.mxu0 0.0
      %400 = vmatprep.subr.mxu0 0.0
      %401 = vmatpush2.msra.mxu0 0.0
      %402 = vmatprep.subr.mxu0 0.0
      %403 = vmatpush2.msra.mxu0 0.0
      %404 = vmatprep.subr.mxu0 0.0
      %405 = vmatpush2.msra.mxu0 0.0
      %406 = vmatprep.subr.mxu0 0.0
      %407 = vmatpush2.msra.mxu0 0.0
      %408 = vmatprep.subr.mxu0 0.0
      %409 = vmatpush2.msra.mxu0 0.0
      %410 = vmatprep.subr.mxu0 0.0
      %411 = vmatpush2.msra.mxu0 0.0
      %412 = vmatprep.subr.mxu0 0.0
      %413 = vmatpush2.msra.mxu0 0.0
      %414 = vmatprep.subr.mxu0 0.0
      %415 = vmatpush2.msra.mxu0 0.0
      %416 = vmatprep.subr.mxu0 0.0
      %417 = vmatpush2.msra.mxu0 0.0
      %418 = vmatprep.subr.mxu0 0.0
      %419 = vmatpush2.msra.mxu0 0.0
      %420 = vmatprep.subr.mxu0 0.0
      %421 = vmatpush2.msra.mxu0 0.0
      %422 = vmatprep.subr.mxu0 0.0
      %423 = vmatpush2.msra.mxu0 0.0
      %424 = vmatprep.subr.mxu0 0.0
      %425 = vmatpush2.msra.mxu0 0.0
      %426 = vmatprep.subr.mxu0 0.0
      %427 = vmatpush2.msra.mxu0 0.0
      %428 = vmatprep.subr.mxu0 0.0
      %429 = vmatpush2.msra.mxu0 0.0
      %430 = vmatprep.mubr.f32.mxu0 0.0
      %431 = vmatmul.mubr.f32.gmra.mxu0 %v358
      %v432 = vpop.f32.mrf.mxu0
      %v433 = vadd.f32 %v283, %v432
      %v434 = vpop.f32.mrf.mxu0
      %v435 = vadd.f32 %v285, %v434
      %436 = vdwg.mxu0
      %437 = vmatprep.subr.mxu0 0.0
      %438 = vmatpush1.msra.mxu0 0.0
      %439 = vmatprep.subr.mxu0 0.0
      %440 = vmatpush1.msra.mxu0 0.0
      %441 = vmatprep.subr.mxu0 0.0
      %442 = vmatpush1.msra.mxu0 0.0
      %443 = vmatprep.subr.mxu0 0.0
      %444 = vmatpush1.msra.mxu0 0.0
      %445 = vmatprep.subr.mxu0 0.0
      %446 = vmatpush1.msra.mxu0 0.0
      %447 = vmatprep.subr.mxu0 0.0
      %448 = vmatpush1.msra.mxu0 0.0
      %449 = vmatprep.subr.mxu0 0.0
      %450 = vmatpush1.msra.mxu0 0.0
      %451 = vmatprep.subr.mxu0 0.0
      %452 = vmatpush1.msra.mxu0 0.0
      %453 = vmatprep.subr.mxu0 0.0
      %454 = vmatpush1.msra.mxu0 0.0
      %455 = vmatprep.subr.mxu0 0.0
      %456 = vmatpush1.msra.mxu0 0.0
      %457 = vmatprep.subr.mxu0 0.0
      %458 = vmatpush1.msra.mxu0 0.0
      %459 = vmatprep.subr.mxu0 0.0
      %460 = vmatpush1.msra.mxu0 0.0
      %461 = vmatprep.subr.mxu0 0.0
      %462 = vmatpush1.msra.mxu0 0.0
      %463 = vmatprep.subr.mxu0 0.0
      %464 = vmatpush1.msra.mxu0 0.0
      %465 = vmatprep.subr.mxu0 0.0
      %466 = vmatpush1.msra.mxu0 0.0
      %467 = vmatprep.subr.mxu0 0.0
      %468 = vmatpush1.msra.mxu0 %v364
      %469 = vmatprep.subr.mxu0 0.0
      %470 = vmatpush2.msra.mxu0 0.0
      %471 = vmatprep.subr.mxu0 0.0
      %472 = vmatpush2.msra.mxu0 0.0
      %473 = vmatprep.subr.mxu0 0.0
      %474 = vmatpush2.msra.mxu0 0.0
      %475 = vmatprep.subr.mxu0 0.0
      %476 = vmatpush2.msra.mxu0 0.0
      %477 = vmatprep.subr.mxu0 0.0
      %478 = vmatpush2.msra.mxu0 0.0
      %479 = vmatprep.subr.mxu0 0.0
      %480 = vmatpush2.msra.mxu0 0.0
      %481 = vmatprep.subr.mxu0 0.0
      %482 = vmatpush2.msra.mxu0 0.0
      %483 = vmatprep.subr.mxu0 0.0
      %484 = vmatpush2.msra.mxu0 0.0
      %485 = vmatprep.subr.mxu0 0.0
      %486 = vmatpush2.msra.mxu0 0.0
      %487 = vmatprep.subr.mxu0 0.0
      %488 = vmatpush2.msra.mxu0 0.0
      %489 = vmatprep.subr.mxu0 0.0
      %490 = vmatpush2.msra.mxu0 0.0
      %491 = vmatprep.subr.mxu0 0.0
      %492 = vmatpush2.msra.mxu0 0.0
      %493 = vmatprep.subr.mxu0 0.0
      %494 = vmatpush2.msra.mxu0 0.0
      %495 = vmatprep.subr.mxu0 0.0
      %496 = vmatpush2.msra.mxu0 0.0
      %497 = vmatprep.subr.mxu0 0.0
      %498 = vmatpush2.msra.mxu0 0.0
      %499 = vmatprep.subr.mxu0 0.0
      %500 = vmatpush2.msra.mxu0 0.0
      %501 = vmatprep.mubr.f32.mxu0 0.0
      %502 = vmatmul.mubr.f32.gmra.mxu0 %v358
      %v503 = vpop.f32.mrf.mxu0
      %v504 = vadd.f32 %v354, %v503
      %v505 = vpop.f32.mrf.mxu0
      %506 = vdwg.mxu0
      %s507 = scalar_lea.vmem %s1, 16
      %v508 = vld [vmem:[%s507] sm:$0xff]
      %509 = vrot.lane.b32.xlu0 %v188, 126
      %v510 = vpop.permute.xlu0 %509
      %511 = vrot.lane.b32.xlu0 %v195, 126
      %v512 = vpop.permute.xlu0 %511
      %513 = vrot.lane.b32.xlu0 %v189, 126
      %v514 = vpop.permute.xlu0 %513
      %vm515 = vcmask 1031168
      %v516 = vsel %vm515, %v510, %v512
      %v517 = vsel %vm515, %v512, %v514
      %v519 = vsel %vm205, %v508, 0
      %v521 = vsel %vm209, %v516, 0
      %v523 = vsel %vm209, %v517, 0
      %v525 = vsel %vm209, %v514, 0
      %527 = vmatprep.subr.mxu0 0.0
      %528 = vmatpush1.msra.mxu0 0.0
      %529 = vmatprep.subr.mxu0 0.0
      %530 = vmatpush1.msra.mxu0 0.0
      %531 = vmatprep.subr.mxu0 0.0
      %532 = vmatpush1.msra.mxu0 0.0
      %533 = vmatprep.subr.mxu0 0.0
      %534 = vmatpush1.msra.mxu0 0.0
      %535 = vmatprep.subr.mxu0 0.0
      %536 = vmatpush1.msra.mxu0 0.0
      %537 = vmatprep.subr.mxu0 0.0
      %538 = vmatpush1.msra.mxu0 0.0
      %539 = vmatprep.subr.mxu0 0.0
      %540 = vmatpush1.msra.mxu0 0.0
      %541 = vmatprep.subr.mxu0 0.0
      %542 = vmatpush1.msra.mxu0 0.0
      %543 = vmatprep.subr.mxu0 0.0
      %544 = vmatpush1.msra.mxu0 0.0
      %545 = vmatprep.subr.mxu0 0.0
      %546 = vmatpush1.msra.mxu0 0.0
      %547 = vmatprep.subr.mxu0 0.0
      %548 = vmatpush1.msra.mxu0 0.0
      %549 = vmatprep.subr.mxu0 0.0
      %550 = vmatpush1.msra.mxu0 0.0
      %551 = vmatprep.subr.mxu0 0.0
      %552 = vmatpush1.msra.mxu0 0.0
      %553 = vmatprep.subr.mxu0 0.0
      %554 = vmatpush1.msra.mxu0 0.0
      %555 = vmatprep.subr.mxu0 0.0
      %556 = vmatpush1.msra.mxu0 0.0
      %557 = vmatprep.subr.mxu0 %v523
      %558 = vmatpush1.msra.mxu0 %v521
      %559 = vmatprep.subr.mxu0 0.0
      %560 = vmatpush2.msra.mxu0 0.0
      %561 = vmatprep.subr.mxu0 0.0
      %562 = vmatpush2.msra.mxu0 0.0
      %563 = vmatprep.subr.mxu0 0.0
      %564 = vmatpush2.msra.mxu0 0.0
      %565 = vmatprep.subr.mxu0 0.0
      %566 = vmatpush2.msra.mxu0 0.0
      %567 = vmatprep.subr.mxu0 0.0
      %568 = vmatpush2.msra.mxu0 0.0
      %569 = vmatprep.subr.mxu0 0.0
      %570 = vmatpush2.msra.mxu0 0.0
      %571 = vmatprep.subr.mxu0 0.0
      %572 = vmatpush2.msra.mxu0 0.0
      %573 = vmatprep.subr.mxu0 0.0
      %574 = vmatpush2.msra.mxu0 0.0
      %575 = vmatprep.subr.mxu0 0.0
      %576 = vmatpush2.msra.mxu0 0.0
      %577 = vmatprep.subr.mxu0 0.0
      %578 = vmatpush2.msra.mxu0 0.0
      %579 = vmatprep.subr.mxu0 0.0
      %580 = vmatpush2.msra.mxu0 0.0
      %581 = vmatprep.subr.mxu0 0.0
      %582 = vmatpush2.msra.mxu0 0.0
      %583 = vmatprep.subr.mxu0 0.0
      %584 = vmatpush2.msra.mxu0 0.0
      %585 = vmatprep.subr.mxu0 0.0
      %586 = vmatpush2.msra.mxu0 0.0
      %587 = vmatprep.subr.mxu0 0.0
      %588 = vmatpush2.msra.mxu0 0.0
      %589 = vmatprep.subr.mxu0 0.0
      %590 = vmatpush2.msra.mxu0 0.0
      %591 = vmatprep.mubr.f32.mxu0 0.0
      %592 = vmatmul.mubr.f32.gmra.mxu0 %v519
      %v593 = vpop.f32.mrf.mxu0
      %v594 = vadd.f32 0.0, %v593
      %v595 = vpop.f32.mrf.mxu0
      %v596 = vadd.f32 0.0, %v595
      %597 = vdwg.mxu0
      %598 = vmatprep.subr.mxu0 0.0
      %599 = vmatpush1.msra.mxu0 0.0
      %600 = vmatprep.subr.mxu0 0.0
      %601 = vmatpush1.msra.mxu0 0.0
      %602 = vmatprep.subr.mxu0 0.0
      %603 = vmatpush1.msra.mxu0 0.0
      %604 = vmatprep.subr.mxu0 0.0
      %605 = vmatpush1.msra.mxu0 0.0
      %606 = vmatprep.subr.mxu0 0.0
      %607 = vmatpush1.msra.mxu0 0.0
      %608 = vmatprep.subr.mxu0 0.0
      %609 = vmatpush1.msra.mxu0 0.0
      %610 = vmatprep.subr.mxu0 0.0
      %611 = vmatpush1.msra.mxu0 0.0
      %612 = vmatprep.subr.mxu0 0.0
      %613 = vmatpush1.msra.mxu0 0.0
      %614 = vmatprep.subr.mxu0 0.0
      %615 = vmatpush1.msra.mxu0 0.0
      %616 = vmatprep.subr.mxu0 0.0
      %617 = vmatpush1.msra.mxu0 0.0
      %618 = vmatprep.subr.mxu0 0.0
      %619 = vmatpush1.msra.mxu0 0.0
      %620 = vmatprep.subr.mxu0 0.0
      %621 = vmatpush1.msra.mxu0 0.0
      %622 = vmatprep.subr.mxu0 0.0
      %623 = vmatpush1.msra.mxu0 0.0
      %624 = vmatprep.subr.mxu0 0.0
      %625 = vmatpush1.msra.mxu0 0.0
      %626 = vmatprep.subr.mxu0 0.0
      %627 = vmatpush1.msra.mxu0 0.0
      %628 = vmatprep.subr.mxu0 0.0
      %629 = vmatpush1.msra.mxu0 %v525
      %630 = vmatprep.subr.mxu0 0.0
      %631 = vmatpush2.msra.mxu0 0.0
      %632 = vmatprep.subr.mxu0 0.0
      %633 = vmatpush2.msra.mxu0 0.0
      %634 = vmatprep.subr.mxu0 0.0
      %635 = vmatpush2.msra.mxu0 0.0
      %636 = vmatprep.subr.mxu0 0.0
      %637 = vmatpush2.msra.mxu0 0.0
      %638 = vmatprep.subr.mxu0 0.0
      %639 = vmatpush2.msra.mxu0 0.0
      %640 = vmatprep.subr.mxu0 0.0
      %641 = vmatpush2.msra.mxu0 0.0
      %642 = vmatprep.subr.mxu0 0.0
      %643 = vmatpush2.msra.mxu0 0.0
      %644 = vmatprep.subr.mxu0 0.0
      %645 = vmatpush2.msra.mxu0 0.0
      %646 = vmatprep.subr.mxu0 0.0
      %647 = vmatpush2.msra.mxu0 0.0
      %648 = vmatprep.subr.mxu0 0.0
      %649 = vmatpush2.msra.mxu0 0.0
      %650 = vmatprep.subr.mxu0 0.0
      %651 = vmatpush2.msra.mxu0 0.0
      %652 = vmatprep.subr.mxu0 0.0
      %653 = vmatpush2.msra.mxu0 0.0
      %654 = vmatprep.subr.mxu0 0.0
      %655 = vmatpush2.msra.mxu0 0.0
      %656 = vmatprep.subr.mxu0 0.0
      %657 = vmatpush2.msra.mxu0 0.0
      %658 = vmatprep.subr.mxu0 0.0
      %659 = vmatpush2.msra.mxu0 0.0
      %660 = vmatprep.subr.mxu0 0.0
      %661 = vmatpush2.msra.mxu0 0.0
      %662 = vmatprep.mubr.f32.mxu0 0.0
      %663 = vmatmul.mubr.f32.gmra.mxu0 %v519
      %v664 = vpop.f32.mrf.mxu0
      %v665 = vadd.f32 0.0, %v664
      %v666 = vpop.f32.mrf.mxu0
      %667 = vdwg.mxu0
      %v668 = vadd.f32 %v433, %v594
      %v669 = vadd.f32 %v435, %v596
      %v670 = vadd.f32 %v504, %v665
      %s671 = scalar_lea.vmem %s1, 24
      %v672 = vld [vmem:[%s671] sm:$0xff]
      %673 = vrot.lane.b32.xlu0 %v188, 110
      %v674 = vpop.permute.xlu0 %673
      %675 = vrot.lane.b32.xlu0 %v195, 110
      %v676 = vpop.permute.xlu0 %675
      %677 = vrot.lane.b32.xlu0 %v189, 110
      %v678 = vpop.permute.xlu0 %677
      %vm679 = vcmask 900096
      %v680 = vsel %vm679, %v674, %v676
      %v681 = vsel %vm679, %v676, %v678
      %v683 = vsel %vm205, %v672, 0
      %v685 = vsel %vm209, %v680, 0
      %v687 = vsel %vm209, %v681, 0
      %v689 = vsel %vm209, %v678, 0
      %691 = vmatprep.subr.mxu0 0.0
      %692 = vmatpush1.msra.mxu0 0.0
      %693 = vmatprep.subr.mxu0 0.0
      %694 = vmatpush1.msra.mxu0 0.0
      %695 = vmatprep.subr.mxu0 0.0
      %696 = vmatpush1.msra.mxu0 0.0
      %697 = vmatprep.subr.mxu0 0.0
      %698 = vmatpush1.msra.mxu0 0.0
      %699 = vmatprep.subr.mxu0 0.0
      %700 = vmatpush1.msra.mxu0 0.0
      %701 = vmatprep.subr.mxu0 0.0
      %702 = vmatpush1.msra.mxu0 0.0
      %703 = vmatprep.subr.mxu0 0.0
      %704 = vmatpush1.msra.mxu0 0.0
      %705 = vmatprep.subr.mxu0 0.0
      %706 = vmatpush1.msra.mxu0 0.0
      %707 = vmatprep.subr.mxu0 0.0
      %708 = vmatpush1.msra.mxu0 0.0
      %709 = vmatprep.subr.mxu0 0.0
      %710 = vmatpush1.msra.mxu0 0.0
      %711 = vmatprep.subr.mxu0 0.0
      %712 = vmatpush1.msra.mxu0 0.0
      %713 = vmatprep.subr.mxu0 0.0
      %714 = vmatpush1.msra.mxu0 0.0
      %715 = vmatprep.subr.mxu0 0.0
      %716 = vmatpush1.msra.mxu0 0.0
      %717 = vmatprep.subr.mxu0 0.0
      %718 = vmatpush1.msra.mxu0 0.0
      %719 = vmatprep.subr.mxu0 0.0
      %720 = vmatpush1.msra.mxu0 0.0
      %721 = vmatprep.subr.mxu0 %v687
      %722 = vmatpush1.msra.mxu0 %v685
      %723 = vmatprep.subr.mxu0 0.0
      %724 = vmatpush2.msra.mxu0 0.0
      %725 = vmatprep.subr.mxu0 0.0
      %726 = vmatpush2.msra.mxu0 0.0
      %727 = vmatprep.subr.mxu0 0.0
      %728 = vmatpush2.msra.mxu0 0.0
      %729 = vmatprep.subr.mxu0 0.0
      %730 = vmatpush2.msra.mxu0 0.0
      %731 = vmatprep.subr.mxu0 0.0
      %732 = vmatpush2.msra.mxu0 0.0
      %733 = vmatprep.subr.mxu0 0.0
      %734 = vmatpush2.msra.mxu0 0.0
      %735 = vmatprep.subr.mxu0 0.0
      %736 = vmatpush2.msra.mxu0 0.0
      %737 = vmatprep.subr.mxu0 0.0
      %738 = vmatpush2.msra.mxu0 0.0
      %739 = vmatprep.subr.mxu0 0.0
      %740 = vmatpush2.msra.mxu0 0.0
      %741 = vmatprep.subr.mxu0 0.0
      %742 = vmatpush2.msra.mxu0 0.0
      %743 = vmatprep.subr.mxu0 0.0
      %744 = vmatpush2.msra.mxu0 0.0
      %745 = vmatprep.subr.mxu0 0.0
      %746 = vmatpush2.msra.mxu0 0.0
      %747 = vmatprep.subr.mxu0 0.0
      %748 = vmatpush2.msra.mxu0 0.0
      %749 = vmatprep.subr.mxu0 0.0
      %750 = vmatpush2.msra.mxu0 0.0
      %751 = vmatprep.subr.mxu0 0.0
      %752 = vmatpush2.msra.mxu0 0.0
      %753 = vmatprep.subr.mxu0 0.0
      %754 = vmatpush2.msra.mxu0 0.0
      %755 = vmatprep.mubr.f32.mxu0 0.0
      %756 = vmatmul.mubr.f32.gmra.mxu0 %v683
      %v757 = vpop.f32.mrf.mxu0
      %v758 = vadd.f32 0.0, %v757
      %v759 = vpop.f32.mrf.mxu0
      %v760 = vadd.f32 0.0, %v759
      %761 = vdwg.mxu0
      %762 = vmatprep.subr.mxu0 0.0
      %763 = vmatpush1.msra.mxu0 0.0
      %764 = vmatprep.subr.mxu0 0.0
      %765 = vmatpush1.msra.mxu0 0.0
      %766 = vmatprep.subr.mxu0 0.0
      %767 = vmatpush1.msra.mxu0 0.0
      %768 = vmatprep.subr.mxu0 0.0
      %769 = vmatpush1.msra.mxu0 0.0
      %770 = vmatprep.subr.mxu0 0.0
      %771 = vmatpush1.msra.mxu0 0.0
      %772 = vmatprep.subr.mxu0 0.0
      %773 = vmatpush1.msra.mxu0 0.0
      %774 = vmatprep.subr.mxu0 0.0
      %775 = vmatpush1.msra.mxu0 0.0
      %776 = vmatprep.subr.mxu0 0.0
      %777 = vmatpush1.msra.mxu0 0.0
      %778 = vmatprep.subr.mxu0 0.0
      %779 = vmatpush1.msra.mxu0 0.0
      %780 = vmatprep.subr.mxu0 0.0
      %781 = vmatpush1.msra.mxu0 0.0
      %782 = vmatprep.subr.mxu0 0.0
      %783 = vmatpush1.msra.mxu0 0.0
      %784 = vmatprep.subr.mxu0 0.0
      %785 = vmatpush1.msra.mxu0 0.0
      %786 = vmatprep.subr.mxu0 0.0
      %787 = vmatpush1.msra.mxu0 0.0
      %788 = vmatprep.subr.mxu0 0.0
      %789 = vmatpush1.msra.mxu0 0.0
      %790 = vmatprep.subr.mxu0 0.0
      %791 = vmatpush1.msra.mxu0 0.0
      %792 = vmatprep.subr.mxu0 0.0
      %793 = vmatpush1.msra.mxu0 %v689
      %794 = vmatprep.subr.mxu0 0.0
      %795 = vmatpush2.msra.mxu0 0.0
      %796 = vmatprep.subr.mxu0 0.0
      %797 = vmatpush2.msra.mxu0 0.0
      %798 = vmatprep.subr.mxu0 0.0
      %799 = vmatpush2.msra.mxu0 0.0
      %800 = vmatprep.subr.mxu0 0.0
      %801 = vmatpush2.msra.mxu0 0.0
      %802 = vmatprep.subr.mxu0 0.0
      %803 = vmatpush2.msra.mxu0 0.0
      %804 = vmatprep.subr.mxu0 0.0
      %805 = vmatpush2.msra.mxu0 0.0
      %806 = vmatprep.subr.mxu0 0.0
      %807 = vmatpush2.msra.mxu0 0.0
      %808 = vmatprep.subr.mxu0 0.0
      %809 = vmatpush2.msra.mxu0 0.0
      %810 = vmatprep.subr.mxu0 0.0
      %811 = vmatpush2.msra.mxu0 0.0
      %812 = vmatprep.subr.mxu0 0.0
      %813 = vmatpush2.msra.mxu0 0.0
      %814 = vmatprep.subr.mxu0 0.0
      %815 = vmatpush2.msra.mxu0 0.0
      %816 = vmatprep.subr.mxu0 0.0
      %817 = vmatpush2.msra.mxu0 0.0
      %818 = vmatprep.subr.mxu0 0.0
      %819 = vmatpush2.msra.mxu0 0.0
      %820 = vmatprep.subr.mxu0 0.0
      %821 = vmatpush2.msra.mxu0 0.0
      %822 = vmatprep.subr.mxu0 0.0
      %823 = vmatpush2.msra.mxu0 0.0
      %824 = vmatprep.subr.mxu0 0.0
      %825 = vmatpush2.msra.mxu0 0.0
      %826 = vmatprep.mubr.f32.mxu0 0.0
      %827 = vmatmul.mubr.f32.gmra.mxu0 %v683
      %v828 = vpop.f32.mrf.mxu0
      %v829 = vadd.f32 0.0, %v828
      %v830 = vpop.f32.mrf.mxu0
      %831 = vdwg.mxu0
      %v832 = vadd.f32 %v668, %v758
      %v833 = vadd.f32 %v669, %v760
      %v834 = vadd.f32 %v670, %v829
      %s835 = scalar_lea.vmem %s1, 32
      %v836 = vld [vmem:[%s835] sm:$0xff]
      %837 = vrot.lane.b32.xlu0 %v188, 109
      %v838 = vpop.permute.xlu0 %837
      %839 = vrot.lane.b32.xlu0 %v195, 109
      %v840 = vpop.permute.xlu0 %839
      %841 = vrot.lane.b32.xlu0 %v189, 109
      %v842 = vpop.permute.xlu0 %841
      %vm843 = vcmask 891904
      %v844 = vsel %vm843, %v838, %v840
      %v845 = vsel %vm843, %v840, %v842
      %v847 = vsel %vm205, %v836, 0
      %v849 = vsel %vm209, %v844, 0
      %v851 = vsel %vm209, %v845, 0
      %v853 = vsel %vm209, %v842, 0
      %855 = vmatprep.subr.mxu0 0.0
      %856 = vmatpush1.msra.mxu0 0.0
      %857 = vmatprep.subr.mxu0 0.0
      %858 = vmatpush1.msra.mxu0 0.0
      %859 = vmatprep.subr.mxu0 0.0
      %860 = vmatpush1.msra.mxu0 0.0
      %861 = vmatprep.subr.mxu0 0.0
      %862 = vmatpush1.msra.mxu0 0.0
      %863 = vmatprep.subr.mxu0 0.0
      %864 = vmatpush1.msra.mxu0 0.0
      %865 = vmatprep.subr.mxu0 0.0
      %866 = vmatpush1.msra.mxu0 0.0
      %867 = vmatprep.subr.mxu0 0.0
      %868 = vmatpush1.msra.mxu0 0.0
      %869 = vmatprep.subr.mxu0 0.0
      %870 = vmatpush1.msra.mxu0 0.0
      %871 = vmatprep.subr.mxu0 0.0
      %872 = vmatpush1.msra.mxu0 0.0
      %873 = vmatprep.subr.mxu0 0.0
      %874 = vmatpush1.msra.mxu0 0.0
      %875 = vmatprep.subr.mxu0 0.0
      %876 = vmatpush1.msra.mxu0 0.0
      %877 = vmatprep.subr.mxu0 0.0
      %878 = vmatpush1.msra.mxu0 0.0
      %879 = vmatprep.subr.mxu0 0.0
      %880 = vmatpush1.msra.mxu0 0.0
      %881 = vmatprep.subr.mxu0 0.0
      %882 = vmatpush1.msra.mxu0 0.0
      %883 = vmatprep.subr.mxu0 0.0
      %884 = vmatpush1.msra.mxu0 0.0
      %885 = vmatprep.subr.mxu0 %v851
      %886 = vmatpush1.msra.mxu0 %v849
      %887 = vmatprep.subr.mxu0 0.0
      %888 = vmatpush2.msra.mxu0 0.0
      %889 = vmatprep.subr.mxu0 0.0
      %890 = vmatpush2.msra.mxu0 0.0
      %891 = vmatprep.subr.mxu0 0.0
      %892 = vmatpush2.msra.mxu0 0.0
      %893 = vmatprep.subr.mxu0 0.0
      %894 = vmatpush2.msra.mxu0 0.0
      %895 = vmatprep.subr.mxu0 0.0
      %896 = vmatpush2.msra.mxu0 0.0
      %897 = vmatprep.subr.mxu0 0.0
      %898 = vmatpush2.msra.mxu0 0.0
      %899 = vmatprep.subr.mxu0 0.0
      %900 = vmatpush2.msra.mxu0 0.0
      %901 = vmatprep.subr.mxu0 0.0
      %902 = vmatpush2.msra.mxu0 0.0
      %903 = vmatprep.subr.mxu0 0.0
      %904 = vmatpush2.msra.mxu0 0.0
      %905 = vmatprep.subr.mxu0 0.0
      %906 = vmatpush2.msra.mxu0 0.0
      %907 = vmatprep.subr.mxu0 0.0
      %908 = vmatpush2.msra.mxu0 0.0
      %909 = vmatprep.subr.mxu0 0.0
      %910 = vmatpush2.msra.mxu0 0.0
      %911 = vmatprep.subr.mxu0 0.0
      %912 = vmatpush2.msra.mxu0 0.0
      %913 = vmatprep.subr.mxu0 0.0
      %914 = vmatpush2.msra.mxu0 0.0
      %915 = vmatprep.subr.mxu0 0.0
      %916 = vmatpush2.msra.mxu0 0.0
      %917 = vmatprep.subr.mxu0 0.0
      %918 = vmatpush2.msra.mxu0 0.0
      %919 = vmatprep.mubr.f32.mxu0 0.0
      %920 = vmatmul.mubr.f32.gmra.mxu0 %v847
      %v921 = vpop.f32.mrf.mxu0
      %v922 = vadd.f32 0.0, %v921
      %v923 = vpop.f32.mrf.mxu0
      %v924 = vadd.f32 0.0, %v923
      %925 = vdwg.mxu0
      %926 = vmatprep.subr.mxu0 0.0
      %927 = vmatpush1.msra.mxu0 0.0
      %928 = vmatprep.subr.mxu0 0.0
      %929 = vmatpush1.msra.mxu0 0.0
      %930 = vmatprep.subr.mxu0 0.0
      %931 = vmatpush1.msra.mxu0 0.0
      %932 = vmatprep.subr.mxu0 0.0
      %933 = vmatpush1.msra.mxu0 0.0
      %934 = vmatprep.subr.mxu0 0.0
      %935 = vmatpush1.msra.mxu0 0.0
      %936 = vmatprep.subr.mxu0 0.0
      %937 = vmatpush1.msra.mxu0 0.0
      %938 = vmatprep.subr.mxu0 0.0
      %939 = vmatpush1.msra.mxu0 0.0
      %940 = vmatprep.subr.mxu0 0.0
      %941 = vmatpush1.msra.mxu0 0.0
      %942 = vmatprep.subr.mxu0 0.0
      %943 = vmatpush1.msra.mxu0 0.0
      %944 = vmatprep.subr.mxu0 0.0
      %945 = vmatpush1.msra.mxu0 0.0
      %946 = vmatprep.subr.mxu0 0.0
      %947 = vmatpush1.msra.mxu0 0.0
      %948 = vmatprep.subr.mxu0 0.0
      %949 = vmatpush1.msra.mxu0 0.0
      %950 = vmatprep.subr.mxu0 0.0
      %951 = vmatpush1.msra.mxu0 0.0
      %952 = vmatprep.subr.mxu0 0.0
      %953 = vmatpush1.msra.mxu0 0.0
      %954 = vmatprep.subr.mxu0 0.0
      %955 = vmatpush1.msra.mxu0 0.0
      %956 = vmatprep.subr.mxu0 0.0
      %957 = vmatpush1.msra.mxu0 %v853
      %958 = vmatprep.subr.mxu0 0.0
      %959 = vmatpush2.msra.mxu0 0.0
      %960 = vmatprep.subr.mxu0 0.0
      %961 = vmatpush2.msra.mxu0 0.0
      %962 = vmatprep.subr.mxu0 0.0
      %963 = vmatpush2.msra.mxu0 0.0
      %964 = vmatprep.subr.mxu0 0.0
      %965 = vmatpush2.msra.mxu0 0.0
      %966 = vmatprep.subr.mxu0 0.0
      %967 = vmatpush2.msra.mxu0 0.0
      %968 = vmatprep.subr.mxu0 0.0
      %969 = vmatpush2.msra.mxu0 0.0
      %970 = vmatprep.subr.mxu0 0.0
      %971 = vmatpush2.msra.mxu0 0.0
      %972 = vmatprep.subr.mxu0 0.0
      %973 = vmatpush2.msra.mxu0 0.0
      %974 = vmatprep.subr.mxu0 0.0
      %975 = vmatpush2.msra.mxu0 0.0
      %976 = vmatprep.subr.mxu0 0.0
      %977 = vmatpush2.msra.mxu0 0.0
      %978 = vmatprep.subr.mxu0 0.0
      %979 = vmatpush2.msra.mxu0 0.0
      %980 = vmatprep.subr.mxu0 0.0
      %981 = vmatpush2.msra.mxu0 0.0
      %982 = vmatprep.subr.mxu0 0.0
      %983 = vmatpush2.msra.mxu0 0.0
      %984 = vmatprep.subr.mxu0 0.0
      %985 = vmatpush2.msra.mxu0 0.0
      %986 = vmatprep.subr.mxu0 0.0
      %987 = vmatpush2.msra.mxu0 0.0
      %988 = vmatprep.subr.mxu0 0.0
      %989 = vmatpush2.msra.mxu0 0.0
      %990 = vmatprep.mubr.f32.mxu0 0.0
      %991 = vmatmul.mubr.f32.gmra.mxu0 %v847
      %v992 = vpop.f32.mrf.mxu0
      %v993 = vadd.f32 0.0, %v992
      %v994 = vpop.f32.mrf.mxu0
      %995 = vdwg.mxu0
      %v996 = vadd.f32 %v832, %v922
      %v997 = vadd.f32 %v833, %v924
      %v998 = vadd.f32 %v834, %v993
      %s999 = scalar_lea.vmem %s1, 40
      %v1000 = vld [vmem:[%s999] sm:$0xff]
      %1001 = vrot.lane.b32.xlu0 %v188, 108
      %v1002 = vpop.permute.xlu0 %1001
      %1003 = vrot.lane.b32.xlu0 %v195, 108
      %v1004 = vpop.permute.xlu0 %1003
      %1005 = vrot.lane.b32.xlu0 %v189, 108
      %v1006 = vpop.permute.xlu0 %1005
      %vm1007 = vcmask 883712
      %v1008 = vsel %vm1007, %v1002, %v1004
      %v1009 = vsel %vm1007, %v1004, %v1006
      %v1011 = vsel %vm205, %v1000, 0
      %v1013 = vsel %vm209, %v1008, 0
      %v1015 = vsel %vm209, %v1009, 0
      %v1017 = vsel %vm209, %v1006, 0
      %1019 = vmatprep.subr.mxu0 0.0
      %1020 = vmatpush1.msra.mxu0 0.0
      %1021 = vmatprep.subr.mxu0 0.0
      %1022 = vmatpush1.msra.mxu0 0.0
      %1023 = vmatprep.subr.mxu0 0.0
      %1024 = vmatpush1.msra.mxu0 0.0
      %1025 = vmatprep.subr.mxu0 0.0
      %1026 = vmatpush1.msra.mxu0 0.0
      %1027 = vmatprep.subr.mxu0 0.0
      %1028 = vmatpush1.msra.mxu0 0.0
      %1029 = vmatprep.subr.mxu0 0.0
      %1030 = vmatpush1.msra.mxu0 0.0
      %1031 = vmatprep.subr.mxu0 0.0
      %1032 = vmatpush1.msra.mxu0 0.0
      %1033 = vmatprep.subr.mxu0 0.0
      %1034 = vmatpush1.msra.mxu0 0.0
      %1035 = vmatprep.subr.mxu0 0.0
      %1036 = vmatpush1.msra.mxu0 0.0
      %1037 = vmatprep.subr.mxu0 0.0
      %1038 = vmatpush1.msra.mxu0 0.0
      %1039 = vmatprep.subr.mxu0 0.0
      %1040 = vmatpush1.msra.mxu0 0.0
      %1041 = vmatprep.subr.mxu0 0.0
      %1042 = vmatpush1.msra.mxu0 0.0
      %1043 = vmatprep.subr.mxu0 0.0
      %1044 = vmatpush1.msra.mxu0 0.0
      %1045 = vmatprep.subr.mxu0 0.0
      %1046 = vmatpush1.msra.mxu0 0.0
      %1047 = vmatprep.subr.mxu0 0.0
      %1048 = vmatpush1.msra.mxu0 0.0
      %1049 = vmatprep.subr.mxu0 %v1015
      %1050 = vmatpush1.msra.mxu0 %v1013
      %1051 = vmatprep.subr.mxu0 0.0
      %1052 = vmatpush2.msra.mxu0 0.0
      %1053 = vmatprep.subr.mxu0 0.0
      %1054 = vmatpush2.msra.mxu0 0.0
      %1055 = vmatprep.subr.mxu0 0.0
      %1056 = vmatpush2.msra.mxu0 0.0
      %1057 = vmatprep.subr.mxu0 0.0
      %1058 = vmatpush2.msra.mxu0 0.0
      %1059 = vmatprep.subr.mxu0 0.0
      %1060 = vmatpush2.msra.mxu0 0.0
      %1061 = vmatprep.subr.mxu0 0.0
      %1062 = vmatpush2.msra.mxu0 0.0
      %1063 = vmatprep.subr.mxu0 0.0
      %1064 = vmatpush2.msra.mxu0 0.0
      %1065 = vmatprep.subr.mxu0 0.0
      %1066 = vmatpush2.msra.mxu0 0.0
      %1067 = vmatprep.subr.mxu0 0.0
      %1068 = vmatpush2.msra.mxu0 0.0
      %1069 = vmatprep.subr.mxu0 0.0
      %1070 = vmatpush2.msra.mxu0 0.0
      %1071 = vmatprep.subr.mxu0 0.0
      %1072 = vmatpush2.msra.mxu0 0.0
      %1073 = vmatprep.subr.mxu0 0.0
      %1074 = vmatpush2.msra.mxu0 0.0
      %1075 = vmatprep.subr.mxu0 0.0
      %1076 = vmatpush2.msra.mxu0 0.0
      %1077 = vmatprep.subr.mxu0 0.0
      %1078 = vmatpush2.msra.mxu0 0.0
      %1079 = vmatprep.subr.mxu0 0.0
      %1080 = vmatpush2.msra.mxu0 0.0
      %1081 = vmatprep.subr.mxu0 0.0
      %1082 = vmatpush2.msra.mxu0 0.0
      %1083 = vmatprep.mubr.f32.mxu0 0.0
      %1084 = vmatmul.mubr.f32.gmra.mxu0 %v1011
      %v1085 = vpop.f32.mrf.mxu0
      %v1086 = vadd.f32 0.0, %v1085
      %v1087 = vpop.f32.mrf.mxu0
      %v1088 = vadd.f32 0.0, %v1087
      %1089 = vdwg.mxu0
      %1090 = vmatprep.subr.mxu0 0.0
      %1091 = vmatpush1.msra.mxu0 0.0
      %1092 = vmatprep.subr.mxu0 0.0
      %1093 = vmatpush1.msra.mxu0 0.0
      %1094 = vmatprep.subr.mxu0 0.0
      %1095 = vmatpush1.msra.mxu0 0.0
      %1096 = vmatprep.subr.mxu0 0.0
      %1097 = vmatpush1.msra.mxu0 0.0
      %1098 = vmatprep.subr.mxu0 0.0
      %1099 = vmatpush1.msra.mxu0 0.0
      %1100 = vmatprep.subr.mxu0 0.0
      %1101 = vmatpush1.msra.mxu0 0.0
      %1102 = vmatprep.subr.mxu0 0.0
      %1103 = vmatpush1.msra.mxu0 0.0
      %1104 = vmatprep.subr.mxu0 0.0
      %1105 = vmatpush1.msra.mxu0 0.0
      %1106 = vmatprep.subr.mxu0 0.0
      %1107 = vmatpush1.msra.mxu0 0.0
      %1108 = vmatprep.subr.mxu0 0.0
      %1109 = vmatpush1.msra.mxu0 0.0
      %1110 = vmatprep.subr.mxu0 0.0
      %1111 = vmatpush1.msra.mxu0 0.0
      %1112 = vmatprep.subr.mxu0 0.0
      %1113 = vmatpush1.msra.mxu0 0.0
      %1114 = vmatprep.subr.mxu0 0.0
      %1115 = vmatpush1.msra.mxu0 0.0
      %1116 = vmatprep.subr.mxu0 0.0
      %1117 = vmatpush1.msra.mxu0 0.0
      %1118 = vmatprep.subr.mxu0 0.0
      %1119 = vmatpush1.msra.mxu0 0.0
      %1120 = vmatprep.subr.mxu0 0.0
      %1121 = vmatpush1.msra.mxu0 %v1017
      %1122 = vmatprep.subr.mxu0 0.0
      %1123 = vmatpush2.msra.mxu0 0.0
      %1124 = vmatprep.subr.mxu0 0.0
      %1125 = vmatpush2.msra.mxu0 0.0
      %1126 = vmatprep.subr.mxu0 0.0
      %1127 = vmatpush2.msra.mxu0 0.0
      %1128 = vmatprep.subr.mxu0 0.0
      %1129 = vmatpush2.msra.mxu0 0.0
      %1130 = vmatprep.subr.mxu0 0.0
      %1131 = vmatpush2.msra.mxu0 0.0
      %1132 = vmatprep.subr.mxu0 0.0
      %1133 = vmatpush2.msra.mxu0 0.0
      %1134 = vmatprep.subr.mxu0 0.0
      %1135 = vmatpush2.msra.mxu0 0.0
      %1136 = vmatprep.subr.mxu0 0.0
      %1137 = vmatpush2.msra.mxu0 0.0
      %1138 = vmatprep.subr.mxu0 0.0
      %1139 = vmatpush2.msra.mxu0 0.0
      %1140 = vmatprep.subr.mxu0 0.0
      %1141 = vmatpush2.msra.mxu0 0.0
      %1142 = vmatprep.subr.mxu0 0.0
      %1143 = vmatpush2.msra.mxu0 0.0
      %1144 = vmatprep.subr.mxu0 0.0
      %1145 = vmatpush2.msra.mxu0 0.0
      %1146 = vmatprep.subr.mxu0 0.0
      %1147 = vmatpush2.msra.mxu0 0.0
      %1148 = vmatprep.subr.mxu0 0.0
      %1149 = vmatpush2.msra.mxu0 0.0
      %1150 = vmatprep.subr.mxu0 0.0
      %1151 = vmatpush2.msra.mxu0 0.0
      %1152 = vmatprep.subr.mxu0 0.0
      %1153 = vmatpush2.msra.mxu0 0.0
      %1154 = vmatprep.mubr.f32.mxu0 0.0
      %1155 = vmatmul.mubr.f32.gmra.mxu0 %v1011
      %v1156 = vpop.f32.mrf.mxu0
      %v1157 = vadd.f32 0.0, %v1156
      %v1158 = vpop.f32.mrf.mxu0
      %1159 = vdwg.mxu0
      %v1160 = vadd.f32 %v996, %v1086
      %v1161 = vadd.f32 %v997, %v1088
      %v1162 = vadd.f32 %v998, %v1157
      %s1163 = scalar_lea.vmem %s1, 48
      %v1164 = vld [vmem:[%s1163] sm:$0xff]
      %1165 = vrot.lane.b32.xlu0 %v188, 92
      %v1166 = vpop.permute.xlu0 %1165
      %1167 = vrot.lane.b32.xlu0 %v195, 92
      %v1168 = vpop.permute.xlu0 %1167
      %1169 = vrot.lane.b32.xlu0 %v189, 92
      %v1170 = vpop.permute.xlu0 %1169
      %vm1171 = vcmask 752640
      %v1172 = vsel %vm1171, %v1166, %v1168
      %v1173 = vsel %vm1171, %v1168, %v1170
      %v1175 = vsel %vm205, %v1164, 0
      %v1177 = vsel %vm209, %v1172, 0
      %v1179 = vsel %vm209, %v1173, 0
      %v1181 = vsel %vm209, %v1170, 0
      %1183 = vmatprep.subr.mxu0 0.0
      %1184 = vmatpush1.msra.mxu0 0.0
      %1185 = vmatprep.subr.mxu0 0.0
      %1186 = vmatpush1.msra.mxu0 0.0
      %1187 = vmatprep.subr.mxu0 0.0
      %1188 = vmatpush1.msra.mxu0 0.0
      %1189 = vmatprep.subr.mxu0 0.0
      %1190 = vmatpush1.msra.mxu0 0.0
      %1191 = vmatprep.subr.mxu0 0.0
      %1192 = vmatpush1.msra.mxu0 0.0
      %1193 = vmatprep.subr.mxu0 0.0
      %1194 = vmatpush1.msra.mxu0 0.0
      %1195 = vmatprep.subr.mxu0 0.0
      %1196 = vmatpush1.msra.mxu0 0.0
      %1197 = vmatprep.subr.mxu0 0.0
      %1198 = vmatpush1.msra.mxu0 0.0
      %1199 = vmatprep.subr.mxu0 0.0
      %1200 = vmatpush1.msra.mxu0 0.0
      %1201 = vmatprep.subr.mxu0 0.0
      %1202 = vmatpush1.msra.mxu0 0.0
      %1203 = vmatprep.subr.mxu0 0.0
      %1204 = vmatpush1.msra.mxu0 0.0
      %1205 = vmatprep.subr.mxu0 0.0
      %1206 = vmatpush1.msra.mxu0 0.0
      %1207 = vmatprep.subr.mxu0 0.0
      %1208 = vmatpush1.msra.mxu0 0.0
      %1209 = vmatprep.subr.mxu0 0.0
      %1210 = vmatpush1.msra.mxu0 0.0
      %1211 = vmatprep.subr.mxu0 0.0
      %1212 = vmatpush1.msra.mxu0 0.0
      %1213 = vmatprep.subr.mxu0 %v1179
      %1214 = vmatpush1.msra.mxu0 %v1177
      %1215 = vmatprep.subr.mxu0 0.0
      %1216 = vmatpush2.msra.mxu0 0.0
      %1217 = vmatprep.subr.mxu0 0.0
      %1218 = vmatpush2.msra.mxu0 0.0
      %1219 = vmatprep.subr.mxu0 0.0
      %1220 = vmatpush2.msra.mxu0 0.0
      %1221 = vmatprep.subr.mxu0 0.0
      %1222 = vmatpush2.msra.mxu0 0.0
      %1223 = vmatprep.subr.mxu0 0.0
      %1224 = vmatpush2.msra.mxu0 0.0
      %1225 = vmatprep.subr.mxu0 0.0
      %1226 = vmatpush2.msra.mxu0 0.0
      %1227 = vmatprep.subr.mxu0 0.0
      %1228 = vmatpush2.msra.mxu0 0.0
      %1229 = vmatprep.subr.mxu0 0.0
      %1230 = vmatpush2.msra.mxu0 0.0
      %1231 = vmatprep.subr.mxu0 0.0
      %1232 = vmatpush2.msra.mxu0 0.0
      %1233 = vmatprep.subr.mxu0 0.0
      %1234 = vmatpush2.msra.mxu0 0.0
      %1235 = vmatprep.subr.mxu0 0.0
      %1236 = vmatpush2.msra.mxu0 0.0
      %1237 = vmatprep.subr.mxu0 0.0
      %1238 = vmatpush2.msra.mxu0 0.0
      %1239 = vmatprep.subr.mxu0 0.0
      %1240 = vmatpush2.msra.mxu0 0.0
      %1241 = vmatprep.subr.mxu0 0.0
      %1242 = vmatpush2.msra.mxu0 0.0
      %1243 = vmatprep.subr.mxu0 0.0
      %1244 = vmatpush2.msra.mxu0 0.0
      %1245 = vmatprep.subr.mxu0 0.0
      %1246 = vmatpush2.msra.mxu0 0.0
      %1247 = vmatprep.mubr.f32.mxu0 0.0
      %1248 = vmatmul.mubr.f32.gmra.mxu0 %v1175
      %v1249 = vpop.f32.mrf.mxu0
      %v1250 = vadd.f32 0.0, %v1249
      %v1251 = vpop.f32.mrf.mxu0
      %v1252 = vadd.f32 0.0, %v1251
      %1253 = vdwg.mxu0
      %1254 = vmatprep.subr.mxu0 0.0
      %1255 = vmatpush1.msra.mxu0 0.0
      %1256 = vmatprep.subr.mxu0 0.0
      %1257 = vmatpush1.msra.mxu0 0.0
      %1258 = vmatprep.subr.mxu0 0.0
      %1259 = vmatpush1.msra.mxu0 0.0
      %1260 = vmatprep.subr.mxu0 0.0
      %1261 = vmatpush1.msra.mxu0 0.0
      %1262 = vmatprep.subr.mxu0 0.0
      %1263 = vmatpush1.msra.mxu0 0.0
      %1264 = vmatprep.subr.mxu0 0.0
      %1265 = vmatpush1.msra.mxu0 0.0
      %1266 = vmatprep.subr.mxu0 0.0
      %1267 = vmatpush1.msra.mxu0 0.0
      %1268 = vmatprep.subr.mxu0 0.0
      %1269 = vmatpush1.msra.mxu0 0.0
      %1270 = vmatprep.subr.mxu0 0.0
      %1271 = vmatpush1.msra.mxu0 0.0
      %1272 = vmatprep.subr.mxu0 0.0
      %1273 = vmatpush1.msra.mxu0 0.0
      %1274 = vmatprep.subr.mxu0 0.0
      %1275 = vmatpush1.msra.mxu0 0.0
      %1276 = vmatprep.subr.mxu0 0.0
      %1277 = vmatpush1.msra.mxu0 0.0
      %1278 = vmatprep.subr.mxu0 0.0
      %1279 = vmatpush1.msra.mxu0 0.0
      %1280 = vmatprep.subr.mxu0 0.0
      %1281 = vmatpush1.msra.mxu0 0.0
      %1282 = vmatprep.subr.mxu0 0.0
      %1283 = vmatpush1.msra.mxu0 0.0
      %1284 = vmatprep.subr.mxu0 0.0
      %1285 = vmatpush1.msra.mxu0 %v1181
      %1286 = vmatprep.subr.mxu0 0.0
      %1287 = vmatpush2.msra.mxu0 0.0
      %1288 = vmatprep.subr.mxu0 0.0
      %1289 = vmatpush2.msra.mxu0 0.0
      %1290 = vmatprep.subr.mxu0 0.0
      %1291 = vmatpush2.msra.mxu0 0.0
      %1292 = vmatprep.subr.mxu0 0.0
      %1293 = vmatpush2.msra.mxu0 0.0
      %1294 = vmatprep.subr.mxu0 0.0
      %1295 = vmatpush2.msra.mxu0 0.0
      %1296 = vmatprep.subr.mxu0 0.0
      %1297 = vmatpush2.msra.mxu0 0.0
      %1298 = vmatprep.subr.mxu0 0.0
      %1299 = vmatpush2.msra.mxu0 0.0
      %1300 = vmatprep.subr.mxu0 0.0
      %1301 = vmatpush2.msra.mxu0 0.0
      %1302 = vmatprep.subr.mxu0 0.0
      %1303 = vmatpush2.msra.mxu0 0.0
      %1304 = vmatprep.subr.mxu0 0.0
      %1305 = vmatpush2.msra.mxu0 0.0
      %1306 = vmatprep.subr.mxu0 0.0
      %1307 = vmatpush2.msra.mxu0 0.0
      %1308 = vmatprep.subr.mxu0 0.0
      %1309 = vmatpush2.msra.mxu0 0.0
      %1310 = vmatprep.subr.mxu0 0.0
      %1311 = vmatpush2.msra.mxu0 0.0
      %1312 = vmatprep.subr.mxu0 0.0
      %1313 = vmatpush2.msra.mxu0 0.0
      %1314 = vmatprep.subr.mxu0 0.0
      %1315 = vmatpush2.msra.mxu0 0.0
      %1316 = vmatprep.subr.mxu0 0.0
      %1317 = vmatpush2.msra.mxu0 0.0
      %1318 = vmatprep.mubr.f32.mxu0 0.0
      %1319 = vmatmul.mubr.f32.gmra.mxu0 %v1175
      %v1320 = vpop.f32.mrf.mxu0
      %v1321 = vadd.f32 0.0, %v1320
      %v1322 = vpop.f32.mrf.mxu0
      %1323 = vdwg.mxu0
      %v1324 = vadd.f32 %v1160, %v1250
      %v1325 = vadd.f32 %v1161, %v1252
      %v1326 = vadd.f32 %v1162, %v1321
      %s1327 = scalar_lea.vmem %s1, 56
      %v1328 = vld [vmem:[%s1327] sm:$0xff]
      %1329 = vrot.lane.b32.xlu0 %v188, 91
      %v1330 = vpop.permute.xlu0 %1329
      %1331 = vrot.lane.b32.xlu0 %v195, 91
      %v1332 = vpop.permute.xlu0 %1331
      %1333 = vrot.lane.b32.xlu0 %v189, 91
      %v1334 = vpop.permute.xlu0 %1333
      %vm1335 = vcmask 744448
      %v1336 = vsel %vm1335, %v1330, %v1332
      %v1337 = vsel %vm1335, %v1332, %v1334
      %v1339 = vsel %vm205, %v1328, 0
      %v1341 = vsel %vm209, %v1336, 0
      %v1343 = vsel %vm209, %v1337, 0
      %v1345 = vsel %vm209, %v1334, 0
      %1347 = vmatprep.subr.mxu0 0.0
      %1348 = vmatpush1.msra.mxu0 0.0
      %1349 = vmatprep.subr.mxu0 0.0
      %1350 = vmatpush1.msra.mxu0 0.0
      %1351 = vmatprep.subr.mxu0 0.0
      %1352 = vmatpush1.msra.mxu0 0.0
      %1353 = vmatprep.subr.mxu0 0.0
      %1354 = vmatpush1.msra.mxu0 0.0
      %1355 = vmatprep.subr.mxu0 0.0
      %1356 = vmatpush1.msra.mxu0 0.0
      %1357 = vmatprep.subr.mxu0 0.0
      %1358 = vmatpush1.msra.mxu0 0.0
      %1359 = vmatprep.subr.mxu0 0.0
      %1360 = vmatpush1.msra.mxu0 0.0
      %1361 = vmatprep.subr.mxu0 0.0
      %1362 = vmatpush1.msra.mxu0 0.0
      %1363 = vmatprep.subr.mxu0 0.0
      %1364 = vmatpush1.msra.mxu0 0.0
      %1365 = vmatprep.subr.mxu0 0.0
      %1366 = vmatpush1.msra.mxu0 0.0
      %1367 = vmatprep.subr.mxu0 0.0
      %1368 = vmatpush1.msra.mxu0 0.0
      %1369 = vmatprep.subr.mxu0 0.0
      %1370 = vmatpush1.msra.mxu0 0.0
      %1371 = vmatprep.subr.mxu0 0.0
      %1372 = vmatpush1.msra.mxu0 0.0
      %1373 = vmatprep.subr.mxu0 0.0
      %1374 = vmatpush1.msra.mxu0 0.0
      %1375 = vmatprep.subr.mxu0 0.0
      %1376 = vmatpush1.msra.mxu0 0.0
      %1377 = vmatprep.subr.mxu0 %v1343
      %1378 = vmatpush1.msra.mxu0 %v1341
      %1379 = vmatprep.subr.mxu0 0.0
      %1380 = vmatpush2.msra.mxu0 0.0
      %1381 = vmatprep.subr.mxu0 0.0
      %1382 = vmatpush2.msra.mxu0 0.0
      %1383 = vmatprep.subr.mxu0 0.0
      %1384 = vmatpush2.msra.mxu0 0.0
      %1385 = vmatprep.subr.mxu0 0.0
      %1386 = vmatpush2.msra.mxu0 0.0
      %1387 = vmatprep.subr.mxu0 0.0
      %1388 = vmatpush2.msra.mxu0 0.0
      %1389 = vmatprep.subr.mxu0 0.0
      %1390 = vmatpush2.msra.mxu0 0.0
      %1391 = vmatprep.subr.mxu0 0.0
      %1392 = vmatpush2.msra.mxu0 0.0
      %1393 = vmatprep.subr.mxu0 0.0
      %1394 = vmatpush2.msra.mxu0 0.0
      %1395 = vmatprep.subr.mxu0 0.0
      %1396 = vmatpush2.msra.mxu0 0.0
      %1397 = vmatprep.subr.mxu0 0.0
      %1398 = vmatpush2.msra.mxu0 0.0
      %1399 = vmatprep.subr.mxu0 0.0
      %1400 = vmatpush2.msra.mxu0 0.0
      %1401 = vmatprep.subr.mxu0 0.0
      %1402 = vmatpush2.msra.mxu0 0.0
      %1403 = vmatprep.subr.mxu0 0.0
      %1404 = vmatpush2.msra.mxu0 0.0
      %1405 = vmatprep.subr.mxu0 0.0
      %1406 = vmatpush2.msra.mxu0 0.0
      %1407 = vmatprep.subr.mxu0 0.0
      %1408 = vmatpush2.msra.mxu0 0.0
      %1409 = vmatprep.subr.mxu0 0.0
      %1410 = vmatpush2.msra.mxu0 0.0
      %1411 = vmatprep.mubr.f32.mxu0 0.0
      %1412 = vmatmul.mubr.f32.gmra.mxu0 %v1339
      %v1413 = vpop.f32.mrf.mxu0
      %v1414 = vadd.f32 0.0, %v1413
      %v1415 = vpop.f32.mrf.mxu0
      %v1416 = vadd.f32 0.0, %v1415
      %1417 = vdwg.mxu0
      %1418 = vmatprep.subr.mxu0 0.0
      %1419 = vmatpush1.msra.mxu0 0.0
      %1420 = vmatprep.subr.mxu0 0.0
      %1421 = vmatpush1.msra.mxu0 0.0
      %1422 = vmatprep.subr.mxu0 0.0
      %1423 = vmatpush1.msra.mxu0 0.0
      %1424 = vmatprep.subr.mxu0 0.0
      %1425 = vmatpush1.msra.mxu0 0.0
      %1426 = vmatprep.subr.mxu0 0.0
      %1427 = vmatpush1.msra.mxu0 0.0
      %1428 = vmatprep.subr.mxu0 0.0
      %1429 = vmatpush1.msra.mxu0 0.0
      %1430 = vmatprep.subr.mxu0 0.0
      %1431 = vmatpush1.msra.mxu0 0.0
      %1432 = vmatprep.subr.mxu0 0.0
      %1433 = vmatpush1.msra.mxu0 0.0
      %1434 = vmatprep.subr.mxu0 0.0
      %1435 = vmatpush1.msra.mxu0 0.0
      %1436 = vmatprep.subr.mxu0 0.0
      %1437 = vmatpush1.msra.mxu0 0.0
      %1438 = vmatprep.subr.mxu0 0.0
      %1439 = vmatpush1.msra.mxu0 0.0
      %1440 = vmatprep.subr.mxu0 0.0
      %1441 = vmatpush1.msra.mxu0 0.0
      %1442 = vmatprep.subr.mxu0 0.0
      %1443 = vmatpush1.msra.mxu0 0.0
      %1444 = vmatprep.subr.mxu0 0.0
      %1445 = vmatpush1.msra.mxu0 0.0
      %1446 = vmatprep.subr.mxu0 0.0
      %1447 = vmatpush1.msra.mxu0 0.0
      %1448 = vmatprep.subr.mxu0 0.0
      %1449 = vmatpush1.msra.mxu0 %v1345
      %1450 = vmatprep.subr.mxu0 0.0
      %1451 = vmatpush2.msra.mxu0 0.0
      %1452 = vmatprep.subr.mxu0 0.0
      %1453 = vmatpush2.msra.mxu0 0.0
      %1454 = vmatprep.subr.mxu0 0.0
      %1455 = vmatpush2.msra.mxu0 0.0
      %1456 = vmatprep.subr.mxu0 0.0
      %1457 = vmatpush2.msra.mxu0 0.0
      %1458 = vmatprep.subr.mxu0 0.0
      %1459 = vmatpush2.msra.mxu0 0.0
      %1460 = vmatprep.subr.mxu0 0.0
      %1461 = vmatpush2.msra.mxu0 0.0
      %1462 = vmatprep.subr.mxu0 0.0
      %1463 = vmatpush2.msra.mxu0 0.0
      %1464 = vmatprep.subr.mxu0 0.0
      %1465 = vmatpush2.msra.mxu0 0.0
      %1466 = vmatprep.subr.mxu0 0.0
      %1467 = vmatpush2.msra.mxu0 0.0
      %1468 = vmatprep.subr.mxu0 0.0
      %1469 = vmatpush2.msra.mxu0 0.0
      %1470 = vmatprep.subr.mxu0 0.0
      %1471 = vmatpush2.msra.mxu0 0.0
      %1472 = vmatprep.subr.mxu0 0.0
      %1473 = vmatpush2.msra.mxu0 0.0
      %1474 = vmatprep.subr.mxu0 0.0
      %1475 = vmatpush2.msra.mxu0 0.0
      %1476 = vmatprep.subr.mxu0 0.0
      %1477 = vmatpush2.msra.mxu0 0.0
      %1478 = vmatprep.subr.mxu0 0.0
      %1479 = vmatpush2.msra.mxu0 0.0
      %1480 = vmatprep.subr.mxu0 0.0
      %1481 = vmatpush2.msra.mxu0 0.0
      %1482 = vmatprep.mubr.f32.mxu0 0.0
      %1483 = vmatmul.mubr.f32.gmra.mxu0 %v1339
      %v1484 = vpop.f32.mrf.mxu0
      %v1485 = vadd.f32 0.0, %v1484
      %v1486 = vpop.f32.mrf.mxu0
      %1487 = vdwg.mxu0
      %v1488 = vadd.f32 %v1324, %v1414
      %v1489 = vadd.f32 %v1325, %v1416
      %v1490 = vadd.f32 %v1326, %v1485
      %s1491 = scalar_lea.vmem %s1, 64
      %v1492 = vld [vmem:[%s1491] sm:$0xff]
      %1493 = vrot.lane.b32.xlu0 %v188, 90
      %v1494 = vpop.permute.xlu0 %1493
      %1495 = vrot.lane.b32.xlu0 %v195, 90
      %v1496 = vpop.permute.xlu0 %1495
      %1497 = vrot.lane.b32.xlu0 %v189, 90
      %v1498 = vpop.permute.xlu0 %1497
      %vm1499 = vcmask 736256
      %v1500 = vsel %vm1499, %v1494, %v1496
      %v1501 = vsel %vm1499, %v1496, %v1498
      %v1503 = vsel %vm205, %v1492, 0
      %v1505 = vsel %vm209, %v1500, 0
      %v1507 = vsel %vm209, %v1501, 0
      %v1509 = vsel %vm209, %v1498, 0
      %1511 = vmatprep.subr.mxu0 0.0
      %1512 = vmatpush1.msra.mxu0 0.0
      %1513 = vmatprep.subr.mxu0 0.0
      %1514 = vmatpush1.msra.mxu0 0.0
      %1515 = vmatprep.subr.mxu0 0.0
      %1516 = vmatpush1.msra.mxu0 0.0
      %1517 = vmatprep.subr.mxu0 0.0
      %1518 = vmatpush1.msra.mxu0 0.0
      %1519 = vmatprep.subr.mxu0 0.0
      %1520 = vmatpush1.msra.mxu0 0.0
      %1521 = vmatprep.subr.mxu0 0.0
      %1522 = vmatpush1.msra.mxu0 0.0
      %1523 = vmatprep.subr.mxu0 0.0
      %1524 = vmatpush1.msra.mxu0 0.0
      %1525 = vmatprep.subr.mxu0 0.0
      %1526 = vmatpush1.msra.mxu0 0.0
      %1527 = vmatprep.subr.mxu0 0.0
      %1528 = vmatpush1.msra.mxu0 0.0
      %1529 = vmatprep.subr.mxu0 0.0
      %1530 = vmatpush1.msra.mxu0 0.0
      %1531 = vmatprep.subr.mxu0 0.0
      %1532 = vmatpush1.msra.mxu0 0.0
      %1533 = vmatprep.subr.mxu0 0.0
      %1534 = vmatpush1.msra.mxu0 0.0
      %1535 = vmatprep.subr.mxu0 0.0
      %1536 = vmatpush1.msra.mxu0 0.0
      %1537 = vmatprep.subr.mxu0 0.0
      %1538 = vmatpush1.msra.mxu0 0.0
      %1539 = vmatprep.subr.mxu0 0.0
      %1540 = vmatpush1.msra.mxu0 0.0
      %1541 = vmatprep.subr.mxu0 %v1507
      %1542 = vmatpush1.msra.mxu0 %v1505
      %1543 = vmatprep.subr.mxu0 0.0
      %1544 = vmatpush2.msra.mxu0 0.0
      %1545 = vmatprep.subr.mxu0 0.0
      %1546 = vmatpush2.msra.mxu0 0.0
      %1547 = vmatprep.subr.mxu0 0.0
      %1548 = vmatpush2.msra.mxu0 0.0
      %1549 = vmatprep.subr.mxu0 0.0
      %1550 = vmatpush2.msra.mxu0 0.0
      %1551 = vmatprep.subr.mxu0 0.0
      %1552 = vmatpush2.msra.mxu0 0.0
      %1553 = vmatprep.subr.mxu0 0.0
      %1554 = vmatpush2.msra.mxu0 0.0
      %1555 = vmatprep.subr.mxu0 0.0
      %1556 = vmatpush2.msra.mxu0 0.0
      %1557 = vmatprep.subr.mxu0 0.0
      %1558 = vmatpush2.msra.mxu0 0.0
      %1559 = vmatprep.subr.mxu0 0.0
      %1560 = vmatpush2.msra.mxu0 0.0
      %1561 = vmatprep.subr.mxu0 0.0
      %1562 = vmatpush2.msra.mxu0 0.0
      %1563 = vmatprep.subr.mxu0 0.0
      %1564 = vmatpush2.msra.mxu0 0.0
      %1565 = vmatprep.subr.mxu0 0.0
      %1566 = vmatpush2.msra.mxu0 0.0
      %1567 = vmatprep.subr.mxu0 0.0
      %1568 = vmatpush2.msra.mxu0 0.0
      %1569 = vmatprep.subr.mxu0 0.0
      %1570 = vmatpush2.msra.mxu0 0.0
      %1571 = vmatprep.subr.mxu0 0.0
      %1572 = vmatpush2.msra.mxu0 0.0
      %1573 = vmatprep.subr.mxu0 0.0
      %1574 = vmatpush2.msra.mxu0 0.0
      %1575 = vmatprep.mubr.f32.mxu0 0.0
      %1576 = vmatmul.mubr.f32.gmra.mxu0 %v1503
      %v1577 = vpop.f32.mrf.mxu0
      %v1578 = vadd.f32 0.0, %v1577
      %v1579 = vpop.f32.mrf.mxu0
      %v1580 = vadd.f32 0.0, %v1579
      %1581 = vdwg.mxu0
      %1582 = vmatprep.subr.mxu0 0.0
      %1583 = vmatpush1.msra.mxu0 0.0
      %1584 = vmatprep.subr.mxu0 0.0
      %1585 = vmatpush1.msra.mxu0 0.0
      %1586 = vmatprep.subr.mxu0 0.0
      %1587 = vmatpush1.msra.mxu0 0.0
      %1588 = vmatprep.subr.mxu0 0.0
      %1589 = vmatpush1.msra.mxu0 0.0
      %1590 = vmatprep.subr.mxu0 0.0
      %1591 = vmatpush1.msra.mxu0 0.0
      %1592 = vmatprep.subr.mxu0 0.0
      %1593 = vmatpush1.msra.mxu0 0.0
      %1594 = vmatprep.subr.mxu0 0.0
      %1595 = vmatpush1.msra.mxu0 0.0
      %1596 = vmatprep.subr.mxu0 0.0
      %1597 = vmatpush1.msra.mxu0 0.0
      %1598 = vmatprep.subr.mxu0 0.0
      %1599 = vmatpush1.msra.mxu0 0.0
      %1600 = vmatprep.subr.mxu0 0.0
      %1601 = vmatpush1.msra.mxu0 0.0
      %1602 = vmatprep.subr.mxu0 0.0
      %1603 = vmatpush1.msra.mxu0 0.0
      %1604 = vmatprep.subr.mxu0 0.0
      %1605 = vmatpush1.msra.mxu0 0.0
      %1606 = vmatprep.subr.mxu0 0.0
      %1607 = vmatpush1.msra.mxu0 0.0
      %1608 = vmatprep.subr.mxu0 0.0
      %1609 = vmatpush1.msra.mxu0 0.0
      %1610 = vmatprep.subr.mxu0 0.0
      %1611 = vmatpush1.msra.mxu0 0.0
      %1612 = vmatprep.subr.mxu0 0.0
      %1613 = vmatpush1.msra.mxu0 %v1509
      %1614 = vmatprep.subr.mxu0 0.0
      %1615 = vmatpush2.msra.mxu0 0.0
      %1616 = vmatprep.subr.mxu0 0.0
      %1617 = vmatpush2.msra.mxu0 0.0
      %1618 = vmatprep.subr.mxu0 0.0
      %1619 = vmatpush2.msra.mxu0 0.0
      %1620 = vmatprep.subr.mxu0 0.0
      %1621 = vmatpush2.msra.mxu0 0.0
      %1622 = vmatprep.subr.mxu0 0.0
      %1623 = vmatpush2.msra.mxu0 0.0
      %1624 = vmatprep.subr.mxu0 0.0
      %1625 = vmatpush2.msra.mxu0 0.0
      %1626 = vmatprep.subr.mxu0 0.0
      %1627 = vmatpush2.msra.mxu0 0.0
      %1628 = vmatprep.subr.mxu0 0.0
      %1629 = vmatpush2.msra.mxu0 0.0
      %1630 = vmatprep.subr.mxu0 0.0
      %1631 = vmatpush2.msra.mxu0 0.0
      %1632 = vmatprep.subr.mxu0 0.0
      %1633 = vmatpush2.msra.mxu0 0.0
      %1634 = vmatprep.subr.mxu0 0.0
      %1635 = vmatpush2.msra.mxu0 0.0
      %1636 = vmatprep.subr.mxu0 0.0
      %1637 = vmatpush2.msra.mxu0 0.0
      %1638 = vmatprep.subr.mxu0 0.0
      %1639 = vmatpush2.msra.mxu0 0.0
      %1640 = vmatprep.subr.mxu0 0.0
      %1641 = vmatpush2.msra.mxu0 0.0
      %1642 = vmatprep.subr.mxu0 0.0
      %1643 = vmatpush2.msra.mxu0 0.0
      %1644 = vmatprep.subr.mxu0 0.0
      %1645 = vmatpush2.msra.mxu0 0.0
      %1646 = vmatprep.mubr.f32.mxu0 0.0
      %1647 = vmatmul.mubr.f32.gmra.mxu0 %v1503
      %v1648 = vpop.f32.mrf.mxu0
      %v1649 = vadd.f32 0.0, %v1648
      %v1650 = vpop.f32.mrf.mxu0
      %1651 = vdwg.mxu0
      %v1652 = vadd.f32 %v1488, %v1578
      %v1653 = vadd.f32 %v1489, %v1580
      %v1654 = vadd.f32 %v1490, %v1649
      %v1655 = vld [vmem:[%s2] sm:$0x7]
      %v1657 = vlaneseq
      %v1658 = vshrl.u32 %v1657, 7
      %v1659 = vsub.s32 0, %v1658
      %v1660 = vrot.slane %v1655, %v1659
      %v1661 = vlaneseq
      %v1662 = vshrl.u32 %v1661, 7
      %v1663 = vsub.s32 1, %v1662
      %v1664 = vrot.slane %v1655, %v1663
      %v1665 = vlaneseq
      %v1666 = vshrl.u32 %v1665, 7
      %v1667 = vsub.s32 2, %v1666
      %v1668 = vrot.slane %v1655, %v1667
      %v1672 = vmul.f32 %v1652, %v1660
      %v1673 = vmul.f32 %v1653, %v1664
      %v1674 = vmul.f32 %v1654, %v1668
      %v1675 = vld [vmem:[%s3] sm:$0xff]
      %v1676 = vadd.f32 %v1672, %v1673
      %vm1677 = vcmask 261120
      %v1678 = vsel %vm1677, %v1674, 0.0
      %v1679 = vadd.f32 %v1676, %v1678
      %1680 = vadd.xlane.f32.xlu0 %v1679
      %v1681 = vpop.xlane.xlu0 %1680
      %v1682 = vadd.f32 %v1675, %v1681
      %vm1683 = vcmask 7168
      %1684 = vst.msk [vmem:[%s3] sm:$0xff] %vm1683, %v1682
      %v1685 = vld [vmem:[%s4] sm:$0xff]
      %v1686 = vmul.f32 %v1672, %v1652
      %v1687 = vmul.f32 %v1673, %v1653
      %v1688 = vmul.f32 %v1674, %v1654
      %v1689 = vadd.f32 %v1686, %v1687
      %v1690 = vsel %vm1677, %v1688, 0.0
      %v1691 = vadd.f32 %v1689, %v1690
      %1692 = vadd.xlane.f32.xlu0 %v1691
      %v1693 = vpop.xlane.xlu0 %1692
      %v1694 = vadd.f32 %v1685, %v1693
      %1695 = vst.msk [vmem:[%s4] sm:$0xff] %vm1683, %v1694
      // Predicated region
      $region37: #{conv_block.4} parent=31 // pred_check
        %p1696 = pneg %p97
      $region38: #{conv_block.4} parent=31 // pred_check_branch
        %1698 = sbr.rel (%p1696) target = $region40
      $region39: #{conv_block.4} parent=31 // pred_region
        _
      $region40: #{conv_block.4} parent=31 // pred_fallthru
        _
      // Predicated region
      $region41: #{conv_block.4} parent=31 // pred_check
        %p1699 = pneg %p118
      $region42: #{conv_block.4} parent=31 // pred_check_branch
        %1701 = sbr.rel (%p1699) target = $region44
      $region43: #{conv_block.4} parent=31 // pred_region
        _
      $region44: #{conv_block.4} parent=31 // pred_fallthru
        _
      // Predicated region
      $region45: #{conv_block.4} parent=31 // pred_check
        %p1702 = pneg %p97
      $region46: #{conv_block.4} parent=31 // pred_check_branch
        %1704 = sbr.rel (%p1702) target = $region48
      $region47: #{conv_block.4} parent=31 // pred_region
        _
      $region48: #{conv_block.4} parent=31 // pred_fallthru
        _
      // Predicated region
      $region49: #{conv_block.4} parent=31 // pred_check
        %p1705 = pneg %p118
      $region50: #{conv_block.4} parent=31 // pred_check_branch
        %1707 = sbr.rel (%p1705) target = $region52
      $region51: #{conv_block.4} parent=31 // pred_region
        _
      $region52: #{conv_block.4} parent=31 // pred_fallthru
        _
    $region32: #{conv_block.4} parent=5 // pred_fallthru
      _
    %p1708 = scmp.le.s32.totalorder 2, %s11
    // Predicated region
    $region53: #{conv_block.4} parent=5 // pred_check
      %p1709 = pneg %p1708
    $region54: #{conv_block.4} parent=5 // pred_check_branch
      %1711 = sbr.rel (%p1709) target = $region56
    $region55: #{conv_block.4} parent=5 // pred_region
      %s1712 = ssub.s32 %s11, 2
    $region56: #{conv_block.4} parent=5 // pred_fallthru
      _
  $region6: #{conv_block.4} parent=0 // loop_footer
    %s15 = sadd.s32 1, %s11
  $region7: #{conv_block.4} parent=0 // loop_footer_branch
    %10 = sbr.rel target = $region3
  $region8: #{conv_block.4} parent=0 // loop_exit
    _

// kernel: conv_block.5
$region0: #{conv_block.5}
  #allocation0 [shape = 'u32[]', space=smem, size = 0x4, offset = 0x4, fixed_abs, tag = 'smem constant byte address 0x4 - core index']
  #allocation1 [shape = 'u32[144,128]{1,0:T(1,128)}', space=vmem, size = 0x12000, scoped, tag = 'internal scratch']
  %s0 = inlined_call_operand.vmem [shape: f32[2,4,326], index: 0, kind: input, shape index: {}]
  %s1 = inlined_call_operand.vmem [shape: f32[9,8,4], index: 1, kind: input, shape index: {}]
  %s2 = inlined_call_operand.vmem [shape: f32[8,1], index: 2, kind: input, shape index: {}]
  %s3 = inlined_call_operand.vmem [shape: f32[8,1], index: 3, kind: input, shape index: {}]
  %s4 = inlined_call_operand.vmem [shape: f32[2,8,288], index: 4, kind: output, shape index: {}]
  %s5 = sld [smem:[#allocation0]]
  $region49: #{conv_block.5} parent=0
    _
  %s7 = ssub.s32 1, %s5
  %s8 = scalar_select 0, %s7, %s5
  loop: start=0, step=1, limit=4
  $region2: #{conv_block.5} parent=0 // loop_pre_header
    _
  $region3: #{conv_block.5} parent=0 // loop_header
    %s10 = sphi 0, %s14
    %p11 = scmp.ge.s32.totalorder %s10, 4
    %s20 = sphi 0, %s22
    %s23 = sphi 0, %s20
    %s24 = sphi 0, %s23
    %s40 = sphi 0, %s24
    %s44 = sphi 0, %s44
    %s46 = sphi 0, %s44
    %s47 = sphi 0, %s46
    %s61 = sphi 0, %s47
    %s65 = sphi 0, %s65
    %s67 = sphi 0, %s65
    %s68 = sphi 0, %s67
    %s82 = sphi 0, %s68
    %s86 = sphi 0, %s86
    %s88 = sphi 0, %s86
    %s89 = sphi 0, %s88
    %s103 = sphi 0, %s89
    %s109 = sphi 0, %s111
    %s112 = sphi 0, %s109
    %s113 = sphi 0, %s112
    %s129 = sphi 0, %s113
  $region4: #{conv_block.5} parent=0 // loop_header_branch
    %13 = sbr.rel (%p11) target = $region8
  $region5: #{conv_block.5} parent=0 // loop_body
    %s15 = ssub.s32 %s10, 1
    %s16 = ssub.s32 %s10, 2
    %s17 = sadd.s32 %s10, 1
    %s18 = ssub.s32 %s10, %s17
    %p19 = scmp.eq.s32.totalorder %s18, 0
    %s21 = sadd.s32 %s20, 1
    %s22 = scalar_select %p19, %s20, %s21
    %p25 = pneg %p19
    %p26 = scmp.eq.s32.totalorder %s10, 1
    %p27 = por %p25, %p26
    %p28 = scmp.ne.s32.totalorder %s20, %s23
    %p29 = scmp.eq.s32.totalorder %s10, 0
    %p30 = por %p28, %p29
    %p31 = scmp.ne.s32.totalorder %s20, %s23
    %p32 = scmp.eq.s32.totalorder %s15, 1
    %p33 = por %p31, %p32
    %p34 = scmp.ne.s32.totalorder %s23, %s24
    %p35 = scmp.eq.s32.totalorder %s15, 0
    %p36 = por %p34, %p35
    %p37 = scmp.ne.s32.totalorder %s23, %s24
    %p38 = scmp.eq.s32.totalorder %s16, 1
    %p39 = por %p37, %p38
    %p41 = scmp.ne.s32.totalorder %s24, %s40
    %p42 = scmp.eq.s32.totalorder %s16, 0
    %p43 = por %p41, %p42
    %s45 = sadd.s32 %s44, 1
    %p48 = scmp.eq.s32.totalorder %s10, 1
    %p49 = scmp.ne.s32.totalorder %s44, %s46
    %p50 = scmp.eq.s32.totalorder %s10, 0
    %p51 = por %p49, %p50
    %p52 = scmp.ne.s32.totalorder %s44, %s46
    %p53 = scmp.eq.s32.totalorder %s15, 1
    %p54 = por %p52, %p53
    %p55 = scmp.ne.s32.totalorder %s46, %s47
    %p56 = scmp.eq.s32.totalorder %s15, 0
    %p57 = por %p55, %p56
    %p58 = scmp.ne.s32.totalorder %s46, %s47
    %p59 = scmp.eq.s32.totalorder %s16, 1
    %p60 = por %p58, %p59
    %p62 = scmp.ne.s32.totalorder %s47, %s61
    %p63 = scmp.eq.s32.totalorder %s16, 0
    %p64 = por %p62, %p63
    %s66 = sadd.s32 %s65, 1
    %p69 = scmp.eq.s32.totalorder %s10, 1
    %p70 = scmp.ne.s32.totalorder %s65, %s67
    %p71 = scmp.eq.s32.totalorder %s10, 0
    %p72 = por %p70, %p71
    %p73 = scmp.ne.s32.totalorder %s65, %s67
    %p74 = scmp.eq.s32.totalorder %s15, 1
    %p75 = por %p73, %p74
    %p76 = scmp.ne.s32.totalorder %s67, %s68
    %p77 = scmp.eq.s32.totalorder %s15, 0
    %p78 = por %p76, %p77
    %p79 = scmp.ne.s32.totalorder %s67, %s68
    %p80 = scmp.eq.s32.totalorder %s16, 1
    %p81 = por %p79, %p80
    %p83 = scmp.ne.s32.totalorder %s68, %s82
    %p84 = scmp.eq.s32.totalorder %s16, 0
    %p85 = por %p83, %p84
    %s87 = sadd.s32 %s86, 1
    %p90 = scmp.eq.s32.totalorder %s10, 1
    %p91 = scmp.ne.s32.totalorder %s86, %s88
    %p92 = scmp.eq.s32.totalorder %s10, 0
    %p93 = por %p91, %p92
    %p94 = scmp.ne.s32.totalorder %s86, %s88
    %p95 = scmp.eq.s32.totalorder %s15, 1
    %p96 = por %p94, %p95
    %p97 = scmp.ne.s32.totalorder %s88, %s89
    %p98 = scmp.eq.s32.totalorder %s15, 0
    %p99 = por %p97, %p98
    %p100 = scmp.ne.s32.totalorder %s88, %s89
    %p101 = scmp.eq.s32.totalorder %s16, 1
    %p102 = por %p100, %p101
    %p104 = scmp.ne.s32.totalorder %s89, %s103
    %p105 = scmp.eq.s32.totalorder %s16, 0
    %p106 = por %p104, %p105
    %s107 = ssub.s32 %s10, %s17
    %p108 = scmp.eq.s32.totalorder %s107, 0
    %s110 = sadd.s32 %s109, 1
    %s111 = scalar_select %p108, %s109, %s110
    %p114 = pneg %p108
    %p115 = scmp.eq.s32.totalorder %s10, 1
    %p116 = por %p114, %p115
    %p117 = scmp.ne.s32.totalorder %s109, %s112
    %p118 = scmp.eq.s32.totalorder %s10, 0
    %p119 = por %p117, %p118
    %p120 = scmp.ne.s32.totalorder %s109, %s112
    %p121 = scmp.eq.s32.totalorder %s15, 1
    %p122 = por %p120, %p121
    %p123 = scmp.ne.s32.totalorder %s112, %s113
    %p124 = scmp.eq.s32.totalorder %s15, 0
    %p125 = por %p123, %p124
    %p126 = scmp.ne.s32.totalorder %s112, %s113
    %p127 = scmp.eq.s32.totalorder %s16, 1
    %p128 = por %p126, %p127
    %p130 = scmp.ne.s32.totalorder %s113, %s129
    %p131 = scmp.eq.s32.totalorder %s16, 0
    %p132 = por %p130, %p131
    %p133 = scmp.le.s32.totalorder 1, %s10
    %p134 = scmp.lt.s32.totalorder %s10, 3
    %p135 = pnand %p133, %p134
    %p136 = pneg %p135
    // Predicated region
    $region9: #{conv_block.5} parent=5 // pred_check
      _
    $region10: #{conv_block.5} parent=5 // pred_check_branch
      %138 = sbr.rel (%p135) target = $region12
    $region11: #{conv_block.5} parent=5 // pred_region
      %s139 = ssub.s32 %s10, 1
      // Predicated region
      $region13: #{conv_block.5} parent=11 // pred_check
        %p140 = pneg %p57
      $region14: #{conv_block.5} parent=11 // pred_check_branch
        %142 = sbr.rel (%p140) target = $region16
      $region15: #{conv_block.5} parent=11 // pred_region
        _
      $region16: #{conv_block.5} parent=11 // pred_fallthru
        _
      // Predicated region
      $region17: #{conv_block.5} parent=11 // pred_check
        %p143 = pneg %p78
      $region18: #{conv_block.5} parent=11 // pred_check_branch
        %145 = sbr.rel (%p143) target = $region20
      $region19: #{conv_block.5} parent=11 // pred_region
        _
      $region20: #{conv_block.5} parent=11 // pred_fallthru
        _
      // Predicated region
      $region21: #{conv_block.5} parent=11 // pred_check
        %p146 = pneg %p99
      $region22: #{conv_block.5} parent=11 // pred_check_branch
        %148 = sbr.rel (%p146) target = $region24
      $region23: #{conv_block.5} parent=11 // pred_region
        _
      $region24: #{conv_block.5} parent=11 // pred_fallthru
        _
    $region12: #{conv_block.5} parent=5 // pred_fallthru
      _
    %p149 = scmp.lt.s32.totalorder %s10, 2
    // Predicated region
    $region25: #{conv_block.5} parent=5 // pred_check
      %p150 = pneg %p149
    $region26: #{conv_block.5} parent=5 // pred_check_branch
      %152 = sbr.rel (%p150) target = $region28
    $region27: #{conv_block.5} parent=5 // pred_region
      // Predicated region
      $region29: #{conv_block.5} parent=27 // pred_check
        %p153 = pneg %p30
      $region30: #{conv_block.5} parent=27 // pred_check_branch
        %155 = sbr.rel (%p153) target = $region32
      $region31: #{conv_block.5} parent=27 // pred_region
        %p156 = scmp.lt.s32.totalorder %s10, 1
        %s157 = scalar_select %p156, %s10, 1
        %s158 = smul.addr %s157, 3
        %s159 = smul.addr %s158, 4
        %s160 = scalar_lea.vmem %s0, %s159
      $region32: #{conv_block.5} parent=27 // pred_fallthru
        _
    $region28: #{conv_block.5} parent=5 // pred_fallthru
      _
    %p161 = scmp.le.s32.totalorder 1, %s10
    %p162 = scmp.lt.s32.totalorder %s10, 3
    %p163 = pnand %p161, %p162
    %p164 = pneg %p163
    // Predicated region
    $region33: #{conv_block.5} parent=5 // pred_check
      _
    $region34: #{conv_block.5} parent=5 // pred_check_branch
      %166 = sbr.rel (%p163) target = $region36
    $region35: #{conv_block.5} parent=5 // pred_region
      %s167 = ssub.s32 %s10, 1
      %p168 = scmp.lt.s32.totalorder %s15, 1
      %s169 = scalar_select %p168, %s15, 1
      %s170 = smul.addr %s169, 3
      %s171 = smul.addr %s170, 4
      %s172 = scalar_lea.vmem %s0, %s171
      %p173 = pneg %p36
      %p174 = pneg %p33
      %p175 = pneg %p57
      %p176 = pneg %p54
      %p177 = pneg %p78
      %p178 = pneg %p75
      %p179 = pneg %p99
      %p180 = pneg %p96
      %p181 = pneg %p125
      %p182 = pneg %p122
      %p183 = scmp.lt.s32.totalorder %s15, 1
      %s184 = scalar_select %p183, %s15, 1
      %s185 = smul.addr %s184, 3
      %s186 = smul.addr %s185, 8
      %s187 = scalar_lea.vmem %s4, %s186
      %p188 = scmp.lt.s32.totalorder %s15, 1
      %s189 = scalar_select %p188, %s15, 1
      %s190 = smul.addr %s189, 3
      %s191 = smul.addr %s190, 4
      %s192 = scalar_lea.vmem %s0, %s191
      %p193 = scmp.lt.s32.totalorder %s15, 1
      %s194 = scalar_select %p193, %s15, 1
      %s195 = smul.addr %s194, 3
      %s196 = smul.addr %s195, 8
      %s197 = scalar_lea.vmem %s4, %s196
      %v198 = vld [vmem:[%s192] sm:$0xff]
      %v199 = vld [vmem:[%s192 + $0x8] sm:$0xf]
      %v200 = vld [vmem:[%s1] sm:$0xff]
      %s201 = scalar_lea.vmem %s1, 8
      %v202 = vld [vmem:[%s201] sm:$0xff]
      %v205 = vcombine.high %v198, %v198
      %206 = vrot.lane.b32.xlu0 %v198, 127
      %v207 = vpop.permute.xlu0 %206
      %208 = vrot.lane.b32.xlu0 %v205, 127
      %v209 = vpop.permute.xlu0 %208
      %210 = vrot.lane.b32.xlu0 %v199, 127
      %v211 = vpop.permute.xlu0 %210
      %vm212 = vcmask 1039360
      %v213 = vsel %vm212, %v207, %v209
      %v214 = vsel %vm212, %v209, %v211
      %vm215 = vcmask 31744
      %v217 = vsel %vm215, %v202, 0
      %vm219 = vcmask 1043456
      %v220 = vsel %vm219, %v213, 0
      %v222 = vsel %vm219, %v214, 0
      %v224 = vsel %vm219, %v211, 0
      %226 = vmatprep.subr.mxu0 0.0
      %227 = vmatpush1.msra.mxu0 0.0
      %228 = vmatprep.subr.mxu0 0.0
      %229 = vmatpush1.msra.mxu0 0.0
      %230 = vmatprep.subr.mxu0 0.0
      %231 = vmatpush1.msra.mxu0 0.0
      %232 = vmatprep.subr.mxu0 0.0
      %233 = vmatpush1.msra.mxu0 0.0
      %234 = vmatprep.subr.mxu0 0.0
      %235 = vmatpush1.msra.mxu0 0.0
      %236 = vmatprep.subr.mxu0 0.0
      %237 = vmatpush1.msra.mxu0 0.0
      %238 = vmatprep.subr.mxu0 0.0
      %239 = vmatpush1.msra.mxu0 0.0
      %240 = vmatprep.subr.mxu0 0.0
      %241 = vmatpush1.msra.mxu0 0.0
      %242 = vmatprep.subr.mxu0 0.0
      %243 = vmatpush1.msra.mxu0 0.0
      %244 = vmatprep.subr.mxu0 0.0
      %245 = vmatpush1.msra.mxu0 0.0
      %246 = vmatprep.subr.mxu0 0.0
      %247 = vmatpush1.msra.mxu0 0.0
      %248 = vmatprep.subr.mxu0 0.0
      %249 = vmatpush1.msra.mxu0 0.0
      %250 = vmatprep.subr.mxu0 0.0
      %251 = vmatpush1.msra.mxu0 0.0
      %252 = vmatprep.subr.mxu0 0.0
      %253 = vmatpush1.msra.mxu0 0.0
      %254 = vmatprep.subr.mxu0 0.0
      %255 = vmatpush1.msra.mxu0 0.0
      %256 = vmatprep.subr.mxu0 %v222
      %257 = vmatpush1.msra.mxu0 %v220
      %258 = vmatprep.subr.mxu0 0.0
      %259 = vmatpush2.msra.mxu0 0.0
      %260 = vmatprep.subr.mxu0 0.0
      %261 = vmatpush2.msra.mxu0 0.0
      %262 = vmatprep.subr.mxu0 0.0
      %263 = vmatpush2.msra.mxu0 0.0
      %264 = vmatprep.subr.mxu0 0.0
      %265 = vmatpush2.msra.mxu0 0.0
      %266 = vmatprep.subr.mxu0 0.0
      %267 = vmatpush2.msra.mxu0 0.0
      %268 = vmatprep.subr.mxu0 0.0
      %269 = vmatpush2.msra.mxu0 0.0
      %270 = vmatprep.subr.mxu0 0.0
      %271 = vmatpush2.msra.mxu0 0.0
      %272 = vmatprep.subr.mxu0 0.0
      %273 = vmatpush2.msra.mxu0 0.0
      %274 = vmatprep.subr.mxu0 0.0
      %275 = vmatpush2.msra.mxu0 0.0
      %276 = vmatprep.subr.mxu0 0.0
      %277 = vmatpush2.msra.mxu0 0.0
      %278 = vmatprep.subr.mxu0 0.0
      %279 = vmatpush2.msra.mxu0 0.0
      %280 = vmatprep.subr.mxu0 0.0
      %281 = vmatpush2.msra.mxu0 0.0
      %282 = vmatprep.subr.mxu0 0.0
      %283 = vmatpush2.msra.mxu0 0.0
      %284 = vmatprep.subr.mxu0 0.0
      %285 = vmatpush2.msra.mxu0 0.0
      %286 = vmatprep.subr.mxu0 0.0
      %287 = vmatpush2.msra.mxu0 0.0
      %288 = vmatprep.subr.mxu0 0.0
      %289 = vmatpush2.msra.mxu0 0.0
      %290 = vmatprep.mubr.f32.mxu0 0.0
      %291 = vmatmul.mubr.f32.gmra.mxu0 %v217
      %v292 = vpop.f32.mrf.mxu0
      %v293 = vadd.f32 0.0, %v292
      %v294 = vpop.f32.mrf.mxu0
      %v295 = vadd.f32 0.0, %v294
      %296 = vdwg.mxu0
      %297 = vmatprep.subr.mxu0 0.0
      %298 = vmatpush1.msra.mxu0 0.0
      %299 = vmatprep.subr.mxu0 0.0
      %300 = vmatpush1.msra.mxu0 0.0
      %301 = vmatprep.subr.mxu0 0.0
      %302 = vmatpush1.msra.mxu0 0.0
      %303 = vmatprep.subr.mxu0 0.0
      %304 = vmatpush1.msra.mxu0 0.0
      %305 = vmatprep.subr.mxu0 0.0
      %306 = vmatpush1.msra.mxu0 0.0
      %307 = vmatprep.subr.mxu0 0.0
      %308 = vmatpush1.msra.mxu0 0.0
      %309 = vmatprep.subr.mxu0 0.0
      %310 = vmatpush1.msra.mxu0 0.0
      %311 = vmatprep.subr.mxu0 0.0
      %312 = vmatpush1.msra.mxu0 0.0
      %313 = vmatprep.subr.mxu0 0.0
      %314 = vmatpush1.msra.mxu0 0.0
      %315 = vmatprep.subr.mxu0 0.0
      %316 = vmatpush1.msra.mxu0 0.0
      %317 = vmatprep.subr.mxu0 0.0
      %318 = vmatpush1.msra.mxu0 0.0
      %319 = vmatprep.subr.mxu0 0.0
      %320 = vmatpush1.msra.mxu0 0.0
      %321 = vmatprep.subr.mxu0 0.0
      %322 = vmatpush1.msra.mxu0 0.0
      %323 = vmatprep.subr.mxu0 0.0
      %324 = vmatpush1.msra.mxu0 0.0
      %325 = vmatprep.subr.mxu0 0.0
      %326 = vmatpush1.msra.mxu0 0.0
      %327 = vmatprep.subr.mxu0 0.0
      %328 = vmatpush1.msra.mxu0 %v224
      %329 = vmatprep.subr.mxu0 0.0
      %330 = vmatpush2.msra.mxu0 0.0
      %331 = vmatprep.subr.mxu0 0.0
      %332 = vmatpush2.msra.mxu0 0.0
      %333 = vmatprep.subr.mxu0 0.0
      %334 = vmatpush2.msra.mxu0 0.0
      %335 = vmatprep.subr.mxu0 0.0
      %336 = vmatpush2.msra.mxu0 0.0
      %337 = vmatprep.subr.mxu0 0.0
      %338 = vmatpush2.msra.mxu0 0.0
      %339 = vmatprep.subr.mxu0 0.0
      %340 = vmatpush2.msra.mxu0 0.0
      %341 = vmatprep.subr.mxu0 0.0
      %342 = vmatpush2.msra.mxu0 0.0
      %343 = vmatprep.subr.mxu0 0.0
      %344 = vmatpush2.msra.mxu0 0.0
      %345 = vmatprep.subr.mxu0 0.0
      %346 = vmatpush2.msra.mxu0 0.0
      %347 = vmatprep.subr.mxu0 0.0
      %348 = vmatpush2.msra.mxu0 0.0
      %349 = vmatprep.subr.mxu0 0.0
      %350 = vmatpush2.msra.mxu0 0.0
      %351 = vmatprep.subr.mxu0 0.0
      %352 = vmatpush2.msra.mxu0 0.0
      %353 = vmatprep.subr.mxu0 0.0
      %354 = vmatpush2.msra.mxu0 0.0
      %355 = vmatprep.subr.mxu0 0.0
      %356 = vmatpush2.msra.mxu0 0.0
      %357 = vmatprep.subr.mxu0 0.0
      %358 = vmatpush2.msra.mxu0 0.0
      %359 = vmatprep.subr.mxu0 0.0
      %360 = vmatpush2.msra.mxu0 0.0
      %361 = vmatprep.mubr.f32.mxu0 0.0
      %362 = vmatmul.mubr.f32.gmra.mxu0 %v217
      %v363 = vpop.f32.mrf.mxu0
      %v364 = vadd.f32 0.0, %v363
      %v365 = vpop.f32.mrf.mxu0
      %366 = vdwg.mxu0
      %v368 = vsel %vm215, %v200, 0
      %v370 = vsel %vm219, %v198, 0
      %v372 = vsel %vm219, %v205, 0
      %v374 = vsel %vm219, %v199, 0
      %376 = vmatprep.subr.mxu0 0.0
      %377 = vmatpush1.msra.mxu0 0.0
      %378 = vmatprep.subr.mxu0 0.0
      %379 = vmatpush1.msra.mxu0 0.0
      %380 = vmatprep.subr.mxu0 0.0
      %381 = vmatpush1.msra.mxu0 0.0
      %382 = vmatprep.subr.mxu0 0.0
      %383 = vmatpush1.msra.mxu0 0.0
      %384 = vmatprep.subr.mxu0 0.0
      %385 = vmatpush1.msra.mxu0 0.0
      %386 = vmatprep.subr.mxu0 0.0
      %387 = vmatpush1.msra.mxu0 0.0
      %388 = vmatprep.subr.mxu0 0.0
      %389 = vmatpush1.msra.mxu0 0.0
      %390 = vmatprep.subr.mxu0 0.0
      %391 = vmatpush1.msra.mxu0 0.0
      %392 = vmatprep.subr.mxu0 0.0
      %393 = vmatpush1.msra.mxu0 0.0
      %394 = vmatprep.subr.mxu0 0.0
      %395 = vmatpush1.msra.mxu0 0.0
      %396 = vmatprep.subr.mxu0 0.0
      %397 = vmatpush1.msra.mxu0 0.0
      %398 = vmatprep.subr.mxu0 0.0
      %399 = vmatpush1.msra.mxu0 0.0
      %400 = vmatprep.subr.mxu0 0.0
      %401 = vmatpush1.msra.mxu0 0.0
      %402 = vmatprep.subr.mxu0 0.0
      %403 = vmatpush1.msra.mxu0 0.0
      %404 = vmatprep.subr.mxu0 0.0
      %405 = vmatpush1.msra.mxu0 0.0
      %406 = vmatprep.subr.mxu0 %v372
      %407 = vmatpush1.msra.mxu0 %v370
      %408 = vmatprep.subr.mxu0 0.0
      %409 = vmatpush2.msra.mxu0 0.0
      %410 = vmatprep.subr.mxu0 0.0
      %411 = vmatpush2.msra.mxu0 0.0
      %412 = vmatprep.subr.mxu0 0.0
      %413 = vmatpush2.msra.mxu0 0.0
      %414 = vmatprep.subr.mxu0 0.0
      %415 = vmatpush2.msra.mxu0 0.0
      %416 = vmatprep.subr.mxu0 0.0
      %417 = vmatpush2.msra.mxu0 0.0
      %418 = vmatprep.subr.mxu0 0.0
      %419 = vmatpush2.msra.mxu0 0.0
      %420 = vmatprep.subr.mxu0 0.0
      %421 = vmatpush2.msra.mxu0 0.0
      %422 = vmatprep.subr.mxu0 0.0
      %423 = vmatpush2.msra.mxu0 0.0
      %424 = vmatprep.subr.mxu0 0.0
      %425 = vmatpush2.msra.mxu0 0.0
      %426 = vmatprep.subr.mxu0 0.0
      %427 = vmatpush2.msra.mxu0 0.0
      %428 = vmatprep.subr.mxu0 0.0
      %429 = vmatpush2.msra.mxu0 0.0
      %430 = vmatprep.subr.mxu0 0.0
      %431 = vmatpush2.msra.mxu0 0.0
      %432 = vmatprep.subr.mxu0 0.0
      %433 = vmatpush2.msra.mxu0 0.0
      %434 = vmatprep.subr.mxu0 0.0
      %435 = vmatpush2.msra.mxu0 0.0
      %436 = vmatprep.subr.mxu0 0.0
      %437 = vmatpush2.msra.mxu0 0.0
      %438 = vmatprep.subr.mxu0 0.0
      %439 = vmatpush2.msra.mxu0 0.0
      %440 = vmatprep.mubr.f32.mxu0 0.0
      %441 = vmatmul.mubr.f32.gmra.mxu0 %v368
      %v442 = vpop.f32.mrf.mxu0
      %v443 = vadd.f32 %v293, %v442
      %v444 = vpop.f32.mrf.mxu0
      %v445 = vadd.f32 %v295, %v444
      %446 = vdwg.mxu0
      %447 = vmatprep.subr.mxu0 0.0
      %448 = vmatpush1.msra.mxu0 0.0
      %449 = vmatprep.subr.mxu0 0.0
      %450 = vmatpush1.msra.mxu0 0.0
      %451 = vmatprep.subr.mxu0 0.0
      %452 = vmatpush1.msra.mxu0 0.0
      %453 = vmatprep.subr.mxu0 0.0
      %454 = vmatpush1.msra.mxu0 0.0
      %455 = vmatprep.subr.mxu0 0.0
      %456 = vmatpush1.msra.mxu0 0.0
      %457 = vmatprep.subr.mxu0 0.0
      %458 = vmatpush1.msra.mxu0 0.0
      %459 = vmatprep.subr.mxu0 0.0
      %460 = vmatpush1.msra.mxu0 0.0
      %461 = vmatprep.subr.mxu0 0.0
      %462 = vmatpush1.msra.mxu0 0.0
      %463 = vmatprep.subr.mxu0 0.0
      %464 = vmatpush1.msra.mxu0 0.0
      %465 = vmatprep.subr.mxu0 0.0
      %466 = vmatpush1.msra.mxu0 0.0
      %467 = vmatprep.subr.mxu0 0.0
      %468 = vmatpush1.msra.mxu0 0.0
      %469 = vmatprep.subr.mxu0 0.0
      %470 = vmatpush1.msra.mxu0 0.0
      %471 = vmatprep.subr.mxu0 0.0
      %472 = vmatpush1.msra.mxu0 0.0
      %473 = vmatprep.subr.mxu0 0.0
      %474 = vmatpush1.msra.mxu0 0.0
      %475 = vmatprep.subr.mxu0 0.0
      %476 = vmatpush1.msra.mxu0 0.0
      %477 = vmatprep.subr.mxu0 0.0
      %478 = vmatpush1.msra.mxu0 %v374
      %479 = vmatprep.subr.mxu0 0.0
      %480 = vmatpush2.msra.mxu0 0.0
      %481 = vmatprep.subr.mxu0 0.0
      %482 = vmatpush2.msra.mxu0 0.0
      %483 = vmatprep.subr.mxu0 0.0
      %484 = vmatpush2.msra.mxu0 0.0
      %485 = vmatprep.subr.mxu0 0.0
      %486 = vmatpush2.msra.mxu0 0.0
      %487 = vmatprep.subr.mxu0 0.0
      %488 = vmatpush2.msra.mxu0 0.0
      %489 = vmatprep.subr.mxu0 0.0
      %490 = vmatpush2.msra.mxu0 0.0
      %491 = vmatprep.subr.mxu0 0.0
      %492 = vmatpush2.msra.mxu0 0.0
      %493 = vmatprep.subr.mxu0 0.0
      %494 = vmatpush2.msra.mxu0 0.0
      %495 = vmatprep.subr.mxu0 0.0
      %496 = vmatpush2.msra.mxu0 0.0
      %497 = vmatprep.subr.mxu0 0.0
      %498 = vmatpush2.msra.mxu0 0.0
      %499 = vmatprep.subr.mxu0 0.0
      %500 = vmatpush2.msra.mxu0 0.0
      %501 = vmatprep.subr.mxu0 0.0
      %502 = vmatpush2.msra.mxu0 0.0
      %503 = vmatprep.subr.mxu0 0.0
      %504 = vmatpush2.msra.mxu0 0.0
      %505 = vmatprep.subr.mxu0 0.0
      %506 = vmatpush2.msra.mxu0 0.0
      %507 = vmatprep.subr.mxu0 0.0
      %508 = vmatpush2.msra.mxu0 0.0
      %509 = vmatprep.subr.mxu0 0.0
      %510 = vmatpush2.msra.mxu0 0.0
      %511 = vmatprep.mubr.f32.mxu0 0.0
      %512 = vmatmul.mubr.f32.gmra.mxu0 %v368
      %v513 = vpop.f32.mrf.mxu0
      %v514 = vadd.f32 %v364, %v513
      %v515 = vpop.f32.mrf.mxu0
      %516 = vdwg.mxu0
      %s517 = scalar_lea.vmem %s1, 16
      %v518 = vld [vmem:[%s517] sm:$0xff]
      %519 = vrot.lane.b32.xlu0 %v198, 126
      %v520 = vpop.permute.xlu0 %519
      %521 = vrot.lane.b32.xlu0 %v205, 126
      %v522 = vpop.permute.xlu0 %521
      %523 = vrot.lane.b32.xlu0 %v199, 126
      %v524 = vpop.permute.xlu0 %523
      %vm525 = vcmask 1031168
      %v526 = vsel %vm525, %v520, %v522
      %v527 = vsel %vm525, %v522, %v524
      %v529 = vsel %vm215, %v518, 0
      %v531 = vsel %vm219, %v526, 0
      %v533 = vsel %vm219, %v527, 0
      %v535 = vsel %vm219, %v524, 0
      %537 = vmatprep.subr.mxu0 0.0
      %538 = vmatpush1.msra.mxu0 0.0
      %539 = vmatprep.subr.mxu0 0.0
      %540 = vmatpush1.msra.mxu0 0.0
      %541 = vmatprep.subr.mxu0 0.0
      %542 = vmatpush1.msra.mxu0 0.0
      %543 = vmatprep.subr.mxu0 0.0
      %544 = vmatpush1.msra.mxu0 0.0
      %545 = vmatprep.subr.mxu0 0.0
      %546 = vmatpush1.msra.mxu0 0.0
      %547 = vmatprep.subr.mxu0 0.0
      %548 = vmatpush1.msra.mxu0 0.0
      %549 = vmatprep.subr.mxu0 0.0
      %550 = vmatpush1.msra.mxu0 0.0
      %551 = vmatprep.subr.mxu0 0.0
      %552 = vmatpush1.msra.mxu0 0.0
      %553 = vmatprep.subr.mxu0 0.0
      %554 = vmatpush1.msra.mxu0 0.0
      %555 = vmatprep.subr.mxu0 0.0
      %556 = vmatpush1.msra.mxu0 0.0
      %557 = vmatprep.subr.mxu0 0.0
      %558 = vmatpush1.msra.mxu0 0.0
      %559 = vmatprep.subr.mxu0 0.0
      %560 = vmatpush1.msra.mxu0 0.0
      %561 = vmatprep.subr.mxu0 0.0
      %562 = vmatpush1.msra.mxu0 0.0
      %563 = vmatprep.subr.mxu0 0.0
      %564 = vmatpush1.msra.mxu0 0.0
      %565 = vmatprep.subr.mxu0 0.0
      %566 = vmatpush1.msra.mxu0 0.0
      %567 = vmatprep.subr.mxu0 %v533
      %568 = vmatpush1.msra.mxu0 %v531
      %569 = vmatprep.subr.mxu0 0.0
      %570 = vmatpush2.msra.mxu0 0.0
      %571 = vmatprep.subr.mxu0 0.0
      %572 = vmatpush2.msra.mxu0 0.0
      %573 = vmatprep.subr.mxu0 0.0
      %574 = vmatpush2.msra.mxu0 0.0
      %575 = vmatprep.subr.mxu0 0.0
      %576 = vmatpush2.msra.mxu0 0.0
      %577 = vmatprep.subr.mxu0 0.0
      %578 = vmatpush2.msra.mxu0 0.0
      %579 = vmatprep.subr.mxu0 0.0
      %580 = vmatpush2.msra.mxu0 0.0
      %581 = vmatprep.subr.mxu0 0.0
      %582 = vmatpush2.msra.mxu0 0.0
      %583 = vmatprep.subr.mxu0 0.0
      %584 = vmatpush2.msra.mxu0 0.0
      %585 = vmatprep.subr.mxu0 0.0
      %586 = vmatpush2.msra.mxu0 0.0
      %587 = vmatprep.subr.mxu0 0.0
      %588 = vmatpush2.msra.mxu0 0.0
      %589 = vmatprep.subr.mxu0 0.0
      %590 = vmatpush2.msra.mxu0 0.0
      %591 = vmatprep.subr.mxu0 0.0
      %592 = vmatpush2.msra.mxu0 0.0
      %593 = vmatprep.subr.mxu0 0.0
      %594 = vmatpush2.msra.mxu0 0.0
      %595 = vmatprep.subr.mxu0 0.0
      %596 = vmatpush2.msra.mxu0 0.0
      %597 = vmatprep.subr.mxu0 0.0
      %598 = vmatpush2.msra.mxu0 0.0
      %599 = vmatprep.subr.mxu0 0.0
      %600 = vmatpush2.msra.mxu0 0.0
      %601 = vmatprep.mubr.f32.mxu0 0.0
      %602 = vmatmul.mubr.f32.gmra.mxu0 %v529
      %v603 = vpop.f32.mrf.mxu0
      %v604 = vadd.f32 0.0, %v603
      %v605 = vpop.f32.mrf.mxu0
      %v606 = vadd.f32 0.0, %v605
      %607 = vdwg.mxu0
      %608 = vmatprep.subr.mxu0 0.0
      %609 = vmatpush1.msra.mxu0 0.0
      %610 = vmatprep.subr.mxu0 0.0
      %611 = vmatpush1.msra.mxu0 0.0
      %612 = vmatprep.subr.mxu0 0.0
      %613 = vmatpush1.msra.mxu0 0.0
      %614 = vmatprep.subr.mxu0 0.0
      %615 = vmatpush1.msra.mxu0 0.0
      %616 = vmatprep.subr.mxu0 0.0
      %617 = vmatpush1.msra.mxu0 0.0
      %618 = vmatprep.subr.mxu0 0.0
      %619 = vmatpush1.msra.mxu0 0.0
      %620 = vmatprep.subr.mxu0 0.0
      %621 = vmatpush1.msra.mxu0 0.0
      %622 = vmatprep.subr.mxu0 0.0
      %623 = vmatpush1.msra.mxu0 0.0
      %624 = vmatprep.subr.mxu0 0.0
      %625 = vmatpush1.msra.mxu0 0.0
      %626 = vmatprep.subr.mxu0 0.0
      %627 = vmatpush1.msra.mxu0 0.0
      %628 = vmatprep.subr.mxu0 0.0
      %629 = vmatpush1.msra.mxu0 0.0
      %630 = vmatprep.subr.mxu0 0.0
      %631 = vmatpush1.msra.mxu0 0.0
      %632 = vmatprep.subr.mxu0 0.0
      %633 = vmatpush1.msra.mxu0 0.0
      %634 = vmatprep.subr.mxu0 0.0
      %635 = vmatpush1.msra.mxu0 0.0
      %636 = vmatprep.subr.mxu0 0.0
      %637 = vmatpush1.msra.mxu0 0.0
      %638 = vmatprep.subr.mxu0 0.0
      %639 = vmatpush1.msra.mxu0 %v535
      %640 = vmatprep.subr.mxu0 0.0
      %641 = vmatpush2.msra.mxu0 0.0
      %642 = vmatprep.subr.mxu0 0.0
      %643 = vmatpush2.msra.mxu0 0.0
      %644 = vmatprep.subr.mxu0 0.0
      %645 = vmatpush2.msra.mxu0 0.0
      %646 = vmatprep.subr.mxu0 0.0
      %647 = vmatpush2.msra.mxu0 0.0
      %648 = vmatprep.subr.mxu0 0.0
      %649 = vmatpush2.msra.mxu0 0.0
      %650 = vmatprep.subr.mxu0 0.0
      %651 = vmatpush2.msra.mxu0 0.0
      %652 = vmatprep.subr.mxu0 0.0
      %653 = vmatpush2.msra.mxu0 0.0
      %654 = vmatprep.subr.mxu0 0.0
      %655 = vmatpush2.msra.mxu0 0.0
      %656 = vmatprep.subr.mxu0 0.0
      %657 = vmatpush2.msra.mxu0 0.0
      %658 = vmatprep.subr.mxu0 0.0
      %659 = vmatpush2.msra.mxu0 0.0
      %660 = vmatprep.subr.mxu0 0.0
      %661 = vmatpush2.msra.mxu0 0.0
      %662 = vmatprep.subr.mxu0 0.0
      %663 = vmatpush2.msra.mxu0 0.0
      %664 = vmatprep.subr.mxu0 0.0
      %665 = vmatpush2.msra.mxu0 0.0
      %666 = vmatprep.subr.mxu0 0.0
      %667 = vmatpush2.msra.mxu0 0.0
      %668 = vmatprep.subr.mxu0 0.0
      %669 = vmatpush2.msra.mxu0 0.0
      %670 = vmatprep.subr.mxu0 0.0
      %671 = vmatpush2.msra.mxu0 0.0
      %672 = vmatprep.mubr.f32.mxu0 0.0
      %673 = vmatmul.mubr.f32.gmra.mxu0 %v529
      %v674 = vpop.f32.mrf.mxu0
      %v675 = vadd.f32 0.0, %v674
      %v676 = vpop.f32.mrf.mxu0
      %677 = vdwg.mxu0
      %v678 = vadd.f32 %v443, %v604
      %v679 = vadd.f32 %v445, %v606
      %v680 = vadd.f32 %v514, %v675
      %s681 = scalar_lea.vmem %s1, 24
      %v682 = vld [vmem:[%s681] sm:$0xff]
      %683 = vrot.lane.b32.xlu0 %v198, 110
      %v684 = vpop.permute.xlu0 %683
      %685 = vrot.lane.b32.xlu0 %v205, 110
      %v686 = vpop.permute.xlu0 %685
      %687 = vrot.lane.b32.xlu0 %v199, 110
      %v688 = vpop.permute.xlu0 %687
      %vm689 = vcmask 900096
      %v690 = vsel %vm689, %v684, %v686
      %v691 = vsel %vm689, %v686, %v688
      %v693 = vsel %vm215, %v682, 0
      %v695 = vsel %vm219, %v690, 0
      %v697 = vsel %vm219, %v691, 0
      %v699 = vsel %vm219, %v688, 0
      %701 = vmatprep.subr.mxu0 0.0
      %702 = vmatpush1.msra.mxu0 0.0
      %703 = vmatprep.subr.mxu0 0.0
      %704 = vmatpush1.msra.mxu0 0.0
      %705 = vmatprep.subr.mxu0 0.0
      %706 = vmatpush1.msra.mxu0 0.0
      %707 = vmatprep.subr.mxu0 0.0
      %708 = vmatpush1.msra.mxu0 0.0
      %709 = vmatprep.subr.mxu0 0.0
      %710 = vmatpush1.msra.mxu0 0.0
      %711 = vmatprep.subr.mxu0 0.0
      %712 = vmatpush1.msra.mxu0 0.0
      %713 = vmatprep.subr.mxu0 0.0
      %714 = vmatpush1.msra.mxu0 0.0
      %715 = vmatprep.subr.mxu0 0.0
      %716 = vmatpush1.msra.mxu0 0.0
      %717 = vmatprep.subr.mxu0 0.0
      %718 = vmatpush1.msra.mxu0 0.0
      %719 = vmatprep.subr.mxu0 0.0
      %720 = vmatpush1.msra.mxu0 0.0
      %721 = vmatprep.subr.mxu0 0.0
      %722 = vmatpush1.msra.mxu0 0.0
      %723 = vmatprep.subr.mxu0 0.0
      %724 = vmatpush1.msra.mxu0 0.0
      %725 = vmatprep.subr.mxu0 0.0
      %726 = vmatpush1.msra.mxu0 0.0
      %727 = vmatprep.subr.mxu0 0.0
      %728 = vmatpush1.msra.mxu0 0.0
      %729 = vmatprep.subr.mxu0 0.0
      %730 = vmatpush1.msra.mxu0 0.0
      %731 = vmatprep.subr.mxu0 %v697
      %732 = vmatpush1.msra.mxu0 %v695
      %733 = vmatprep.subr.mxu0 0.0
      %734 = vmatpush2.msra.mxu0 0.0
      %735 = vmatprep.subr.mxu0 0.0
      %736 = vmatpush2.msra.mxu0 0.0
      %737 = vmatprep.subr.mxu0 0.0
      %738 = vmatpush2.msra.mxu0 0.0
      %739 = vmatprep.subr.mxu0 0.0
      %740 = vmatpush2.msra.mxu0 0.0
      %741 = vmatprep.subr.mxu0 0.0
      %742 = vmatpush2.msra.mxu0 0.0
      %743 = vmatprep.subr.mxu0 0.0
      %744 = vmatpush2.msra.mxu0 0.0
      %745 = vmatprep.subr.mxu0 0.0
      %746 = vmatpush2.msra.mxu0 0.0
      %747 = vmatprep.subr.mxu0 0.0
      %748 = vmatpush2.msra.mxu0 0.0
      %749 = vmatprep.subr.mxu0 0.0
      %750 = vmatpush2.msra.mxu0 0.0
      %751 = vmatprep.subr.mxu0 0.0
      %752 = vmatpush2.msra.mxu0 0.0
      %753 = vmatprep.subr.mxu0 0.0
      %754 = vmatpush2.msra.mxu0 0.0
      %755 = vmatprep.subr.mxu0 0.0
      %756 = vmatpush2.msra.mxu0 0.0
      %757 = vmatprep.subr.mxu0 0.0
      %758 = vmatpush2.msra.mxu0 0.0
      %759 = vmatprep.subr.mxu0 0.0
      %760 = vmatpush2.msra.mxu0 0.0
      %761 = vmatprep.subr.mxu0 0.0
      %762 = vmatpush2.msra.mxu0 0.0
      %763 = vmatprep.subr.mxu0 0.0
      %764 = vmatpush2.msra.mxu0 0.0
      %765 = vmatprep.mubr.f32.mxu0 0.0
      %766 = vmatmul.mubr.f32.gmra.mxu0 %v693
      %v767 = vpop.f32.mrf.mxu0
      %v768 = vadd.f32 0.0, %v767
      %v769 = vpop.f32.mrf.mxu0
      %v770 = vadd.f32 0.0, %v769
      %771 = vdwg.mxu0
      %772 = vmatprep.subr.mxu0 0.0
      %773 = vmatpush1.msra.mxu0 0.0
      %774 = vmatprep.subr.mxu0 0.0
      %775 = vmatpush1.msra.mxu0 0.0
      %776 = vmatprep.subr.mxu0 0.0
      %777 = vmatpush1.msra.mxu0 0.0
      %778 = vmatprep.subr.mxu0 0.0
      %779 = vmatpush1.msra.mxu0 0.0
      %780 = vmatprep.subr.mxu0 0.0
      %781 = vmatpush1.msra.mxu0 0.0
      %782 = vmatprep.subr.mxu0 0.0
      %783 = vmatpush1.msra.mxu0 0.0
      %784 = vmatprep.subr.mxu0 0.0
      %785 = vmatpush1.msra.mxu0 0.0
      %786 = vmatprep.subr.mxu0 0.0
      %787 = vmatpush1.msra.mxu0 0.0
      %788 = vmatprep.subr.mxu0 0.0
      %789 = vmatpush1.msra.mxu0 0.0
      %790 = vmatprep.subr.mxu0 0.0
      %791 = vmatpush1.msra.mxu0 0.0
      %792 = vmatprep.subr.mxu0 0.0
      %793 = vmatpush1.msra.mxu0 0.0
      %794 = vmatprep.subr.mxu0 0.0
      %795 = vmatpush1.msra.mxu0 0.0
      %796 = vmatprep.subr.mxu0 0.0
      %797 = vmatpush1.msra.mxu0 0.0
      %798 = vmatprep.subr.mxu0 0.0
      %799 = vmatpush1.msra.mxu0 0.0
      %800 = vmatprep.subr.mxu0 0.0
      %801 = vmatpush1.msra.mxu0 0.0
      %802 = vmatprep.subr.mxu0 0.0
      %803 = vmatpush1.msra.mxu0 %v699
      %804 = vmatprep.subr.mxu0 0.0
      %805 = vmatpush2.msra.mxu0 0.0
      %806 = vmatprep.subr.mxu0 0.0
      %807 = vmatpush2.msra.mxu0 0.0
      %808 = vmatprep.subr.mxu0 0.0
      %809 = vmatpush2.msra.mxu0 0.0
      %810 = vmatprep.subr.mxu0 0.0
      %811 = vmatpush2.msra.mxu0 0.0
      %812 = vmatprep.subr.mxu0 0.0
      %813 = vmatpush2.msra.mxu0 0.0
      %814 = vmatprep.subr.mxu0 0.0
      %815 = vmatpush2.msra.mxu0 0.0
      %816 = vmatprep.subr.mxu0 0.0
      %817 = vmatpush2.msra.mxu0 0.0
      %818 = vmatprep.subr.mxu0 0.0
      %819 = vmatpush2.msra.mxu0 0.0
      %820 = vmatprep.subr.mxu0 0.0
      %821 = vmatpush2.msra.mxu0 0.0
      %822 = vmatprep.subr.mxu0 0.0
      %823 = vmatpush2.msra.mxu0 0.0
      %824 = vmatprep.subr.mxu0 0.0
      %825 = vmatpush2.msra.mxu0 0.0
      %826 = vmatprep.subr.mxu0 0.0
      %827 = vmatpush2.msra.mxu0 0.0
      %828 = vmatprep.subr.mxu0 0.0
      %829 = vmatpush2.msra.mxu0 0.0
      %830 = vmatprep.subr.mxu0 0.0
      %831 = vmatpush2.msra.mxu0 0.0
      %832 = vmatprep.subr.mxu0 0.0
      %833 = vmatpush2.msra.mxu0 0.0
      %834 = vmatprep.subr.mxu0 0.0
      %835 = vmatpush2.msra.mxu0 0.0
      %836 = vmatprep.mubr.f32.mxu0 0.0
      %837 = vmatmul.mubr.f32.gmra.mxu0 %v693
      %v838 = vpop.f32.mrf.mxu0
      %v839 = vadd.f32 0.0, %v838
      %v840 = vpop.f32.mrf.mxu0
      %841 = vdwg.mxu0
      %v842 = vadd.f32 %v678, %v768
      %v843 = vadd.f32 %v679, %v770
      %v844 = vadd.f32 %v680, %v839
      %s845 = scalar_lea.vmem %s1, 32
      %v846 = vld [vmem:[%s845] sm:$0xff]
      %847 = vrot.lane.b32.xlu0 %v198, 109
      %v848 = vpop.permute.xlu0 %847
      %849 = vrot.lane.b32.xlu0 %v205, 109
      %v850 = vpop.permute.xlu0 %849
      %851 = vrot.lane.b32.xlu0 %v199, 109
      %v852 = vpop.permute.xlu0 %851
      %vm853 = vcmask 891904
      %v854 = vsel %vm853, %v848, %v850
      %v855 = vsel %vm853, %v850, %v852
      %v857 = vsel %vm215, %v846, 0
      %v859 = vsel %vm219, %v854, 0
      %v861 = vsel %vm219, %v855, 0
      %v863 = vsel %vm219, %v852, 0
      %865 = vmatprep.subr.mxu0 0.0
      %866 = vmatpush1.msra.mxu0 0.0
      %867 = vmatprep.subr.mxu0 0.0
      %868 = vmatpush1.msra.mxu0 0.0
      %869 = vmatprep.subr.mxu0 0.0
      %870 = vmatpush1.msra.mxu0 0.0
      %871 = vmatprep.subr.mxu0 0.0
      %872 = vmatpush1.msra.mxu0 0.0
      %873 = vmatprep.subr.mxu0 0.0
      %874 = vmatpush1.msra.mxu0 0.0
      %875 = vmatprep.subr.mxu0 0.0
      %876 = vmatpush1.msra.mxu0 0.0
      %877 = vmatprep.subr.mxu0 0.0
      %878 = vmatpush1.msra.mxu0 0.0
      %879 = vmatprep.subr.mxu0 0.0
      %880 = vmatpush1.msra.mxu0 0.0
      %881 = vmatprep.subr.mxu0 0.0
      %882 = vmatpush1.msra.mxu0 0.0
      %883 = vmatprep.subr.mxu0 0.0
      %884 = vmatpush1.msra.mxu0 0.0
      %885 = vmatprep.subr.mxu0 0.0
      %886 = vmatpush1.msra.mxu0 0.0
      %887 = vmatprep.subr.mxu0 0.0
      %888 = vmatpush1.msra.mxu0 0.0
      %889 = vmatprep.subr.mxu0 0.0
      %890 = vmatpush1.msra.mxu0 0.0
      %891 = vmatprep.subr.mxu0 0.0
      %892 = vmatpush1.msra.mxu0 0.0
      %893 = vmatprep.subr.mxu0 0.0
      %894 = vmatpush1.msra.mxu0 0.0
      %895 = vmatprep.subr.mxu0 %v861
      %896 = vmatpush1.msra.mxu0 %v859
      %897 = vmatprep.subr.mxu0 0.0
      %898 = vmatpush2.msra.mxu0 0.0
      %899 = vmatprep.subr.mxu0 0.0
      %900 = vmatpush2.msra.mxu0 0.0
      %901 = vmatprep.subr.mxu0 0.0
      %902 = vmatpush2.msra.mxu0 0.0
      %903 = vmatprep.subr.mxu0 0.0
      %904 = vmatpush2.msra.mxu0 0.0
      %905 = vmatprep.subr.mxu0 0.0
      %906 = vmatpush2.msra.mxu0 0.0
      %907 = vmatprep.subr.mxu0 0.0
      %908 = vmatpush2.msra.mxu0 0.0
      %909 = vmatprep.subr.mxu0 0.0
      %910 = vmatpush2.msra.mxu0 0.0
      %911 = vmatprep.subr.mxu0 0.0
      %912 = vmatpush2.msra.mxu0 0.0
      %913 = vmatprep.subr.mxu0 0.0
      %914 = vmatpush2.msra.mxu0 0.0
      %915 = vmatprep.subr.mxu0 0.0
      %916 = vmatpush2.msra.mxu0 0.0
      %917 = vmatprep.subr.mxu0 0.0
      %918 = vmatpush2.msra.mxu0 0.0
      %919 = vmatprep.subr.mxu0 0.0
      %920 = vmatpush2.msra.mxu0 0.0
      %921 = vmatprep.subr.mxu0 0.0
      %922 = vmatpush2.msra.mxu0 0.0
      %923 = vmatprep.subr.mxu0 0.0
      %924 = vmatpush2.msra.mxu0 0.0
      %925 = vmatprep.subr.mxu0 0.0
      %926 = vmatpush2.msra.mxu0 0.0
      %927 = vmatprep.subr.mxu0 0.0
      %928 = vmatpush2.msra.mxu0 0.0
      %929 = vmatprep.mubr.f32.mxu0 0.0
      %930 = vmatmul.mubr.f32.gmra.mxu0 %v857
      %v931 = vpop.f32.mrf.mxu0
      %v932 = vadd.f32 0.0, %v931
      %v933 = vpop.f32.mrf.mxu0
      %v934 = vadd.f32 0.0, %v933
      %935 = vdwg.mxu0
      %936 = vmatprep.subr.mxu0 0.0
      %937 = vmatpush1.msra.mxu0 0.0
      %938 = vmatprep.subr.mxu0 0.0
      %939 = vmatpush1.msra.mxu0 0.0
      %940 = vmatprep.subr.mxu0 0.0
      %941 = vmatpush1.msra.mxu0 0.0
      %942 = vmatprep.subr.mxu0 0.0
      %943 = vmatpush1.msra.mxu0 0.0
      %944 = vmatprep.subr.mxu0 0.0
      %945 = vmatpush1.msra.mxu0 0.0
      %946 = vmatprep.subr.mxu0 0.0
      %947 = vmatpush1.msra.mxu0 0.0
      %948 = vmatprep.subr.mxu0 0.0
      %949 = vmatpush1.msra.mxu0 0.0
      %950 = vmatprep.subr.mxu0 0.0
      %951 = vmatpush1.msra.mxu0 0.0
      %952 = vmatprep.subr.mxu0 0.0
      %953 = vmatpush1.msra.mxu0 0.0
      %954 = vmatprep.subr.mxu0 0.0
      %955 = vmatpush1.msra.mxu0 0.0
      %956 = vmatprep.subr.mxu0 0.0
      %957 = vmatpush1.msra.mxu0 0.0
      %958 = vmatprep.subr.mxu0 0.0
      %959 = vmatpush1.msra.mxu0 0.0
      %960 = vmatprep.subr.mxu0 0.0
      %961 = vmatpush1.msra.mxu0 0.0
      %962 = vmatprep.subr.mxu0 0.0
      %963 = vmatpush1.msra.mxu0 0.0
      %964 = vmatprep.subr.mxu0 0.0
      %965 = vmatpush1.msra.mxu0 0.0
      %966 = vmatprep.subr.mxu0 0.0
      %967 = vmatpush1.msra.mxu0 %v863
      %968 = vmatprep.subr.mxu0 0.0
      %969 = vmatpush2.msra.mxu0 0.0
      %970 = vmatprep.subr.mxu0 0.0
      %971 = vmatpush2.msra.mxu0 0.0
      %972 = vmatprep.subr.mxu0 0.0
      %973 = vmatpush2.msra.mxu0 0.0
      %974 = vmatprep.subr.mxu0 0.0
      %975 = vmatpush2.msra.mxu0 0.0
      %976 = vmatprep.subr.mxu0 0.0
      %977 = vmatpush2.msra.mxu0 0.0
      %978 = vmatprep.subr.mxu0 0.0
      %979 = vmatpush2.msra.mxu0 0.0
      %980 = vmatprep.subr.mxu0 0.0
      %981 = vmatpush2.msra.mxu0 0.0
      %982 = vmatprep.subr.mxu0 0.0
      %983 = vmatpush2.msra.mxu0 0.0
      %984 = vmatprep.subr.mxu0 0.0
      %985 = vmatpush2.msra.mxu0 0.0
      %986 = vmatprep.subr.mxu0 0.0
      %987 = vmatpush2.msra.mxu0 0.0
      %988 = vmatprep.subr.mxu0 0.0
      %989 = vmatpush2.msra.mxu0 0.0
      %990 = vmatprep.subr.mxu0 0.0
      %991 = vmatpush2.msra.mxu0 0.0
      %992 = vmatprep.subr.mxu0 0.0
      %993 = vmatpush2.msra.mxu0 0.0
      %994 = vmatprep.subr.mxu0 0.0
      %995 = vmatpush2.msra.mxu0 0.0
      %996 = vmatprep.subr.mxu0 0.0
      %997 = vmatpush2.msra.mxu0 0.0
      %998 = vmatprep.subr.mxu0 0.0
      %999 = vmatpush2.msra.mxu0 0.0
      %1000 = vmatprep.mubr.f32.mxu0 0.0
      %1001 = vmatmul.mubr.f32.gmra.mxu0 %v857
      %v1002 = vpop.f32.mrf.mxu0
      %v1003 = vadd.f32 0.0, %v1002
      %v1004 = vpop.f32.mrf.mxu0
      %1005 = vdwg.mxu0
      %v1006 = vadd.f32 %v842, %v932
      %v1007 = vadd.f32 %v843, %v934
      %v1008 = vadd.f32 %v844, %v1003
      %s1009 = scalar_lea.vmem %s1, 40
      %v1010 = vld [vmem:[%s1009] sm:$0xff]
      %1011 = vrot.lane.b32.xlu0 %v198, 108
      %v1012 = vpop.permute.xlu0 %1011
      %1013 = vrot.lane.b32.xlu0 %v205, 108
      %v1014 = vpop.permute.xlu0 %1013
      %1015 = vrot.lane.b32.xlu0 %v199, 108
      %v1016 = vpop.permute.xlu0 %1015
      %vm1017 = vcmask 883712
      %v1018 = vsel %vm1017, %v1012, %v1014
      %v1019 = vsel %vm1017, %v1014, %v1016
      %v1021 = vsel %vm215, %v1010, 0
      %v1023 = vsel %vm219, %v1018, 0
      %v1025 = vsel %vm219, %v1019, 0
      %v1027 = vsel %vm219, %v1016, 0
      %1029 = vmatprep.subr.mxu0 0.0
      %1030 = vmatpush1.msra.mxu0 0.0
      %1031 = vmatprep.subr.mxu0 0.0
      %1032 = vmatpush1.msra.mxu0 0.0
      %1033 = vmatprep.subr.mxu0 0.0
      %1034 = vmatpush1.msra.mxu0 0.0
      %1035 = vmatprep.subr.mxu0 0.0
      %1036 = vmatpush1.msra.mxu0 0.0
      %1037 = vmatprep.subr.mxu0 0.0
      %1038 = vmatpush1.msra.mxu0 0.0
      %1039 = vmatprep.subr.mxu0 0.0
      %1040 = vmatpush1.msra.mxu0 0.0
      %1041 = vmatprep.subr.mxu0 0.0
      %1042 = vmatpush1.msra.mxu0 0.0
      %1043 = vmatprep.subr.mxu0 0.0
      %1044 = vmatpush1.msra.mxu0 0.0
      %1045 = vmatprep.subr.mxu0 0.0
      %1046 = vmatpush1.msra.mxu0 0.0
      %1047 = vmatprep.subr.mxu0 0.0
      %1048 = vmatpush1.msra.mxu0 0.0
      %1049 = vmatprep.subr.mxu0 0.0
      %1050 = vmatpush1.msra.mxu0 0.0
      %1051 = vmatprep.subr.mxu0 0.0
      %1052 = vmatpush1.msra.mxu0 0.0
      %1053 = vmatprep.subr.mxu0 0.0
      %1054 = vmatpush1.msra.mxu0 0.0
      %1055 = vmatprep.subr.mxu0 0.0
      %1056 = vmatpush1.msra.mxu0 0.0
      %1057 = vmatprep.subr.mxu0 0.0
      %1058 = vmatpush1.msra.mxu0 0.0
      %1059 = vmatprep.subr.mxu0 %v1025
      %1060 = vmatpush1.msra.mxu0 %v1023
      %1061 = vmatprep.subr.mxu0 0.0
      %1062 = vmatpush2.msra.mxu0 0.0
      %1063 = vmatprep.subr.mxu0 0.0
      %1064 = vmatpush2.msra.mxu0 0.0
      %1065 = vmatprep.subr.mxu0 0.0
      %1066 = vmatpush2.msra.mxu0 0.0
      %1067 = vmatprep.subr.mxu0 0.0
      %1068 = vmatpush2.msra.mxu0 0.0
      %1069 = vmatprep.subr.mxu0 0.0
      %1070 = vmatpush2.msra.mxu0 0.0
      %1071 = vmatprep.subr.mxu0 0.0
      %1072 = vmatpush2.msra.mxu0 0.0
      %1073 = vmatprep.subr.mxu0 0.0
      %1074 = vmatpush2.msra.mxu0 0.0
      %1075 = vmatprep.subr.mxu0 0.0
      %1076 = vmatpush2.msra.mxu0 0.0
      %1077 = vmatprep.subr.mxu0 0.0
      %1078 = vmatpush2.msra.mxu0 0.0
      %1079 = vmatprep.subr.mxu0 0.0
      %1080 = vmatpush2.msra.mxu0 0.0
      %1081 = vmatprep.subr.mxu0 0.0
      %1082 = vmatpush2.msra.mxu0 0.0
      %1083 = vmatprep.subr.mxu0 0.0
      %1084 = vmatpush2.msra.mxu0 0.0
      %1085 = vmatprep.subr.mxu0 0.0
      %1086 = vmatpush2.msra.mxu0 0.0
      %1087 = vmatprep.subr.mxu0 0.0
      %1088 = vmatpush2.msra.mxu0 0.0
      %1089 = vmatprep.subr.mxu0 0.0
      %1090 = vmatpush2.msra.mxu0 0.0
      %1091 = vmatprep.subr.mxu0 0.0
      %1092 = vmatpush2.msra.mxu0 0.0
      %1093 = vmatprep.mubr.f32.mxu0 0.0
      %1094 = vmatmul.mubr.f32.gmra.mxu0 %v1021
      %v1095 = vpop.f32.mrf.mxu0
      %v1096 = vadd.f32 0.0, %v1095
      %v1097 = vpop.f32.mrf.mxu0
      %v1098 = vadd.f32 0.0, %v1097
      %1099 = vdwg.mxu0
      %1100 = vmatprep.subr.mxu0 0.0
      %1101 = vmatpush1.msra.mxu0 0.0
      %1102 = vmatprep.subr.mxu0 0.0
      %1103 = vmatpush1.msra.mxu0 0.0
      %1104 = vmatprep.subr.mxu0 0.0
      %1105 = vmatpush1.msra.mxu0 0.0
      %1106 = vmatprep.subr.mxu0 0.0
      %1107 = vmatpush1.msra.mxu0 0.0
      %1108 = vmatprep.subr.mxu0 0.0
      %1109 = vmatpush1.msra.mxu0 0.0
      %1110 = vmatprep.subr.mxu0 0.0
      %1111 = vmatpush1.msra.mxu0 0.0
      %1112 = vmatprep.subr.mxu0 0.0
      %1113 = vmatpush1.msra.mxu0 0.0
      %1114 = vmatprep.subr.mxu0 0.0
      %1115 = vmatpush1.msra.mxu0 0.0
      %1116 = vmatprep.subr.mxu0 0.0
      %1117 = vmatpush1.msra.mxu0 0.0
      %1118 = vmatprep.subr.mxu0 0.0
      %1119 = vmatpush1.msra.mxu0 0.0
      %1120 = vmatprep.subr.mxu0 0.0
      %1121 = vmatpush1.msra.mxu0 0.0
      %1122 = vmatprep.subr.mxu0 0.0
      %1123 = vmatpush1.msra.mxu0 0.0
      %1124 = vmatprep.subr.mxu0 0.0
      %1125 = vmatpush1.msra.mxu0 0.0
      %1126 = vmatprep.subr.mxu0 0.0
      %1127 = vmatpush1.msra.mxu0 0.0
      %1128 = vmatprep.subr.mxu0 0.0
      %1129 = vmatpush1.msra.mxu0 0.0
      %1130 = vmatprep.subr.mxu0 0.0
      %1131 = vmatpush1.msra.mxu0 %v1027
      %1132 = vmatprep.subr.mxu0 0.0
      %1133 = vmatpush2.msra.mxu0 0.0
      %1134 = vmatprep.subr.mxu0 0.0
      %1135 = vmatpush2.msra.mxu0 0.0
      %1136 = vmatprep.subr.mxu0 0.0
      %1137 = vmatpush2.msra.mxu0 0.0
      %1138 = vmatprep.subr.mxu0 0.0
      %1139 = vmatpush2.msra.mxu0 0.0
      %1140 = vmatprep.subr.mxu0 0.0
      %1141 = vmatpush2.msra.mxu0 0.0
      %1142 = vmatprep.subr.mxu0 0.0
      %1143 = vmatpush2.msra.mxu0 0.0
      %1144 = vmatprep.subr.mxu0 0.0
      %1145 = vmatpush2.msra.mxu0 0.0
      %1146 = vmatprep.subr.mxu0 0.0
      %1147 = vmatpush2.msra.mxu0 0.0
      %1148 = vmatprep.subr.mxu0 0.0
      %1149 = vmatpush2.msra.mxu0 0.0
      %1150 = vmatprep.subr.mxu0 0.0
      %1151 = vmatpush2.msra.mxu0 0.0
      %1152 = vmatprep.subr.mxu0 0.0
      %1153 = vmatpush2.msra.mxu0 0.0
      %1154 = vmatprep.subr.mxu0 0.0
      %1155 = vmatpush2.msra.mxu0 0.0
      %1156 = vmatprep.subr.mxu0 0.0
      %1157 = vmatpush2.msra.mxu0 0.0
      %1158 = vmatprep.subr.mxu0 0.0
      %1159 = vmatpush2.msra.mxu0 0.0
      %1160 = vmatprep.subr.mxu0 0.0
      %1161 = vmatpush2.msra.mxu0 0.0
      %1162 = vmatprep.subr.mxu0 0.0
      %1163 = vmatpush2.msra.mxu0 0.0
      %1164 = vmatprep.mubr.f32.mxu0 0.0
      %1165 = vmatmul.mubr.f32.gmra.mxu0 %v1021
      %v1166 = vpop.f32.mrf.mxu0
      %v1167 = vadd.f32 0.0, %v1166
      %v1168 = vpop.f32.mrf.mxu0
      %1169 = vdwg.mxu0
      %v1170 = vadd.f32 %v1006, %v1096
      %v1171 = vadd.f32 %v1007, %v1098
      %v1172 = vadd.f32 %v1008, %v1167
      %s1173 = scalar_lea.vmem %s1, 48
      %v1174 = vld [vmem:[%s1173] sm:$0xff]
      %1175 = vrot.lane.b32.xlu0 %v198, 92
      %v1176 = vpop.permute.xlu0 %1175
      %1177 = vrot.lane.b32.xlu0 %v205, 92
      %v1178 = vpop.permute.xlu0 %1177
      %1179 = vrot.lane.b32.xlu0 %v199, 92
      %v1180 = vpop.permute.xlu0 %1179
      %vm1181 = vcmask 752640
      %v1182 = vsel %vm1181, %v1176, %v1178
      %v1183 = vsel %vm1181, %v1178, %v1180
      %v1185 = vsel %vm215, %v1174, 0
      %v1187 = vsel %vm219, %v1182, 0
      %v1189 = vsel %vm219, %v1183, 0
      %v1191 = vsel %vm219, %v1180, 0
      %1193 = vmatprep.subr.mxu0 0.0
      %1194 = vmatpush1.msra.mxu0 0.0
      %1195 = vmatprep.subr.mxu0 0.0
      %1196 = vmatpush1.msra.mxu0 0.0
      %1197 = vmatprep.subr.mxu0 0.0
      %1198 = vmatpush1.msra.mxu0 0.0
      %1199 = vmatprep.subr.mxu0 0.0
      %1200 = vmatpush1.msra.mxu0 0.0
      %1201 = vmatprep.subr.mxu0 0.0
      %1202 = vmatpush1.msra.mxu0 0.0
      %1203 = vmatprep.subr.mxu0 0.0
      %1204 = vmatpush1.msra.mxu0 0.0
      %1205 = vmatprep.subr.mxu0 0.0
      %1206 = vmatpush1.msra.mxu0 0.0
      %1207 = vmatprep.subr.mxu0 0.0
      %1208 = vmatpush1.msra.mxu0 0.0
      %1209 = vmatprep.subr.mxu0 0.0
      %1210 = vmatpush1.msra.mxu0 0.0
      %1211 = vmatprep.subr.mxu0 0.0
      %1212 = vmatpush1.msra.mxu0 0.0
      %1213 = vmatprep.subr.mxu0 0.0
      %1214 = vmatpush1.msra.mxu0 0.0
      %1215 = vmatprep.subr.mxu0 0.0
      %1216 = vmatpush1.msra.mxu0 0.0
      %1217 = vmatprep.subr.mxu0 0.0
      %1218 = vmatpush1.msra.mxu0 0.0
      %1219 = vmatprep.subr.mxu0 0.0
      %1220 = vmatpush1.msra.mxu0 0.0
      %1221 = vmatprep.subr.mxu0 0.0
      %1222 = vmatpush1.msra.mxu0 0.0
      %1223 = vmatprep.subr.mxu0 %v1189
      %1224 = vmatpush1.msra.mxu0 %v1187
      %1225 = vmatprep.subr.mxu0 0.0
      %1226 = vmatpush2.msra.mxu0 0.0
      %1227 = vmatprep.subr.mxu0 0.0
      %1228 = vmatpush2.msra.mxu0 0.0
      %1229 = vmatprep.subr.mxu0 0.0
      %1230 = vmatpush2.msra.mxu0 0.0
      %1231 = vmatprep.subr.mxu0 0.0
      %1232 = vmatpush2.msra.mxu0 0.0
      %1233 = vmatprep.subr.mxu0 0.0
      %1234 = vmatpush2.msra.mxu0 0.0
      %1235 = vmatprep.subr.mxu0 0.0
      %1236 = vmatpush2.msra.mxu0 0.0
      %1237 = vmatprep.subr.mxu0 0.0
      %1238 = vmatpush2.msra.mxu0 0.0
      %1239 = vmatprep.subr.mxu0 0.0
      %1240 = vmatpush2.msra.mxu0 0.0
      %1241 = vmatprep.subr.mxu0 0.0
      %1242 = vmatpush2.msra.mxu0 0.0
      %1243 = vmatprep.subr.mxu0 0.0
      %1244 = vmatpush2.msra.mxu0 0.0
      %1245 = vmatprep.subr.mxu0 0.0
      %1246 = vmatpush2.msra.mxu0 0.0
      %1247 = vmatprep.subr.mxu0 0.0
      %1248 = vmatpush2.msra.mxu0 0.0
      %1249 = vmatprep.subr.mxu0 0.0
      %1250 = vmatpush2.msra.mxu0 0.0
      %1251 = vmatprep.subr.mxu0 0.0
      %1252 = vmatpush2.msra.mxu0 0.0
      %1253 = vmatprep.subr.mxu0 0.0
      %1254 = vmatpush2.msra.mxu0 0.0
      %1255 = vmatprep.subr.mxu0 0.0
      %1256 = vmatpush2.msra.mxu0 0.0
      %1257 = vmatprep.mubr.f32.mxu0 0.0
      %1258 = vmatmul.mubr.f32.gmra.mxu0 %v1185
      %v1259 = vpop.f32.mrf.mxu0
      %v1260 = vadd.f32 0.0, %v1259
      %v1261 = vpop.f32.mrf.mxu0
      %v1262 = vadd.f32 0.0, %v1261
      %1263 = vdwg.mxu0
      %1264 = vmatprep.subr.mxu0 0.0
      %1265 = vmatpush1.msra.mxu0 0.0
      %1266 = vmatprep.subr.mxu0 0.0
      %1267 = vmatpush1.msra.mxu0 0.0
      %1268 = vmatprep.subr.mxu0 0.0
      %1269 = vmatpush1.msra.mxu0 0.0
      %1270 = vmatprep.subr.mxu0 0.0
      %1271 = vmatpush1.msra.mxu0 0.0
      %1272 = vmatprep.subr.mxu0 0.0
      %1273 = vmatpush1.msra.mxu0 0.0
      %1274 = vmatprep.subr.mxu0 0.0
      %1275 = vmatpush1.msra.mxu0 0.0
      %1276 = vmatprep.subr.mxu0 0.0
      %1277 = vmatpush1.msra.mxu0 0.0
      %1278 = vmatprep.subr.mxu0 0.0
      %1279 = vmatpush1.msra.mxu0 0.0
      %1280 = vmatprep.subr.mxu0 0.0
      %1281 = vmatpush1.msra.mxu0 0.0
      %1282 = vmatprep.subr.mxu0 0.0
      %1283 = vmatpush1.msra.mxu0 0.0
      %1284 = vmatprep.subr.mxu0 0.0
      %1285 = vmatpush1.msra.mxu0 0.0
      %1286 = vmatprep.subr.mxu0 0.0
      %1287 = vmatpush1.msra.mxu0 0.0
      %1288 = vmatprep.subr.mxu0 0.0
      %1289 = vmatpush1.msra.mxu0 0.0
      %1290 = vmatprep.subr.mxu0 0.0
      %1291 = vmatpush1.msra.mxu0 0.0
      %1292 = vmatprep.subr.mxu0 0.0
      %1293 = vmatpush1.msra.mxu0 0.0
      %1294 = vmatprep.subr.mxu0 0.0
      %1295 = vmatpush1.msra.mxu0 %v1191
      %1296 = vmatprep.subr.mxu0 0.0
      %1297 = vmatpush2.msra.mxu0 0.0
      %1298 = vmatprep.subr.mxu0 0.0
      %1299 = vmatpush2.msra.mxu0 0.0
      %1300 = vmatprep.subr.mxu0 0.0
      %1301 = vmatpush2.msra.mxu0 0.0
      %1302 = vmatprep.subr.mxu0 0.0
      %1303 = vmatpush2.msra.mxu0 0.0
      %1304 = vmatprep.subr.mxu0 0.0
      %1305 = vmatpush2.msra.mxu0 0.0
      %1306 = vmatprep.subr.mxu0 0.0
      %1307 = vmatpush2.msra.mxu0 0.0
      %1308 = vmatprep.subr.mxu0 0.0
      %1309 = vmatpush2.msra.mxu0 0.0
      %1310 = vmatprep.subr.mxu0 0.0
      %1311 = vmatpush2.msra.mxu0 0.0
      %1312 = vmatprep.subr.mxu0 0.0
      %1313 = vmatpush2.msra.mxu0 0.0
      %1314 = vmatprep.subr.mxu0 0.0
      %1315 = vmatpush2.msra.mxu0 0.0
      %1316 = vmatprep.subr.mxu0 0.0
      %1317 = vmatpush2.msra.mxu0 0.0
      %1318 = vmatprep.subr.mxu0 0.0
      %1319 = vmatpush2.msra.mxu0 0.0
      %1320 = vmatprep.subr.mxu0 0.0
      %1321 = vmatpush2.msra.mxu0 0.0
      %1322 = vmatprep.subr.mxu0 0.0
      %1323 = vmatpush2.msra.mxu0 0.0
      %1324 = vmatprep.subr.mxu0 0.0
      %1325 = vmatpush2.msra.mxu0 0.0
      %1326 = vmatprep.subr.mxu0 0.0
      %1327 = vmatpush2.msra.mxu0 0.0
      %1328 = vmatprep.mubr.f32.mxu0 0.0
      %1329 = vmatmul.mubr.f32.gmra.mxu0 %v1185
      %v1330 = vpop.f32.mrf.mxu0
      %v1331 = vadd.f32 0.0, %v1330
      %v1332 = vpop.f32.mrf.mxu0
      %1333 = vdwg.mxu0
      %v1334 = vadd.f32 %v1170, %v1260
      %v1335 = vadd.f32 %v1171, %v1262
      %v1336 = vadd.f32 %v1172, %v1331
      %s1337 = scalar_lea.vmem %s1, 56
      %v1338 = vld [vmem:[%s1337] sm:$0xff]
      %1339 = vrot.lane.b32.xlu0 %v198, 91
      %v1340 = vpop.permute.xlu0 %1339
      %1341 = vrot.lane.b32.xlu0 %v205, 91
      %v1342 = vpop.permute.xlu0 %1341
      %1343 = vrot.lane.b32.xlu0 %v199, 91
      %v1344 = vpop.permute.xlu0 %1343
      %vm1345 = vcmask 744448
      %v1346 = vsel %vm1345, %v1340, %v1342
      %v1347 = vsel %vm1345, %v1342, %v1344
      %v1349 = vsel %vm215, %v1338, 0
      %v1351 = vsel %vm219, %v1346, 0
      %v1353 = vsel %vm219, %v1347, 0
      %v1355 = vsel %vm219, %v1344, 0
      %1357 = vmatprep.subr.mxu0 0.0
      %1358 = vmatpush1.msra.mxu0 0.0
      %1359 = vmatprep.subr.mxu0 0.0
      %1360 = vmatpush1.msra.mxu0 0.0
      %1361 = vmatprep.subr.mxu0 0.0
      %1362 = vmatpush1.msra.mxu0 0.0
      %1363 = vmatprep.subr.mxu0 0.0
      %1364 = vmatpush1.msra.mxu0 0.0
      %1365 = vmatprep.subr.mxu0 0.0
      %1366 = vmatpush1.msra.mxu0 0.0
      %1367 = vmatprep.subr.mxu0 0.0
      %1368 = vmatpush1.msra.mxu0 0.0
      %1369 = vmatprep.subr.mxu0 0.0
      %1370 = vmatpush1.msra.mxu0 0.0
      %1371 = vmatprep.subr.mxu0 0.0
      %1372 = vmatpush1.msra.mxu0 0.0
      %1373 = vmatprep.subr.mxu0 0.0
      %1374 = vmatpush1.msra.mxu0 0.0
      %1375 = vmatprep.subr.mxu0 0.0
      %1376 = vmatpush1.msra.mxu0 0.0
      %1377 = vmatprep.subr.mxu0 0.0
      %1378 = vmatpush1.msra.mxu0 0.0
      %1379 = vmatprep.subr.mxu0 0.0
      %1380 = vmatpush1.msra.mxu0 0.0
      %1381 = vmatprep.subr.mxu0 0.0
      %1382 = vmatpush1.msra.mxu0 0.0
      %1383 = vmatprep.subr.mxu0 0.0
      %1384 = vmatpush1.msra.mxu0 0.0
      %1385 = vmatprep.subr.mxu0 0.0
      %1386 = vmatpush1.msra.mxu0 0.0
      %1387 = vmatprep.subr.mxu0 %v1353
      %1388 = vmatpush1.msra.mxu0 %v1351
      %1389 = vmatprep.subr.mxu0 0.0
      %1390 = vmatpush2.msra.mxu0 0.0
      %1391 = vmatprep.subr.mxu0 0.0
      %1392 = vmatpush2.msra.mxu0 0.0
      %1393 = vmatprep.subr.mxu0 0.0
      %1394 = vmatpush2.msra.mxu0 0.0
      %1395 = vmatprep.subr.mxu0 0.0
      %1396 = vmatpush2.msra.mxu0 0.0
      %1397 = vmatprep.subr.mxu0 0.0
      %1398 = vmatpush2.msra.mxu0 0.0
      %1399 = vmatprep.subr.mxu0 0.0
      %1400 = vmatpush2.msra.mxu0 0.0
      %1401 = vmatprep.subr.mxu0 0.0
      %1402 = vmatpush2.msra.mxu0 0.0
      %1403 = vmatprep.subr.mxu0 0.0
      %1404 = vmatpush2.msra.mxu0 0.0
      %1405 = vmatprep.subr.mxu0 0.0
      %1406 = vmatpush2.msra.mxu0 0.0
      %1407 = vmatprep.subr.mxu0 0.0
      %1408 = vmatpush2.msra.mxu0 0.0
      %1409 = vmatprep.subr.mxu0 0.0
      %1410 = vmatpush2.msra.mxu0 0.0
      %1411 = vmatprep.subr.mxu0 0.0
      %1412 = vmatpush2.msra.mxu0 0.0
      %1413 = vmatprep.subr.mxu0 0.0
      %1414 = vmatpush2.msra.mxu0 0.0
      %1415 = vmatprep.subr.mxu0 0.0
      %1416 = vmatpush2.msra.mxu0 0.0
      %1417 = vmatprep.subr.mxu0 0.0
      %1418 = vmatpush2.msra.mxu0 0.0
      %1419 = vmatprep.subr.mxu0 0.0
      %1420 = vmatpush2.msra.mxu0 0.0
      %1421 = vmatprep.mubr.f32.mxu0 0.0
      %1422 = vmatmul.mubr.f32.gmra.mxu0 %v1349
      %v1423 = vpop.f32.mrf.mxu0
      %v1424 = vadd.f32 0.0, %v1423
      %v1425 = vpop.f32.mrf.mxu0
      %v1426 = vadd.f32 0.0, %v1425
      %1427 = vdwg.mxu0
      %1428 = vmatprep.subr.mxu0 0.0
      %1429 = vmatpush1.msra.mxu0 0.0
      %1430 = vmatprep.subr.mxu0 0.0
      %1431 = vmatpush1.msra.mxu0 0.0
      %1432 = vmatprep.subr.mxu0 0.0
      %1433 = vmatpush1.msra.mxu0 0.0
      %1434 = vmatprep.subr.mxu0 0.0
      %1435 = vmatpush1.msra.mxu0 0.0
      %1436 = vmatprep.subr.mxu0 0.0
      %1437 = vmatpush1.msra.mxu0 0.0
      %1438 = vmatprep.subr.mxu0 0.0
      %1439 = vmatpush1.msra.mxu0 0.0
      %1440 = vmatprep.subr.mxu0 0.0
      %1441 = vmatpush1.msra.mxu0 0.0
      %1442 = vmatprep.subr.mxu0 0.0
      %1443 = vmatpush1.msra.mxu0 0.0
      %1444 = vmatprep.subr.mxu0 0.0
      %1445 = vmatpush1.msra.mxu0 0.0
      %1446 = vmatprep.subr.mxu0 0.0
      %1447 = vmatpush1.msra.mxu0 0.0
      %1448 = vmatprep.subr.mxu0 0.0
      %1449 = vmatpush1.msra.mxu0 0.0
      %1450 = vmatprep.subr.mxu0 0.0
      %1451 = vmatpush1.msra.mxu0 0.0
      %1452 = vmatprep.subr.mxu0 0.0
      %1453 = vmatpush1.msra.mxu0 0.0
      %1454 = vmatprep.subr.mxu0 0.0
      %1455 = vmatpush1.msra.mxu0 0.0
      %1456 = vmatprep.subr.mxu0 0.0
      %1457 = vmatpush1.msra.mxu0 0.0
      %1458 = vmatprep.subr.mxu0 0.0
      %1459 = vmatpush1.msra.mxu0 %v1355
      %1460 = vmatprep.subr.mxu0 0.0
      %1461 = vmatpush2.msra.mxu0 0.0
      %1462 = vmatprep.subr.mxu0 0.0
      %1463 = vmatpush2.msra.mxu0 0.0
      %1464 = vmatprep.subr.mxu0 0.0
      %1465 = vmatpush2.msra.mxu0 0.0
      %1466 = vmatprep.subr.mxu0 0.0
      %1467 = vmatpush2.msra.mxu0 0.0
      %1468 = vmatprep.subr.mxu0 0.0
      %1469 = vmatpush2.msra.mxu0 0.0
      %1470 = vmatprep.subr.mxu0 0.0
      %1471 = vmatpush2.msra.mxu0 0.0
      %1472 = vmatprep.subr.mxu0 0.0
      %1473 = vmatpush2.msra.mxu0 0.0
      %1474 = vmatprep.subr.mxu0 0.0
      %1475 = vmatpush2.msra.mxu0 0.0
      %1476 = vmatprep.subr.mxu0 0.0
      %1477 = vmatpush2.msra.mxu0 0.0
      %1478 = vmatprep.subr.mxu0 0.0
      %1479 = vmatpush2.msra.mxu0 0.0
      %1480 = vmatprep.subr.mxu0 0.0
      %1481 = vmatpush2.msra.mxu0 0.0
      %1482 = vmatprep.subr.mxu0 0.0
      %1483 = vmatpush2.msra.mxu0 0.0
      %1484 = vmatprep.subr.mxu0 0.0
      %1485 = vmatpush2.msra.mxu0 0.0
      %1486 = vmatprep.subr.mxu0 0.0
      %1487 = vmatpush2.msra.mxu0 0.0
      %1488 = vmatprep.subr.mxu0 0.0
      %1489 = vmatpush2.msra.mxu0 0.0
      %1490 = vmatprep.subr.mxu0 0.0
      %1491 = vmatpush2.msra.mxu0 0.0
      %1492 = vmatprep.mubr.f32.mxu0 0.0
      %1493 = vmatmul.mubr.f32.gmra.mxu0 %v1349
      %v1494 = vpop.f32.mrf.mxu0
      %v1495 = vadd.f32 0.0, %v1494
      %v1496 = vpop.f32.mrf.mxu0
      %1497 = vdwg.mxu0
      %v1498 = vadd.f32 %v1334, %v1424
      %v1499 = vadd.f32 %v1335, %v1426
      %v1500 = vadd.f32 %v1336, %v1495
      %s1501 = scalar_lea.vmem %s1, 64
      %v1502 = vld [vmem:[%s1501] sm:$0xff]
      %1503 = vrot.lane.b32.xlu0 %v198, 90
      %v1504 = vpop.permute.xlu0 %1503
      %1505 = vrot.lane.b32.xlu0 %v205, 90
      %v1506 = vpop.permute.xlu0 %1505
      %1507 = vrot.lane.b32.xlu0 %v199, 90
      %v1508 = vpop.permute.xlu0 %1507
      %vm1509 = vcmask 736256
      %v1510 = vsel %vm1509, %v1504, %v1506
      %v1511 = vsel %vm1509, %v1506, %v1508
      %v1513 = vsel %vm215, %v1502, 0
      %v1515 = vsel %vm219, %v1510, 0
      %v1517 = vsel %vm219, %v1511, 0
      %v1519 = vsel %vm219, %v1508, 0
      %1521 = vmatprep.subr.mxu0 0.0
      %1522 = vmatpush1.msra.mxu0 0.0
      %1523 = vmatprep.subr.mxu0 0.0
      %1524 = vmatpush1.msra.mxu0 0.0
      %1525 = vmatprep.subr.mxu0 0.0
      %1526 = vmatpush1.msra.mxu0 0.0
      %1527 = vmatprep.subr.mxu0 0.0
      %1528 = vmatpush1.msra.mxu0 0.0
      %1529 = vmatprep.subr.mxu0 0.0
      %1530 = vmatpush1.msra.mxu0 0.0
      %1531 = vmatprep.subr.mxu0 0.0
      %1532 = vmatpush1.msra.mxu0 0.0
      %1533 = vmatprep.subr.mxu0 0.0
      %1534 = vmatpush1.msra.mxu0 0.0
      %1535 = vmatprep.subr.mxu0 0.0
      %1536 = vmatpush1.msra.mxu0 0.0
      %1537 = vmatprep.subr.mxu0 0.0
      %1538 = vmatpush1.msra.mxu0 0.0
      %1539 = vmatprep.subr.mxu0 0.0
      %1540 = vmatpush1.msra.mxu0 0.0
      %1541 = vmatprep.subr.mxu0 0.0
      %1542 = vmatpush1.msra.mxu0 0.0
      %1543 = vmatprep.subr.mxu0 0.0
      %1544 = vmatpush1.msra.mxu0 0.0
      %1545 = vmatprep.subr.mxu0 0.0
      %1546 = vmatpush1.msra.mxu0 0.0
      %1547 = vmatprep.subr.mxu0 0.0
      %1548 = vmatpush1.msra.mxu0 0.0
      %1549 = vmatprep.subr.mxu0 0.0
      %1550 = vmatpush1.msra.mxu0 0.0
      %1551 = vmatprep.subr.mxu0 %v1517
      %1552 = vmatpush1.msra.mxu0 %v1515
      %1553 = vmatprep.subr.mxu0 0.0
      %1554 = vmatpush2.msra.mxu0 0.0
      %1555 = vmatprep.subr.mxu0 0.0
      %1556 = vmatpush2.msra.mxu0 0.0
      %1557 = vmatprep.subr.mxu0 0.0
      %1558 = vmatpush2.msra.mxu0 0.0
      %1559 = vmatprep.subr.mxu0 0.0
      %1560 = vmatpush2.msra.mxu0 0.0
      %1561 = vmatprep.subr.mxu0 0.0
      %1562 = vmatpush2.msra.mxu0 0.0
      %1563 = vmatprep.subr.mxu0 0.0
      %1564 = vmatpush2.msra.mxu0 0.0
      %1565 = vmatprep.subr.mxu0 0.0
      %1566 = vmatpush2.msra.mxu0 0.0
      %1567 = vmatprep.subr.mxu0 0.0
      %1568 = vmatpush2.msra.mxu0 0.0
      %1569 = vmatprep.subr.mxu0 0.0
      %1570 = vmatpush2.msra.mxu0 0.0
      %1571 = vmatprep.subr.mxu0 0.0
      %1572 = vmatpush2.msra.mxu0 0.0
      %1573 = vmatprep.subr.mxu0 0.0
      %1574 = vmatpush2.msra.mxu0 0.0
      %1575 = vmatprep.subr.mxu0 0.0
      %1576 = vmatpush2.msra.mxu0 0.0
      %1577 = vmatprep.subr.mxu0 0.0
      %1578 = vmatpush2.msra.mxu0 0.0
      %1579 = vmatprep.subr.mxu0 0.0
      %1580 = vmatpush2.msra.mxu0 0.0
      %1581 = vmatprep.subr.mxu0 0.0
      %1582 = vmatpush2.msra.mxu0 0.0
      %1583 = vmatprep.subr.mxu0 0.0
      %1584 = vmatpush2.msra.mxu0 0.0
      %1585 = vmatprep.mubr.f32.mxu0 0.0
      %1586 = vmatmul.mubr.f32.gmra.mxu0 %v1513
      %v1587 = vpop.f32.mrf.mxu0
      %v1588 = vadd.f32 0.0, %v1587
      %v1589 = vpop.f32.mrf.mxu0
      %v1590 = vadd.f32 0.0, %v1589
      %1591 = vdwg.mxu0
      %1592 = vmatprep.subr.mxu0 0.0
      %1593 = vmatpush1.msra.mxu0 0.0
      %1594 = vmatprep.subr.mxu0 0.0
      %1595 = vmatpush1.msra.mxu0 0.0
      %1596 = vmatprep.subr.mxu0 0.0
      %1597 = vmatpush1.msra.mxu0 0.0
      %1598 = vmatprep.subr.mxu0 0.0
      %1599 = vmatpush1.msra.mxu0 0.0
      %1600 = vmatprep.subr.mxu0 0.0
      %1601 = vmatpush1.msra.mxu0 0.0
      %1602 = vmatprep.subr.mxu0 0.0
      %1603 = vmatpush1.msra.mxu0 0.0
      %1604 = vmatprep.subr.mxu0 0.0
      %1605 = vmatpush1.msra.mxu0 0.0
      %1606 = vmatprep.subr.mxu0 0.0
      %1607 = vmatpush1.msra.mxu0 0.0
      %1608 = vmatprep.subr.mxu0 0.0
      %1609 = vmatpush1.msra.mxu0 0.0
      %1610 = vmatprep.subr.mxu0 0.0
      %1611 = vmatpush1.msra.mxu0 0.0
      %1612 = vmatprep.subr.mxu0 0.0
      %1613 = vmatpush1.msra.mxu0 0.0
      %1614 = vmatprep.subr.mxu0 0.0
      %1615 = vmatpush1.msra.mxu0 0.0
      %1616 = vmatprep.subr.mxu0 0.0
      %1617 = vmatpush1.msra.mxu0 0.0
      %1618 = vmatprep.subr.mxu0 0.0
      %1619 = vmatpush1.msra.mxu0 0.0
      %1620 = vmatprep.subr.mxu0 0.0
      %1621 = vmatpush1.msra.mxu0 0.0
      %1622 = vmatprep.subr.mxu0 0.0
      %1623 = vmatpush1.msra.mxu0 %v1519
      %1624 = vmatprep.subr.mxu0 0.0
      %1625 = vmatpush2.msra.mxu0 0.0
      %1626 = vmatprep.subr.mxu0 0.0
      %1627 = vmatpush2.msra.mxu0 0.0
      %1628 = vmatprep.subr.mxu0 0.0
      %1629 = vmatpush2.msra.mxu0 0.0
      %1630 = vmatprep.subr.mxu0 0.0
      %1631 = vmatpush2.msra.mxu0 0.0
      %1632 = vmatprep.subr.mxu0 0.0
      %1633 = vmatpush2.msra.mxu0 0.0
      %1634 = vmatprep.subr.mxu0 0.0
      %1635 = vmatpush2.msra.mxu0 0.0
      %1636 = vmatprep.subr.mxu0 0.0
      %1637 = vmatpush2.msra.mxu0 0.0
      %1638 = vmatprep.subr.mxu0 0.0
      %1639 = vmatpush2.msra.mxu0 0.0
      %1640 = vmatprep.subr.mxu0 0.0
      %1641 = vmatpush2.msra.mxu0 0.0
      %1642 = vmatprep.subr.mxu0 0.0
      %1643 = vmatpush2.msra.mxu0 0.0
      %1644 = vmatprep.subr.mxu0 0.0
      %1645 = vmatpush2.msra.mxu0 0.0
      %1646 = vmatprep.subr.mxu0 0.0
      %1647 = vmatpush2.msra.mxu0 0.0
      %1648 = vmatprep.subr.mxu0 0.0
      %1649 = vmatpush2.msra.mxu0 0.0
      %1650 = vmatprep.subr.mxu0 0.0
      %1651 = vmatpush2.msra.mxu0 0.0
      %1652 = vmatprep.subr.mxu0 0.0
      %1653 = vmatpush2.msra.mxu0 0.0
      %1654 = vmatprep.subr.mxu0 0.0
      %1655 = vmatpush2.msra.mxu0 0.0
      %1656 = vmatprep.mubr.f32.mxu0 0.0
      %1657 = vmatmul.mubr.f32.gmra.mxu0 %v1513
      %v1658 = vpop.f32.mrf.mxu0
      %v1659 = vadd.f32 0.0, %v1658
      %v1660 = vpop.f32.mrf.mxu0
      %1661 = vdwg.mxu0
      %v1662 = vadd.f32 %v1498, %v1588
      %v1663 = vadd.f32 %v1499, %v1590
      %v1664 = vadd.f32 %v1500, %v1659
      %v1665 = vld [vmem:[%s2] sm:$0xff]
      %1667 = vset.pattern.permute.xlu0 0
      %1668 = vperm.xlu0 %1667, %v1665
      %v1669 = vpop.permute.xlu0 %1668
      %v1671 = vmul.f32 %v1662, %v1669
      %v1672 = vmul.f32 %v1663, %v1669
      %v1673 = vmul.f32 %v1664, %v1669
      %v1674 = vld [vmem:[%s3] sm:$0xff]
      %1676 = vset.pattern.permute.xlu0 0
      %1677 = vperm.xlu0 %1676, %v1674
      %v1678 = vpop.permute.xlu0 %1677
      %v1680 = vadd.f32 %v1671, %v1678
      %v1681 = vadd.f32 %v1672, %v1678
      %v1682 = vadd.f32 %v1673, %v1678
      %vm1683 = vcmp.ge.f32.partialorder %v1680, 0.0
      %vm1684 = vcmp.ge.f32.partialorder %v1681, 0.0
      %vm1685 = vcmp.ge.f32.partialorder %v1682, 0.0
      %v1686 = vmul.f32 %v1680, 0.2
      %v1687 = vmul.f32 %v1681, 0.2
      %v1688 = vmul.f32 %v1682, 0.2
      %v1689 = vsel %vm1683, %v1680, %v1686
      %v1690 = vsel %vm1684, %v1681, %v1687
      %v1691 = vsel %vm1685, %v1682, %v1688
      %1692 = vst [vmem:[%s197] sm:$0xff] %v1689
      %1693 = vst [vmem:[%s197 + $0x8] sm:$0xff] %v1690
      %vm1694 = vcmask 261120
      %1695 = vst.msk [vmem:[%s197 + $0x10] sm:$0xff] %vm1694, %v1691
      %p1696 = scmp.lt.s32.totalorder %s15, 1
      %s1697 = scalar_select %p1696, %s15, 1
      %s1698 = smul.addr %s1697, 3
      %s1699 = smul.addr %s1698, 8
      %s1700 = scalar_lea.vmem %s4, %s1699
      // Predicated region
      $region37: #{conv_block.5} parent=35 // pred_check
        %p1701 = pneg %p122
      $region38: #{conv_block.5} parent=35 // pred_check_branch
        %1703 = sbr.rel (%p1701) target = $region40
      $region39: #{conv_block.5} parent=35 // pred_region
        _
      $region40: #{conv_block.5} parent=35 // pred_fallthru
        _
    $region36: #{conv_block.5} parent=5 // pred_fallthru
      _
    %p1704 = scmp.le.s32.totalorder 2, %s10
    // Predicated region
    $region41: #{conv_block.5} parent=5 // pred_check
      %p1705 = pneg %p1704
    $region42: #{conv_block.5} parent=5 // pred_check_branch
      %1707 = sbr.rel (%p1705) target = $region44
    $region43: #{conv_block.5} parent=5 // pred_region
      %s1708 = ssub.s32 %s10, 2
      // Predicated region
      $region45: #{conv_block.5} parent=43 // pred_check
        %p1709 = pneg %p128
      $region46: #{conv_block.5} parent=43 // pred_check_branch
        %1711 = sbr.rel (%p1709) target = $region48
      $region47: #{conv_block.5} parent=43 // pred_region
        %p1712 = scmp.lt.s32.totalorder %s16, 1
        %s1713 = scalar_select %p1712, %s16, 1
        %s1714 = smul.addr %s1713, 3
        %s1715 = smul.addr %s1714, 8
        %s1716 = scalar_lea.vmem %s4, %s1715
      $region48: #{conv_block.5} parent=43 // pred_fallthru
        _
    $region44: #{conv_block.5} parent=5 // pred_fallthru
      _
  $region6: #{conv_block.5} parent=0 // loop_footer
    %s14 = sadd.s32 1, %s10
  $region7: #{conv_block.5} parent=0 // loop_footer_branch
    %9 = sbr.rel target = $region3
  $region8: #{conv_block.5} parent=0 // loop_exit
    _

// kernel: conv_block.7
$region0: #{conv_block.7}
  #allocation0 [shape = 'u32[]', space=smem, size = 0x4, offset = 0x4, fixed_abs, tag = 'smem constant byte address 0x4 - core index']
  #allocation1 [shape = 'u32[144,128]{1,0:T(1,128)}', space=vmem, size = 0x12000, scoped, tag = 'internal scratch']
  %s0 = inlined_call_operand.vmem [shape: f32[2,8,326], index: 0, kind: input, shape index: {}]
  %s1 = inlined_call_operand.vmem [shape: f32[9,8,8], index: 1, kind: input, shape index: {}]
  %s2 = inlined_call_operand.vmem [shape: f32[8,1], index: 2, kind: input, shape index: {}]
  %s3 = inlined_call_operand.vmem [shape: f32[8,1], index: 3, kind: input, shape index: {}]
  %s4 = inlined_call_operand.vmem [shape: f32[2,8,288], index: 4, kind: output, shape index: {}]
  %s5 = sld [smem:[#allocation0]]
  $region49: #{conv_block.7} parent=0
    _
  %s7 = ssub.s32 1, %s5
  %s8 = scalar_select 0, %s7, %s5
  loop: start=0, step=1, limit=4
  $region2: #{conv_block.7} parent=0 // loop_pre_header
    _
  $region3: #{conv_block.7} parent=0 // loop_header
    %s10 = sphi 0, %s14
    %p11 = scmp.ge.s32.totalorder %s10, 4
    %s20 = sphi 0, %s22
    %s23 = sphi 0, %s20
    %s24 = sphi 0, %s23
    %s40 = sphi 0, %s24
    %s44 = sphi 0, %s44
    %s46 = sphi 0, %s44
    %s47 = sphi 0, %s46
    %s61 = sphi 0, %s47
    %s65 = sphi 0, %s65
    %s67 = sphi 0, %s65
    %s68 = sphi 0, %s67
    %s82 = sphi 0, %s68
    %s86 = sphi 0, %s86
    %s88 = sphi 0, %s86
    %s89 = sphi 0, %s88
    %s103 = sphi 0, %s89
    %s109 = sphi 0, %s111
    %s112 = sphi 0, %s109
    %s113 = sphi 0, %s112
    %s129 = sphi 0, %s113
  $region4: #{conv_block.7} parent=0 // loop_header_branch
    %13 = sbr.rel (%p11) target = $region8
  $region5: #{conv_block.7} parent=0 // loop_body
    %s15 = ssub.s32 %s10, 1
    %s16 = ssub.s32 %s10, 2
    %s17 = sadd.s32 %s10, 1
    %s18 = ssub.s32 %s10, %s17
    %p19 = scmp.eq.s32.totalorder %s18, 0
    %s21 = sadd.s32 %s20, 1
    %s22 = scalar_select %p19, %s20, %s21
    %p25 = pneg %p19
    %p26 = scmp.eq.s32.totalorder %s10, 1
    %p27 = por %p25, %p26
    %p28 = scmp.ne.s32.totalorder %s20, %s23
    %p29 = scmp.eq.s32.totalorder %s10, 0
    %p30 = por %p28, %p29
    %p31 = scmp.ne.s32.totalorder %s20, %s23
    %p32 = scmp.eq.s32.totalorder %s15, 1
    %p33 = por %p31, %p32
    %p34 = scmp.ne.s32.totalorder %s23, %s24
    %p35 = scmp.eq.s32.totalorder %s15, 0
    %p36 = por %p34, %p35
    %p37 = scmp.ne.s32.totalorder %s23, %s24
    %p38 = scmp.eq.s32.totalorder %s16, 1
    %p39 = por %p37, %p38
    %p41 = scmp.ne.s32.totalorder %s24, %s40
    %p42 = scmp.eq.s32.totalorder %s16, 0
    %p43 = por %p41, %p42
    %s45 = sadd.s32 %s44, 1
    %p48 = scmp.eq.s32.totalorder %s10, 1
    %p49 = scmp.ne.s32.totalorder %s44, %s46
    %p50 = scmp.eq.s32.totalorder %s10, 0
    %p51 = por %p49, %p50
    %p52 = scmp.ne.s32.totalorder %s44, %s46
    %p53 = scmp.eq.s32.totalorder %s15, 1
    %p54 = por %p52, %p53
    %p55 = scmp.ne.s32.totalorder %s46, %s47
    %p56 = scmp.eq.s32.totalorder %s15, 0
    %p57 = por %p55, %p56
    %p58 = scmp.ne.s32.totalorder %s46, %s47
    %p59 = scmp.eq.s32.totalorder %s16, 1
    %p60 = por %p58, %p59
    %p62 = scmp.ne.s32.totalorder %s47, %s61
    %p63 = scmp.eq.s32.totalorder %s16, 0
    %p64 = por %p62, %p63
    %s66 = sadd.s32 %s65, 1
    %p69 = scmp.eq.s32.totalorder %s10, 1
    %p70 = scmp.ne.s32.totalorder %s65, %s67
    %p71 = scmp.eq.s32.totalorder %s10, 0
    %p72 = por %p70, %p71
    %p73 = scmp.ne.s32.totalorder %s65, %s67
    %p74 = scmp.eq.s32.totalorder %s15, 1
    %p75 = por %p73, %p74
    %p76 = scmp.ne.s32.totalorder %s67, %s68
    %p77 = scmp.eq.s32.totalorder %s15, 0
    %p78 = por %p76, %p77
    %p79 = scmp.ne.s32.totalorder %s67, %s68
    %p80 = scmp.eq.s32.totalorder %s16, 1
    %p81 = por %p79, %p80
    %p83 = scmp.ne.s32.totalorder %s68, %s82
    %p84 = scmp.eq.s32.totalorder %s16, 0
    %p85 = por %p83, %p84
    %s87 = sadd.s32 %s86, 1
    %p90 = scmp.eq.s32.totalorder %s10, 1
    %p91 = scmp.ne.s32.totalorder %s86, %s88
    %p92 = scmp.eq.s32.totalorder %s10, 0
    %p93 = por %p91, %p92
    %p94 = scmp.ne.s32.totalorder %s86, %s88
    %p95 = scmp.eq.s32.totalorder %s15, 1
    %p96 = por %p94, %p95
    %p97 = scmp.ne.s32.totalorder %s88, %s89
    %p98 = scmp.eq.s32.totalorder %s15, 0
    %p99 = por %p97, %p98
    %p100 = scmp.ne.s32.totalorder %s88, %s89
    %p101 = scmp.eq.s32.totalorder %s16, 1
    %p102 = por %p100, %p101
    %p104 = scmp.ne.s32.totalorder %s89, %s103
    %p105 = scmp.eq.s32.totalorder %s16, 0
    %p106 = por %p104, %p105
    %s107 = ssub.s32 %s10, %s17
    %p108 = scmp.eq.s32.totalorder %s107, 0
    %s110 = sadd.s32 %s109, 1
    %s111 = scalar_select %p108, %s109, %s110
    %p114 = pneg %p108
    %p115 = scmp.eq.s32.totalorder %s10, 1
    %p116 = por %p114, %p115
    %p117 = scmp.ne.s32.totalorder %s109, %s112
    %p118 = scmp.eq.s32.totalorder %s10, 0
    %p119 = por %p117, %p118
    %p120 = scmp.ne.s32.totalorder %s109, %s112
    %p121 = scmp.eq.s32.totalorder %s15, 1
    %p122 = por %p120, %p121
    %p123 = scmp.ne.s32.totalorder %s112, %s113
    %p124 = scmp.eq.s32.totalorder %s15, 0
    %p125 = por %p123, %p124
    %p126 = scmp.ne.s32.totalorder %s112, %s113
    %p127 = scmp.eq.s32.totalorder %s16, 1
    %p128 = por %p126, %p127
    %p130 = scmp.ne.s32.totalorder %s113, %s129
    %p131 = scmp.eq.s32.totalorder %s16, 0
    %p132 = por %p130, %p131
    %p133 = scmp.le.s32.totalorder 1, %s10
    %p134 = scmp.lt.s32.totalorder %s10, 3
    %p135 = pnand %p133, %p134
    %p136 = pneg %p135
    // Predicated region
    $region9: #{conv_block.7} parent=5 // pred_check
      _
    $region10: #{conv_block.7} parent=5 // pred_check_branch
      %138 = sbr.rel (%p135) target = $region12
    $region11: #{conv_block.7} parent=5 // pred_region
      %s139 = ssub.s32 %s10, 1
      // Predicated region
      $region13: #{conv_block.7} parent=11 // pred_check
        %p140 = pneg %p57
      $region14: #{conv_block.7} parent=11 // pred_check_branch
        %142 = sbr.rel (%p140) target = $region16
      $region15: #{conv_block.7} parent=11 // pred_region
        _
      $region16: #{conv_block.7} parent=11 // pred_fallthru
        _
      // Predicated region
      $region17: #{conv_block.7} parent=11 // pred_check
        %p143 = pneg %p78
      $region18: #{conv_block.7} parent=11 // pred_check_branch
        %145 = sbr.rel (%p143) target = $region20
      $region19: #{conv_block.7} parent=11 // pred_region
        _
      $region20: #{conv_block.7} parent=11 // pred_fallthru
        _
      // Predicated region
      $region21: #{conv_block.7} parent=11 // pred_check
        %p146 = pneg %p99
      $region22: #{conv_block.7} parent=11 // pred_check_branch
        %148 = sbr.rel (%p146) target = $region24
      $region23: #{conv_block.7} parent=11 // pred_region
        _
      $region24: #{conv_block.7} parent=11 // pred_fallthru
        _
    $region12: #{conv_block.7} parent=5 // pred_fallthru
      _
    %p149 = scmp.lt.s32.totalorder %s10, 2
    // Predicated region
    $region25: #{conv_block.7} parent=5 // pred_check
      %p150 = pneg %p149
    $region26: #{conv_block.7} parent=5 // pred_check_branch
      %152 = sbr.rel (%p150) target = $region28
    $region27: #{conv_block.7} parent=5 // pred_region
      // Predicated region
      $region29: #{conv_block.7} parent=27 // pred_check
        %p153 = pneg %p30
      $region30: #{conv_block.7} parent=27 // pred_check_branch
        %155 = sbr.rel (%p153) target = $region32
      $region31: #{conv_block.7} parent=27 // pred_region
        %p156 = scmp.lt.s32.totalorder %s10, 1
        %s157 = scalar_select %p156, %s10, 1
        %s158 = smul.addr %s157, 3
        %s159 = smul.addr %s158, 8
        %s160 = scalar_lea.vmem %s0, %s159
      $region32: #{conv_block.7} parent=27 // pred_fallthru
        _
    $region28: #{conv_block.7} parent=5 // pred_fallthru
      _
    %p161 = scmp.le.s32.totalorder 1, %s10
    %p162 = scmp.lt.s32.totalorder %s10, 3
    %p163 = pnand %p161, %p162
    %p164 = pneg %p163
    // Predicated region
    $region33: #{conv_block.7} parent=5 // pred_check
      _
    $region34: #{conv_block.7} parent=5 // pred_check_branch
      %166 = sbr.rel (%p163) target = $region36
    $region35: #{conv_block.7} parent=5 // pred_region
      %s167 = ssub.s32 %s10, 1
      %p168 = scmp.lt.s32.totalorder %s15, 1
      %s169 = scalar_select %p168, %s15, 1
      %s170 = smul.addr %s169, 3
      %s171 = smul.addr %s170, 8
      %s172 = scalar_lea.vmem %s0, %s171
      %p173 = pneg %p36
      %p174 = pneg %p33
      %p175 = pneg %p57
      %p176 = pneg %p54
      %p177 = pneg %p78
      %p178 = pneg %p75
      %p179 = pneg %p99
      %p180 = pneg %p96
      %p181 = pneg %p125
      %p182 = pneg %p122
      %p183 = scmp.lt.s32.totalorder %s15, 1
      %s184 = scalar_select %p183, %s15, 1
      %s185 = smul.addr %s184, 3
      %s186 = smul.addr %s185, 8
      %s187 = scalar_lea.vmem %s4, %s186
      %p188 = scmp.lt.s32.totalorder %s15, 1
      %s189 = scalar_select %p188, %s15, 1
      %s190 = smul.addr %s189, 3
      %s191 = smul.addr %s190, 8
      %s192 = scalar_lea.vmem %s0, %s191
      %p193 = scmp.lt.s32.totalorder %s15, 1
      %s194 = scalar_select %p193, %s15, 1
      %s195 = smul.addr %s194, 3
      %s196 = smul.addr %s195, 8
      %s197 = scalar_lea.vmem %s4, %s196
      %v198 = vld [vmem:[%s192] sm:$0xff]
      %v199 = vld [vmem:[%s192 + $0x8] sm:$0xff]
      %v200 = vld [vmem:[%s192 + $0x10] sm:$0xff]
      %v201 = vld [vmem:[%s1] sm:$0xff]
      %s202 = scalar_lea.vmem %s1, 8
      %v203 = vld [vmem:[%s202] sm:$0xff]
      %207 = vrot.lane.b32.xlu0 %v198, 127
      %v208 = vpop.permute.xlu0 %207
      %209 = vrot.lane.b32.xlu0 %v199, 127
      %v210 = vpop.permute.xlu0 %209
      %211 = vrot.lane.b32.xlu0 %v200, 127
      %v212 = vpop.permute.xlu0 %211
      %vm213 = vcmask 1039360
      %v214 = vsel %vm213, %v208, %v210
      %v215 = vsel %vm213, %v210, %v212
      %vm219 = vcmask 64512
      %v221 = vsel %vm219, %v203, 0
      %223 = vmatprep.subr.mxu0 0.0
      %224 = vmatpush1.msra.mxu0 0.0
      %225 = vmatprep.subr.mxu0 0.0
      %226 = vmatpush1.msra.mxu0 0.0
      %227 = vmatprep.subr.mxu0 0.0
      %228 = vmatpush1.msra.mxu0 0.0
      %229 = vmatprep.subr.mxu0 0.0
      %230 = vmatpush1.msra.mxu0 0.0
      %231 = vmatprep.subr.mxu0 0.0
      %232 = vmatpush1.msra.mxu0 0.0
      %233 = vmatprep.subr.mxu0 0.0
      %234 = vmatpush1.msra.mxu0 0.0
      %235 = vmatprep.subr.mxu0 0.0
      %236 = vmatpush1.msra.mxu0 0.0
      %237 = vmatprep.subr.mxu0 0.0
      %238 = vmatpush1.msra.mxu0 0.0
      %239 = vmatprep.subr.mxu0 0.0
      %240 = vmatpush1.msra.mxu0 0.0
      %241 = vmatprep.subr.mxu0 0.0
      %242 = vmatpush1.msra.mxu0 0.0
      %243 = vmatprep.subr.mxu0 0.0
      %244 = vmatpush1.msra.mxu0 0.0
      %245 = vmatprep.subr.mxu0 0.0
      %246 = vmatpush1.msra.mxu0 0.0
      %247 = vmatprep.subr.mxu0 0.0
      %248 = vmatpush1.msra.mxu0 0.0
      %249 = vmatprep.subr.mxu0 0.0
      %250 = vmatpush1.msra.mxu0 0.0
      %251 = vmatprep.subr.mxu0 0.0
      %252 = vmatpush1.msra.mxu0 0.0
      %253 = vmatprep.subr.mxu0 %v215
      %254 = vmatpush1.msra.mxu0 %v214
      %255 = vmatprep.subr.mxu0 0.0
      %256 = vmatpush2.msra.mxu0 0.0
      %257 = vmatprep.subr.mxu0 0.0
      %258 = vmatpush2.msra.mxu0 0.0
      %259 = vmatprep.subr.mxu0 0.0
      %260 = vmatpush2.msra.mxu0 0.0
      %261 = vmatprep.subr.mxu0 0.0
      %262 = vmatpush2.msra.mxu0 0.0
      %263 = vmatprep.subr.mxu0 0.0
      %264 = vmatpush2.msra.mxu0 0.0
      %265 = vmatprep.subr.mxu0 0.0
      %266 = vmatpush2.msra.mxu0 0.0
      %267 = vmatprep.subr.mxu0 0.0
      %268 = vmatpush2.msra.mxu0 0.0
      %269 = vmatprep.subr.mxu0 0.0
      %270 = vmatpush2.msra.mxu0 0.0
      %271 = vmatprep.subr.mxu0 0.0
      %272 = vmatpush2.msra.mxu0 0.0
      %273 = vmatprep.subr.mxu0 0.0
      %274 = vmatpush2.msra.mxu0 0.0
      %275 = vmatprep.subr.mxu0 0.0
      %276 = vmatpush2.msra.mxu0 0.0
      %277 = vmatprep.subr.mxu0 0.0
      %278 = vmatpush2.msra.mxu0 0.0
      %279 = vmatprep.subr.mxu0 0.0
      %280 = vmatpush2.msra.mxu0 0.0
      %281 = vmatprep.subr.mxu0 0.0
      %282 = vmatpush2.msra.mxu0 0.0
      %283 = vmatprep.subr.mxu0 0.0
      %284 = vmatpush2.msra.mxu0 0.0
      %285 = vmatprep.subr.mxu0 0.0
      %286 = vmatpush2.msra.mxu0 0.0
      %287 = vmatprep.mubr.f32.mxu0 0.0
      %288 = vmatmul.mubr.f32.gmra.mxu0 %v221
      %v289 = vpop.f32.mrf.mxu0
      %v290 = vadd.f32 0.0, %v289
      %v291 = vpop.f32.mrf.mxu0
      %v292 = vadd.f32 0.0, %v291
      %293 = vdwg.mxu0
      %294 = vmatprep.subr.mxu0 0.0
      %295 = vmatpush1.msra.mxu0 0.0
      %296 = vmatprep.subr.mxu0 0.0
      %297 = vmatpush1.msra.mxu0 0.0
      %298 = vmatprep.subr.mxu0 0.0
      %299 = vmatpush1.msra.mxu0 0.0
      %300 = vmatprep.subr.mxu0 0.0
      %301 = vmatpush1.msra.mxu0 0.0
      %302 = vmatprep.subr.mxu0 0.0
      %303 = vmatpush1.msra.mxu0 0.0
      %304 = vmatprep.subr.mxu0 0.0
      %305 = vmatpush1.msra.mxu0 0.0
      %306 = vmatprep.subr.mxu0 0.0
      %307 = vmatpush1.msra.mxu0 0.0
      %308 = vmatprep.subr.mxu0 0.0
      %309 = vmatpush1.msra.mxu0 0.0
      %310 = vmatprep.subr.mxu0 0.0
      %311 = vmatpush1.msra.mxu0 0.0
      %312 = vmatprep.subr.mxu0 0.0
      %313 = vmatpush1.msra.mxu0 0.0
      %314 = vmatprep.subr.mxu0 0.0
      %315 = vmatpush1.msra.mxu0 0.0
      %316 = vmatprep.subr.mxu0 0.0
      %317 = vmatpush1.msra.mxu0 0.0
      %318 = vmatprep.subr.mxu0 0.0
      %319 = vmatpush1.msra.mxu0 0.0
      %320 = vmatprep.subr.mxu0 0.0
      %321 = vmatpush1.msra.mxu0 0.0
      %322 = vmatprep.subr.mxu0 0.0
      %323 = vmatpush1.msra.mxu0 0.0
      %324 = vmatprep.subr.mxu0 0.0
      %325 = vmatpush1.msra.mxu0 %v212
      %326 = vmatprep.subr.mxu0 0.0
      %327 = vmatpush2.msra.mxu0 0.0
      %328 = vmatprep.subr.mxu0 0.0
      %329 = vmatpush2.msra.mxu0 0.0
      %330 = vmatprep.subr.mxu0 0.0
      %331 = vmatpush2.msra.mxu0 0.0
      %332 = vmatprep.subr.mxu0 0.0
      %333 = vmatpush2.msra.mxu0 0.0
      %334 = vmatprep.subr.mxu0 0.0
      %335 = vmatpush2.msra.mxu0 0.0
      %336 = vmatprep.subr.mxu0 0.0
      %337 = vmatpush2.msra.mxu0 0.0
      %338 = vmatprep.subr.mxu0 0.0
      %339 = vmatpush2.msra.mxu0 0.0
      %340 = vmatprep.subr.mxu0 0.0
      %341 = vmatpush2.msra.mxu0 0.0
      %342 = vmatprep.subr.mxu0 0.0
      %343 = vmatpush2.msra.mxu0 0.0
      %344 = vmatprep.subr.mxu0 0.0
      %345 = vmatpush2.msra.mxu0 0.0
      %346 = vmatprep.subr.mxu0 0.0
      %347 = vmatpush2.msra.mxu0 0.0
      %348 = vmatprep.subr.mxu0 0.0
      %349 = vmatpush2.msra.mxu0 0.0
      %350 = vmatprep.subr.mxu0 0.0
      %351 = vmatpush2.msra.mxu0 0.0
      %352 = vmatprep.subr.mxu0 0.0
      %353 = vmatpush2.msra.mxu0 0.0
      %354 = vmatprep.subr.mxu0 0.0
      %355 = vmatpush2.msra.mxu0 0.0
      %356 = vmatprep.subr.mxu0 0.0
      %357 = vmatpush2.msra.mxu0 0.0
      %358 = vmatprep.mubr.f32.mxu0 0.0
      %359 = vmatmul.mubr.f32.gmra.mxu0 %v221
      %v360 = vpop.f32.mrf.mxu0
      %v361 = vadd.f32 0.0, %v360
      %v362 = vpop.f32.mrf.mxu0
      %363 = vdwg.mxu0
      %v365 = vsel %vm219, %v201, 0
      %367 = vmatprep.subr.mxu0 0.0
      %368 = vmatpush1.msra.mxu0 0.0
      %369 = vmatprep.subr.mxu0 0.0
      %370 = vmatpush1.msra.mxu0 0.0
      %371 = vmatprep.subr.mxu0 0.0
      %372 = vmatpush1.msra.mxu0 0.0
      %373 = vmatprep.subr.mxu0 0.0
      %374 = vmatpush1.msra.mxu0 0.0
      %375 = vmatprep.subr.mxu0 0.0
      %376 = vmatpush1.msra.mxu0 0.0
      %377 = vmatprep.subr.mxu0 0.0
      %378 = vmatpush1.msra.mxu0 0.0
      %379 = vmatprep.subr.mxu0 0.0
      %380 = vmatpush1.msra.mxu0 0.0
      %381 = vmatprep.subr.mxu0 0.0
      %382 = vmatpush1.msra.mxu0 0.0
      %383 = vmatprep.subr.mxu0 0.0
      %384 = vmatpush1.msra.mxu0 0.0
      %385 = vmatprep.subr.mxu0 0.0
      %386 = vmatpush1.msra.mxu0 0.0
      %387 = vmatprep.subr.mxu0 0.0
      %388 = vmatpush1.msra.mxu0 0.0
      %389 = vmatprep.subr.mxu0 0.0
      %390 = vmatpush1.msra.mxu0 0.0
      %391 = vmatprep.subr.mxu0 0.0
      %392 = vmatpush1.msra.mxu0 0.0
      %393 = vmatprep.subr.mxu0 0.0
      %394 = vmatpush1.msra.mxu0 0.0
      %395 = vmatprep.subr.mxu0 0.0
      %396 = vmatpush1.msra.mxu0 0.0
      %397 = vmatprep.subr.mxu0 %v199
      %398 = vmatpush1.msra.mxu0 %v198
      %399 = vmatprep.subr.mxu0 0.0
      %400 = vmatpush2.msra.mxu0 0.0
      %401 = vmatprep.subr.mxu0 0.0
      %402 = vmatpush2.msra.mxu0 0.0
      %403 = vmatprep.subr.mxu0 0.0
      %404 = vmatpush2.msra.mxu0 0.0
      %405 = vmatprep.subr.mxu0 0.0
      %406 = vmatpush2.msra.mxu0 0.0
      %407 = vmatprep.subr.mxu0 0.0
      %408 = vmatpush2.msra.mxu0 0.0
      %409 = vmatprep.subr.mxu0 0.0
      %410 = vmatpush2.msra.mxu0 0.0
      %411 = vmatprep.subr.mxu0 0.0
      %412 = vmatpush2.msra.mxu0 0.0
      %413 = vmatprep.subr.mxu0 0.0
      %414 = vmatpush2.msra.mxu0 0.0
      %415 = vmatprep.subr.mxu0 0.0
      %416 = vmatpush2.msra.mxu0 0.0
      %417 = vmatprep.subr.mxu0 0.0
      %418 = vmatpush2.msra.mxu0 0.0
      %419 = vmatprep.subr.mxu0 0.0
      %420 = vmatpush2.msra.mxu0 0.0
      %421 = vmatprep.subr.mxu0 0.0
      %422 = vmatpush2.msra.mxu0 0.0
      %423 = vmatprep.subr.mxu0 0.0
      %424 = vmatpush2.msra.mxu0 0.0
      %425 = vmatprep.subr.mxu0 0.0
      %426 = vmatpush2.msra.mxu0 0.0
      %427 = vmatprep.subr.mxu0 0.0
      %428 = vmatpush2.msra.mxu0 0.0
      %429 = vmatprep.subr.mxu0 0.0
      %430 = vmatpush2.msra.mxu0 0.0
      %431 = vmatprep.mubr.f32.mxu0 0.0
      %432 = vmatmul.mubr.f32.gmra.mxu0 %v365
      %v433 = vpop.f32.mrf.mxu0
      %v434 = vadd.f32 %v290, %v433
      %v435 = vpop.f32.mrf.mxu0
      %v436 = vadd.f32 %v292, %v435
      %437 = vdwg.mxu0
      %438 = vmatprep.subr.mxu0 0.0
      %439 = vmatpush1.msra.mxu0 0.0
      %440 = vmatprep.subr.mxu0 0.0
      %441 = vmatpush1.msra.mxu0 0.0
      %442 = vmatprep.subr.mxu0 0.0
      %443 = vmatpush1.msra.mxu0 0.0
      %444 = vmatprep.subr.mxu0 0.0
      %445 = vmatpush1.msra.mxu0 0.0
      %446 = vmatprep.subr.mxu0 0.0
      %447 = vmatpush1.msra.mxu0 0.0
      %448 = vmatprep.subr.mxu0 0.0
      %449 = vmatpush1.msra.mxu0 0.0
      %450 = vmatprep.subr.mxu0 0.0
      %451 = vmatpush1.msra.mxu0 0.0
      %452 = vmatprep.subr.mxu0 0.0
      %453 = vmatpush1.msra.mxu0 0.0
      %454 = vmatprep.subr.mxu0 0.0
      %455 = vmatpush1.msra.mxu0 0.0
      %456 = vmatprep.subr.mxu0 0.0
      %457 = vmatpush1.msra.mxu0 0.0
      %458 = vmatprep.subr.mxu0 0.0
      %459 = vmatpush1.msra.mxu0 0.0
      %460 = vmatprep.subr.mxu0 0.0
      %461 = vmatpush1.msra.mxu0 0.0
      %462 = vmatprep.subr.mxu0 0.0
      %463 = vmatpush1.msra.mxu0 0.0
      %464 = vmatprep.subr.mxu0 0.0
      %465 = vmatpush1.msra.mxu0 0.0
      %466 = vmatprep.subr.mxu0 0.0
      %467 = vmatpush1.msra.mxu0 0.0
      %468 = vmatprep.subr.mxu0 0.0
      %469 = vmatpush1.msra.mxu0 %v200
      %470 = vmatprep.subr.mxu0 0.0
      %471 = vmatpush2.msra.mxu0 0.0
      %472 = vmatprep.subr.mxu0 0.0
      %473 = vmatpush2.msra.mxu0 0.0
      %474 = vmatprep.subr.mxu0 0.0
      %475 = vmatpush2.msra.mxu0 0.0
      %476 = vmatprep.subr.mxu0 0.0
      %477 = vmatpush2.msra.mxu0 0.0
      %478 = vmatprep.subr.mxu0 0.0
      %479 = vmatpush2.msra.mxu0 0.0
      %480 = vmatprep.subr.mxu0 0.0
      %481 = vmatpush2.msra.mxu0 0.0
      %482 = vmatprep.subr.mxu0 0.0
      %483 = vmatpush2.msra.mxu0 0.0
      %484 = vmatprep.subr.mxu0 0.0
      %485 = vmatpush2.msra.mxu0 0.0
      %486 = vmatprep.subr.mxu0 0.0
      %487 = vmatpush2.msra.mxu0 0.0
      %488 = vmatprep.subr.mxu0 0.0
      %489 = vmatpush2.msra.mxu0 0.0
      %490 = vmatprep.subr.mxu0 0.0
      %491 = vmatpush2.msra.mxu0 0.0
      %492 = vmatprep.subr.mxu0 0.0
      %493 = vmatpush2.msra.mxu0 0.0
      %494 = vmatprep.subr.mxu0 0.0
      %495 = vmatpush2.msra.mxu0 0.0
      %496 = vmatprep.subr.mxu0 0.0
      %497 = vmatpush2.msra.mxu0 0.0
      %498 = vmatprep.subr.mxu0 0.0
      %499 = vmatpush2.msra.mxu0 0.0
      %500 = vmatprep.subr.mxu0 0.0
      %501 = vmatpush2.msra.mxu0 0.0
      %502 = vmatprep.mubr.f32.mxu0 0.0
      %503 = vmatmul.mubr.f32.gmra.mxu0 %v365
      %v504 = vpop.f32.mrf.mxu0
      %v505 = vadd.f32 %v361, %v504
      %v506 = vpop.f32.mrf.mxu0
      %507 = vdwg.mxu0
      %s508 = scalar_lea.vmem %s1, 16
      %v509 = vld [vmem:[%s508] sm:$0xff]
      %510 = vrot.lane.b32.xlu0 %v198, 126
      %v511 = vpop.permute.xlu0 %510
      %512 = vrot.lane.b32.xlu0 %v199, 126
      %v513 = vpop.permute.xlu0 %512
      %514 = vrot.lane.b32.xlu0 %v200, 126
      %v515 = vpop.permute.xlu0 %514
      %vm516 = vcmask 1031168
      %v517 = vsel %vm516, %v511, %v513
      %v518 = vsel %vm516, %v513, %v515
      %v523 = vsel %vm219, %v509, 0
      %525 = vmatprep.subr.mxu0 0.0
      %526 = vmatpush1.msra.mxu0 0.0
      %527 = vmatprep.subr.mxu0 0.0
      %528 = vmatpush1.msra.mxu0 0.0
      %529 = vmatprep.subr.mxu0 0.0
      %530 = vmatpush1.msra.mxu0 0.0
      %531 = vmatprep.subr.mxu0 0.0
      %532 = vmatpush1.msra.mxu0 0.0
      %533 = vmatprep.subr.mxu0 0.0
      %534 = vmatpush1.msra.mxu0 0.0
      %535 = vmatprep.subr.mxu0 0.0
      %536 = vmatpush1.msra.mxu0 0.0
      %537 = vmatprep.subr.mxu0 0.0
      %538 = vmatpush1.msra.mxu0 0.0
      %539 = vmatprep.subr.mxu0 0.0
      %540 = vmatpush1.msra.mxu0 0.0
      %541 = vmatprep.subr.mxu0 0.0
      %542 = vmatpush1.msra.mxu0 0.0
      %543 = vmatprep.subr.mxu0 0.0
      %544 = vmatpush1.msra.mxu0 0.0
      %545 = vmatprep.subr.mxu0 0.0
      %546 = vmatpush1.msra.mxu0 0.0
      %547 = vmatprep.subr.mxu0 0.0
      %548 = vmatpush1.msra.mxu0 0.0
      %549 = vmatprep.subr.mxu0 0.0
      %550 = vmatpush1.msra.mxu0 0.0
      %551 = vmatprep.subr.mxu0 0.0
      %552 = vmatpush1.msra.mxu0 0.0
      %553 = vmatprep.subr.mxu0 0.0
      %554 = vmatpush1.msra.mxu0 0.0
      %555 = vmatprep.subr.mxu0 %v518
      %556 = vmatpush1.msra.mxu0 %v517
      %557 = vmatprep.subr.mxu0 0.0
      %558 = vmatpush2.msra.mxu0 0.0
      %559 = vmatprep.subr.mxu0 0.0
      %560 = vmatpush2.msra.mxu0 0.0
      %561 = vmatprep.subr.mxu0 0.0
      %562 = vmatpush2.msra.mxu0 0.0
      %563 = vmatprep.subr.mxu0 0.0
      %564 = vmatpush2.msra.mxu0 0.0
      %565 = vmatprep.subr.mxu0 0.0
      %566 = vmatpush2.msra.mxu0 0.0
      %567 = vmatprep.subr.mxu0 0.0
      %568 = vmatpush2.msra.mxu0 0.0
      %569 = vmatprep.subr.mxu0 0.0
      %570 = vmatpush2.msra.mxu0 0.0
      %571 = vmatprep.subr.mxu0 0.0
      %572 = vmatpush2.msra.mxu0 0.0
      %573 = vmatprep.subr.mxu0 0.0
      %574 = vmatpush2.msra.mxu0 0.0
      %575 = vmatprep.subr.mxu0 0.0
      %576 = vmatpush2.msra.mxu0 0.0
      %577 = vmatprep.subr.mxu0 0.0
      %578 = vmatpush2.msra.mxu0 0.0
      %579 = vmatprep.subr.mxu0 0.0
      %580 = vmatpush2.msra.mxu0 0.0
      %581 = vmatprep.subr.mxu0 0.0
      %582 = vmatpush2.msra.mxu0 0.0
      %583 = vmatprep.subr.mxu0 0.0
      %584 = vmatpush2.msra.mxu0 0.0
      %585 = vmatprep.subr.mxu0 0.0
      %586 = vmatpush2.msra.mxu0 0.0
      %587 = vmatprep.subr.mxu0 0.0
      %588 = vmatpush2.msra.mxu0 0.0
      %589 = vmatprep.mubr.f32.mxu0 0.0
      %590 = vmatmul.mubr.f32.gmra.mxu0 %v523
      %v591 = vpop.f32.mrf.mxu0
      %v592 = vadd.f32 0.0, %v591
      %v593 = vpop.f32.mrf.mxu0
      %v594 = vadd.f32 0.0, %v593
      %595 = vdwg.mxu0
      %596 = vmatprep.subr.mxu0 0.0
      %597 = vmatpush1.msra.mxu0 0.0
      %598 = vmatprep.subr.mxu0 0.0
      %599 = vmatpush1.msra.mxu0 0.0
      %600 = vmatprep.subr.mxu0 0.0
      %601 = vmatpush1.msra.mxu0 0.0
      %602 = vmatprep.subr.mxu0 0.0
      %603 = vmatpush1.msra.mxu0 0.0
      %604 = vmatprep.subr.mxu0 0.0
      %605 = vmatpush1.msra.mxu0 0.0
      %606 = vmatprep.subr.mxu0 0.0
      %607 = vmatpush1.msra.mxu0 0.0
      %608 = vmatprep.subr.mxu0 0.0
      %609 = vmatpush1.msra.mxu0 0.0
      %610 = vmatprep.subr.mxu0 0.0
      %611 = vmatpush1.msra.mxu0 0.0
      %612 = vmatprep.subr.mxu0 0.0
      %613 = vmatpush1.msra.mxu0 0.0
      %614 = vmatprep.subr.mxu0 0.0
      %615 = vmatpush1.msra.mxu0 0.0
      %616 = vmatprep.subr.mxu0 0.0
      %617 = vmatpush1.msra.mxu0 0.0
      %618 = vmatprep.subr.mxu0 0.0
      %619 = vmatpush1.msra.mxu0 0.0
      %620 = vmatprep.subr.mxu0 0.0
      %621 = vmatpush1.msra.mxu0 0.0
      %622 = vmatprep.subr.mxu0 0.0
      %623 = vmatpush1.msra.mxu0 0.0
      %624 = vmatprep.subr.mxu0 0.0
      %625 = vmatpush1.msra.mxu0 0.0
      %626 = vmatprep.subr.mxu0 0.0
      %627 = vmatpush1.msra.mxu0 %v515
      %628 = vmatprep.subr.mxu0 0.0
      %629 = vmatpush2.msra.mxu0 0.0
      %630 = vmatprep.subr.mxu0 0.0
      %631 = vmatpush2.msra.mxu0 0.0
      %632 = vmatprep.subr.mxu0 0.0
      %633 = vmatpush2.msra.mxu0 0.0
      %634 = vmatprep.subr.mxu0 0.0
      %635 = vmatpush2.msra.mxu0 0.0
      %636 = vmatprep.subr.mxu0 0.0
      %637 = vmatpush2.msra.mxu0 0.0
      %638 = vmatprep.subr.mxu0 0.0
      %639 = vmatpush2.msra.mxu0 0.0
      %640 = vmatprep.subr.mxu0 0.0
      %641 = vmatpush2.msra.mxu0 0.0
      %642 = vmatprep.subr.mxu0 0.0
      %643 = vmatpush2.msra.mxu0 0.0
      %644 = vmatprep.subr.mxu0 0.0
      %645 = vmatpush2.msra.mxu0 0.0
      %646 = vmatprep.subr.mxu0 0.0
      %647 = vmatpush2.msra.mxu0 0.0
      %648 = vmatprep.subr.mxu0 0.0
      %649 = vmatpush2.msra.mxu0 0.0
      %650 = vmatprep.subr.mxu0 0.0
      %651 = vmatpush2.msra.mxu0 0.0
      %652 = vmatprep.subr.mxu0 0.0
      %653 = vmatpush2.msra.mxu0 0.0
      %654 = vmatprep.subr.mxu0 0.0
      %655 = vmatpush2.msra.mxu0 0.0
      %656 = vmatprep.subr.mxu0 0.0
      %657 = vmatpush2.msra.mxu0 0.0
      %658 = vmatprep.subr.mxu0 0.0
      %659 = vmatpush2.msra.mxu0 0.0
      %660 = vmatprep.mubr.f32.mxu0 0.0
      %661 = vmatmul.mubr.f32.gmra.mxu0 %v523
      %v662 = vpop.f32.mrf.mxu0
      %v663 = vadd.f32 0.0, %v662
      %v664 = vpop.f32.mrf.mxu0
      %665 = vdwg.mxu0
      %v666 = vadd.f32 %v434, %v592
      %v667 = vadd.f32 %v436, %v594
      %v668 = vadd.f32 %v505, %v663
      %s669 = scalar_lea.vmem %s1, 24
      %v670 = vld [vmem:[%s669] sm:$0xff]
      %671 = vrot.lane.b32.xlu0 %v198, 110
      %v672 = vpop.permute.xlu0 %671
      %673 = vrot.lane.b32.xlu0 %v199, 110
      %v674 = vpop.permute.xlu0 %673
      %675 = vrot.lane.b32.xlu0 %v200, 110
      %v676 = vpop.permute.xlu0 %675
      %vm677 = vcmask 900096
      %v678 = vsel %vm677, %v672, %v674
      %v679 = vsel %vm677, %v674, %v676
      %v684 = vsel %vm219, %v670, 0
      %686 = vmatprep.subr.mxu0 0.0
      %687 = vmatpush1.msra.mxu0 0.0
      %688 = vmatprep.subr.mxu0 0.0
      %689 = vmatpush1.msra.mxu0 0.0
      %690 = vmatprep.subr.mxu0 0.0
      %691 = vmatpush1.msra.mxu0 0.0
      %692 = vmatprep.subr.mxu0 0.0
      %693 = vmatpush1.msra.mxu0 0.0
      %694 = vmatprep.subr.mxu0 0.0
      %695 = vmatpush1.msra.mxu0 0.0
      %696 = vmatprep.subr.mxu0 0.0
      %697 = vmatpush1.msra.mxu0 0.0
      %698 = vmatprep.subr.mxu0 0.0
      %699 = vmatpush1.msra.mxu0 0.0
      %700 = vmatprep.subr.mxu0 0.0
      %701 = vmatpush1.msra.mxu0 0.0
      %702 = vmatprep.subr.mxu0 0.0
      %703 = vmatpush1.msra.mxu0 0.0
      %704 = vmatprep.subr.mxu0 0.0
      %705 = vmatpush1.msra.mxu0 0.0
      %706 = vmatprep.subr.mxu0 0.0
      %707 = vmatpush1.msra.mxu0 0.0
      %708 = vmatprep.subr.mxu0 0.0
      %709 = vmatpush1.msra.mxu0 0.0
      %710 = vmatprep.subr.mxu0 0.0
      %711 = vmatpush1.msra.mxu0 0.0
      %712 = vmatprep.subr.mxu0 0.0
      %713 = vmatpush1.msra.mxu0 0.0
      %714 = vmatprep.subr.mxu0 0.0
      %715 = vmatpush1.msra.mxu0 0.0
      %716 = vmatprep.subr.mxu0 %v679
      %717 = vmatpush1.msra.mxu0 %v678
      %718 = vmatprep.subr.mxu0 0.0
      %719 = vmatpush2.msra.mxu0 0.0
      %720 = vmatprep.subr.mxu0 0.0
      %721 = vmatpush2.msra.mxu0 0.0
      %722 = vmatprep.subr.mxu0 0.0
      %723 = vmatpush2.msra.mxu0 0.0
      %724 = vmatprep.subr.mxu0 0.0
      %725 = vmatpush2.msra.mxu0 0.0
      %726 = vmatprep.subr.mxu0 0.0
      %727 = vmatpush2.msra.mxu0 0.0
      %728 = vmatprep.subr.mxu0 0.0
      %729 = vmatpush2.msra.mxu0 0.0
      %730 = vmatprep.subr.mxu0 0.0
      %731 = vmatpush2.msra.mxu0 0.0
      %732 = vmatprep.subr.mxu0 0.0
      %733 = vmatpush2.msra.mxu0 0.0
      %734 = vmatprep.subr.mxu0 0.0
      %735 = vmatpush2.msra.mxu0 0.0
      %736 = vmatprep.subr.mxu0 0.0
      %737 = vmatpush2.msra.mxu0 0.0
      %738 = vmatprep.subr.mxu0 0.0
      %739 = vmatpush2.msra.mxu0 0.0
      %740 = vmatprep.subr.mxu0 0.0
      %741 = vmatpush2.msra.mxu0 0.0
      %742 = vmatprep.subr.mxu0 0.0
      %743 = vmatpush2.msra.mxu0 0.0
      %744 = vmatprep.subr.mxu0 0.0
      %745 = vmatpush2.msra.mxu0 0.0
      %746 = vmatprep.subr.mxu0 0.0
      %747 = vmatpush2.msra.mxu0 0.0
      %748 = vmatprep.subr.mxu0 0.0
      %749 = vmatpush2.msra.mxu0 0.0
      %750 = vmatprep.mubr.f32.mxu0 0.0
      %751 = vmatmul.mubr.f32.gmra.mxu0 %v684
      %v752 = vpop.f32.mrf.mxu0
      %v753 = vadd.f32 0.0, %v752
      %v754 = vpop.f32.mrf.mxu0
      %v755 = vadd.f32 0.0, %v754
      %756 = vdwg.mxu0
      %757 = vmatprep.subr.mxu0 0.0
      %758 = vmatpush1.msra.mxu0 0.0
      %759 = vmatprep.subr.mxu0 0.0
      %760 = vmatpush1.msra.mxu0 0.0
      %761 = vmatprep.subr.mxu0 0.0
      %762 = vmatpush1.msra.mxu0 0.0
      %763 = vmatprep.subr.mxu0 0.0
      %764 = vmatpush1.msra.mxu0 0.0
      %765 = vmatprep.subr.mxu0 0.0
      %766 = vmatpush1.msra.mxu0 0.0
      %767 = vmatprep.subr.mxu0 0.0
      %768 = vmatpush1.msra.mxu0 0.0
      %769 = vmatprep.subr.mxu0 0.0
      %770 = vmatpush1.msra.mxu0 0.0
      %771 = vmatprep.subr.mxu0 0.0
      %772 = vmatpush1.msra.mxu0 0.0
      %773 = vmatprep.subr.mxu0 0.0
      %774 = vmatpush1.msra.mxu0 0.0
      %775 = vmatprep.subr.mxu0 0.0
      %776 = vmatpush1.msra.mxu0 0.0
      %777 = vmatprep.subr.mxu0 0.0
      %778 = vmatpush1.msra.mxu0 0.0
      %779 = vmatprep.subr.mxu0 0.0
      %780 = vmatpush1.msra.mxu0 0.0
      %781 = vmatprep.subr.mxu0 0.0
      %782 = vmatpush1.msra.mxu0 0.0
      %783 = vmatprep.subr.mxu0 0.0
      %784 = vmatpush1.msra.mxu0 0.0
      %785 = vmatprep.subr.mxu0 0.0
      %786 = vmatpush1.msra.mxu0 0.0
      %787 = vmatprep.subr.mxu0 0.0
      %788 = vmatpush1.msra.mxu0 %v676
      %789 = vmatprep.subr.mxu0 0.0
      %790 = vmatpush2.msra.mxu0 0.0
      %791 = vmatprep.subr.mxu0 0.0
      %792 = vmatpush2.msra.mxu0 0.0
      %793 = vmatprep.subr.mxu0 0.0
      %794 = vmatpush2.msra.mxu0 0.0
      %795 = vmatprep.subr.mxu0 0.0
      %796 = vmatpush2.msra.mxu0 0.0
      %797 = vmatprep.subr.mxu0 0.0
      %798 = vmatpush2.msra.mxu0 0.0
      %799 = vmatprep.subr.mxu0 0.0
      %800 = vmatpush2.msra.mxu0 0.0
      %801 = vmatprep.subr.mxu0 0.0
      %802 = vmatpush2.msra.mxu0 0.0
      %803 = vmatprep.subr.mxu0 0.0
      %804 = vmatpush2.msra.mxu0 0.0
      %805 = vmatprep.subr.mxu0 0.0
      %806 = vmatpush2.msra.mxu0 0.0
      %807 = vmatprep.subr.mxu0 0.0
      %808 = vmatpush2.msra.mxu0 0.0
      %809 = vmatprep.subr.mxu0 0.0
      %810 = vmatpush2.msra.mxu0 0.0
      %811 = vmatprep.subr.mxu0 0.0
      %812 = vmatpush2.msra.mxu0 0.0
      %813 = vmatprep.subr.mxu0 0.0
      %814 = vmatpush2.msra.mxu0 0.0
      %815 = vmatprep.subr.mxu0 0.0
      %816 = vmatpush2.msra.mxu0 0.0
      %817 = vmatprep.subr.mxu0 0.0
      %818 = vmatpush2.msra.mxu0 0.0
      %819 = vmatprep.subr.mxu0 0.0
      %820 = vmatpush2.msra.mxu0 0.0
      %821 = vmatprep.mubr.f32.mxu0 0.0
      %822 = vmatmul.mubr.f32.gmra.mxu0 %v684
      %v823 = vpop.f32.mrf.mxu0
      %v824 = vadd.f32 0.0, %v823
      %v825 = vpop.f32.mrf.mxu0
      %826 = vdwg.mxu0
      %v827 = vadd.f32 %v666, %v753
      %v828 = vadd.f32 %v667, %v755
      %v829 = vadd.f32 %v668, %v824
      %s830 = scalar_lea.vmem %s1, 32
      %v831 = vld [vmem:[%s830] sm:$0xff]
      %832 = vrot.lane.b32.xlu0 %v198, 109
      %v833 = vpop.permute.xlu0 %832
      %834 = vrot.lane.b32.xlu0 %v199, 109
      %v835 = vpop.permute.xlu0 %834
      %836 = vrot.lane.b32.xlu0 %v200, 109
      %v837 = vpop.permute.xlu0 %836
      %vm838 = vcmask 891904
      %v839 = vsel %vm838, %v833, %v835
      %v840 = vsel %vm838, %v835, %v837
      %v845 = vsel %vm219, %v831, 0
      %847 = vmatprep.subr.mxu0 0.0
      %848 = vmatpush1.msra.mxu0 0.0
      %849 = vmatprep.subr.mxu0 0.0
      %850 = vmatpush1.msra.mxu0 0.0
      %851 = vmatprep.subr.mxu0 0.0
      %852 = vmatpush1.msra.mxu0 0.0
      %853 = vmatprep.subr.mxu0 0.0
      %854 = vmatpush1.msra.mxu0 0.0
      %855 = vmatprep.subr.mxu0 0.0
      %856 = vmatpush1.msra.mxu0 0.0
      %857 = vmatprep.subr.mxu0 0.0
      %858 = vmatpush1.msra.mxu0 0.0
      %859 = vmatprep.subr.mxu0 0.0
      %860 = vmatpush1.msra.mxu0 0.0
      %861 = vmatprep.subr.mxu0 0.0
      %862 = vmatpush1.msra.mxu0 0.0
      %863 = vmatprep.subr.mxu0 0.0
      %864 = vmatpush1.msra.mxu0 0.0
      %865 = vmatprep.subr.mxu0 0.0
      %866 = vmatpush1.msra.mxu0 0.0
      %867 = vmatprep.subr.mxu0 0.0
      %868 = vmatpush1.msra.mxu0 0.0
      %869 = vmatprep.subr.mxu0 0.0
      %870 = vmatpush1.msra.mxu0 0.0
      %871 = vmatprep.subr.mxu0 0.0
      %872 = vmatpush1.msra.mxu0 0.0
      %873 = vmatprep.subr.mxu0 0.0
      %874 = vmatpush1.msra.mxu0 0.0
      %875 = vmatprep.subr.mxu0 0.0
      %876 = vmatpush1.msra.mxu0 0.0
      %877 = vmatprep.subr.mxu0 %v840
      %878 = vmatpush1.msra.mxu0 %v839
      %879 = vmatprep.subr.mxu0 0.0
      %880 = vmatpush2.msra.mxu0 0.0
      %881 = vmatprep.subr.mxu0 0.0
      %882 = vmatpush2.msra.mxu0 0.0
      %883 = vmatprep.subr.mxu0 0.0
      %884 = vmatpush2.msra.mxu0 0.0
      %885 = vmatprep.subr.mxu0 0.0
      %886 = vmatpush2.msra.mxu0 0.0
      %887 = vmatprep.subr.mxu0 0.0
      %888 = vmatpush2.msra.mxu0 0.0
      %889 = vmatprep.subr.mxu0 0.0
      %890 = vmatpush2.msra.mxu0 0.0
      %891 = vmatprep.subr.mxu0 0.0
      %892 = vmatpush2.msra.mxu0 0.0
      %893 = vmatprep.subr.mxu0 0.0
      %894 = vmatpush2.msra.mxu0 0.0
      %895 = vmatprep.subr.mxu0 0.0
      %896 = vmatpush2.msra.mxu0 0.0
      %897 = vmatprep.subr.mxu0 0.0
      %898 = vmatpush2.msra.mxu0 0.0
      %899 = vmatprep.subr.mxu0 0.0
      %900 = vmatpush2.msra.mxu0 0.0
      %901 = vmatprep.subr.mxu0 0.0
      %902 = vmatpush2.msra.mxu0 0.0
      %903 = vmatprep.subr.mxu0 0.0
      %904 = vmatpush2.msra.mxu0 0.0
      %905 = vmatprep.subr.mxu0 0.0
      %906 = vmatpush2.msra.mxu0 0.0
      %907 = vmatprep.subr.mxu0 0.0
      %908 = vmatpush2.msra.mxu0 0.0
      %909 = vmatprep.subr.mxu0 0.0
      %910 = vmatpush2.msra.mxu0 0.0
      %911 = vmatprep.mubr.f32.mxu0 0.0
      %912 = vmatmul.mubr.f32.gmra.mxu0 %v845
      %v913 = vpop.f32.mrf.mxu0
      %v914 = vadd.f32 0.0, %v913
      %v915 = vpop.f32.mrf.mxu0
      %v916 = vadd.f32 0.0, %v915
      %917 = vdwg.mxu0
      %918 = vmatprep.subr.mxu0 0.0
      %919 = vmatpush1.msra.mxu0 0.0
      %920 = vmatprep.subr.mxu0 0.0
      %921 = vmatpush1.msra.mxu0 0.0
      %922 = vmatprep.subr.mxu0 0.0
      %923 = vmatpush1.msra.mxu0 0.0
      %924 = vmatprep.subr.mxu0 0.0
      %925 = vmatpush1.msra.mxu0 0.0
      %926 = vmatprep.subr.mxu0 0.0
      %927 = vmatpush1.msra.mxu0 0.0
      %928 = vmatprep.subr.mxu0 0.0
      %929 = vmatpush1.msra.mxu0 0.0
      %930 = vmatprep.subr.mxu0 0.0
      %931 = vmatpush1.msra.mxu0 0.0
      %932 = vmatprep.subr.mxu0 0.0
      %933 = vmatpush1.msra.mxu0 0.0
      %934 = vmatprep.subr.mxu0 0.0
      %935 = vmatpush1.msra.mxu0 0.0
      %936 = vmatprep.subr.mxu0 0.0
      %937 = vmatpush1.msra.mxu0 0.0
      %938 = vmatprep.subr.mxu0 0.0
      %939 = vmatpush1.msra.mxu0 0.0
      %940 = vmatprep.subr.mxu0 0.0
      %941 = vmatpush1.msra.mxu0 0.0
      %942 = vmatprep.subr.mxu0 0.0
      %943 = vmatpush1.msra.mxu0 0.0
      %944 = vmatprep.subr.mxu0 0.0
      %945 = vmatpush1.msra.mxu0 0.0
      %946 = vmatprep.subr.mxu0 0.0
      %947 = vmatpush1.msra.mxu0 0.0
      %948 = vmatprep.subr.mxu0 0.0
      %949 = vmatpush1.msra.mxu0 %v837
      %950 = vmatprep.subr.mxu0 0.0
      %951 = vmatpush2.msra.mxu0 0.0
      %952 = vmatprep.subr.mxu0 0.0
      %953 = vmatpush2.msra.mxu0 0.0
      %954 = vmatprep.subr.mxu0 0.0
      %955 = vmatpush2.msra.mxu0 0.0
      %956 = vmatprep.subr.mxu0 0.0
      %957 = vmatpush2.msra.mxu0 0.0
      %958 = vmatprep.subr.mxu0 0.0
      %959 = vmatpush2.msra.mxu0 0.0
      %960 = vmatprep.subr.mxu0 0.0
      %961 = vmatpush2.msra.mxu0 0.0
      %962 = vmatprep.subr.mxu0 0.0
      %963 = vmatpush2.msra.mxu0 0.0
      %964 = vmatprep.subr.mxu0 0.0
      %965 = vmatpush2.msra.mxu0 0.0
      %966 = vmatprep.subr.mxu0 0.0
      %967 = vmatpush2.msra.mxu0 0.0
      %968 = vmatprep.subr.mxu0 0.0
      %969 = vmatpush2.msra.mxu0 0.0
      %970 = vmatprep.subr.mxu0 0.0
      %971 = vmatpush2.msra.mxu0 0.0
      %972 = vmatprep.subr.mxu0 0.0
      %973 = vmatpush2.msra.mxu0 0.0
      %974 = vmatprep.subr.mxu0 0.0
      %975 = vmatpush2.msra.mxu0 0.0
      %976 = vmatprep.subr.mxu0 0.0
      %977 = vmatpush2.msra.mxu0 0.0
      %978 = vmatprep.subr.mxu0 0.0
      %979 = vmatpush2.msra.mxu0 0.0
      %980 = vmatprep.subr.mxu0 0.0
      %981 = vmatpush2.msra.mxu0 0.0
      %982 = vmatprep.mubr.f32.mxu0 0.0
      %983 = vmatmul.mubr.f32.gmra.mxu0 %v845
      %v984 = vpop.f32.mrf.mxu0
      %v985 = vadd.f32 0.0, %v984
      %v986 = vpop.f32.mrf.mxu0
      %987 = vdwg.mxu0
      %v988 = vadd.f32 %v827, %v914
      %v989 = vadd.f32 %v828, %v916
      %v990 = vadd.f32 %v829, %v985
      %s991 = scalar_lea.vmem %s1, 40
      %v992 = vld [vmem:[%s991] sm:$0xff]
      %993 = vrot.lane.b32.xlu0 %v198, 108
      %v994 = vpop.permute.xlu0 %993
      %995 = vrot.lane.b32.xlu0 %v199, 108
      %v996 = vpop.permute.xlu0 %995
      %997 = vrot.lane.b32.xlu0 %v200, 108
      %v998 = vpop.permute.xlu0 %997
      %vm999 = vcmask 883712
      %v1000 = vsel %vm999, %v994, %v996
      %v1001 = vsel %vm999, %v996, %v998
      %v1006 = vsel %vm219, %v992, 0
      %1008 = vmatprep.subr.mxu0 0.0
      %1009 = vmatpush1.msra.mxu0 0.0
      %1010 = vmatprep.subr.mxu0 0.0
      %1011 = vmatpush1.msra.mxu0 0.0
      %1012 = vmatprep.subr.mxu0 0.0
      %1013 = vmatpush1.msra.mxu0 0.0
      %1014 = vmatprep.subr.mxu0 0.0
      %1015 = vmatpush1.msra.mxu0 0.0
      %1016 = vmatprep.subr.mxu0 0.0
      %1017 = vmatpush1.msra.mxu0 0.0
      %1018 = vmatprep.subr.mxu0 0.0
      %1019 = vmatpush1.msra.mxu0 0.0
      %1020 = vmatprep.subr.mxu0 0.0
      %1021 = vmatpush1.msra.mxu0 0.0
      %1022 = vmatprep.subr.mxu0 0.0
      %1023 = vmatpush1.msra.mxu0 0.0
      %1024 = vmatprep.subr.mxu0 0.0
      %1025 = vmatpush1.msra.mxu0 0.0
      %1026 = vmatprep.subr.mxu0 0.0
      %1027 = vmatpush1.msra.mxu0 0.0
      %1028 = vmatprep.subr.mxu0 0.0
      %1029 = vmatpush1.msra.mxu0 0.0
      %1030 = vmatprep.subr.mxu0 0.0
      %1031 = vmatpush1.msra.mxu0 0.0
      %1032 = vmatprep.subr.mxu0 0.0
      %1033 = vmatpush1.msra.mxu0 0.0
      %1034 = vmatprep.subr.mxu0 0.0
      %1035 = vmatpush1.msra.mxu0 0.0
      %1036 = vmatprep.subr.mxu0 0.0
      %1037 = vmatpush1.msra.mxu0 0.0
      %1038 = vmatprep.subr.mxu0 %v1001
      %1039 = vmatpush1.msra.mxu0 %v1000
      %1040 = vmatprep.subr.mxu0 0.0
      %1041 = vmatpush2.msra.mxu0 0.0
      %1042 = vmatprep.subr.mxu0 0.0
      %1043 = vmatpush2.msra.mxu0 0.0
      %1044 = vmatprep.subr.mxu0 0.0
      %1045 = vmatpush2.msra.mxu0 0.0
      %1046 = vmatprep.subr.mxu0 0.0
      %1047 = vmatpush2.msra.mxu0 0.0
      %1048 = vmatprep.subr.mxu0 0.0
      %1049 = vmatpush2.msra.mxu0 0.0
      %1050 = vmatprep.subr.mxu0 0.0
      %1051 = vmatpush2.msra.mxu0 0.0
      %1052 = vmatprep.subr.mxu0 0.0
      %1053 = vmatpush2.msra.mxu0 0.0
      %1054 = vmatprep.subr.mxu0 0.0
      %1055 = vmatpush2.msra.mxu0 0.0
      %1056 = vmatprep.subr.mxu0 0.0
      %1057 = vmatpush2.msra.mxu0 0.0
      %1058 = vmatprep.subr.mxu0 0.0
      %1059 = vmatpush2.msra.mxu0 0.0
      %1060 = vmatprep.subr.mxu0 0.0
      %1061 = vmatpush2.msra.mxu0 0.0
      %1062 = vmatprep.subr.mxu0 0.0
      %1063 = vmatpush2.msra.mxu0 0.0
      %1064 = vmatprep.subr.mxu0 0.0
      %1065 = vmatpush2.msra.mxu0 0.0
      %1066 = vmatprep.subr.mxu0 0.0
      %1067 = vmatpush2.msra.mxu0 0.0
      %1068 = vmatprep.subr.mxu0 0.0
      %1069 = vmatpush2.msra.mxu0 0.0
      %1070 = vmatprep.subr.mxu0 0.0
      %1071 = vmatpush2.msra.mxu0 0.0
      %1072 = vmatprep.mubr.f32.mxu0 0.0
      %1073 = vmatmul.mubr.f32.gmra.mxu0 %v1006
      %v1074 = vpop.f32.mrf.mxu0
      %v1075 = vadd.f32 0.0, %v1074
      %v1076 = vpop.f32.mrf.mxu0
      %v1077 = vadd.f32 0.0, %v1076
      %1078 = vdwg.mxu0
      %1079 = vmatprep.subr.mxu0 0.0
      %1080 = vmatpush1.msra.mxu0 0.0
      %1081 = vmatprep.subr.mxu0 0.0
      %1082 = vmatpush1.msra.mxu0 0.0
      %1083 = vmatprep.subr.mxu0 0.0
      %1084 = vmatpush1.msra.mxu0 0.0
      %1085 = vmatprep.subr.mxu0 0.0
      %1086 = vmatpush1.msra.mxu0 0.0
      %1087 = vmatprep.subr.mxu0 0.0
      %1088 = vmatpush1.msra.mxu0 0.0
      %1089 = vmatprep.subr.mxu0 0.0
      %1090 = vmatpush1.msra.mxu0 0.0
      %1091 = vmatprep.subr.mxu0 0.0
      %1092 = vmatpush1.msra.mxu0 0.0
      %1093 = vmatprep.subr.mxu0 0.0
      %1094 = vmatpush1.msra.mxu0 0.0
      %1095 = vmatprep.subr.mxu0 0.0
      %1096 = vmatpush1.msra.mxu0 0.0
      %1097 = vmatprep.subr.mxu0 0.0
      %1098 = vmatpush1.msra.mxu0 0.0
      %1099 = vmatprep.subr.mxu0 0.0
      %1100 = vmatpush1.msra.mxu0 0.0
      %1101 = vmatprep.subr.mxu0 0.0
      %1102 = vmatpush1.msra.mxu0 0.0
      %1103 = vmatprep.subr.mxu0 0.0
      %1104 = vmatpush1.msra.mxu0 0.0
      %1105 = vmatprep.subr.mxu0 0.0
      %1106 = vmatpush1.msra.mxu0 0.0
      %1107 = vmatprep.subr.mxu0 0.0
      %1108 = vmatpush1.msra.mxu0 0.0
      %1109 = vmatprep.subr.mxu0 0.0
      %1110 = vmatpush1.msra.mxu0 %v998
      %1111 = vmatprep.subr.mxu0 0.0
      %1112 = vmatpush2.msra.mxu0 0.0
      %1113 = vmatprep.subr.mxu0 0.0
      %1114 = vmatpush2.msra.mxu0 0.0
      %1115 = vmatprep.subr.mxu0 0.0
      %1116 = vmatpush2.msra.mxu0 0.0
      %1117 = vmatprep.subr.mxu0 0.0
      %1118 = vmatpush2.msra.mxu0 0.0
      %1119 = vmatprep.subr.mxu0 0.0
      %1120 = vmatpush2.msra.mxu0 0.0
      %1121 = vmatprep.subr.mxu0 0.0
      %1122 = vmatpush2.msra.mxu0 0.0
      %1123 = vmatprep.subr.mxu0 0.0
      %1124 = vmatpush2.msra.mxu0 0.0
      %1125 = vmatprep.subr.mxu0 0.0
      %1126 = vmatpush2.msra.mxu0 0.0
      %1127 = vmatprep.subr.mxu0 0.0
      %1128 = vmatpush2.msra.mxu0 0.0
      %1129 = vmatprep.subr.mxu0 0.0
      %1130 = vmatpush2.msra.mxu0 0.0
      %1131 = vmatprep.subr.mxu0 0.0
      %1132 = vmatpush2.msra.mxu0 0.0
      %1133 = vmatprep.subr.mxu0 0.0
      %1134 = vmatpush2.msra.mxu0 0.0
      %1135 = vmatprep.subr.mxu0 0.0
      %1136 = vmatpush2.msra.mxu0 0.0
      %1137 = vmatprep.subr.mxu0 0.0
      %1138 = vmatpush2.msra.mxu0 0.0
      %1139 = vmatprep.subr.mxu0 0.0
      %1140 = vmatpush2.msra.mxu0 0.0
      %1141 = vmatprep.subr.mxu0 0.0
      %1142 = vmatpush2.msra.mxu0 0.0
      %1143 = vmatprep.mubr.f32.mxu0 0.0
      %1144 = vmatmul.mubr.f32.gmra.mxu0 %v1006
      %v1145 = vpop.f32.mrf.mxu0
      %v1146 = vadd.f32 0.0, %v1145
      %v1147 = vpop.f32.mrf.mxu0
      %1148 = vdwg.mxu0
      %v1149 = vadd.f32 %v988, %v1075
      %v1150 = vadd.f32 %v989, %v1077
      %v1151 = vadd.f32 %v990, %v1146
      %s1152 = scalar_lea.vmem %s1, 48
      %v1153 = vld [vmem:[%s1152] sm:$0xff]
      %1154 = vrot.lane.b32.xlu0 %v198, 92
      %v1155 = vpop.permute.xlu0 %1154
      %1156 = vrot.lane.b32.xlu0 %v199, 92
      %v1157 = vpop.permute.xlu0 %1156
      %1158 = vrot.lane.b32.xlu0 %v200, 92
      %v1159 = vpop.permute.xlu0 %1158
      %vm1160 = vcmask 752640
      %v1161 = vsel %vm1160, %v1155, %v1157
      %v1162 = vsel %vm1160, %v1157, %v1159
      %v1167 = vsel %vm219, %v1153, 0
      %1169 = vmatprep.subr.mxu0 0.0
      %1170 = vmatpush1.msra.mxu0 0.0
      %1171 = vmatprep.subr.mxu0 0.0
      %1172 = vmatpush1.msra.mxu0 0.0
      %1173 = vmatprep.subr.mxu0 0.0
      %1174 = vmatpush1.msra.mxu0 0.0
      %1175 = vmatprep.subr.mxu0 0.0
      %1176 = vmatpush1.msra.mxu0 0.0
      %1177 = vmatprep.subr.mxu0 0.0
      %1178 = vmatpush1.msra.mxu0 0.0
      %1179 = vmatprep.subr.mxu0 0.0
      %1180 = vmatpush1.msra.mxu0 0.0
      %1181 = vmatprep.subr.mxu0 0.0
      %1182 = vmatpush1.msra.mxu0 0.0
      %1183 = vmatprep.subr.mxu0 0.0
      %1184 = vmatpush1.msra.mxu0 0.0
      %1185 = vmatprep.subr.mxu0 0.0
      %1186 = vmatpush1.msra.mxu0 0.0
      %1187 = vmatprep.subr.mxu0 0.0
      %1188 = vmatpush1.msra.mxu0 0.0
      %1189 = vmatprep.subr.mxu0 0.0
      %1190 = vmatpush1.msra.mxu0 0.0
      %1191 = vmatprep.subr.mxu0 0.0
      %1192 = vmatpush1.msra.mxu0 0.0
      %1193 = vmatprep.subr.mxu0 0.0
      %1194 = vmatpush1.msra.mxu0 0.0
      %1195 = vmatprep.subr.mxu0 0.0
      %1196 = vmatpush1.msra.mxu0 0.0
      %1197 = vmatprep.subr.mxu0 0.0
      %1198 = vmatpush1.msra.mxu0 0.0
      %1199 = vmatprep.subr.mxu0 %v1162
      %1200 = vmatpush1.msra.mxu0 %v1161
      %1201 = vmatprep.subr.mxu0 0.0
      %1202 = vmatpush2.msra.mxu0 0.0
      %1203 = vmatprep.subr.mxu0 0.0
      %1204 = vmatpush2.msra.mxu0 0.0
      %1205 = vmatprep.subr.mxu0 0.0
      %1206 = vmatpush2.msra.mxu0 0.0
      %1207 = vmatprep.subr.mxu0 0.0
      %1208 = vmatpush2.msra.mxu0 0.0
      %1209 = vmatprep.subr.mxu0 0.0
      %1210 = vmatpush2.msra.mxu0 0.0
      %1211 = vmatprep.subr.mxu0 0.0
      %1212 = vmatpush2.msra.mxu0 0.0
      %1213 = vmatprep.subr.mxu0 0.0
      %1214 = vmatpush2.msra.mxu0 0.0
      %1215 = vmatprep.subr.mxu0 0.0
      %1216 = vmatpush2.msra.mxu0 0.0
      %1217 = vmatprep.subr.mxu0 0.0
      %1218 = vmatpush2.msra.mxu0 0.0
      %1219 = vmatprep.subr.mxu0 0.0
      %1220 = vmatpush2.msra.mxu0 0.0
      %1221 = vmatprep.subr.mxu0 0.0
      %1222 = vmatpush2.msra.mxu0 0.0
      %1223 = vmatprep.subr.mxu0 0.0
      %1224 = vmatpush2.msra.mxu0 0.0
      %1225 = vmatprep.subr.mxu0 0.0
      %1226 = vmatpush2.msra.mxu0 0.0
      %1227 = vmatprep.subr.mxu0 0.0
      %1228 = vmatpush2.msra.mxu0 0.0
      %1229 = vmatprep.subr.mxu0 0.0
      %1230 = vmatpush2.msra.mxu0 0.0
      %1231 = vmatprep.subr.mxu0 0.0
      %1232 = vmatpush2.msra.mxu0 0.0
      %1233 = vmatprep.mubr.f32.mxu0 0.0
      %1234 = vmatmul.mubr.f32.gmra.mxu0 %v1167
      %v1235 = vpop.f32.mrf.mxu0
      %v1236 = vadd.f32 0.0, %v1235
      %v1237 = vpop.f32.mrf.mxu0
      %v1238 = vadd.f32 0.0, %v1237
      %1239 = vdwg.mxu0
      %1240 = vmatprep.subr.mxu0 0.0
      %1241 = vmatpush1.msra.mxu0 0.0
      %1242 = vmatprep.subr.mxu0 0.0
      %1243 = vmatpush1.msra.mxu0 0.0
      %1244 = vmatprep.subr.mxu0 0.0
      %1245 = vmatpush1.msra.mxu0 0.0
      %1246 = vmatprep.subr.mxu0 0.0
      %1247 = vmatpush1.msra.mxu0 0.0
      %1248 = vmatprep.subr.mxu0 0.0
      %1249 = vmatpush1.msra.mxu0 0.0
      %1250 = vmatprep.subr.mxu0 0.0
      %1251 = vmatpush1.msra.mxu0 0.0
      %1252 = vmatprep.subr.mxu0 0.0
      %1253 = vmatpush1.msra.mxu0 0.0
      %1254 = vmatprep.subr.mxu0 0.0
      %1255 = vmatpush1.msra.mxu0 0.0
      %1256 = vmatprep.subr.mxu0 0.0
      %1257 = vmatpush1.msra.mxu0 0.0
      %1258 = vmatprep.subr.mxu0 0.0
      %1259 = vmatpush1.msra.mxu0 0.0
      %1260 = vmatprep.subr.mxu0 0.0
      %1261 = vmatpush1.msra.mxu0 0.0
      %1262 = vmatprep.subr.mxu0 0.0
      %1263 = vmatpush1.msra.mxu0 0.0
      %1264 = vmatprep.subr.mxu0 0.0
      %1265 = vmatpush1.msra.mxu0 0.0
      %1266 = vmatprep.subr.mxu0 0.0
      %1267 = vmatpush1.msra.mxu0 0.0
      %1268 = vmatprep.subr.mxu0 0.0
      %1269 = vmatpush1.msra.mxu0 0.0
      %1270 = vmatprep.subr.mxu0 0.0
      %1271 = vmatpush1.msra.mxu0 %v1159
      %1272 = vmatprep.subr.mxu0 0.0
      %1273 = vmatpush2.msra.mxu0 0.0
      %1274 = vmatprep.subr.mxu0 0.0
      %1275 = vmatpush2.msra.mxu0 0.0
      %1276 = vmatprep.subr.mxu0 0.0
      %1277 = vmatpush2.msra.mxu0 0.0
      %1278 = vmatprep.subr.mxu0 0.0
      %1279 = vmatpush2.msra.mxu0 0.0
      %1280 = vmatprep.subr.mxu0 0.0
      %1281 = vmatpush2.msra.mxu0 0.0
      %1282 = vmatprep.subr.mxu0 0.0
      %1283 = vmatpush2.msra.mxu0 0.0
      %1284 = vmatprep.subr.mxu0 0.0
      %1285 = vmatpush2.msra.mxu0 0.0
      %1286 = vmatprep.subr.mxu0 0.0
      %1287 = vmatpush2.msra.mxu0 0.0
      %1288 = vmatprep.subr.mxu0 0.0
      %1289 = vmatpush2.msra.mxu0 0.0
      %1290 = vmatprep.subr.mxu0 0.0
      %1291 = vmatpush2.msra.mxu0 0.0
      %1292 = vmatprep.subr.mxu0 0.0
      %1293 = vmatpush2.msra.mxu0 0.0
      %1294 = vmatprep.subr.mxu0 0.0
      %1295 = vmatpush2.msra.mxu0 0.0
      %1296 = vmatprep.subr.mxu0 0.0
      %1297 = vmatpush2.msra.mxu0 0.0
      %1298 = vmatprep.subr.mxu0 0.0
      %1299 = vmatpush2.msra.mxu0 0.0
      %1300 = vmatprep.subr.mxu0 0.0
      %1301 = vmatpush2.msra.mxu0 0.0
      %1302 = vmatprep.subr.mxu0 0.0
      %1303 = vmatpush2.msra.mxu0 0.0
      %1304 = vmatprep.mubr.f32.mxu0 0.0
      %1305 = vmatmul.mubr.f32.gmra.mxu0 %v1167
      %v1306 = vpop.f32.mrf.mxu0
      %v1307 = vadd.f32 0.0, %v1306
      %v1308 = vpop.f32.mrf.mxu0
      %1309 = vdwg.mxu0
      %v1310 = vadd.f32 %v1149, %v1236
      %v1311 = vadd.f32 %v1150, %v1238
      %v1312 = vadd.f32 %v1151, %v1307
      %s1313 = scalar_lea.vmem %s1, 56
      %v1314 = vld [vmem:[%s1313] sm:$0xff]
      %1315 = vrot.lane.b32.xlu0 %v198, 91
      %v1316 = vpop.permute.xlu0 %1315
      %1317 = vrot.lane.b32.xlu0 %v199, 91
      %v1318 = vpop.permute.xlu0 %1317
      %1319 = vrot.lane.b32.xlu0 %v200, 91
      %v1320 = vpop.permute.xlu0 %1319
      %vm1321 = vcmask 744448
      %v1322 = vsel %vm1321, %v1316, %v1318
      %v1323 = vsel %vm1321, %v1318, %v1320
      %v1328 = vsel %vm219, %v1314, 0
      %1330 = vmatprep.subr.mxu0 0.0
      %1331 = vmatpush1.msra.mxu0 0.0
      %1332 = vmatprep.subr.mxu0 0.0
      %1333 = vmatpush1.msra.mxu0 0.0
      %1334 = vmatprep.subr.mxu0 0.0
      %1335 = vmatpush1.msra.mxu0 0.0
      %1336 = vmatprep.subr.mxu0 0.0
      %1337 = vmatpush1.msra.mxu0 0.0
      %1338 = vmatprep.subr.mxu0 0.0
      %1339 = vmatpush1.msra.mxu0 0.0
      %1340 = vmatprep.subr.mxu0 0.0
      %1341 = vmatpush1.msra.mxu0 0.0
      %1342 = vmatprep.subr.mxu0 0.0
      %1343 = vmatpush1.msra.mxu0 0.0
      %1344 = vmatprep.subr.mxu0 0.0
      %1345 = vmatpush1.msra.mxu0 0.0
      %1346 = vmatprep.subr.mxu0 0.0
      %1347 = vmatpush1.msra.mxu0 0.0
      %1348 = vmatprep.subr.mxu0 0.0
      %1349 = vmatpush1.msra.mxu0 0.0
      %1350 = vmatprep.subr.mxu0 0.0
      %1351 = vmatpush1.msra.mxu0 0.0
      %1352 = vmatprep.subr.mxu0 0.0
      %1353 = vmatpush1.msra.mxu0 0.0
      %1354 = vmatprep.subr.mxu0 0.0
      %1355 = vmatpush1.msra.mxu0 0.0
      %1356 = vmatprep.subr.mxu0 0.0
      %1357 = vmatpush1.msra.mxu0 0.0
      %1358 = vmatprep.subr.mxu0 0.0
      %1359 = vmatpush1.msra.mxu0 0.0
      %1360 = vmatprep.subr.mxu0 %v1323
      %1361 = vmatpush1.msra.mxu0 %v1322
      %1362 = vmatprep.subr.mxu0 0.0
      %1363 = vmatpush2.msra.mxu0 0.0
      %1364 = vmatprep.subr.mxu0 0.0
      %1365 = vmatpush2.msra.mxu0 0.0
      %1366 = vmatprep.subr.mxu0 0.0
      %1367 = vmatpush2.msra.mxu0 0.0
      %1368 = vmatprep.subr.mxu0 0.0
      %1369 = vmatpush2.msra.mxu0 0.0
      %1370 = vmatprep.subr.mxu0 0.0
      %1371 = vmatpush2.msra.mxu0 0.0
      %1372 = vmatprep.subr.mxu0 0.0
      %1373 = vmatpush2.msra.mxu0 0.0
      %1374 = vmatprep.subr.mxu0 0.0
      %1375 = vmatpush2.msra.mxu0 0.0
      %1376 = vmatprep.subr.mxu0 0.0
      %1377 = vmatpush2.msra.mxu0 0.0
      %1378 = vmatprep.subr.mxu0 0.0
      %1379 = vmatpush2.msra.mxu0 0.0
      %1380 = vmatprep.subr.mxu0 0.0
      %1381 = vmatpush2.msra.mxu0 0.0
      %1382 = vmatprep.subr.mxu0 0.0
      %1383 = vmatpush2.msra.mxu0 0.0
      %1384 = vmatprep.subr.mxu0 0.0
      %1385 = vmatpush2.msra.mxu0 0.0
      %1386 = vmatprep.subr.mxu0 0.0
      %1387 = vmatpush2.msra.mxu0 0.0
      %1388 = vmatprep.subr.mxu0 0.0
      %1389 = vmatpush2.msra.mxu0 0.0
      %1390 = vmatprep.subr.mxu0 0.0
      %1391 = vmatpush2.msra.mxu0 0.0
      %1392 = vmatprep.subr.mxu0 0.0
      %1393 = vmatpush2.msra.mxu0 0.0
      %1394 = vmatprep.mubr.f32.mxu0 0.0
      %1395 = vmatmul.mubr.f32.gmra.mxu0 %v1328
      %v1396 = vpop.f32.mrf.mxu0
      %v1397 = vadd.f32 0.0, %v1396
      %v1398 = vpop.f32.mrf.mxu0
      %v1399 = vadd.f32 0.0, %v1398
      %1400 = vdwg.mxu0
      %1401 = vmatprep.subr.mxu0 0.0
      %1402 = vmatpush1.msra.mxu0 0.0
      %1403 = vmatprep.subr.mxu0 0.0
      %1404 = vmatpush1.msra.mxu0 0.0
      %1405 = vmatprep.subr.mxu0 0.0
      %1406 = vmatpush1.msra.mxu0 0.0
      %1407 = vmatprep.subr.mxu0 0.0
      %1408 = vmatpush1.msra.mxu0 0.0
      %1409 = vmatprep.subr.mxu0 0.0
      %1410 = vmatpush1.msra.mxu0 0.0
      %1411 = vmatprep.subr.mxu0 0.0
      %1412 = vmatpush1.msra.mxu0 0.0
      %1413 = vmatprep.subr.mxu0 0.0
      %1414 = vmatpush1.msra.mxu0 0.0
      %1415 = vmatprep.subr.mxu0 0.0
      %1416 = vmatpush1.msra.mxu0 0.0
      %1417 = vmatprep.subr.mxu0 0.0
      %1418 = vmatpush1.msra.mxu0 0.0
      %1419 = vmatprep.subr.mxu0 0.0
      %1420 = vmatpush1.msra.mxu0 0.0
      %1421 = vmatprep.subr.mxu0 0.0
      %1422 = vmatpush1.msra.mxu0 0.0
      %1423 = vmatprep.subr.mxu0 0.0
      %1424 = vmatpush1.msra.mxu0 0.0
      %1425 = vmatprep.subr.mxu0 0.0
      %1426 = vmatpush1.msra.mxu0 0.0
      %1427 = vmatprep.subr.mxu0 0.0
      %1428 = vmatpush1.msra.mxu0 0.0
      %1429 = vmatprep.subr.mxu0 0.0
      %1430 = vmatpush1.msra.mxu0 0.0
      %1431 = vmatprep.subr.mxu0 0.0
      %1432 = vmatpush1.msra.mxu0 %v1320
      %1433 = vmatprep.subr.mxu0 0.0
      %1434 = vmatpush2.msra.mxu0 0.0
      %1435 = vmatprep.subr.mxu0 0.0
      %1436 = vmatpush2.msra.mxu0 0.0
      %1437 = vmatprep.subr.mxu0 0.0
      %1438 = vmatpush2.msra.mxu0 0.0
      %1439 = vmatprep.subr.mxu0 0.0
      %1440 = vmatpush2.msra.mxu0 0.0
      %1441 = vmatprep.subr.mxu0 0.0
      %1442 = vmatpush2.msra.mxu0 0.0
      %1443 = vmatprep.subr.mxu0 0.0
      %1444 = vmatpush2.msra.mxu0 0.0
      %1445 = vmatprep.subr.mxu0 0.0
      %1446 = vmatpush2.msra.mxu0 0.0
      %1447 = vmatprep.subr.mxu0 0.0
      %1448 = vmatpush2.msra.mxu0 0.0
      %1449 = vmatprep.subr.mxu0 0.0
      %1450 = vmatpush2.msra.mxu0 0.0
      %1451 = vmatprep.subr.mxu0 0.0
      %1452 = vmatpush2.msra.mxu0 0.0
      %1453 = vmatprep.subr.mxu0 0.0
      %1454 = vmatpush2.msra.mxu0 0.0
      %1455 = vmatprep.subr.mxu0 0.0
      %1456 = vmatpush2.msra.mxu0 0.0
      %1457 = vmatprep.subr.mxu0 0.0
      %1458 = vmatpush2.msra.mxu0 0.0
      %1459 = vmatprep.subr.mxu0 0.0
      %1460 = vmatpush2.msra.mxu0 0.0
      %1461 = vmatprep.subr.mxu0 0.0
      %1462 = vmatpush2.msra.mxu0 0.0
      %1463 = vmatprep.subr.mxu0 0.0
      %1464 = vmatpush2.msra.mxu0 0.0
      %1465 = vmatprep.mubr.f32.mxu0 0.0
      %1466 = vmatmul.mubr.f32.gmra.mxu0 %v1328
      %v1467 = vpop.f32.mrf.mxu0
      %v1468 = vadd.f32 0.0, %v1467
      %v1469 = vpop.f32.mrf.mxu0
      %1470 = vdwg.mxu0
      %v1471 = vadd.f32 %v1310, %v1397
      %v1472 = vadd.f32 %v1311, %v1399
      %v1473 = vadd.f32 %v1312, %v1468
      %s1474 = scalar_lea.vmem %s1, 64
      %v1475 = vld [vmem:[%s1474] sm:$0xff]
      %1476 = vrot.lane.b32.xlu0 %v198, 90
      %v1477 = vpop.permute.xlu0 %1476
      %1478 = vrot.lane.b32.xlu0 %v199, 90
      %v1479 = vpop.permute.xlu0 %1478
      %1480 = vrot.lane.b32.xlu0 %v200, 90
      %v1481 = vpop.permute.xlu0 %1480
      %vm1482 = vcmask 736256
      %v1483 = vsel %vm1482, %v1477, %v1479
      %v1484 = vsel %vm1482, %v1479, %v1481
      %v1489 = vsel %vm219, %v1475, 0
      %1491 = vmatprep.subr.mxu0 0.0
      %1492 = vmatpush1.msra.mxu0 0.0
      %1493 = vmatprep.subr.mxu0 0.0
      %1494 = vmatpush1.msra.mxu0 0.0
      %1495 = vmatprep.subr.mxu0 0.0
      %1496 = vmatpush1.msra.mxu0 0.0
      %1497 = vmatprep.subr.mxu0 0.0
      %1498 = vmatpush1.msra.mxu0 0.0
      %1499 = vmatprep.subr.mxu0 0.0
      %1500 = vmatpush1.msra.mxu0 0.0
      %1501 = vmatprep.subr.mxu0 0.0
      %1502 = vmatpush1.msra.mxu0 0.0
      %1503 = vmatprep.subr.mxu0 0.0
      %1504 = vmatpush1.msra.mxu0 0.0
      %1505 = vmatprep.subr.mxu0 0.0
      %1506 = vmatpush1.msra.mxu0 0.0
      %1507 = vmatprep.subr.mxu0 0.0
      %1508 = vmatpush1.msra.mxu0 0.0
      %1509 = vmatprep.subr.mxu0 0.0
      %1510 = vmatpush1.msra.mxu0 0.0
      %1511 = vmatprep.subr.mxu0 0.0
      %1512 = vmatpush1.msra.mxu0 0.0
      %1513 = vmatprep.subr.mxu0 0.0
      %1514 = vmatpush1.msra.mxu0 0.0
      %1515 = vmatprep.subr.mxu0 0.0
      %1516 = vmatpush1.msra.mxu0 0.0
      %1517 = vmatprep.subr.mxu0 0.0
      %1518 = vmatpush1.msra.mxu0 0.0
      %1519 = vmatprep.subr.mxu0 0.0
      %1520 = vmatpush1.msra.mxu0 0.0
      %1521 = vmatprep.subr.mxu0 %v1484
      %1522 = vmatpush1.msra.mxu0 %v1483
      %1523 = vmatprep.subr.mxu0 0.0
      %1524 = vmatpush2.msra.mxu0 0.0
      %1525 = vmatprep.subr.mxu0 0.0
      %1526 = vmatpush2.msra.mxu0 0.0
      %1527 = vmatprep.subr.mxu0 0.0
      %1528 = vmatpush2.msra.mxu0 0.0
      %1529 = vmatprep.subr.mxu0 0.0
      %1530 = vmatpush2.msra.mxu0 0.0
      %1531 = vmatprep.subr.mxu0 0.0
      %1532 = vmatpush2.msra.mxu0 0.0
      %1533 = vmatprep.subr.mxu0 0.0
      %1534 = vmatpush2.msra.mxu0 0.0
      %1535 = vmatprep.subr.mxu0 0.0
      %1536 = vmatpush2.msra.mxu0 0.0
      %1537 = vmatprep.subr.mxu0 0.0
      %1538 = vmatpush2.msra.mxu0 0.0
      %1539 = vmatprep.subr.mxu0 0.0
      %1540 = vmatpush2.msra.mxu0 0.0
      %1541 = vmatprep.subr.mxu0 0.0
      %1542 = vmatpush2.msra.mxu0 0.0
      %1543 = vmatprep.subr.mxu0 0.0
      %1544 = vmatpush2.msra.mxu0 0.0
      %1545 = vmatprep.subr.mxu0 0.0
      %1546 = vmatpush2.msra.mxu0 0.0
      %1547 = vmatprep.subr.mxu0 0.0
      %1548 = vmatpush2.msra.mxu0 0.0
      %1549 = vmatprep.subr.mxu0 0.0
      %1550 = vmatpush2.msra.mxu0 0.0
      %1551 = vmatprep.subr.mxu0 0.0
      %1552 = vmatpush2.msra.mxu0 0.0
      %1553 = vmatprep.subr.mxu0 0.0
      %1554 = vmatpush2.msra.mxu0 0.0
      %1555 = vmatprep.mubr.f32.mxu0 0.0
      %1556 = vmatmul.mubr.f32.gmra.mxu0 %v1489
      %v1557 = vpop.f32.mrf.mxu0
      %v1558 = vadd.f32 0.0, %v1557
      %v1559 = vpop.f32.mrf.mxu0
      %v1560 = vadd.f32 0.0, %v1559
      %1561 = vdwg.mxu0
      %1562 = vmatprep.subr.mxu0 0.0
      %1563 = vmatpush1.msra.mxu0 0.0
      %1564 = vmatprep.subr.mxu0 0.0
      %1565 = vmatpush1.msra.mxu0 0.0
      %1566 = vmatprep.subr.mxu0 0.0
      %1567 = vmatpush1.msra.mxu0 0.0
      %1568 = vmatprep.subr.mxu0 0.0
      %1569 = vmatpush1.msra.mxu0 0.0
      %1570 = vmatprep.subr.mxu0 0.0
      %1571 = vmatpush1.msra.mxu0 0.0
      %1572 = vmatprep.subr.mxu0 0.0
      %1573 = vmatpush1.msra.mxu0 0.0
      %1574 = vmatprep.subr.mxu0 0.0
      %1575 = vmatpush1.msra.mxu0 0.0
      %1576 = vmatprep.subr.mxu0 0.0
      %1577 = vmatpush1.msra.mxu0 0.0
      %1578 = vmatprep.subr.mxu0 0.0
      %1579 = vmatpush1.msra.mxu0 0.0
      %1580 = vmatprep.subr.mxu0 0.0
      %1581 = vmatpush1.msra.mxu0 0.0
      %1582 = vmatprep.subr.mxu0 0.0
      %1583 = vmatpush1.msra.mxu0 0.0
      %1584 = vmatprep.subr.mxu0 0.0
      %1585 = vmatpush1.msra.mxu0 0.0
      %1586 = vmatprep.subr.mxu0 0.0
      %1587 = vmatpush1.msra.mxu0 0.0
      %1588 = vmatprep.subr.mxu0 0.0
      %1589 = vmatpush1.msra.mxu0 0.0
      %1590 = vmatprep.subr.mxu0 0.0
      %1591 = vmatpush1.msra.mxu0 0.0
      %1592 = vmatprep.subr.mxu0 0.0
      %1593 = vmatpush1.msra.mxu0 %v1481
      %1594 = vmatprep.subr.mxu0 0.0
      %1595 = vmatpush2.msra.mxu0 0.0
      %1596 = vmatprep.subr.mxu0 0.0
      %1597 = vmatpush2.msra.mxu0 0.0
      %1598 = vmatprep.subr.mxu0 0.0
      %1599 = vmatpush2.msra.mxu0 0.0
      %1600 = vmatprep.subr.mxu0 0.0
      %1601 = vmatpush2.msra.mxu0 0.0
      %1602 = vmatprep.subr.mxu0 0.0
      %1603 = vmatpush2.msra.mxu0 0.0
      %1604 = vmatprep.subr.mxu0 0.0
      %1605 = vmatpush2.msra.mxu0 0.0
      %1606 = vmatprep.subr.mxu0 0.0
      %1607 = vmatpush2.msra.mxu0 0.0
      %1608 = vmatprep.subr.mxu0 0.0
      %1609 = vmatpush2.msra.mxu0 0.0
      %1610 = vmatprep.subr.mxu0 0.0
      %1611 = vmatpush2.msra.mxu0 0.0
      %1612 = vmatprep.subr.mxu0 0.0
      %1613 = vmatpush2.msra.mxu0 0.0
      %1614 = vmatprep.subr.mxu0 0.0
      %1615 = vmatpush2.msra.mxu0 0.0
      %1616 = vmatprep.subr.mxu0 0.0
      %1617 = vmatpush2.msra.mxu0 0.0
      %1618 = vmatprep.subr.mxu0 0.0
      %1619 = vmatpush2.msra.mxu0 0.0
      %1620 = vmatprep.subr.mxu0 0.0
      %1621 = vmatpush2.msra.mxu0 0.0
      %1622 = vmatprep.subr.mxu0 0.0
      %1623 = vmatpush2.msra.mxu0 0.0
      %1624 = vmatprep.subr.mxu0 0.0
      %1625 = vmatpush2.msra.mxu0 0.0
      %1626 = vmatprep.mubr.f32.mxu0 0.0
      %1627 = vmatmul.mubr.f32.gmra.mxu0 %v1489
      %v1628 = vpop.f32.mrf.mxu0
      %v1629 = vadd.f32 0.0, %v1628
      %v1630 = vpop.f32.mrf.mxu0
      %1631 = vdwg.mxu0
      %v1632 = vadd.f32 %v1471, %v1558
      %v1633 = vadd.f32 %v1472, %v1560
      %v1634 = vadd.f32 %v1473, %v1629
      %v1635 = vld [vmem:[%s2] sm:$0xff]
      %1637 = vset.pattern.permute.xlu0 0
      %1638 = vperm.xlu0 %1637, %v1635
      %v1639 = vpop.permute.xlu0 %1638
      %v1641 = vmul.f32 %v1632, %v1639
      %v1642 = vmul.f32 %v1633, %v1639
      %v1643 = vmul.f32 %v1634, %v1639
      %v1644 = vld [vmem:[%s3] sm:$0xff]
      %1646 = vset.pattern.permute.xlu0 0
      %1647 = vperm.xlu0 %1646, %v1644
      %v1648 = vpop.permute.xlu0 %1647
      %v1650 = vadd.f32 %v1641, %v1648
      %v1651 = vadd.f32 %v1642, %v1648
      %v1652 = vadd.f32 %v1643, %v1648
      %vm1653 = vcmp.ge.f32.partialorder %v1650, 0.0
      %vm1654 = vcmp.ge.f32.partialorder %v1651, 0.0
      %vm1655 = vcmp.ge.f32.partialorder %v1652, 0.0
      %v1656 = vmul.f32 %v1650, 0.2
      %v1657 = vmul.f32 %v1651, 0.2
      %v1658 = vmul.f32 %v1652, 0.2
      %v1659 = vsel %vm1653, %v1650, %v1656
      %v1660 = vsel %vm1654, %v1651, %v1657
      %v1661 = vsel %vm1655, %v1652, %v1658
      %1662 = vst [vmem:[%s197] sm:$0xff] %v1659
      %1663 = vst [vmem:[%s197 + $0x8] sm:$0xff] %v1660
      %vm1664 = vcmask 261120
      %1665 = vst.msk [vmem:[%s197 + $0x10] sm:$0xff] %vm1664, %v1661
      %p1666 = scmp.lt.s32.totalorder %s15, 1
      %s1667 = scalar_select %p1666, %s15, 1
      %s1668 = smul.addr %s1667, 3
      %s1669 = smul.addr %s1668, 8
      %s1670 = scalar_lea.vmem %s4, %s1669
      // Predicated region
      $region37: #{conv_block.7} parent=35 // pred_check
        %p1671 = pneg %p122
      $region38: #{conv_block.7} parent=35 // pred_check_branch
        %1673 = sbr.rel (%p1671) target = $region40
      $region39: #{conv_block.7} parent=35 // pred_region
        _
      $region40: #{conv_block.7} parent=35 // pred_fallthru
        _
    $region36: #{conv_block.7} parent=5 // pred_fallthru
      _
    %p1674 = scmp.le.s32.totalorder 2, %s10
    // Predicated region
    $region41: #{conv_block.7} parent=5 // pred_check
      %p1675 = pneg %p1674
    $region42: #{conv_block.7} parent=5 // pred_check_branch
      %1677 = sbr.rel (%p1675) target = $region44
    $region43: #{conv_block.7} parent=5 // pred_region
      %s1678 = ssub.s32 %s10, 2
      // Predicated region
      $region45: #{conv_block.7} parent=43 // pred_check
        %p1679 = pneg %p128
      $region46: #{conv_block.7} parent=43 // pred_check_branch
        %1681 = sbr.rel (%p1679) target = $region48
      $region47: #{conv_block.7} parent=43 // pred_region
        %p1682 = scmp.lt.s32.totalorder %s16, 1
        %s1683 = scalar_select %p1682, %s16, 1
        %s1684 = smul.addr %s1683, 3
        %s1685 = smul.addr %s1684, 8
        %s1686 = scalar_lea.vmem %s4, %s1685
      $region48: #{conv_block.7} parent=43 // pred_fallthru
        _
    $region44: #{conv_block.7} parent=5 // pred_fallthru
      _
  $region6: #{conv_block.7} parent=0 // loop_footer
    %s14 = sadd.s32 1, %s10
  $region7: #{conv_block.7} parent=0 // loop_footer_branch
    %9 = sbr.rel target = $region3
  $region8: #{conv_block.7} parent=0 // loop_exit
    _

// kernel: conv_block.6
$region0: #{conv_block.6}
  #allocation0 [shape = 'u32[]', space=smem, size = 0x4, offset = 0x4, fixed_abs, tag = 'smem constant byte address 0x4 - core index']
  #allocation1 [shape = 'u32[144,128]{1,0:T(1,128)}', space=vmem, size = 0x12000, scoped, tag = 'internal scratch']
  %s0 = inlined_call_operand.vmem [shape: f32[2,8,326], index: 0, kind: input, shape index: {}]
  %s1 = inlined_call_operand.vmem [shape: f32[9,8,8], index: 1, kind: input, shape index: {}]
  %s2 = inlined_call_operand.vmem [shape: f32[1,288], index: 2, kind: input, shape index: {}]
  %s3 = inlined_call_operand.vmem [shape: f32[8,1], index: 3, kind: output, shape index: {0}]
  %s4 = inlined_call_operand.vmem [shape: f32[8,1], index: 4, kind: output, shape index: {1}]
  %5 = xla_tuple %s3, %s4
  %s6 = sld [smem:[#allocation0]]
  $region57: #{conv_block.6} parent=0
    _
  %s8 = ssub.s32 1, %s6
  %s9 = scalar_select 0, %s8, %s6
  loop: start=0, step=1, limit=4
  $region2: #{conv_block.6} parent=0 // loop_pre_header
    _
  $region3: #{conv_block.6} parent=0 // loop_header
    %s11 = sphi 0, %s15
    %p12 = scmp.ge.s32.totalorder %s11, 4
    %s21 = sphi 0, %s23
    %s24 = sphi 0, %s21
    %s25 = sphi 0, %s24
    %s41 = sphi 0, %s25
    %s45 = sphi 0, %s45
    %s47 = sphi 0, %s45
    %s48 = sphi 0, %s47
    %s62 = sphi 0, %s48
    %s66 = sphi 0, %s66
    %s68 = sphi 0, %s66
    %s69 = sphi 0, %s68
    %s83 = sphi 0, %s69
    %s87 = sphi 0, %s87
    %s89 = sphi 0, %s87
    %s90 = sphi 0, %s89
    %s104 = sphi 0, %s90
    %s108 = sphi 0, %s108
    %s110 = sphi 0, %s108
    %s111 = sphi 0, %s110
    %s125 = sphi 0, %s111
  $region4: #{conv_block.6} parent=0 // loop_header_branch
    %14 = sbr.rel (%p12) target = $region8
  $region5: #{conv_block.6} parent=0 // loop_body
    %s16 = ssub.s32 %s11, 1
    %s17 = ssub.s32 %s11, 2
    %s18 = sadd.s32 %s11, 1
    %s19 = ssub.s32 %s11, %s18
    %p20 = scmp.eq.s32.totalorder %s19, 0
    %s22 = sadd.s32 %s21, 1
    %s23 = scalar_select %p20, %s21, %s22
    %p26 = pneg %p20
    %p27 = scmp.eq.s32.totalorder %s11, 1
    %p28 = por %p26, %p27
    %p29 = scmp.ne.s32.totalorder %s21, %s24
    %p30 = scmp.eq.s32.totalorder %s11, 0
    %p31 = por %p29, %p30
    %p32 = scmp.ne.s32.totalorder %s21, %s24
    %p33 = scmp.eq.s32.totalorder %s16, 1
    %p34 = por %p32, %p33
    %p35 = scmp.ne.s32.totalorder %s24, %s25
    %p36 = scmp.eq.s32.totalorder %s16, 0
    %p37 = por %p35, %p36
    %p38 = scmp.ne.s32.totalorder %s24, %s25
    %p39 = scmp.eq.s32.totalorder %s17, 1
    %p40 = por %p38, %p39
    %p42 = scmp.ne.s32.totalorder %s25, %s41
    %p43 = scmp.eq.s32.totalorder %s17, 0
    %p44 = por %p42, %p43
    %s46 = sadd.s32 %s45, 1
    %p49 = scmp.eq.s32.totalorder %s11, 1
    %p50 = scmp.ne.s32.totalorder %s45, %s47
    %p51 = scmp.eq.s32.totalorder %s11, 0
    %p52 = por %p50, %p51
    %p53 = scmp.ne.s32.totalorder %s45, %s47
    %p54 = scmp.eq.s32.totalorder %s16, 1
    %p55 = por %p53, %p54
    %p56 = scmp.ne.s32.totalorder %s47, %s48
    %p57 = scmp.eq.s32.totalorder %s16, 0
    %p58 = por %p56, %p57
    %p59 = scmp.ne.s32.totalorder %s47, %s48
    %p60 = scmp.eq.s32.totalorder %s17, 1
    %p61 = por %p59, %p60
    %p63 = scmp.ne.s32.totalorder %s48, %s62
    %p64 = scmp.eq.s32.totalorder %s17, 0
    %p65 = por %p63, %p64
    %s67 = sadd.s32 %s66, 1
    %p70 = scmp.eq.s32.totalorder %s11, 1
    %p71 = scmp.ne.s32.totalorder %s66, %s68
    %p72 = scmp.eq.s32.totalorder %s11, 0
    %p73 = por %p71, %p72
    %p74 = scmp.ne.s32.totalorder %s66, %s68
    %p75 = scmp.eq.s32.totalorder %s16, 1
    %p76 = por %p74, %p75
    %p77 = scmp.ne.s32.totalorder %s68, %s69
    %p78 = scmp.eq.s32.totalorder %s16, 0
    %p79 = por %p77, %p78
    %p80 = scmp.ne.s32.totalorder %s68, %s69
    %p81 = scmp.eq.s32.totalorder %s17, 1
    %p82 = por %p80, %p81
    %p84 = scmp.ne.s32.totalorder %s69, %s83
    %p85 = scmp.eq.s32.totalorder %s17, 0
    %p86 = por %p84, %p85
    %s88 = sadd.s32 %s87, 1
    %p91 = scmp.eq.s32.totalorder %s11, 1
    %p92 = scmp.ne.s32.totalorder %s87, %s89
    %p93 = scmp.eq.s32.totalorder %s11, 0
    %p94 = por %p92, %p93
    %p95 = scmp.ne.s32.totalorder %s87, %s89
    %p96 = scmp.eq.s32.totalorder %s16, 1
    %p97 = por %p95, %p96
    %p98 = scmp.ne.s32.totalorder %s89, %s90
    %p99 = scmp.eq.s32.totalorder %s16, 0
    %p100 = por %p98, %p99
    %p101 = scmp.ne.s32.totalorder %s89, %s90
    %p102 = scmp.eq.s32.totalorder %s17, 1
    %p103 = por %p101, %p102
    %p105 = scmp.ne.s32.totalorder %s90, %s104
    %p106 = scmp.eq.s32.totalorder %s17, 0
    %p107 = por %p105, %p106
    %s109 = sadd.s32 %s108, 1
    %p112 = scmp.eq.s32.totalorder %s11, 1
    %p113 = scmp.ne.s32.totalorder %s108, %s110
    %p114 = scmp.eq.s32.totalorder %s11, 0
    %p115 = por %p113, %p114
    %p116 = scmp.ne.s32.totalorder %s108, %s110
    %p117 = scmp.eq.s32.totalorder %s16, 1
    %p118 = por %p116, %p117
    %p119 = scmp.ne.s32.totalorder %s110, %s111
    %p120 = scmp.eq.s32.totalorder %s16, 0
    %p121 = por %p119, %p120
    %p122 = scmp.ne.s32.totalorder %s110, %s111
    %p123 = scmp.eq.s32.totalorder %s17, 1
    %p124 = por %p122, %p123
    %p126 = scmp.ne.s32.totalorder %s111, %s125
    %p127 = scmp.eq.s32.totalorder %s17, 0
    %p128 = por %p126, %p127
    %p129 = scmp.le.s32.totalorder 1, %s11
    %p130 = scmp.lt.s32.totalorder %s11, 3
    %p131 = pnand %p129, %p130
    %p132 = pneg %p131
    // Predicated region
    $region9: #{conv_block.6} parent=5 // pred_check
      _
    $region10: #{conv_block.6} parent=5 // pred_check_branch
      %134 = sbr.rel (%p131) target = $region12
    $region11: #{conv_block.6} parent=5 // pred_region
      %s135 = ssub.s32 %s11, 1
      // Predicated region
      $region13: #{conv_block.6} parent=11 // pred_check
        %p136 = pneg %p58
      $region14: #{conv_block.6} parent=11 // pred_check_branch
        %138 = sbr.rel (%p136) target = $region16
      $region15: #{conv_block.6} parent=11 // pred_region
        _
      $region16: #{conv_block.6} parent=11 // pred_fallthru
        _
      // Predicated region
      $region17: #{conv_block.6} parent=11 // pred_check
        %p139 = pneg %p79
      $region18: #{conv_block.6} parent=11 // pred_check_branch
        %141 = sbr.rel (%p139) target = $region20
      $region19: #{conv_block.6} parent=11 // pred_region
        _
      $region20: #{conv_block.6} parent=11 // pred_fallthru
        _
    $region12: #{conv_block.6} parent=5 // pred_fallthru
      _
    %p142 = scmp.lt.s32.totalorder %s11, 2
    // Predicated region
    $region21: #{conv_block.6} parent=5 // pred_check
      %p143 = pneg %p142
    $region22: #{conv_block.6} parent=5 // pred_check_branch
      %145 = sbr.rel (%p143) target = $region24
    $region23: #{conv_block.6} parent=5 // pred_region
      // Predicated region
      $region25: #{conv_block.6} parent=23 // pred_check
        %p146 = pneg %p31
      $region26: #{conv_block.6} parent=23 // pred_check_branch
        %148 = sbr.rel (%p146) target = $region28
      $region27: #{conv_block.6} parent=23 // pred_region
        %p149 = scmp.lt.s32.totalorder %s11, 1
        %s150 = scalar_select %p149, %s11, 1
        %s151 = smul.addr %s150, 3
        %s152 = smul.addr %s151, 8
        %s153 = scalar_lea.vmem %s0, %s152
      $region28: #{conv_block.6} parent=23 // pred_fallthru
        _
    $region24: #{conv_block.6} parent=5 // pred_fallthru
      _
    %p154 = scmp.le.s32.totalorder 1, %s11
    %p155 = scmp.lt.s32.totalorder %s11, 3
    %p156 = pnand %p154, %p155
    %p157 = pneg %p156
    // Predicated region
    $region29: #{conv_block.6} parent=5 // pred_check
      _
    $region30: #{conv_block.6} parent=5 // pred_check_branch
      %159 = sbr.rel (%p156) target = $region32
    $region31: #{conv_block.6} parent=5 // pred_region
      %s160 = ssub.s32 %s11, 1
      %p161 = scmp.lt.s32.totalorder %s16, 1
      %s162 = scalar_select %p161, %s16, 1
      %s163 = smul.addr %s162, 3
      %s164 = smul.addr %s163, 8
      %s165 = scalar_lea.vmem %s0, %s164
      %p166 = pneg %p37
      %p167 = pneg %p34
      %p168 = pneg %p58
      %p169 = pneg %p55
      %p170 = pneg %p79
      %p171 = pneg %p76
      %p172 = pneg %p100
      %p173 = pneg %p97
      %p174 = pneg %p121
      %p175 = pneg %p118
      %p176 = scmp.lt.s32.totalorder %s16, 1
      %s177 = scalar_select %p176, %s16, 1
      %s178 = smul.addr %s177, 3
      %s179 = smul.addr %s178, 8
      %s180 = scalar_lea.vmem %s0, %s179
      %p181 = scmp.eq.s32.totalorder %s16, 0
      // Predicated region
      $region33: #{conv_block.6} parent=31 // pred_check
        %p182 = pneg %p181
      $region34: #{conv_block.6} parent=31 // pred_check_branch
        %184 = sbr.rel (%p182) target = $region36
      $region35: #{conv_block.6} parent=31 // pred_region
        %vm185 = vcmask 7168
        %186 = vst.msk [vmem:[%s3] sm:$0xff] %vm185, 0.0
        %187 = vst.msk [vmem:[%s4] sm:$0xff] %vm185, 0.0
      $region36: #{conv_block.6} parent=31 // pred_fallthru
        _
      %v188 = vld [vmem:[%s180] sm:$0xff]
      %v189 = vld [vmem:[%s180 + $0x8] sm:$0xff]
      %v190 = vld [vmem:[%s180 + $0x10] sm:$0xff]
      %v191 = vld [vmem:[%s1] sm:$0xff]
      %s192 = scalar_lea.vmem %s1, 8
      %v193 = vld [vmem:[%s192] sm:$0xff]
      %197 = vrot.lane.b32.xlu0 %v188, 127
      %v198 = vpop.permute.xlu0 %197
      %199 = vrot.lane.b32.xlu0 %v189, 127
      %v200 = vpop.permute.xlu0 %199
      %201 = vrot.lane.b32.xlu0 %v190, 127
      %v202 = vpop.permute.xlu0 %201
      %vm203 = vcmask 1039360
      %v204 = vsel %vm203, %v198, %v200
      %v205 = vsel %vm203, %v200, %v202
      %vm209 = vcmask 64512
      %v211 = vsel %vm209, %v193, 0
      %213 = vmatprep.subr.mxu0 0.0
      %214 = vmatpush1.msra.mxu0 0.0
      %215 = vmatprep.subr.mxu0 0.0
      %216 = vmatpush1.msra.mxu0 0.0
      %217 = vmatprep.subr.mxu0 0.0
      %218 = vmatpush1.msra.mxu0 0.0
      %219 = vmatprep.subr.mxu0 0.0
      %220 = vmatpush1.msra.mxu0 0.0
      %221 = vmatprep.subr.mxu0 0.0
      %222 = vmatpush1.msra.mxu0 0.0
      %223 = vmatprep.subr.mxu0 0.0
      %224 = vmatpush1.msra.mxu0 0.0
      %225 = vmatprep.subr.mxu0 0.0
      %226 = vmatpush1.msra.mxu0 0.0
      %227 = vmatprep.subr.mxu0 0.0
      %228 = vmatpush1.msra.mxu0 0.0
      %229 = vmatprep.subr.mxu0 0.0
      %230 = vmatpush1.msra.mxu0 0.0
      %231 = vmatprep.subr.mxu0 0.0
      %232 = vmatpush1.msra.mxu0 0.0
      %233 = vmatprep.subr.mxu0 0.0
      %234 = vmatpush1.msra.mxu0 0.0
      %235 = vmatprep.subr.mxu0 0.0
      %236 = vmatpush1.msra.mxu0 0.0
      %237 = vmatprep.subr.mxu0 0.0
      %238 = vmatpush1.msra.mxu0 0.0
      %239 = vmatprep.subr.mxu0 0.0
      %240 = vmatpush1.msra.mxu0 0.0
      %241 = vmatprep.subr.mxu0 0.0
      %242 = vmatpush1.msra.mxu0 0.0
      %243 = vmatprep.subr.mxu0 %v205
      %244 = vmatpush1.msra.mxu0 %v204
      %245 = vmatprep.subr.mxu0 0.0
      %246 = vmatpush2.msra.mxu0 0.0
      %247 = vmatprep.subr.mxu0 0.0
      %248 = vmatpush2.msra.mxu0 0.0
      %249 = vmatprep.subr.mxu0 0.0
      %250 = vmatpush2.msra.mxu0 0.0
      %251 = vmatprep.subr.mxu0 0.0
      %252 = vmatpush2.msra.mxu0 0.0
      %253 = vmatprep.subr.mxu0 0.0
      %254 = vmatpush2.msra.mxu0 0.0
      %255 = vmatprep.subr.mxu0 0.0
      %256 = vmatpush2.msra.mxu0 0.0
      %257 = vmatprep.subr.mxu0 0.0
      %258 = vmatpush2.msra.mxu0 0.0
      %259 = vmatprep.subr.mxu0 0.0
      %260 = vmatpush2.msra.mxu0 0.0
      %261 = vmatprep.subr.mxu0 0.0
      %262 = vmatpush2.msra.mxu0 0.0
      %263 = vmatprep.subr.mxu0 0.0
      %264 = vmatpush2.msra.mxu0 0.0
      %265 = vmatprep.subr.mxu0 0.0
      %266 = vmatpush2.msra.mxu0 0.0
      %267 = vmatprep.subr.mxu0 0.0
      %268 = vmatpush2.msra.mxu0 0.0
      %269 = vmatprep.subr.mxu0 0.0
      %270 = vmatpush2.msra.mxu0 0.0
      %271 = vmatprep.subr.mxu0 0.0
      %272 = vmatpush2.msra.mxu0 0.0
      %273 = vmatprep.subr.mxu0 0.0
      %274 = vmatpush2.msra.mxu0 0.0
      %275 = vmatprep.subr.mxu0 0.0
      %276 = vmatpush2.msra.mxu0 0.0
      %277 = vmatprep.mubr.f32.mxu0 0.0
      %278 = vmatmul.mubr.f32.gmra.mxu0 %v211
      %v279 = vpop.f32.mrf.mxu0
      %v280 = vadd.f32 0.0, %v279
      %v281 = vpop.f32.mrf.mxu0
      %v282 = vadd.f32 0.0, %v281
      %283 = vdwg.mxu0
      %284 = vmatprep.subr.mxu0 0.0
      %285 = vmatpush1.msra.mxu0 0.0
      %286 = vmatprep.subr.mxu0 0.0
      %287 = vmatpush1.msra.mxu0 0.0
      %288 = vmatprep.subr.mxu0 0.0
      %289 = vmatpush1.msra.mxu0 0.0
      %290 = vmatprep.subr.mxu0 0.0
      %291 = vmatpush1.msra.mxu0 0.0
      %292 = vmatprep.subr.mxu0 0.0
      %293 = vmatpush1.msra.mxu0 0.0
      %294 = vmatprep.subr.mxu0 0.0
      %295 = vmatpush1.msra.mxu0 0.0
      %296 = vmatprep.subr.mxu0 0.0
      %297 = vmatpush1.msra.mxu0 0.0
      %298 = vmatprep.subr.mxu0 0.0
      %299 = vmatpush1.msra.mxu0 0.0
      %300 = vmatprep.subr.mxu0 0.0
      %301 = vmatpush1.msra.mxu0 0.0
      %302 = vmatprep.subr.mxu0 0.0
      %303 = vmatpush1.msra.mxu0 0.0
      %304 = vmatprep.subr.mxu0 0.0
      %305 = vmatpush1.msra.mxu0 0.0
      %306 = vmatprep.subr.mxu0 0.0
      %307 = vmatpush1.msra.mxu0 0.0
      %308 = vmatprep.subr.mxu0 0.0
      %309 = vmatpush1.msra.mxu0 0.0
      %310 = vmatprep.subr.mxu0 0.0
      %311 = vmatpush1.msra.mxu0 0.0
      %312 = vmatprep.subr.mxu0 0.0
      %313 = vmatpush1.msra.mxu0 0.0
      %314 = vmatprep.subr.mxu0 0.0
      %315 = vmatpush1.msra.mxu0 %v202
      %316 = vmatprep.subr.mxu0 0.0
      %317 = vmatpush2.msra.mxu0 0.0
      %318 = vmatprep.subr.mxu0 0.0
      %319 = vmatpush2.msra.mxu0 0.0
      %320 = vmatprep.subr.mxu0 0.0
      %321 = vmatpush2.msra.mxu0 0.0
      %322 = vmatprep.subr.mxu0 0.0
      %323 = vmatpush2.msra.mxu0 0.0
      %324 = vmatprep.subr.mxu0 0.0
      %325 = vmatpush2.msra.mxu0 0.0
      %326 = vmatprep.subr.mxu0 0.0
      %327 = vmatpush2.msra.mxu0 0.0
      %328 = vmatprep.subr.mxu0 0.0
      %329 = vmatpush2.msra.mxu0 0.0
      %330 = vmatprep.subr.mxu0 0.0
      %331 = vmatpush2.msra.mxu0 0.0
      %332 = vmatprep.subr.mxu0 0.0
      %333 = vmatpush2.msra.mxu0 0.0
      %334 = vmatprep.subr.mxu0 0.0
      %335 = vmatpush2.msra.mxu0 0.0
      %336 = vmatprep.subr.mxu0 0.0
      %337 = vmatpush2.msra.mxu0 0.0
      %338 = vmatprep.subr.mxu0 0.0
      %339 = vmatpush2.msra.mxu0 0.0
      %340 = vmatprep.subr.mxu0 0.0
      %341 = vmatpush2.msra.mxu0 0.0
      %342 = vmatprep.subr.mxu0 0.0
      %343 = vmatpush2.msra.mxu0 0.0
      %344 = vmatprep.subr.mxu0 0.0
      %345 = vmatpush2.msra.mxu0 0.0
      %346 = vmatprep.subr.mxu0 0.0
      %347 = vmatpush2.msra.mxu0 0.0
      %348 = vmatprep.mubr.f32.mxu0 0.0
      %349 = vmatmul.mubr.f32.gmra.mxu0 %v211
      %v350 = vpop.f32.mrf.mxu0
      %v351 = vadd.f32 0.0, %v350
      %v352 = vpop.f32.mrf.mxu0
      %353 = vdwg.mxu0
      %v355 = vsel %vm209, %v191, 0
      %357 = vmatprep.subr.mxu0 0.0
      %358 = vmatpush1.msra.mxu0 0.0
      %359 = vmatprep.subr.mxu0 0.0
      %360 = vmatpush1.msra.mxu0 0.0
      %361 = vmatprep.subr.mxu0 0.0
      %362 = vmatpush1.msra.mxu0 0.0
      %363 = vmatprep.subr.mxu0 0.0
      %364 = vmatpush1.msra.mxu0 0.0
      %365 = vmatprep.subr.mxu0 0.0
      %366 = vmatpush1.msra.mxu0 0.0
      %367 = vmatprep.subr.mxu0 0.0
      %368 = vmatpush1.msra.mxu0 0.0
      %369 = vmatprep.subr.mxu0 0.0
      %370 = vmatpush1.msra.mxu0 0.0
      %371 = vmatprep.subr.mxu0 0.0
      %372 = vmatpush1.msra.mxu0 0.0
      %373 = vmatprep.subr.mxu0 0.0
      %374 = vmatpush1.msra.mxu0 0.0
      %375 = vmatprep.subr.mxu0 0.0
      %376 = vmatpush1.msra.mxu0 0.0
      %377 = vmatprep.subr.mxu0 0.0
      %378 = vmatpush1.msra.mxu0 0.0
      %379 = vmatprep.subr.mxu0 0.0
      %380 = vmatpush1.msra.mxu0 0.0
      %381 = vmatprep.subr.mxu0 0.0
      %382 = vmatpush1.msra.mxu0 0.0
      %383 = vmatprep.subr.mxu0 0.0
      %384 = vmatpush1.msra.mxu0 0.0
      %385 = vmatprep.subr.mxu0 0.0
      %386 = vmatpush1.msra.mxu0 0.0
      %387 = vmatprep.subr.mxu0 %v189
      %388 = vmatpush1.msra.mxu0 %v188
      %389 = vmatprep.subr.mxu0 0.0
      %390 = vmatpush2.msra.mxu0 0.0
      %391 = vmatprep.subr.mxu0 0.0
      %392 = vmatpush2.msra.mxu0 0.0
      %393 = vmatprep.subr.mxu0 0.0
      %394 = vmatpush2.msra.mxu0 0.0
      %395 = vmatprep.subr.mxu0 0.0
      %396 = vmatpush2.msra.mxu0 0.0
      %397 = vmatprep.subr.mxu0 0.0
      %398 = vmatpush2.msra.mxu0 0.0
      %399 = vmatprep.subr.mxu0 0.0
      %400 = vmatpush2.msra.mxu0 0.0
      %401 = vmatprep.subr.mxu0 0.0
      %402 = vmatpush2.msra.mxu0 0.0
      %403 = vmatprep.subr.mxu0 0.0
      %404 = vmatpush2.msra.mxu0 0.0
      %405 = vmatprep.subr.mxu0 0.0
      %406 = vmatpush2.msra.mxu0 0.0
      %407 = vmatprep.subr.mxu0 0.0
      %408 = vmatpush2.msra.mxu0 0.0
      %409 = vmatprep.subr.mxu0 0.0
      %410 = vmatpush2.msra.mxu0 0.0
      %411 = vmatprep.subr.mxu0 0.0
      %412 = vmatpush2.msra.mxu0 0.0
      %413 = vmatprep.subr.mxu0 0.0
      %414 = vmatpush2.msra.mxu0 0.0
      %415 = vmatprep.subr.mxu0 0.0
      %416 = vmatpush2.msra.mxu0 0.0
      %417 = vmatprep.subr.mxu0 0.0
      %418 = vmatpush2.msra.mxu0 0.0
      %419 = vmatprep.subr.mxu0 0.0
      %420 = vmatpush2.msra.mxu0 0.0
      %421 = vmatprep.mubr.f32.mxu0 0.0
      %422 = vmatmul.mubr.f32.gmra.mxu0 %v355
      %v423 = vpop.f32.mrf.mxu0
      %v424 = vadd.f32 %v280, %v423
      %v425 = vpop.f32.mrf.mxu0
      %v426 = vadd.f32 %v282, %v425
      %427 = vdwg.mxu0
      %428 = vmatprep.subr.mxu0 0.0
      %429 = vmatpush1.msra.mxu0 0.0
      %430 = vmatprep.subr.mxu0 0.0
      %431 = vmatpush1.msra.mxu0 0.0
      %432 = vmatprep.subr.mxu0 0.0
      %433 = vmatpush1.msra.mxu0 0.0
      %434 = vmatprep.subr.mxu0 0.0
      %435 = vmatpush1.msra.mxu0 0.0
      %436 = vmatprep.subr.mxu0 0.0
      %437 = vmatpush1.msra.mxu0 0.0
      %438 = vmatprep.subr.mxu0 0.0
      %439 = vmatpush1.msra.mxu0 0.0
      %440 = vmatprep.subr.mxu0 0.0
      %441 = vmatpush1.msra.mxu0 0.0
      %442 = vmatprep.subr.mxu0 0.0
      %443 = vmatpush1.msra.mxu0 0.0
      %444 = vmatprep.subr.mxu0 0.0
      %445 = vmatpush1.msra.mxu0 0.0
      %446 = vmatprep.subr.mxu0 0.0
      %447 = vmatpush1.msra.mxu0 0.0
      %448 = vmatprep.subr.mxu0 0.0
      %449 = vmatpush1.msra.mxu0 0.0
      %450 = vmatprep.subr.mxu0 0.0
      %451 = vmatpush1.msra.mxu0 0.0
      %452 = vmatprep.subr.mxu0 0.0
      %453 = vmatpush1.msra.mxu0 0.0
      %454 = vmatprep.subr.mxu0 0.0
      %455 = vmatpush1.msra.mxu0 0.0
      %456 = vmatprep.subr.mxu0 0.0
      %457 = vmatpush1.msra.mxu0 0.0
      %458 = vmatprep.subr.mxu0 0.0
      %459 = vmatpush1.msra.mxu0 %v190
      %460 = vmatprep.subr.mxu0 0.0
      %461 = vmatpush2.msra.mxu0 0.0
      %462 = vmatprep.subr.mxu0 0.0
      %463 = vmatpush2.msra.mxu0 0.0
      %464 = vmatprep.subr.mxu0 0.0
      %465 = vmatpush2.msra.mxu0 0.0
      %466 = vmatprep.subr.mxu0 0.0
      %467 = vmatpush2.msra.mxu0 0.0
      %468 = vmatprep.subr.mxu0 0.0
      %469 = vmatpush2.msra.mxu0 0.0
      %470 = vmatprep.subr.mxu0 0.0
      %471 = vmatpush2.msra.mxu0 0.0
      %472 = vmatprep.subr.mxu0 0.0
      %473 = vmatpush2.msra.mxu0 0.0
      %474 = vmatprep.subr.mxu0 0.0
      %475 = vmatpush2.msra.mxu0 0.0
      %476 = vmatprep.subr.mxu0 0.0
      %477 = vmatpush2.msra.mxu0 0.0
      %478 = vmatprep.subr.mxu0 0.0
      %479 = vmatpush2.msra.mxu0 0.0
      %480 = vmatprep.subr.mxu0 0.0
      %481 = vmatpush2.msra.mxu0 0.0
      %482 = vmatprep.subr.mxu0 0.0
      %483 = vmatpush2.msra.mxu0 0.0
      %484 = vmatprep.subr.mxu0 0.0
      %485 = vmatpush2.msra.mxu0 0.0
      %486 = vmatprep.subr.mxu0 0.0
      %487 = vmatpush2.msra.mxu0 0.0
      %488 = vmatprep.subr.mxu0 0.0
      %489 = vmatpush2.msra.mxu0 0.0
      %490 = vmatprep.subr.mxu0 0.0
      %491 = vmatpush2.msra.mxu0 0.0
      %492 = vmatprep.mubr.f32.mxu0 0.0
      %493 = vmatmul.mubr.f32.gmra.mxu0 %v355
      %v494 = vpop.f32.mrf.mxu0
      %v495 = vadd.f32 %v351, %v494
      %v496 = vpop.f32.mrf.mxu0
      %497 = vdwg.mxu0
      %s498 = scalar_lea.vmem %s1, 16
      %v499 = vld [vmem:[%s498] sm:$0xff]
      %500 = vrot.lane.b32.xlu0 %v188, 126
      %v501 = vpop.permute.xlu0 %500
      %502 = vrot.lane.b32.xlu0 %v189, 126
      %v503 = vpop.permute.xlu0 %502
      %504 = vrot.lane.b32.xlu0 %v190, 126
      %v505 = vpop.permute.xlu0 %504
      %vm506 = vcmask 1031168
      %v507 = vsel %vm506, %v501, %v503
      %v508 = vsel %vm506, %v503, %v505
      %v513 = vsel %vm209, %v499, 0
      %515 = vmatprep.subr.mxu0 0.0
      %516 = vmatpush1.msra.mxu0 0.0
      %517 = vmatprep.subr.mxu0 0.0
      %518 = vmatpush1.msra.mxu0 0.0
      %519 = vmatprep.subr.mxu0 0.0
      %520 = vmatpush1.msra.mxu0 0.0
      %521 = vmatprep.subr.mxu0 0.0
      %522 = vmatpush1.msra.mxu0 0.0
      %523 = vmatprep.subr.mxu0 0.0
      %524 = vmatpush1.msra.mxu0 0.0
      %525 = vmatprep.subr.mxu0 0.0
      %526 = vmatpush1.msra.mxu0 0.0
      %527 = vmatprep.subr.mxu0 0.0
      %528 = vmatpush1.msra.mxu0 0.0
      %529 = vmatprep.subr.mxu0 0.0
      %530 = vmatpush1.msra.mxu0 0.0
      %531 = vmatprep.subr.mxu0 0.0
      %532 = vmatpush1.msra.mxu0 0.0
      %533 = vmatprep.subr.mxu0 0.0
      %534 = vmatpush1.msra.mxu0 0.0
      %535 = vmatprep.subr.mxu0 0.0
      %536 = vmatpush1.msra.mxu0 0.0
      %537 = vmatprep.subr.mxu0 0.0
      %538 = vmatpush1.msra.mxu0 0.0
      %539 = vmatprep.subr.mxu0 0.0
      %540 = vmatpush1.msra.mxu0 0.0
      %541 = vmatprep.subr.mxu0 0.0
      %542 = vmatpush1.msra.mxu0 0.0
      %543 = vmatprep.subr.mxu0 0.0
      %544 = vmatpush1.msra.mxu0 0.0
      %545 = vmatprep.subr.mxu0 %v508
      %546 = vmatpush1.msra.mxu0 %v507
      %547 = vmatprep.subr.mxu0 0.0
      %548 = vmatpush2.msra.mxu0 0.0
      %549 = vmatprep.subr.mxu0 0.0
      %550 = vmatpush2.msra.mxu0 0.0
      %551 = vmatprep.subr.mxu0 0.0
      %552 = vmatpush2.msra.mxu0 0.0
      %553 = vmatprep.subr.mxu0 0.0
      %554 = vmatpush2.msra.mxu0 0.0
      %555 = vmatprep.subr.mxu0 0.0
      %556 = vmatpush2.msra.mxu0 0.0
      %557 = vmatprep.subr.mxu0 0.0
      %558 = vmatpush2.msra.mxu0 0.0
      %559 = vmatprep.subr.mxu0 0.0
      %560 = vmatpush2.msra.mxu0 0.0
      %561 = vmatprep.subr.mxu0 0.0
      %562 = vmatpush2.msra.mxu0 0.0
      %563 = vmatprep.subr.mxu0 0.0
      %564 = vmatpush2.msra.mxu0 0.0
      %565 = vmatprep.subr.mxu0 0.0
      %566 = vmatpush2.msra.mxu0 0.0
      %567 = vmatprep.subr.mxu0 0.0
      %568 = vmatpush2.msra.mxu0 0.0
      %569 = vmatprep.subr.mxu0 0.0
      %570 = vmatpush2.msra.mxu0 0.0
      %571 = vmatprep.subr.mxu0 0.0
      %572 = vmatpush2.msra.mxu0 0.0
      %573 = vmatprep.subr.mxu0 0.0
      %574 = vmatpush2.msra.mxu0 0.0
      %575 = vmatprep.subr.mxu0 0.0
      %576 = vmatpush2.msra.mxu0 0.0
      %577 = vmatprep.subr.mxu0 0.0
      %578 = vmatpush2.msra.mxu0 0.0
      %579 = vmatprep.mubr.f32.mxu0 0.0
      %580 = vmatmul.mubr.f32.gmra.mxu0 %v513
      %v581 = vpop.f32.mrf.mxu0
      %v582 = vadd.f32 0.0, %v581
      %v583 = vpop.f32.mrf.mxu0
      %v584 = vadd.f32 0.0, %v583
      %585 = vdwg.mxu0
      %586 = vmatprep.subr.mxu0 0.0
      %587 = vmatpush1.msra.mxu0 0.0
      %588 = vmatprep.subr.mxu0 0.0
      %589 = vmatpush1.msra.mxu0 0.0
      %590 = vmatprep.subr.mxu0 0.0
      %591 = vmatpush1.msra.mxu0 0.0
      %592 = vmatprep.subr.mxu0 0.0
      %593 = vmatpush1.msra.mxu0 0.0
      %594 = vmatprep.subr.mxu0 0.0
      %595 = vmatpush1.msra.mxu0 0.0
      %596 = vmatprep.subr.mxu0 0.0
      %597 = vmatpush1.msra.mxu0 0.0
      %598 = vmatprep.subr.mxu0 0.0
      %599 = vmatpush1.msra.mxu0 0.0
      %600 = vmatprep.subr.mxu0 0.0
      %601 = vmatpush1.msra.mxu0 0.0
      %602 = vmatprep.subr.mxu0 0.0
      %603 = vmatpush1.msra.mxu0 0.0
      %604 = vmatprep.subr.mxu0 0.0
      %605 = vmatpush1.msra.mxu0 0.0
      %606 = vmatprep.subr.mxu0 0.0
      %607 = vmatpush1.msra.mxu0 0.0
      %608 = vmatprep.subr.mxu0 0.0
      %609 = vmatpush1.msra.mxu0 0.0
      %610 = vmatprep.subr.mxu0 0.0
      %611 = vmatpush1.msra.mxu0 0.0
      %612 = vmatprep.subr.mxu0 0.0
      %613 = vmatpush1.msra.mxu0 0.0
      %614 = vmatprep.subr.mxu0 0.0
      %615 = vmatpush1.msra.mxu0 0.0
      %616 = vmatprep.subr.mxu0 0.0
      %617 = vmatpush1.msra.mxu0 %v505
      %618 = vmatprep.subr.mxu0 0.0
      %619 = vmatpush2.msra.mxu0 0.0
      %620 = vmatprep.subr.mxu0 0.0
      %621 = vmatpush2.msra.mxu0 0.0
      %622 = vmatprep.subr.mxu0 0.0
      %623 = vmatpush2.msra.mxu0 0.0
      %624 = vmatprep.subr.mxu0 0.0
      %625 = vmatpush2.msra.mxu0 0.0
      %626 = vmatprep.subr.mxu0 0.0
      %627 = vmatpush2.msra.mxu0 0.0
      %628 = vmatprep.subr.mxu0 0.0
      %629 = vmatpush2.msra.mxu0 0.0
      %630 = vmatprep.subr.mxu0 0.0
      %631 = vmatpush2.msra.mxu0 0.0
      %632 = vmatprep.subr.mxu0 0.0
      %633 = vmatpush2.msra.mxu0 0.0
      %634 = vmatprep.subr.mxu0 0.0
      %635 = vmatpush2.msra.mxu0 0.0
      %636 = vmatprep.subr.mxu0 0.0
      %637 = vmatpush2.msra.mxu0 0.0
      %638 = vmatprep.subr.mxu0 0.0
      %639 = vmatpush2.msra.mxu0 0.0
      %640 = vmatprep.subr.mxu0 0.0
      %641 = vmatpush2.msra.mxu0 0.0
      %642 = vmatprep.subr.mxu0 0.0
      %643 = vmatpush2.msra.mxu0 0.0
      %644 = vmatprep.subr.mxu0 0.0
      %645 = vmatpush2.msra.mxu0 0.0
      %646 = vmatprep.subr.mxu0 0.0
      %647 = vmatpush2.msra.mxu0 0.0
      %648 = vmatprep.subr.mxu0 0.0
      %649 = vmatpush2.msra.mxu0 0.0
      %650 = vmatprep.mubr.f32.mxu0 0.0
      %651 = vmatmul.mubr.f32.gmra.mxu0 %v513
      %v652 = vpop.f32.mrf.mxu0
      %v653 = vadd.f32 0.0, %v652
      %v654 = vpop.f32.mrf.mxu0
      %655 = vdwg.mxu0
      %v656 = vadd.f32 %v424, %v582
      %v657 = vadd.f32 %v426, %v584
      %v658 = vadd.f32 %v495, %v653
      %s659 = scalar_lea.vmem %s1, 24
      %v660 = vld [vmem:[%s659] sm:$0xff]
      %661 = vrot.lane.b32.xlu0 %v188, 110
      %v662 = vpop.permute.xlu0 %661
      %663 = vrot.lane.b32.xlu0 %v189, 110
      %v664 = vpop.permute.xlu0 %663
      %665 = vrot.lane.b32.xlu0 %v190, 110
      %v666 = vpop.permute.xlu0 %665
      %vm667 = vcmask 900096
      %v668 = vsel %vm667, %v662, %v664
      %v669 = vsel %vm667, %v664, %v666
      %v674 = vsel %vm209, %v660, 0
      %676 = vmatprep.subr.mxu0 0.0
      %677 = vmatpush1.msra.mxu0 0.0
      %678 = vmatprep.subr.mxu0 0.0
      %679 = vmatpush1.msra.mxu0 0.0
      %680 = vmatprep.subr.mxu0 0.0
      %681 = vmatpush1.msra.mxu0 0.0
      %682 = vmatprep.subr.mxu0 0.0
      %683 = vmatpush1.msra.mxu0 0.0
      %684 = vmatprep.subr.mxu0 0.0
      %685 = vmatpush1.msra.mxu0 0.0
      %686 = vmatprep.subr.mxu0 0.0
      %687 = vmatpush1.msra.mxu0 0.0
      %688 = vmatprep.subr.mxu0 0.0
      %689 = vmatpush1.msra.mxu0 0.0
      %690 = vmatprep.subr.mxu0 0.0
      %691 = vmatpush1.msra.mxu0 0.0
      %692 = vmatprep.subr.mxu0 0.0
      %693 = vmatpush1.msra.mxu0 0.0
      %694 = vmatprep.subr.mxu0 0.0
      %695 = vmatpush1.msra.mxu0 0.0
      %696 = vmatprep.subr.mxu0 0.0
      %697 = vmatpush1.msra.mxu0 0.0
      %698 = vmatprep.subr.mxu0 0.0
      %699 = vmatpush1.msra.mxu0 0.0
      %700 = vmatprep.subr.mxu0 0.0
      %701 = vmatpush1.msra.mxu0 0.0
      %702 = vmatprep.subr.mxu0 0.0
      %703 = vmatpush1.msra.mxu0 0.0
      %704 = vmatprep.subr.mxu0 0.0
      %705 = vmatpush1.msra.mxu0 0.0
      %706 = vmatprep.subr.mxu0 %v669
      %707 = vmatpush1.msra.mxu0 %v668
      %708 = vmatprep.subr.mxu0 0.0
      %709 = vmatpush2.msra.mxu0 0.0
      %710 = vmatprep.subr.mxu0 0.0
      %711 = vmatpush2.msra.mxu0 0.0
      %712 = vmatprep.subr.mxu0 0.0
      %713 = vmatpush2.msra.mxu0 0.0
      %714 = vmatprep.subr.mxu0 0.0
      %715 = vmatpush2.msra.mxu0 0.0
      %716 = vmatprep.subr.mxu0 0.0
      %717 = vmatpush2.msra.mxu0 0.0
      %718 = vmatprep.subr.mxu0 0.0
      %719 = vmatpush2.msra.mxu0 0.0
      %720 = vmatprep.subr.mxu0 0.0
      %721 = vmatpush2.msra.mxu0 0.0
      %722 = vmatprep.subr.mxu0 0.0
      %723 = vmatpush2.msra.mxu0 0.0
      %724 = vmatprep.subr.mxu0 0.0
      %725 = vmatpush2.msra.mxu0 0.0
      %726 = vmatprep.subr.mxu0 0.0
      %727 = vmatpush2.msra.mxu0 0.0
      %728 = vmatprep.subr.mxu0 0.0
      %729 = vmatpush2.msra.mxu0 0.0
      %730 = vmatprep.subr.mxu0 0.0
      %731 = vmatpush2.msra.mxu0 0.0
      %732 = vmatprep.subr.mxu0 0.0
      %733 = vmatpush2.msra.mxu0 0.0
      %734 = vmatprep.subr.mxu0 0.0
      %735 = vmatpush2.msra.mxu0 0.0
      %736 = vmatprep.subr.mxu0 0.0
      %737 = vmatpush2.msra.mxu0 0.0
      %738 = vmatprep.subr.mxu0 0.0
      %739 = vmatpush2.msra.mxu0 0.0
      %740 = vmatprep.mubr.f32.mxu0 0.0
      %741 = vmatmul.mubr.f32.gmra.mxu0 %v674
      %v742 = vpop.f32.mrf.mxu0
      %v743 = vadd.f32 0.0, %v742
      %v744 = vpop.f32.mrf.mxu0
      %v745 = vadd.f32 0.0, %v744
      %746 = vdwg.mxu0
      %747 = vmatprep.subr.mxu0 0.0
      %748 = vmatpush1.msra.mxu0 0.0
      %749 = vmatprep.subr.mxu0 0.0
      %750 = vmatpush1.msra.mxu0 0.0
      %751 = vmatprep.subr.mxu0 0.0
      %752 = vmatpush1.msra.mxu0 0.0
      %753 = vmatprep.subr.mxu0 0.0
      %754 = vmatpush1.msra.mxu0 0.0
      %755 = vmatprep.subr.mxu0 0.0
      %756 = vmatpush1.msra.mxu0 0.0
      %757 = vmatprep.subr.mxu0 0.0
      %758 = vmatpush1.msra.mxu0 0.0
      %759 = vmatprep.subr.mxu0 0.0
      %760 = vmatpush1.msra.mxu0 0.0
      %761 = vmatprep.subr.mxu0 0.0
      %762 = vmatpush1.msra.mxu0 0.0
      %763 = vmatprep.subr.mxu0 0.0
      %764 = vmatpush1.msra.mxu0 0.0
      %765 = vmatprep.subr.mxu0 0.0
      %766 = vmatpush1.msra.mxu0 0.0
      %767 = vmatprep.subr.mxu0 0.0
      %768 = vmatpush1.msra.mxu0 0.0
      %769 = vmatprep.subr.mxu0 0.0
      %770 = vmatpush1.msra.mxu0 0.0
      %771 = vmatprep.subr.mxu0 0.0
      %772 = vmatpush1.msra.mxu0 0.0
      %773 = vmatprep.subr.mxu0 0.0
      %774 = vmatpush1.msra.mxu0 0.0
      %775 = vmatprep.subr.mxu0 0.0
      %776 = vmatpush1.msra.mxu0 0.0
      %777 = vmatprep.subr.mxu0 0.0
      %778 = vmatpush1.msra.mxu0 %v666
      %779 = vmatprep.subr.mxu0 0.0
      %780 = vmatpush2.msra.mxu0 0.0
      %781 = vmatprep.subr.mxu0 0.0
      %782 = vmatpush2.msra.mxu0 0.0
      %783 = vmatprep.subr.mxu0 0.0
      %784 = vmatpush2.msra.mxu0 0.0
      %785 = vmatprep.subr.mxu0 0.0
      %786 = vmatpush2.msra.mxu0 0.0
      %787 = vmatprep.subr.mxu0 0.0
      %788 = vmatpush2.msra.mxu0 0.0
      %789 = vmatprep.subr.mxu0 0.0
      %790 = vmatpush2.msra.mxu0 0.0
      %791 = vmatprep.subr.mxu0 0.0
      %792 = vmatpush2.msra.mxu0 0.0
      %793 = vmatprep.subr.mxu0 0.0
      %794 = vmatpush2.msra.mxu0 0.0
      %795 = vmatprep.subr.mxu0 0.0
      %796 = vmatpush2.msra.mxu0 0.0
      %797 = vmatprep.subr.mxu0 0.0
      %798 = vmatpush2.msra.mxu0 0.0
      %799 = vmatprep.subr.mxu0 0.0
      %800 = vmatpush2.msra.mxu0 0.0
      %801 = vmatprep.subr.mxu0 0.0
      %802 = vmatpush2.msra.mxu0 0.0
      %803 = vmatprep.subr.mxu0 0.0
      %804 = vmatpush2.msra.mxu0 0.0
      %805 = vmatprep.subr.mxu0 0.0
      %806 = vmatpush2.msra.mxu0 0.0
      %807 = vmatprep.subr.mxu0 0.0
      %808 = vmatpush2.msra.mxu0 0.0
      %809 = vmatprep.subr.mxu0 0.0
      %810 = vmatpush2.msra.mxu0 0.0
      %811 = vmatprep.mubr.f32.mxu0 0.0
      %812 = vmatmul.mubr.f32.gmra.mxu0 %v674
      %v813 = vpop.f32.mrf.mxu0
      %v814 = vadd.f32 0.0, %v813
      %v815 = vpop.f32.mrf.mxu0
      %816 = vdwg.mxu0
      %v817 = vadd.f32 %v656, %v743
      %v818 = vadd.f32 %v657, %v745
      %v819 = vadd.f32 %v658, %v814
      %s820 = scalar_lea.vmem %s1, 32
      %v821 = vld [vmem:[%s820] sm:$0xff]
      %822 = vrot.lane.b32.xlu0 %v188, 109
      %v823 = vpop.permute.xlu0 %822
      %824 = vrot.lane.b32.xlu0 %v189, 109
      %v825 = vpop.permute.xlu0 %824
      %826 = vrot.lane.b32.xlu0 %v190, 109
      %v827 = vpop.permute.xlu0 %826
      %vm828 = vcmask 891904
      %v829 = vsel %vm828, %v823, %v825
      %v830 = vsel %vm828, %v825, %v827
      %v835 = vsel %vm209, %v821, 0
      %837 = vmatprep.subr.mxu0 0.0
      %838 = vmatpush1.msra.mxu0 0.0
      %839 = vmatprep.subr.mxu0 0.0
      %840 = vmatpush1.msra.mxu0 0.0
      %841 = vmatprep.subr.mxu0 0.0
      %842 = vmatpush1.msra.mxu0 0.0
      %843 = vmatprep.subr.mxu0 0.0
      %844 = vmatpush1.msra.mxu0 0.0
      %845 = vmatprep.subr.mxu0 0.0
      %846 = vmatpush1.msra.mxu0 0.0
      %847 = vmatprep.subr.mxu0 0.0
      %848 = vmatpush1.msra.mxu0 0.0
      %849 = vmatprep.subr.mxu0 0.0
      %850 = vmatpush1.msra.mxu0 0.0
      %851 = vmatprep.subr.mxu0 0.0
      %852 = vmatpush1.msra.mxu0 0.0
      %853 = vmatprep.subr.mxu0 0.0
      %854 = vmatpush1.msra.mxu0 0.0
      %855 = vmatprep.subr.mxu0 0.0
      %856 = vmatpush1.msra.mxu0 0.0
      %857 = vmatprep.subr.mxu0 0.0
      %858 = vmatpush1.msra.mxu0 0.0
      %859 = vmatprep.subr.mxu0 0.0
      %860 = vmatpush1.msra.mxu0 0.0
      %861 = vmatprep.subr.mxu0 0.0
      %862 = vmatpush1.msra.mxu0 0.0
      %863 = vmatprep.subr.mxu0 0.0
      %864 = vmatpush1.msra.mxu0 0.0
      %865 = vmatprep.subr.mxu0 0.0
      %866 = vmatpush1.msra.mxu0 0.0
      %867 = vmatprep.subr.mxu0 %v830
      %868 = vmatpush1.msra.mxu0 %v829
      %869 = vmatprep.subr.mxu0 0.0
      %870 = vmatpush2.msra.mxu0 0.0
      %871 = vmatprep.subr.mxu0 0.0
      %872 = vmatpush2.msra.mxu0 0.0
      %873 = vmatprep.subr.mxu0 0.0
      %874 = vmatpush2.msra.mxu0 0.0
      %875 = vmatprep.subr.mxu0 0.0
      %876 = vmatpush2.msra.mxu0 0.0
      %877 = vmatprep.subr.mxu0 0.0
      %878 = vmatpush2.msra.mxu0 0.0
      %879 = vmatprep.subr.mxu0 0.0
      %880 = vmatpush2.msra.mxu0 0.0
      %881 = vmatprep.subr.mxu0 0.0
      %882 = vmatpush2.msra.mxu0 0.0
      %883 = vmatprep.subr.mxu0 0.0
      %884 = vmatpush2.msra.mxu0 0.0
      %885 = vmatprep.subr.mxu0 0.0
      %886 = vmatpush2.msra.mxu0 0.0
      %887 = vmatprep.subr.mxu0 0.0
      %888 = vmatpush2.msra.mxu0 0.0
      %889 = vmatprep.subr.mxu0 0.0
      %890 = vmatpush2.msra.mxu0 0.0
      %891 = vmatprep.subr.mxu0 0.0
      %892 = vmatpush2.msra.mxu0 0.0
      %893 = vmatprep.subr.mxu0 0.0
      %894 = vmatpush2.msra.mxu0 0.0
      %895 = vmatprep.subr.mxu0 0.0
      %896 = vmatpush2.msra.mxu0 0.0
      %897 = vmatprep.subr.mxu0 0.0
      %898 = vmatpush2.msra.mxu0 0.0
      %899 = vmatprep.subr.mxu0 0.0
      %900 = vmatpush2.msra.mxu0 0.0
      %901 = vmatprep.mubr.f32.mxu0 0.0
      %902 = vmatmul.mubr.f32.gmra.mxu0 %v835
      %v903 = vpop.f32.mrf.mxu0
      %v904 = vadd.f32 0.0, %v903
      %v905 = vpop.f32.mrf.mxu0
      %v906 = vadd.f32 0.0, %v905
      %907 = vdwg.mxu0
      %908 = vmatprep.subr.mxu0 0.0
      %909 = vmatpush1.msra.mxu0 0.0
      %910 = vmatprep.subr.mxu0 0.0
      %911 = vmatpush1.msra.mxu0 0.0
      %912 = vmatprep.subr.mxu0 0.0
      %913 = vmatpush1.msra.mxu0 0.0
      %914 = vmatprep.subr.mxu0 0.0
      %915 = vmatpush1.msra.mxu0 0.0
      %916 = vmatprep.subr.mxu0 0.0
      %917 = vmatpush1.msra.mxu0 0.0
      %918 = vmatprep.subr.mxu0 0.0
      %919 = vmatpush1.msra.mxu0 0.0
      %920 = vmatprep.subr.mxu0 0.0
      %921 = vmatpush1.msra.mxu0 0.0
      %922 = vmatprep.subr.mxu0 0.0
      %923 = vmatpush1.msra.mxu0 0.0
      %924 = vmatprep.subr.mxu0 0.0
      %925 = vmatpush1.msra.mxu0 0.0
      %926 = vmatprep.subr.mxu0 0.0
      %927 = vmatpush1.msra.mxu0 0.0
      %928 = vmatprep.subr.mxu0 0.0
      %929 = vmatpush1.msra.mxu0 0.0
      %930 = vmatprep.subr.mxu0 0.0
      %931 = vmatpush1.msra.mxu0 0.0
      %932 = vmatprep.subr.mxu0 0.0
      %933 = vmatpush1.msra.mxu0 0.0
      %934 = vmatprep.subr.mxu0 0.0
      %935 = vmatpush1.msra.mxu0 0.0
      %936 = vmatprep.subr.mxu0 0.0
      %937 = vmatpush1.msra.mxu0 0.0
      %938 = vmatprep.subr.mxu0 0.0
      %939 = vmatpush1.msra.mxu0 %v827
      %940 = vmatprep.subr.mxu0 0.0
      %941 = vmatpush2.msra.mxu0 0.0
      %942 = vmatprep.subr.mxu0 0.0
      %943 = vmatpush2.msra.mxu0 0.0
      %944 = vmatprep.subr.mxu0 0.0
      %945 = vmatpush2.msra.mxu0 0.0
      %946 = vmatprep.subr.mxu0 0.0
      %947 = vmatpush2.msra.mxu0 0.0
      %948 = vmatprep.subr.mxu0 0.0
      %949 = vmatpush2.msra.mxu0 0.0
      %950 = vmatprep.subr.mxu0 0.0
      %951 = vmatpush2.msra.mxu0 0.0
      %952 = vmatprep.subr.mxu0 0.0
      %953 = vmatpush2.msra.mxu0 0.0
      %954 = vmatprep.subr.mxu0 0.0
      %955 = vmatpush2.msra.mxu0 0.0
      %956 = vmatprep.subr.mxu0 0.0
      %957 = vmatpush2.msra.mxu0 0.0
      %958 = vmatprep.subr.mxu0 0.0
      %959 = vmatpush2.msra.mxu0 0.0
      %960 = vmatprep.subr.mxu0 0.0
      %961 = vmatpush2.msra.mxu0 0.0
      %962 = vmatprep.subr.mxu0 0.0
      %963 = vmatpush2.msra.mxu0 0.0
      %964 = vmatprep.subr.mxu0 0.0
      %965 = vmatpush2.msra.mxu0 0.0
      %966 = vmatprep.subr.mxu0 0.0
      %967 = vmatpush2.msra.mxu0 0.0
      %968 = vmatprep.subr.mxu0 0.0
      %969 = vmatpush2.msra.mxu0 0.0
      %970 = vmatprep.subr.mxu0 0.0
      %971 = vmatpush2.msra.mxu0 0.0
      %972 = vmatprep.mubr.f32.mxu0 0.0
      %973 = vmatmul.mubr.f32.gmra.mxu0 %v835
      %v974 = vpop.f32.mrf.mxu0
      %v975 = vadd.f32 0.0, %v974
      %v976 = vpop.f32.mrf.mxu0
      %977 = vdwg.mxu0
      %v978 = vadd.f32 %v817, %v904
      %v979 = vadd.f32 %v818, %v906
      %v980 = vadd.f32 %v819, %v975
      %s981 = scalar_lea.vmem %s1, 40
      %v982 = vld [vmem:[%s981] sm:$0xff]
      %983 = vrot.lane.b32.xlu0 %v188, 108
      %v984 = vpop.permute.xlu0 %983
      %985 = vrot.lane.b32.xlu0 %v189, 108
      %v986 = vpop.permute.xlu0 %985
      %987 = vrot.lane.b32.xlu0 %v190, 108
      %v988 = vpop.permute.xlu0 %987
      %vm989 = vcmask 883712
      %v990 = vsel %vm989, %v984, %v986
      %v991 = vsel %vm989, %v986, %v988
      %v996 = vsel %vm209, %v982, 0
      %998 = vmatprep.subr.mxu0 0.0
      %999 = vmatpush1.msra.mxu0 0.0
      %1000 = vmatprep.subr.mxu0 0.0
      %1001 = vmatpush1.msra.mxu0 0.0
      %1002 = vmatprep.subr.mxu0 0.0
      %1003 = vmatpush1.msra.mxu0 0.0
      %1004 = vmatprep.subr.mxu0 0.0
      %1005 = vmatpush1.msra.mxu0 0.0
      %1006 = vmatprep.subr.mxu0 0.0
      %1007 = vmatpush1.msra.mxu0 0.0
      %1008 = vmatprep.subr.mxu0 0.0
      %1009 = vmatpush1.msra.mxu0 0.0
      %1010 = vmatprep.subr.mxu0 0.0
      %1011 = vmatpush1.msra.mxu0 0.0
      %1012 = vmatprep.subr.mxu0 0.0
      %1013 = vmatpush1.msra.mxu0 0.0
      %1014 = vmatprep.subr.mxu0 0.0
      %1015 = vmatpush1.msra.mxu0 0.0
      %1016 = vmatprep.subr.mxu0 0.0
      %1017 = vmatpush1.msra.mxu0 0.0
      %1018 = vmatprep.subr.mxu0 0.0
      %1019 = vmatpush1.msra.mxu0 0.0
      %1020 = vmatprep.subr.mxu0 0.0
      %1021 = vmatpush1.msra.mxu0 0.0
      %1022 = vmatprep.subr.mxu0 0.0
      %1023 = vmatpush1.msra.mxu0 0.0
      %1024 = vmatprep.subr.mxu0 0.0
      %1025 = vmatpush1.msra.mxu0 0.0
      %1026 = vmatprep.subr.mxu0 0.0
      %1027 = vmatpush1.msra.mxu0 0.0
      %1028 = vmatprep.subr.mxu0 %v991
      %1029 = vmatpush1.msra.mxu0 %v990
      %1030 = vmatprep.subr.mxu0 0.0
      %1031 = vmatpush2.msra.mxu0 0.0
      %1032 = vmatprep.subr.mxu0 0.0
      %1033 = vmatpush2.msra.mxu0 0.0
      %1034 = vmatprep.subr.mxu0 0.0
      %1035 = vmatpush2.msra.mxu0 0.0
      %1036 = vmatprep.subr.mxu0 0.0
      %1037 = vmatpush2.msra.mxu0 0.0
      %1038 = vmatprep.subr.mxu0 0.0
      %1039 = vmatpush2.msra.mxu0 0.0
      %1040 = vmatprep.subr.mxu0 0.0
      %1041 = vmatpush2.msra.mxu0 0.0
      %1042 = vmatprep.subr.mxu0 0.0
      %1043 = vmatpush2.msra.mxu0 0.0
      %1044 = vmatprep.subr.mxu0 0.0
      %1045 = vmatpush2.msra.mxu0 0.0
      %1046 = vmatprep.subr.mxu0 0.0
      %1047 = vmatpush2.msra.mxu0 0.0
      %1048 = vmatprep.subr.mxu0 0.0
      %1049 = vmatpush2.msra.mxu0 0.0
      %1050 = vmatprep.subr.mxu0 0.0
      %1051 = vmatpush2.msra.mxu0 0.0
      %1052 = vmatprep.subr.mxu0 0.0
      %1053 = vmatpush2.msra.mxu0 0.0
      %1054 = vmatprep.subr.mxu0 0.0
      %1055 = vmatpush2.msra.mxu0 0.0
      %1056 = vmatprep.subr.mxu0 0.0
      %1057 = vmatpush2.msra.mxu0 0.0
      %1058 = vmatprep.subr.mxu0 0.0
      %1059 = vmatpush2.msra.mxu0 0.0
      %1060 = vmatprep.subr.mxu0 0.0
      %1061 = vmatpush2.msra.mxu0 0.0
      %1062 = vmatprep.mubr.f32.mxu0 0.0
      %1063 = vmatmul.mubr.f32.gmra.mxu0 %v996
      %v1064 = vpop.f32.mrf.mxu0
      %v1065 = vadd.f32 0.0, %v1064
      %v1066 = vpop.f32.mrf.mxu0
      %v1067 = vadd.f32 0.0, %v1066
      %1068 = vdwg.mxu0
      %1069 = vmatprep.subr.mxu0 0.0
      %1070 = vmatpush1.msra.mxu0 0.0
      %1071 = vmatprep.subr.mxu0 0.0
      %1072 = vmatpush1.msra.mxu0 0.0
      %1073 = vmatprep.subr.mxu0 0.0
      %1074 = vmatpush1.msra.mxu0 0.0
      %1075 = vmatprep.subr.mxu0 0.0
      %1076 = vmatpush1.msra.mxu0 0.0
      %1077 = vmatprep.subr.mxu0 0.0
      %1078 = vmatpush1.msra.mxu0 0.0
      %1079 = vmatprep.subr.mxu0 0.0
      %1080 = vmatpush1.msra.mxu0 0.0
      %1081 = vmatprep.subr.mxu0 0.0
      %1082 = vmatpush1.msra.mxu0 0.0
      %1083 = vmatprep.subr.mxu0 0.0
      %1084 = vmatpush1.msra.mxu0 0.0
      %1085 = vmatprep.subr.mxu0 0.0
      %1086 = vmatpush1.msra.mxu0 0.0
      %1087 = vmatprep.subr.mxu0 0.0
      %1088 = vmatpush1.msra.mxu0 0.0
      %1089 = vmatprep.subr.mxu0 0.0
      %1090 = vmatpush1.msra.mxu0 0.0
      %1091 = vmatprep.subr.mxu0 0.0
      %1092 = vmatpush1.msra.mxu0 0.0
      %1093 = vmatprep.subr.mxu0 0.0
      %1094 = vmatpush1.msra.mxu0 0.0
      %1095 = vmatprep.subr.mxu0 0.0
      %1096 = vmatpush1.msra.mxu0 0.0
      %1097 = vmatprep.subr.mxu0 0.0
      %1098 = vmatpush1.msra.mxu0 0.0
      %1099 = vmatprep.subr.mxu0 0.0
      %1100 = vmatpush1.msra.mxu0 %v988
      %1101 = vmatprep.subr.mxu0 0.0
      %1102 = vmatpush2.msra.mxu0 0.0
      %1103 = vmatprep.subr.mxu0 0.0
      %1104 = vmatpush2.msra.mxu0 0.0
      %1105 = vmatprep.subr.mxu0 0.0
      %1106 = vmatpush2.msra.mxu0 0.0
      %1107 = vmatprep.subr.mxu0 0.0
      %1108 = vmatpush2.msra.mxu0 0.0
      %1109 = vmatprep.subr.mxu0 0.0
      %1110 = vmatpush2.msra.mxu0 0.0
      %1111 = vmatprep.subr.mxu0 0.0
      %1112 = vmatpush2.msra.mxu0 0.0
      %1113 = vmatprep.subr.mxu0 0.0
      %1114 = vmatpush2.msra.mxu0 0.0
      %1115 = vmatprep.subr.mxu0 0.0
      %1116 = vmatpush2.msra.mxu0 0.0
      %1117 = vmatprep.subr.mxu0 0.0
      %1118 = vmatpush2.msra.mxu0 0.0
      %1119 = vmatprep.subr.mxu0 0.0
      %1120 = vmatpush2.msra.mxu0 0.0
      %1121 = vmatprep.subr.mxu0 0.0
      %1122 = vmatpush2.msra.mxu0 0.0
      %1123 = vmatprep.subr.mxu0 0.0
      %1124 = vmatpush2.msra.mxu0 0.0
      %1125 = vmatprep.subr.mxu0 0.0
      %1126 = vmatpush2.msra.mxu0 0.0
      %1127 = vmatprep.subr.mxu0 0.0
      %1128 = vmatpush2.msra.mxu0 0.0
      %1129 = vmatprep.subr.mxu0 0.0
      %1130 = vmatpush2.msra.mxu0 0.0
      %1131 = vmatprep.subr.mxu0 0.0
      %1132 = vmatpush2.msra.mxu0 0.0
      %1133 = vmatprep.mubr.f32.mxu0 0.0
      %1134 = vmatmul.mubr.f32.gmra.mxu0 %v996
      %v1135 = vpop.f32.mrf.mxu0
      %v1136 = vadd.f32 0.0, %v1135
      %v1137 = vpop.f32.mrf.mxu0
      %1138 = vdwg.mxu0
      %v1139 = vadd.f32 %v978, %v1065
      %v1140 = vadd.f32 %v979, %v1067
      %v1141 = vadd.f32 %v980, %v1136
      %s1142 = scalar_lea.vmem %s1, 48
      %v1143 = vld [vmem:[%s1142] sm:$0xff]
      %1144 = vrot.lane.b32.xlu0 %v188, 92
      %v1145 = vpop.permute.xlu0 %1144
      %1146 = vrot.lane.b32.xlu0 %v189, 92
      %v1147 = vpop.permute.xlu0 %1146
      %1148 = vrot.lane.b32.xlu0 %v190, 92
      %v1149 = vpop.permute.xlu0 %1148
      %vm1150 = vcmask 752640
      %v1151 = vsel %vm1150, %v1145, %v1147
      %v1152 = vsel %vm1150, %v1147, %v1149
      %v1157 = vsel %vm209, %v1143, 0
      %1159 = vmatprep.subr.mxu0 0.0
      %1160 = vmatpush1.msra.mxu0 0.0
      %1161 = vmatprep.subr.mxu0 0.0
      %1162 = vmatpush1.msra.mxu0 0.0
      %1163 = vmatprep.subr.mxu0 0.0
      %1164 = vmatpush1.msra.mxu0 0.0
      %1165 = vmatprep.subr.mxu0 0.0
      %1166 = vmatpush1.msra.mxu0 0.0
      %1167 = vmatprep.subr.mxu0 0.0
      %1168 = vmatpush1.msra.mxu0 0.0
      %1169 = vmatprep.subr.mxu0 0.0
      %1170 = vmatpush1.msra.mxu0 0.0
      %1171 = vmatprep.subr.mxu0 0.0
      %1172 = vmatpush1.msra.mxu0 0.0
      %1173 = vmatprep.subr.mxu0 0.0
      %1174 = vmatpush1.msra.mxu0 0.0
      %1175 = vmatprep.subr.mxu0 0.0
      %1176 = vmatpush1.msra.mxu0 0.0
      %1177 = vmatprep.subr.mxu0 0.0
      %1178 = vmatpush1.msra.mxu0 0.0
      %1179 = vmatprep.subr.mxu0 0.0
      %1180 = vmatpush1.msra.mxu0 0.0
      %1181 = vmatprep.subr.mxu0 0.0
      %1182 = vmatpush1.msra.mxu0 0.0
      %1183 = vmatprep.subr.mxu0 0.0
      %1184 = vmatpush1.msra.mxu0 0.0
      %1185 = vmatprep.subr.mxu0 0.0
      %1186 = vmatpush1.msra.mxu0 0.0
      %1187 = vmatprep.subr.mxu0 0.0
      %1188 = vmatpush1.msra.mxu0 0.0
      %1189 = vmatprep.subr.mxu0 %v1152
      %1190 = vmatpush1.msra.mxu0 %v1151
      %1191 = vmatprep.subr.mxu0 0.0
      %1192 = vmatpush2.msra.mxu0 0.0
      %1193 = vmatprep.subr.mxu0 0.0
      %1194 = vmatpush2.msra.mxu0 0.0
      %1195 = vmatprep.subr.mxu0 0.0
      %1196 = vmatpush2.msra.mxu0 0.0
      %1197 = vmatprep.subr.mxu0 0.0
      %1198 = vmatpush2.msra.mxu0 0.0
      %1199 = vmatprep.subr.mxu0 0.0
      %1200 = vmatpush2.msra.mxu0 0.0
      %1201 = vmatprep.subr.mxu0 0.0
      %1202 = vmatpush2.msra.mxu0 0.0
      %1203 = vmatprep.subr.mxu0 0.0
      %1204 = vmatpush2.msra.mxu0 0.0
      %1205 = vmatprep.subr.mxu0 0.0
      %1206 = vmatpush2.msra.mxu0 0.0
      %1207 = vmatprep.subr.mxu0 0.0
      %1208 = vmatpush2.msra.mxu0 0.0
      %1209 = vmatprep.subr.mxu0 0.0
      %1210 = vmatpush2.msra.mxu0 0.0
      %1211 = vmatprep.subr.mxu0 0.0
      %1212 = vmatpush2.msra.mxu0 0.0
      %1213 = vmatprep.subr.mxu0 0.0
      %1214 = vmatpush2.msra.mxu0 0.0
      %1215 = vmatprep.subr.mxu0 0.0
      %1216 = vmatpush2.msra.mxu0 0.0
      %1217 = vmatprep.subr.mxu0 0.0
      %1218 = vmatpush2.msra.mxu0 0.0
      %1219 = vmatprep.subr.mxu0 0.0
      %1220 = vmatpush2.msra.mxu0 0.0
      %1221 = vmatprep.subr.mxu0 0.0
      %1222 = vmatpush2.msra.mxu0 0.0
      %1223 = vmatprep.mubr.f32.mxu0 0.0
      %1224 = vmatmul.mubr.f32.gmra.mxu0 %v1157
      %v1225 = vpop.f32.mrf.mxu0
      %v1226 = vadd.f32 0.0, %v1225
      %v1227 = vpop.f32.mrf.mxu0
      %v1228 = vadd.f32 0.0, %v1227
      %1229 = vdwg.mxu0
      %1230 = vmatprep.subr.mxu0 0.0
      %1231 = vmatpush1.msra.mxu0 0.0
      %1232 = vmatprep.subr.mxu0 0.0
      %1233 = vmatpush1.msra.mxu0 0.0
      %1234 = vmatprep.subr.mxu0 0.0
      %1235 = vmatpush1.msra.mxu0 0.0
      %1236 = vmatprep.subr.mxu0 0.0
      %1237 = vmatpush1.msra.mxu0 0.0
      %1238 = vmatprep.subr.mxu0 0.0
      %1239 = vmatpush1.msra.mxu0 0.0
      %1240 = vmatprep.subr.mxu0 0.0
      %1241 = vmatpush1.msra.mxu0 0.0
      %1242 = vmatprep.subr.mxu0 0.0
      %1243 = vmatpush1.msra.mxu0 0.0
      %1244 = vmatprep.subr.mxu0 0.0
      %1245 = vmatpush1.msra.mxu0 0.0
      %1246 = vmatprep.subr.mxu0 0.0
      %1247 = vmatpush1.msra.mxu0 0.0
      %1248 = vmatprep.subr.mxu0 0.0
      %1249 = vmatpush1.msra.mxu0 0.0
      %1250 = vmatprep.subr.mxu0 0.0
      %1251 = vmatpush1.msra.mxu0 0.0
      %1252 = vmatprep.subr.mxu0 0.0
      %1253 = vmatpush1.msra.mxu0 0.0
      %1254 = vmatprep.subr.mxu0 0.0
      %1255 = vmatpush1.msra.mxu0 0.0
      %1256 = vmatprep.subr.mxu0 0.0
      %1257 = vmatpush1.msra.mxu0 0.0
      %1258 = vmatprep.subr.mxu0 0.0
      %1259 = vmatpush1.msra.mxu0 0.0
      %1260 = vmatprep.subr.mxu0 0.0
      %1261 = vmatpush1.msra.mxu0 %v1149
      %1262 = vmatprep.subr.mxu0 0.0
      %1263 = vmatpush2.msra.mxu0 0.0
      %1264 = vmatprep.subr.mxu0 0.0
      %1265 = vmatpush2.msra.mxu0 0.0
      %1266 = vmatprep.subr.mxu0 0.0
      %1267 = vmatpush2.msra.mxu0 0.0
      %1268 = vmatprep.subr.mxu0 0.0
      %1269 = vmatpush2.msra.mxu0 0.0
      %1270 = vmatprep.subr.mxu0 0.0
      %1271 = vmatpush2.msra.mxu0 0.0
      %1272 = vmatprep.subr.mxu0 0.0
      %1273 = vmatpush2.msra.mxu0 0.0
      %1274 = vmatprep.subr.mxu0 0.0
      %1275 = vmatpush2.msra.mxu0 0.0
      %1276 = vmatprep.subr.mxu0 0.0
      %1277 = vmatpush2.msra.mxu0 0.0
      %1278 = vmatprep.subr.mxu0 0.0
      %1279 = vmatpush2.msra.mxu0 0.0
      %1280 = vmatprep.subr.mxu0 0.0
      %1281 = vmatpush2.msra.mxu0 0.0
      %1282 = vmatprep.subr.mxu0 0.0
      %1283 = vmatpush2.msra.mxu0 0.0
      %1284 = vmatprep.subr.mxu0 0.0
      %1285 = vmatpush2.msra.mxu0 0.0
      %1286 = vmatprep.subr.mxu0 0.0
      %1287 = vmatpush2.msra.mxu0 0.0
      %1288 = vmatprep.subr.mxu0 0.0
      %1289 = vmatpush2.msra.mxu0 0.0
      %1290 = vmatprep.subr.mxu0 0.0
      %1291 = vmatpush2.msra.mxu0 0.0
      %1292 = vmatprep.subr.mxu0 0.0
      %1293 = vmatpush2.msra.mxu0 0.0
      %1294 = vmatprep.mubr.f32.mxu0 0.0
      %1295 = vmatmul.mubr.f32.gmra.mxu0 %v1157
      %v1296 = vpop.f32.mrf.mxu0
      %v1297 = vadd.f32 0.0, %v1296
      %v1298 = vpop.f32.mrf.mxu0
      %1299 = vdwg.mxu0
      %v1300 = vadd.f32 %v1139, %v1226
      %v1301 = vadd.f32 %v1140, %v1228
      %v1302 = vadd.f32 %v1141, %v1297
      %s1303 = scalar_lea.vmem %s1, 56
      %v1304 = vld [vmem:[%s1303] sm:$0xff]
      %1305 = vrot.lane.b32.xlu0 %v188, 91
      %v1306 = vpop.permute.xlu0 %1305
      %1307 = vrot.lane.b32.xlu0 %v189, 91
      %v1308 = vpop.permute.xlu0 %1307
      %1309 = vrot.lane.b32.xlu0 %v190, 91
      %v1310 = vpop.permute.xlu0 %1309
      %vm1311 = vcmask 744448
      %v1312 = vsel %vm1311, %v1306, %v1308
      %v1313 = vsel %vm1311, %v1308, %v1310
      %v1318 = vsel %vm209, %v1304, 0
      %1320 = vmatprep.subr.mxu0 0.0
      %1321 = vmatpush1.msra.mxu0 0.0
      %1322 = vmatprep.subr.mxu0 0.0
      %1323 = vmatpush1.msra.mxu0 0.0
      %1324 = vmatprep.subr.mxu0 0.0
      %1325 = vmatpush1.msra.mxu0 0.0
      %1326 = vmatprep.subr.mxu0 0.0
      %1327 = vmatpush1.msra.mxu0 0.0
      %1328 = vmatprep.subr.mxu0 0.0
      %1329 = vmatpush1.msra.mxu0 0.0
      %1330 = vmatprep.subr.mxu0 0.0
      %1331 = vmatpush1.msra.mxu0 0.0
      %1332 = vmatprep.subr.mxu0 0.0
      %1333 = vmatpush1.msra.mxu0 0.0
      %1334 = vmatprep.subr.mxu0 0.0
      %1335 = vmatpush1.msra.mxu0 0.0
      %1336 = vmatprep.subr.mxu0 0.0
      %1337 = vmatpush1.msra.mxu0 0.0
      %1338 = vmatprep.subr.mxu0 0.0
      %1339 = vmatpush1.msra.mxu0 0.0
      %1340 = vmatprep.subr.mxu0 0.0
      %1341 = vmatpush1.msra.mxu0 0.0
      %1342 = vmatprep.subr.mxu0 0.0
      %1343 = vmatpush1.msra.mxu0 0.0
      %1344 = vmatprep.subr.mxu0 0.0
      %1345 = vmatpush1.msra.mxu0 0.0
      %1346 = vmatprep.subr.mxu0 0.0
      %1347 = vmatpush1.msra.mxu0 0.0
      %1348 = vmatprep.subr.mxu0 0.0
      %1349 = vmatpush1.msra.mxu0 0.0
      %1350 = vmatprep.subr.mxu0 %v1313
      %1351 = vmatpush1.msra.mxu0 %v1312
      %1352 = vmatprep.subr.mxu0 0.0
      %1353 = vmatpush2.msra.mxu0 0.0
      %1354 = vmatprep.subr.mxu0 0.0
      %1355 = vmatpush2.msra.mxu0 0.0
      %1356 = vmatprep.subr.mxu0 0.0
      %1357 = vmatpush2.msra.mxu0 0.0
      %1358 = vmatprep.subr.mxu0 0.0
      %1359 = vmatpush2.msra.mxu0 0.0
      %1360 = vmatprep.subr.mxu0 0.0
      %1361 = vmatpush2.msra.mxu0 0.0
      %1362 = vmatprep.subr.mxu0 0.0
      %1363 = vmatpush2.msra.mxu0 0.0
      %1364 = vmatprep.subr.mxu0 0.0
      %1365 = vmatpush2.msra.mxu0 0.0
      %1366 = vmatprep.subr.mxu0 0.0
      %1367 = vmatpush2.msra.mxu0 0.0
      %1368 = vmatprep.subr.mxu0 0.0
      %1369 = vmatpush2.msra.mxu0 0.0
      %1370 = vmatprep.subr.mxu0 0.0
      %1371 = vmatpush2.msra.mxu0 0.0
      %1372 = vmatprep.subr.mxu0 0.0
      %1373 = vmatpush2.msra.mxu0 0.0
      %1374 = vmatprep.subr.mxu0 0.0
      %1375 = vmatpush2.msra.mxu0 0.0
      %1376 = vmatprep.subr.mxu0 0.0
      %1377 = vmatpush2.msra.mxu0 0.0
      %1378 = vmatprep.subr.mxu0 0.0
      %1379 = vmatpush2.msra.mxu0 0.0
      %1380 = vmatprep.subr.mxu0 0.0
      %1381 = vmatpush2.msra.mxu0 0.0
      %1382 = vmatprep.subr.mxu0 0.0
      %1383 = vmatpush2.msra.mxu0 0.0
      %1384 = vmatprep.mubr.f32.mxu0 0.0
      %1385 = vmatmul.mubr.f32.gmra.mxu0 %v1318
      %v1386 = vpop.f32.mrf.mxu0
      %v1387 = vadd.f32 0.0, %v1386
      %v1388 = vpop.f32.mrf.mxu0
      %v1389 = vadd.f32 0.0, %v1388
      %1390 = vdwg.mxu0
      %1391 = vmatprep.subr.mxu0 0.0
      %1392 = vmatpush1.msra.mxu0 0.0
      %1393 = vmatprep.subr.mxu0 0.0
      %1394 = vmatpush1.msra.mxu0 0.0
      %1395 = vmatprep.subr.mxu0 0.0
      %1396 = vmatpush1.msra.mxu0 0.0
      %1397 = vmatprep.subr.mxu0 0.0
      %1398 = vmatpush1.msra.mxu0 0.0
      %1399 = vmatprep.subr.mxu0 0.0
      %1400 = vmatpush1.msra.mxu0 0.0
      %1401 = vmatprep.subr.mxu0 0.0
      %1402 = vmatpush1.msra.mxu0 0.0
      %1403 = vmatprep.subr.mxu0 0.0
      %1404 = vmatpush1.msra.mxu0 0.0
      %1405 = vmatprep.subr.mxu0 0.0
      %1406 = vmatpush1.msra.mxu0 0.0
      %1407 = vmatprep.subr.mxu0 0.0
      %1408 = vmatpush1.msra.mxu0 0.0
      %1409 = vmatprep.subr.mxu0 0.0
      %1410 = vmatpush1.msra.mxu0 0.0
      %1411 = vmatprep.subr.mxu0 0.0
      %1412 = vmatpush1.msra.mxu0 0.0
      %1413 = vmatprep.subr.mxu0 0.0
      %1414 = vmatpush1.msra.mxu0 0.0
      %1415 = vmatprep.subr.mxu0 0.0
      %1416 = vmatpush1.msra.mxu0 0.0
      %1417 = vmatprep.subr.mxu0 0.0
      %1418 = vmatpush1.msra.mxu0 0.0
      %1419 = vmatprep.subr.mxu0 0.0
      %1420 = vmatpush1.msra.mxu0 0.0
      %1421 = vmatprep.subr.mxu0 0.0
      %1422 = vmatpush1.msra.mxu0 %v1310
      %1423 = vmatprep.subr.mxu0 0.0
      %1424 = vmatpush2.msra.mxu0 0.0
      %1425 = vmatprep.subr.mxu0 0.0
      %1426 = vmatpush2.msra.mxu0 0.0
      %1427 = vmatprep.subr.mxu0 0.0
      %1428 = vmatpush2.msra.mxu0 0.0
      %1429 = vmatprep.subr.mxu0 0.0
      %1430 = vmatpush2.msra.mxu0 0.0
      %1431 = vmatprep.subr.mxu0 0.0
      %1432 = vmatpush2.msra.mxu0 0.0
      %1433 = vmatprep.subr.mxu0 0.0
      %1434 = vmatpush2.msra.mxu0 0.0
      %1435 = vmatprep.subr.mxu0 0.0
      %1436 = vmatpush2.msra.mxu0 0.0
      %1437 = vmatprep.subr.mxu0 0.0
      %1438 = vmatpush2.msra.mxu0 0.0
      %1439 = vmatprep.subr.mxu0 0.0
      %1440 = vmatpush2.msra.mxu0 0.0
      %1441 = vmatprep.subr.mxu0 0.0
      %1442 = vmatpush2.msra.mxu0 0.0
      %1443 = vmatprep.subr.mxu0 0.0
      %1444 = vmatpush2.msra.mxu0 0.0
      %1445 = vmatprep.subr.mxu0 0.0
      %1446 = vmatpush2.msra.mxu0 0.0
      %1447 = vmatprep.subr.mxu0 0.0
      %1448 = vmatpush2.msra.mxu0 0.0
      %1449 = vmatprep.subr.mxu0 0.0
      %1450 = vmatpush2.msra.mxu0 0.0
      %1451 = vmatprep.subr.mxu0 0.0
      %1452 = vmatpush2.msra.mxu0 0.0
      %1453 = vmatprep.subr.mxu0 0.0
      %1454 = vmatpush2.msra.mxu0 0.0
      %1455 = vmatprep.mubr.f32.mxu0 0.0
      %1456 = vmatmul.mubr.f32.gmra.mxu0 %v1318
      %v1457 = vpop.f32.mrf.mxu0
      %v1458 = vadd.f32 0.0, %v1457
      %v1459 = vpop.f32.mrf.mxu0
      %1460 = vdwg.mxu0
      %v1461 = vadd.f32 %v1300, %v1387
      %v1462 = vadd.f32 %v1301, %v1389
      %v1463 = vadd.f32 %v1302, %v1458
      %s1464 = scalar_lea.vmem %s1, 64
      %v1465 = vld [vmem:[%s1464] sm:$0xff]
      %1466 = vrot.lane.b32.xlu0 %v188, 90
      %v1467 = vpop.permute.xlu0 %1466
      %1468 = vrot.lane.b32.xlu0 %v189, 90
      %v1469 = vpop.permute.xlu0 %1468
      %1470 = vrot.lane.b32.xlu0 %v190, 90
      %v1471 = vpop.permute.xlu0 %1470
      %vm1472 = vcmask 736256
      %v1473 = vsel %vm1472, %v1467, %v1469
      %v1474 = vsel %vm1472, %v1469, %v1471
      %v1479 = vsel %vm209, %v1465, 0
      %1481 = vmatprep.subr.mxu0 0.0
      %1482 = vmatpush1.msra.mxu0 0.0
      %1483 = vmatprep.subr.mxu0 0.0
      %1484 = vmatpush1.msra.mxu0 0.0
      %1485 = vmatprep.subr.mxu0 0.0
      %1486 = vmatpush1.msra.mxu0 0.0
      %1487 = vmatprep.subr.mxu0 0.0
      %1488 = vmatpush1.msra.mxu0 0.0
      %1489 = vmatprep.subr.mxu0 0.0
      %1490 = vmatpush1.msra.mxu0 0.0
      %1491 = vmatprep.subr.mxu0 0.0
      %1492 = vmatpush1.msra.mxu0 0.0
      %1493 = vmatprep.subr.mxu0 0.0
      %1494 = vmatpush1.msra.mxu0 0.0
      %1495 = vmatprep.subr.mxu0 0.0
      %1496 = vmatpush1.msra.mxu0 0.0
      %1497 = vmatprep.subr.mxu0 0.0
      %1498 = vmatpush1.msra.mxu0 0.0
      %1499 = vmatprep.subr.mxu0 0.0
      %1500 = vmatpush1.msra.mxu0 0.0
      %1501 = vmatprep.subr.mxu0 0.0
      %1502 = vmatpush1.msra.mxu0 0.0
      %1503 = vmatprep.subr.mxu0 0.0
      %1504 = vmatpush1.msra.mxu0 0.0
      %1505 = vmatprep.subr.mxu0 0.0
      %1506 = vmatpush1.msra.mxu0 0.0
      %1507 = vmatprep.subr.mxu0 0.0
      %1508 = vmatpush1.msra.mxu0 0.0
      %1509 = vmatprep.subr.mxu0 0.0
      %1510 = vmatpush1.msra.mxu0 0.0
      %1511 = vmatprep.subr.mxu0 %v1474
      %1512 = vmatpush1.msra.mxu0 %v1473
      %1513 = vmatprep.subr.mxu0 0.0
      %1514 = vmatpush2.msra.mxu0 0.0
      %1515 = vmatprep.subr.mxu0 0.0
      %1516 = vmatpush2.msra.mxu0 0.0
      %1517 = vmatprep.subr.mxu0 0.0
      %1518 = vmatpush2.msra.mxu0 0.0
      %1519 = vmatprep.subr.mxu0 0.0
      %1520 = vmatpush2.msra.mxu0 0.0
      %1521 = vmatprep.subr.mxu0 0.0
      %1522 = vmatpush2.msra.mxu0 0.0
      %1523 = vmatprep.subr.mxu0 0.0
      %1524 = vmatpush2.msra.mxu0 0.0
      %1525 = vmatprep.subr.mxu0 0.0
      %1526 = vmatpush2.msra.mxu0 0.0
      %1527 = vmatprep.subr.mxu0 0.0
      %1528 = vmatpush2.msra.mxu0 0.0
      %1529 = vmatprep.subr.mxu0 0.0
      %1530 = vmatpush2.msra.mxu0 0.0
      %1531 = vmatprep.subr.mxu0 0.0
      %1532 = vmatpush2.msra.mxu0 0.0
      %1533 = vmatprep.subr.mxu0 0.0
      %1534 = vmatpush2.msra.mxu0 0.0
      %1535 = vmatprep.subr.mxu0 0.0
      %1536 = vmatpush2.msra.mxu0 0.0
      %1537 = vmatprep.subr.mxu0 0.0
      %1538 = vmatpush2.msra.mxu0 0.0
      %1539 = vmatprep.subr.mxu0 0.0
      %1540 = vmatpush2.msra.mxu0 0.0
      %1541 = vmatprep.subr.mxu0 0.0
      %1542 = vmatpush2.msra.mxu0 0.0
      %1543 = vmatprep.subr.mxu0 0.0
      %1544 = vmatpush2.msra.mxu0 0.0
      %1545 = vmatprep.mubr.f32.mxu0 0.0
      %1546 = vmatmul.mubr.f32.gmra.mxu0 %v1479
      %v1547 = vpop.f32.mrf.mxu0
      %v1548 = vadd.f32 0.0, %v1547
      %v1549 = vpop.f32.mrf.mxu0
      %v1550 = vadd.f32 0.0, %v1549
      %1551 = vdwg.mxu0
      %1552 = vmatprep.subr.mxu0 0.0
      %1553 = vmatpush1.msra.mxu0 0.0
      %1554 = vmatprep.subr.mxu0 0.0
      %1555 = vmatpush1.msra.mxu0 0.0
      %1556 = vmatprep.subr.mxu0 0.0
      %1557 = vmatpush1.msra.mxu0 0.0
      %1558 = vmatprep.subr.mxu0 0.0
      %1559 = vmatpush1.msra.mxu0 0.0
      %1560 = vmatprep.subr.mxu0 0.0
      %1561 = vmatpush1.msra.mxu0 0.0
      %1562 = vmatprep.subr.mxu0 0.0
      %1563 = vmatpush1.msra.mxu0 0.0
      %1564 = vmatprep.subr.mxu0 0.0
      %1565 = vmatpush1.msra.mxu0 0.0
      %1566 = vmatprep.subr.mxu0 0.0
      %1567 = vmatpush1.msra.mxu0 0.0
      %1568 = vmatprep.subr.mxu0 0.0
      %1569 = vmatpush1.msra.mxu0 0.0
      %1570 = vmatprep.subr.mxu0 0.0
      %1571 = vmatpush1.msra.mxu0 0.0
      %1572 = vmatprep.subr.mxu0 0.0
      %1573 = vmatpush1.msra.mxu0 0.0
      %1574 = vmatprep.subr.mxu0 0.0
      %1575 = vmatpush1.msra.mxu0 0.0
      %1576 = vmatprep.subr.mxu0 0.0
      %1577 = vmatpush1.msra.mxu0 0.0
      %1578 = vmatprep.subr.mxu0 0.0
      %1579 = vmatpush1.msra.mxu0 0.0
      %1580 = vmatprep.subr.mxu0 0.0
      %1581 = vmatpush1.msra.mxu0 0.0
      %1582 = vmatprep.subr.mxu0 0.0
      %1583 = vmatpush1.msra.mxu0 %v1471
      %1584 = vmatprep.subr.mxu0 0.0
      %1585 = vmatpush2.msra.mxu0 0.0
      %1586 = vmatprep.subr.mxu0 0.0
      %1587 = vmatpush2.msra.mxu0 0.0
      %1588 = vmatprep.subr.mxu0 0.0
      %1589 = vmatpush2.msra.mxu0 0.0
      %1590 = vmatprep.subr.mxu0 0.0
      %1591 = vmatpush2.msra.mxu0 0.0
      %1592 = vmatprep.subr.mxu0 0.0
      %1593 = vmatpush2.msra.mxu0 0.0
      %1594 = vmatprep.subr.mxu0 0.0
      %1595 = vmatpush2.msra.mxu0 0.0
      %1596 = vmatprep.subr.mxu0 0.0
      %1597 = vmatpush2.msra.mxu0 0.0
      %1598 = vmatprep.subr.mxu0 0.0
      %1599 = vmatpush2.msra.mxu0 0.0
      %1600 = vmatprep.subr.mxu0 0.0
      %1601 = vmatpush2.msra.mxu0 0.0
      %1602 = vmatprep.subr.mxu0 0.0
      %1603 = vmatpush2.msra.mxu0 0.0
      %1604 = vmatprep.subr.mxu0 0.0
      %1605 = vmatpush2.msra.mxu0 0.0
      %1606 = vmatprep.subr.mxu0 0.0
      %1607 = vmatpush2.msra.mxu0 0.0
      %1608 = vmatprep.subr.mxu0 0.0
      %1609 = vmatpush2.msra.mxu0 0.0
      %1610 = vmatprep.subr.mxu0 0.0
      %1611 = vmatpush2.msra.mxu0 0.0
      %1612 = vmatprep.subr.mxu0 0.0
      %1613 = vmatpush2.msra.mxu0 0.0
      %1614 = vmatprep.subr.mxu0 0.0
      %1615 = vmatpush2.msra.mxu0 0.0
      %1616 = vmatprep.mubr.f32.mxu0 0.0
      %1617 = vmatmul.mubr.f32.gmra.mxu0 %v1479
      %v1618 = vpop.f32.mrf.mxu0
      %v1619 = vadd.f32 0.0, %v1618
      %v1620 = vpop.f32.mrf.mxu0
      %1621 = vdwg.mxu0
      %v1622 = vadd.f32 %v1461, %v1548
      %v1623 = vadd.f32 %v1462, %v1550
      %v1624 = vadd.f32 %v1463, %v1619
      %v1625 = vld [vmem:[%s2] sm:$0x7]
      %v1627 = vlaneseq
      %v1628 = vshrl.u32 %v1627, 7
      %v1629 = vsub.s32 0, %v1628
      %v1630 = vrot.slane %v1625, %v1629
      %v1631 = vlaneseq
      %v1632 = vshrl.u32 %v1631, 7
      %v1633 = vsub.s32 1, %v1632
      %v1634 = vrot.slane %v1625, %v1633
      %v1635 = vlaneseq
      %v1636 = vshrl.u32 %v1635, 7
      %v1637 = vsub.s32 2, %v1636
      %v1638 = vrot.slane %v1625, %v1637
      %v1642 = vmul.f32 %v1622, %v1630
      %v1643 = vmul.f32 %v1623, %v1634
      %v1644 = vmul.f32 %v1624, %v1638
      %v1645 = vld [vmem:[%s3] sm:$0xff]
      %v1646 = vadd.f32 %v1642, %v1643
      %vm1647 = vcmask 261120
      %v1648 = vsel %vm1647, %v1644, 0.0
      %v1649 = vadd.f32 %v1646, %v1648
      %1650 = vadd.xlane.f32.xlu0 %v1649
      %v1651 = vpop.xlane.xlu0 %1650
      %v1652 = vadd.f32 %v1645, %v1651
      %vm1653 = vcmask 7168
      %1654 = vst.msk [vmem:[%s3] sm:$0xff] %vm1653, %v1652
      %v1655 = vld [vmem:[%s4] sm:$0xff]
      %v1656 = vmul.f32 %v1642, %v1622
      %v1657 = vmul.f32 %v1643, %v1623
      %v1658 = vmul.f32 %v1644, %v1624
      %v1659 = vadd.f32 %v1656, %v1657
      %v1660 = vsel %vm1647, %v1658, 0.0
      %v1661 = vadd.f32 %v1659, %v1660
      %1662 = vadd.xlane.f32.xlu0 %v1661
      %v1663 = vpop.xlane.xlu0 %1662
      %v1664 = vadd.f32 %v1655, %v1663
      %1665 = vst.msk [vmem:[%s4] sm:$0xff] %vm1653, %v1664
      // Predicated region
      $region37: #{conv_block.6} parent=31 // pred_check
        %p1666 = pneg %p97
      $region38: #{conv_block.6} parent=31 // pred_check_branch
        %1668 = sbr.rel (%p1666) target = $region40
      $region39: #{conv_block.6} parent=31 // pred_region
        _
      $region40: #{conv_block.6} parent=31 // pred_fallthru
        _
      // Predicated region
      $region41: #{conv_block.6} parent=31 // pred_check
        %p1669 = pneg %p118
      $region42: #{conv_block.6} parent=31 // pred_check_branch
        %1671 = sbr.rel (%p1669) target = $region44
      $region43: #{conv_block.6} parent=31 // pred_region
        _
      $region44: #{conv_block.6} parent=31 // pred_fallthru
        _
      // Predicated region
      $region45: #{conv_block.6} parent=31 // pred_check
        %p1672 = pneg %p97
      $region46: #{conv_block.6} parent=31 // pred_check_branch
        %1674 = sbr.rel (%p1672) target = $region48
      $region47: #{conv_block.6} parent=31 // pred_region
        _
      $region48: #{conv_block.6} parent=31 // pred_fallthru
        _
      // Predicated region
      $region49: #{conv_block.6} parent=31 // pred_check
        %p1675 = pneg %p118
      $region50: #{conv_block.6} parent=31 // pred_check_branch
        %1677 = sbr.rel (%p1675) target = $region52
      $region51: #{conv_block.6} parent=31 // pred_region
        _
      $region52: #{conv_block.6} parent=31 // pred_fallthru
        _
    $region32: #{conv_block.6} parent=5 // pred_fallthru
      _
    %p1678 = scmp.le.s32.totalorder 2, %s11
    // Predicated region
    $region53: #{conv_block.6} parent=5 // pred_check
      %p1679 = pneg %p1678
    $region54: #{conv_block.6} parent=5 // pred_check_branch
      %1681 = sbr.rel (%p1679) target = $region56
    $region55: #{conv_block.6} parent=5 // pred_region
      %s1682 = ssub.s32 %s11, 2
    $region56: #{conv_block.6} parent=5 // pred_fallthru
      _
  $region6: #{conv_block.6} parent=0 // loop_footer
    %s15 = sadd.s32 1, %s11
  $region7: #{conv_block.6} parent=0 // loop_footer_branch
    %10 = sbr.rel target = $region3
  $region8: #{conv_block.6} parent=0 // loop_exit
    _

</llo_original>
